<compile_context>
chip_gen: v7x
topology: tpu7x:2x2x1
jax: 0.10.0
libtpu: 0.0.40
codegen_flags: <defaults>
</compile_context>

<pallas_src>
import jax
import jax.numpy as jnp
from jax.experimental import pallas as pl
from jax.experimental.pallas import tpu as pltpu

# ---- shapes hard-coded by the PyTorch module --------------------------------
B = 2                  # batch (small example)
C_IN = 2048            # resnet50 backbone output channels
HW = 49                # 7 * 7 spatial positions
HW_PAD = 64            # 49 zero-padded to a sublane-aligned size
E_OUT = 768            # conv1 output channels
S_OUT = 512            # linear1 output features


# ----------------------------- Pallas kernel ---------------------------------
def resnet_head_kernel(x_ref, wc_ref, bc_ref, w1_ref, b1_ref, out_ref):
    """1x1 conv (as matmul) + ReLU + Linear(49->512) + transpose, per batch.

    x_ref : (1, 64, 2048) bf16  backbone features, spatial-major, padded 49->64
    wc_ref: (2048, 768)   bf16  conv1 weight, pre-transposed (C_in, C_out)
    bc_ref: (1, 768)      f32   conv1 bias
    w1_ref: (512, 64)     bf16  linear1 weight, columns zero-padded 49->64
    b1_ref: (512, 1)      f32   linear1 bias
    out   : (1, 512, 768) f32
    """
    x = x_ref[0]                                                       # (64, 2048)
    z = jnp.dot(x, wc_ref[...], preferred_element_type=jnp.float32)   # (64, 768)
    z = jnp.maximum(z + bc_ref[...], 0.0).astype(jnp.bfloat16)        # bias + ReLU
    # (512, 64) @ (64, 768): pad rows of z are killed by zero weight columns.
    out = jnp.dot(w1_ref[...], z, preferred_element_type=jnp.float32)  # (512, 768)
    out_ref[0] = out + b1_ref[...]


# ----------------------------- wrapper ----------------------------------------
@jax.jit
def resnet_feature_extractor_head(backbone_feat, conv1_w, conv1_b,
                                  linear1_w, linear1_b):
    """backbone_feat: (B, 2048, 7, 7) -> (B, 512, 768).

    conv1_w: (768, 2048, 1, 1), conv1_b: (768,)
    linear1_w: (512, 49),       linear1_b: (512,)
    """
    b = backbone_feat.shape[0]
    # layout plumbing (XLA side): NCHW -> (B, HW, C), pad 49->64, cast to bf16
    x = backbone_feat.reshape(b, C_IN, HW).transpose(0, 2, 1)
    x = jnp.pad(x, ((0, 0), (0, HW_PAD - HW), (0, 0))).astype(jnp.bfloat16)
    wc = conv1_w.reshape(E_OUT, C_IN).T.astype(jnp.bfloat16)           # (2048, 768)
    bc = conv1_b.reshape(1, E_OUT)
    w1 = jnp.pad(linear1_w, ((0, 0), (0, HW_PAD - HW))).astype(jnp.bfloat16)
    b1 = linear1_b.reshape(S_OUT, 1)

    return pl.pallas_call(
        resnet_head_kernel,
        out_shape=jax.ShapeDtypeStruct((b, S_OUT, E_OUT), jnp.float32),
        grid=(b,),
        in_specs=[
            pl.BlockSpec((1, HW_PAD, C_IN), lambda i: (i, 0, 0)),
            pl.BlockSpec((C_IN, E_OUT), lambda i: (0, 0)),
            pl.BlockSpec((1, E_OUT), lambda i: (0, 0)),
            pl.BlockSpec((S_OUT, HW_PAD), lambda i: (0, 0)),
            pl.BlockSpec((S_OUT, 1), lambda i: (0, 0)),
        ],
        out_specs=pl.BlockSpec((1, S_OUT, E_OUT), lambda i: (i, 0, 0)),
        compiler_params=pltpu.CompilerParams(
            dimension_semantics=("parallel",),   # v7x: 2 TCs split the batch
            vmem_limit_bytes=32 << 20),          # ~10 MB working set w/ bf16
    )(x, wc, bc, w1, b1)


def reference(backbone_feat, conv1_w, conv1_b, linear1_w, linear1_b):
    """Pure-JAX f32 reference of the PyTorch forward (backbone output onwards)."""
    b = backbone_feat.shape[0]
    w2d = conv1_w.reshape(E_OUT, C_IN)
    z = jnp.einsum('bchw,ec->behw', backbone_feat, w2d)
    z = jnp.maximum(z + conv1_b[None, :, None, None], 0.0)
    z = z.reshape(b, E_OUT, HW)                                 # b e (w h)
    y = jnp.einsum('bes,os->beo', z, linear1_w) + linear1_b     # linear1
    return y.transpose(0, 2, 1)                                 # b e s -> b s e


# ----------------------------- main -------------------------------------------
if __name__ == "__main__":
    key = jax.random.PRNGKey(0)
    k = jax.random.split(key, 5)

    # TODO(synk): stands in for resnet50(image); backbone not re-implemented.
    backbone_feat = jax.random.normal(k[0], (B, C_IN, 7, 7), jnp.float32)
    conv1_w = 0.02 * jax.random.normal(k[1], (E_OUT, C_IN, 1, 1), jnp.float32)
    conv1_b = 0.02 * jax.random.normal(k[2], (E_OUT,), jnp.float32)
    linear1_w = 0.02 * jax.random.normal(k[3], (S_OUT, HW), jnp.float32)
    linear1_b = 0.02 * jax.random.normal(k[4], (S_OUT,), jnp.float32)

    out = resnet_feature_extractor_head(backbone_feat, conv1_w, conv1_b,
                                        linear1_w, linear1_b)
    out = jax.block_until_ready(out)
    assert out.shape == (B, S_OUT, E_OUT)

    ref = reference(backbone_feat, conv1_w, conv1_b, linear1_w, linear1_b)
    assert bool(jnp.allclose(out, ref, atol=3e-2, rtol=3e-2)), "kernel != reference"

    print("KERNEL_OK")
</pallas_src>

<mosaic_0001>
module attributes {stable_mosaic.version = 11 : i64} {
  func.func @resnet_head_kernel(%arg0: i32, %arg1: memref<1x64x2048xbf16, #tpu.memory_space<vmem>>, %arg2: memref<2048x768xbf16, #tpu.memory_space<vmem>>, %arg3: memref<1x768xf32, #tpu.memory_space<vmem>>, %arg4: memref<512x64xbf16, #tpu.memory_space<vmem>>, %arg5: memref<512x1xf32, #tpu.memory_space<vmem>>, %arg6: memref<1x512x768xf32, #tpu.memory_space<vmem>>) attributes {dimension_semantics = [#tpu.dimension_semantics<parallel>], iteration_bounds = array<i64: 2>, scalar_prefetch = 0 : i64, scratch_operands = 0 : i64, tpu.core_type = #tpu.core_type<tc>, window_params = [{transform_indices = @transform_0, window_bounds = array<i64: 1, 64, 2048>}, {pipeline_mode = #tpu.pipeline_mode<synchronous>, transform_indices = @transform_1, window_bounds = array<i64: 2048, 768>}, {pipeline_mode = #tpu.pipeline_mode<synchronous>, transform_indices = @transform_2, window_bounds = array<i64: 1, 768>}, {pipeline_mode = #tpu.pipeline_mode<synchronous>, transform_indices = @transform_3, window_bounds = array<i64: 512, 64>}, {pipeline_mode = #tpu.pipeline_mode<synchronous>, transform_indices = @transform_4, window_bounds = array<i64: 512, 1>}, {transform_indices = @transform_5, window_bounds = array<i64: 1, 512, 768>}]} {
    %c0 = arith.constant 0 : index
    %c0_0 = arith.constant 0 : index
    %c0_1 = arith.constant 0 : index
    %0 = vector.load %arg1[%c0, %c0_0, %c0_1] : memref<1x64x2048xbf16, #tpu.memory_space<vmem>>, vector<1x64x2048xbf16>
    %1 = vector.shape_cast %0 : vector<1x64x2048xbf16> to vector<64x2048xbf16>
    %c0_2 = arith.constant 0 : index
    %c0_3 = arith.constant 0 : index
    %2 = vector.load %arg2[%c0_2, %c0_3] : memref<2048x768xbf16, #tpu.memory_space<vmem>>, vector<2048x768xbf16>
    %cst = arith.constant dense<0.000000e+00> : vector<64x768xf32>
    %3 = tpu.matmul %1, %2, %cst {dimension_numbers = #tpu.dot_dimension_numbers<[1], [0], [0], [1], [0, 0, 1, 1], [], []>} : vector<64x2048xbf16>, vector<2048x768xbf16>, vector<64x768xf32> -> vector<64x768xf32>
    %c0_4 = arith.constant 0 : index
    %c0_5 = arith.constant 0 : index
    %4 = vector.load %arg3[%c0_4, %c0_5] : memref<1x768xf32, #tpu.memory_space<vmem>>, vector<1x768xf32>
    %5 = vector.broadcast %4 : vector<1x768xf32> to vector<64x768xf32>
    %6 = arith.addf %3, %5 : vector<64x768xf32>
    %cst_6 = arith.constant 0.000000e+00 : f32
    %7 = vector.broadcast %cst_6 : f32 to vector<64x768xf32>
    %8 = arith.maximumf %6, %7 : vector<64x768xf32>
    %9 = arith.truncf %8 : vector<64x768xf32> to vector<64x768xbf16>
    %c0_7 = arith.constant 0 : index
    %c0_8 = arith.constant 0 : index
    %10 = vector.load %arg4[%c0_7, %c0_8] : memref<512x64xbf16, #tpu.memory_space<vmem>>, vector<512x64xbf16>
    %cst_9 = arith.constant dense<0.000000e+00> : vector<512x768xf32>
    %11 = tpu.matmul %10, %9, %cst_9 {dimension_numbers = #tpu.dot_dimension_numbers<[1], [0], [0], [1], [0, 0, 1, 1], [], []>} : vector<512x64xbf16>, vector<64x768xbf16>, vector<512x768xf32> -> vector<512x768xf32>
    %c0_10 = arith.constant 0 : index
    %c0_11 = arith.constant 0 : index
    %12 = vector.load %arg5[%c0_10, %c0_11] : memref<512x1xf32, #tpu.memory_space<vmem>>, vector<512x1xf32>
    %13 = vector.broadcast %12 : vector<512x1xf32> to vector<512x768xf32>
    %14 = arith.addf %11, %13 : vector<512x768xf32>
    %c0_12 = arith.constant 0 : index
    %c0_13 = arith.constant 0 : index
    %c0_14 = arith.constant 0 : index
    %15 = vector.load %arg6[%c0_12, %c0_13, %c0_14] : memref<1x512x768xf32, #tpu.memory_space<vmem>>, vector<1x512x768xf32>
    %16 = vector.shape_cast %15 : vector<1x512x768xf32> to vector<512x768xf32>
    %17 = vector.shape_cast %14 : vector<512x768xf32> to vector<1x512x768xf32>
    tpu.vector_store %arg6[%c0_12, %c0_13, %c0_14], %17 {strides = array<i32>} : memref<1x512x768xf32, #tpu.memory_space<vmem>>, vector<1x512x768xf32>,
    return
  }
  func.func @transform_0(%arg0: i32) -> (i32, i32, i32) {
    %c0_i32 = arith.constant 0 : i32
    %c0_i32_0 = arith.constant 0 : i32
    %c0_i32_1 = arith.constant 0 : i32
    return %arg0, %c0_i32, %c0_i32_0 : i32, i32, i32
  }
  func.func @transform_1(%arg0: i32) -> (i32, i32) {
    %c0_i32 = arith.constant 0 : i32
    %c0_i32_0 = arith.constant 0 : i32
    %c0_i32_1 = arith.constant 0 : i32
    return %c0_i32, %c0_i32_0 : i32, i32
  }
  func.func @transform_2(%arg0: i32) -> (i32, i32) {
    %c0_i32 = arith.constant 0 : i32
    %c0_i32_0 = arith.constant 0 : i32
    %c0_i32_1 = arith.constant 0 : i32
    return %c0_i32, %c0_i32_0 : i32, i32
  }
  func.func @transform_3(%arg0: i32) -> (i32, i32) {
    %c0_i32 = arith.constant 0 : i32
    %c0_i32_0 = arith.constant 0 : i32
    %c0_i32_1 = arith.constant 0 : i32
    return %c0_i32, %c0_i32_0 : i32, i32
  }
  func.func @transform_4(%arg0: i32) -> (i32, i32) {
    %c0_i32 = arith.constant 0 : i32
    %c0_i32_0 = arith.constant 0 : i32
    %c0_i32_1 = arith.constant 0 : i32
    return %c0_i32, %c0_i32_0 : i32, i32
  }
  func.func @transform_5(%arg0: i32) -> (i32, i32, i32) {
    %c0_i32 = arith.constant 0 : i32
    %c0_i32_0 = arith.constant 0 : i32
    %c0_i32_1 = arith.constant 0 : i32
    return %arg0, %c0_i32, %c0_i32_0 : i32, i32, i32
  }
}

</mosaic_0001>

<llo_original>
// kernel: resnet_feature_extractor_head.1
$region0: #{resnet_feature_extractor_head.1}
  #allocation0 [shape = 'u32[]', space=smem, size = 0x4, offset = 0x4, fixed_abs, tag = 'smem constant byte address 0x4 - core index']
  #allocation1 [shape = 'u32[144,128]{1,0:T(1,128)}', space=vmem, size = 0x12000, scoped, tag = 'internal scratch']
  %s0 = inlined_call_operand.vmem [shape: bf16[2,64,2048], index: 0, kind: input, shape index: {}]
  %s1 = inlined_call_operand.vmem [shape: bf16[2048,768], index: 1, kind: input, shape index: {}]
  %s2 = inlined_call_operand.vmem [shape: f32[1,768], index: 2, kind: input, shape index: {}]
  %s3 = inlined_call_operand.vmem [shape: bf16[512,64], index: 3, kind: input, shape index: {}]
  %s4 = inlined_call_operand.vmem [shape: f32[512,1], index: 4, kind: input, shape index: {}]
  %s5 = inlined_call_operand.hbm [shape: f32[2,512,768], index: 5, kind: output, shape index: {}]
  %s6 = sld [smem:[#allocation0]]
  $region53: #{resnet_feature_extractor_head.1} parent=0
    _
  %s8 = ssub.s32 1, %s6
  %s9 = scalar_select 0, %s8, %s6
  $region1: #{resnet_feature_extractor_head.1} parent=0
    #allocation2 [shape = 'u8[3145728]{0}', space=vmem, size = 0x300000, scoped, tag = 'output window, operand 0']
    #allocation3 [shape = 's32[2]{0}', space=sflag, size = 0x8, scoped, tag = 'scoped memory for resnet_feature_extractor_head.1']
    %10 = vsyncpa [#allocation3], 0
    %s11 = scalar_lea.sflag [#allocation3], 1
    %12 = vsyncpa %s11, 0
    loop: start=0, step=1, limit=4
    $region2: #{resnet_feature_extractor_head.1} parent=1 // loop_pre_header
      _
    $region3: #{resnet_feature_extractor_head.1} parent=1 // loop_header
      %s14 = sphi 0, %s18
      %p15 = scmp.ge.s32.totalorder %s14, 4
      %s24 = sphi 0, %s26
      %s27 = sphi 0, %s24
      %s28 = sphi 0, %s27
      %s44 = sphi 0, %s28
      %s48 = sphi 0, %s48
      %s50 = sphi 0, %s48
      %s51 = sphi 0, %s50
      %s65 = sphi 0, %s51
      %s69 = sphi 0, %s69
      %s71 = sphi 0, %s69
      %s72 = sphi 0, %s71
      %s86 = sphi 0, %s72
      %s90 = sphi 0, %s90
      %s92 = sphi 0, %s90
      %s93 = sphi 0, %s92
      %s107 = sphi 0, %s93
      %s111 = sphi 0, %s111
      %s113 = sphi 0, %s111
      %s114 = sphi 0, %s113
      %s128 = sphi 0, %s114
      %s134 = sphi 0, %s136
      %s137 = sphi 0, %s134
      %s138 = sphi 0, %s137
      %s154 = sphi 0, %s138
    $region4: #{resnet_feature_extractor_head.1} parent=1 // loop_header_branch
      %17 = sbr.rel (%p15) target = $region8
    $region5: #{resnet_feature_extractor_head.1} parent=1 // loop_body
      %s19 = ssub.s32 %s14, 1
      %s20 = ssub.s32 %s14, 2
      %s21 = sadd.s32 %s14, 1
      %s22 = ssub.s32 %s14, %s21
      %p23 = scmp.eq.s32.totalorder %s22, 0
      %s25 = sadd.s32 %s24, 1
      %s26 = scalar_select %p23, %s24, %s25
      %p29 = pneg %p23
      %p30 = scmp.eq.s32.totalorder %s14, 1
      %p31 = por %p29, %p30
      %p32 = scmp.ne.s32.totalorder %s24, %s27
      %p33 = scmp.eq.s32.totalorder %s14, 0
      %p34 = por %p32, %p33
      %p35 = scmp.ne.s32.totalorder %s24, %s27
      %p36 = scmp.eq.s32.totalorder %s19, 1
      %p37 = por %p35, %p36
      %p38 = scmp.ne.s32.totalorder %s27, %s28
      %p39 = scmp.eq.s32.totalorder %s19, 0
      %p40 = por %p38, %p39
      %p41 = scmp.ne.s32.totalorder %s27, %s28
      %p42 = scmp.eq.s32.totalorder %s20, 1
      %p43 = por %p41, %p42
      %p45 = scmp.ne.s32.totalorder %s28, %s44
      %p46 = scmp.eq.s32.totalorder %s20, 0
      %p47 = por %p45, %p46
      %s49 = sadd.s32 %s48, 1
      %p52 = scmp.eq.s32.totalorder %s14, 1
      %p53 = scmp.ne.s32.totalorder %s48, %s50
      %p54 = scmp.eq.s32.totalorder %s14, 0
      %p55 = por %p53, %p54
      %p56 = scmp.ne.s32.totalorder %s48, %s50
      %p57 = scmp.eq.s32.totalorder %s19, 1
      %p58 = por %p56, %p57
      %p59 = scmp.ne.s32.totalorder %s50, %s51
      %p60 = scmp.eq.s32.totalorder %s19, 0
      %p61 = por %p59, %p60
      %p62 = scmp.ne.s32.totalorder %s50, %s51
      %p63 = scmp.eq.s32.totalorder %s20, 1
      %p64 = por %p62, %p63
      %p66 = scmp.ne.s32.totalorder %s51, %s65
      %p67 = scmp.eq.s32.totalorder %s20, 0
      %p68 = por %p66, %p67
      %s70 = sadd.s32 %s69, 1
      %p73 = scmp.eq.s32.totalorder %s14, 1
      %p74 = scmp.ne.s32.totalorder %s69, %s71
      %p75 = scmp.eq.s32.totalorder %s14, 0
      %p76 = por %p74, %p75
      %p77 = scmp.ne.s32.totalorder %s69, %s71
      %p78 = scmp.eq.s32.totalorder %s19, 1
      %p79 = por %p77, %p78
      %p80 = scmp.ne.s32.totalorder %s71, %s72
      %p81 = scmp.eq.s32.totalorder %s19, 0
      %p82 = por %p80, %p81
      %p83 = scmp.ne.s32.totalorder %s71, %s72
      %p84 = scmp.eq.s32.totalorder %s20, 1
      %p85 = por %p83, %p84
      %p87 = scmp.ne.s32.totalorder %s72, %s86
      %p88 = scmp.eq.s32.totalorder %s20, 0
      %p89 = por %p87, %p88
      %s91 = sadd.s32 %s90, 1
      %p94 = scmp.eq.s32.totalorder %s14, 1
      %p95 = scmp.ne.s32.totalorder %s90, %s92
      %p96 = scmp.eq.s32.totalorder %s14, 0
      %p97 = por %p95, %p96
      %p98 = scmp.ne.s32.totalorder %s90, %s92
      %p99 = scmp.eq.s32.totalorder %s19, 1
      %p100 = por %p98, %p99
      %p101 = scmp.ne.s32.totalorder %s92, %s93
      %p102 = scmp.eq.s32.totalorder %s19, 0
      %p103 = por %p101, %p102
      %p104 = scmp.ne.s32.totalorder %s92, %s93
      %p105 = scmp.eq.s32.totalorder %s20, 1
      %p106 = por %p104, %p105
      %p108 = scmp.ne.s32.totalorder %s93, %s107
      %p109 = scmp.eq.s32.totalorder %s20, 0
      %p110 = por %p108, %p109
      %s112 = sadd.s32 %s111, 1
      %p115 = scmp.eq.s32.totalorder %s14, 1
      %p116 = scmp.ne.s32.totalorder %s111, %s113
      %p117 = scmp.eq.s32.totalorder %s14, 0
      %p118 = por %p116, %p117
      %p119 = scmp.ne.s32.totalorder %s111, %s113
      %p120 = scmp.eq.s32.totalorder %s19, 1
      %p121 = por %p119, %p120
      %p122 = scmp.ne.s32.totalorder %s113, %s114
      %p123 = scmp.eq.s32.totalorder %s19, 0
      %p124 = por %p122, %p123
      %p125 = scmp.ne.s32.totalorder %s113, %s114
      %p126 = scmp.eq.s32.totalorder %s20, 1
      %p127 = por %p125, %p126
      %p129 = scmp.ne.s32.totalorder %s114, %s128
      %p130 = scmp.eq.s32.totalorder %s20, 0
      %p131 = por %p129, %p130
      %s132 = ssub.s32 %s14, %s21
      %p133 = scmp.eq.s32.totalorder %s132, 0
      %s135 = sadd.s32 %s134, 1
      %s136 = scalar_select %p133, %s134, %s135
      %p139 = pneg %p133
      %p140 = scmp.eq.s32.totalorder %s14, 1
      %p141 = por %p139, %p140
      %p142 = scmp.ne.s32.totalorder %s134, %s137
      %p143 = scmp.eq.s32.totalorder %s14, 0
      %p144 = por %p142, %p143
      %p145 = scmp.ne.s32.totalorder %s134, %s137
      %p146 = scmp.eq.s32.totalorder %s19, 1
      %p147 = por %p145, %p146
      %p148 = scmp.ne.s32.totalorder %s137, %s138
      %p149 = scmp.eq.s32.totalorder %s19, 0
      %p150 = por %p148, %p149
      %p151 = scmp.ne.s32.totalorder %s137, %s138
      %p152 = scmp.eq.s32.totalorder %s20, 1
      %p153 = por %p151, %p152
      %p155 = scmp.ne.s32.totalorder %s138, %s154
      %p156 = scmp.eq.s32.totalorder %s20, 0
      %p157 = por %p155, %p156
      %p158 = scmp.le.s32.totalorder 1, %s14
      %p159 = scmp.lt.s32.totalorder %s14, 3
      %p160 = pnand %p158, %p159
      %p161 = pneg %p160
      // Predicated region
      $region9: #{resnet_feature_extractor_head.1} parent=5 // pred_check
        _
      $region10: #{resnet_feature_extractor_head.1} parent=5 // pred_check_branch
        %163 = sbr.rel (%p160) target = $region12
      $region11: #{resnet_feature_extractor_head.1} parent=5 // pred_region
        %s164 = ssub.s32 %s14, 1
        // Predicated region
        $region13: #{resnet_feature_extractor_head.1} parent=11 // pred_check
          %p165 = pneg %p61
        $region14: #{resnet_feature_extractor_head.1} parent=11 // pred_check_branch
          %167 = sbr.rel (%p165) target = $region16
        $region15: #{resnet_feature_extractor_head.1} parent=11 // pred_region
          _
        $region16: #{resnet_feature_extractor_head.1} parent=11 // pred_fallthru
          _
        // Predicated region
        $region17: #{resnet_feature_extractor_head.1} parent=11 // pred_check
          %p168 = pneg %p82
        $region18: #{resnet_feature_extractor_head.1} parent=11 // pred_check_branch
          %170 = sbr.rel (%p168) target = $region20
        $region19: #{resnet_feature_extractor_head.1} parent=11 // pred_region
          _
        $region20: #{resnet_feature_extractor_head.1} parent=11 // pred_fallthru
          _
        // Predicated region
        $region21: #{resnet_feature_extractor_head.1} parent=11 // pred_check
          %p171 = pneg %p103
        $region22: #{resnet_feature_extractor_head.1} parent=11 // pred_check_branch
          %173 = sbr.rel (%p171) target = $region24
        $region23: #{resnet_feature_extractor_head.1} parent=11 // pred_region
          _
        $region24: #{resnet_feature_extractor_head.1} parent=11 // pred_fallthru
          _
        // Predicated region
        $region25: #{resnet_feature_extractor_head.1} parent=11 // pred_check
          %p174 = pneg %p124
        $region26: #{resnet_feature_extractor_head.1} parent=11 // pred_check_branch
          %176 = sbr.rel (%p174) target = $region28
        $region27: #{resnet_feature_extractor_head.1} parent=11 // pred_region
          _
        $region28: #{resnet_feature_extractor_head.1} parent=11 // pred_fallthru
          _
      $region12: #{resnet_feature_extractor_head.1} parent=5 // pred_fallthru
        _
      %p177 = scmp.lt.s32.totalorder %s14, 2
      // Predicated region
      $region29: #{resnet_feature_extractor_head.1} parent=5 // pred_check
        %p178 = pneg %p177
      $region30: #{resnet_feature_extractor_head.1} parent=5 // pred_check_branch
        %180 = sbr.rel (%p178) target = $region32
      $region31: #{resnet_feature_extractor_head.1} parent=5 // pred_region
        // Predicated region
        $region33: #{resnet_feature_extractor_head.1} parent=31 // pred_check
          %p181 = pneg %p34
        $region34: #{resnet_feature_extractor_head.1} parent=31 // pred_check_branch
          %183 = sbr.rel (%p181) target = $region36
        $region35: #{resnet_feature_extractor_head.1} parent=31 // pred_region
          %p184 = scmp.lt.s32.totalorder %s14, 1
          %s185 = scalar_select %p184, %s14, 1
          %s186 = smul.addr %s185, 128
          %s187 = smul.addr %s186, 4
          %s188 = scalar_lea.vmem %s0, %s187
        $region36: #{resnet_feature_extractor_head.1} parent=31 // pred_fallthru
          _
      $region32: #{resnet_feature_extractor_head.1} parent=5 // pred_fallthru
        _
      %p189 = scmp.le.s32.totalorder 1, %s14
      %p190 = scmp.lt.s32.totalorder %s14, 3
      %p191 = pnand %p189, %p190
      %p192 = pneg %p191
      // Predicated region
      $region37: #{resnet_feature_extractor_head.1} parent=5 // pred_check
        _
      $region38: #{resnet_feature_extractor_head.1} parent=5 // pred_check_branch
        %194 = sbr.rel (%p191) target = $region40
      $region39: #{resnet_feature_extractor_head.1} parent=5 // pred_region
        %s195 = ssub.s32 %s14, 1
        %p196 = scmp.lt.s32.totalorder %s19, 1
        %s197 = scalar_select %p196, %s19, 1
        %s198 = smul.addr %s197, 128
        %s199 = smul.addr %s198, 4
        %s200 = scalar_lea.vmem %s0, %s199
        %p201 = pneg %p40
        %p202 = pneg %p37
        %p203 = pneg %p61
        %p204 = pneg %p58
        %p205 = pneg %p82
        %p206 = pneg %p79
        %p207 = pneg %p103
        %p208 = pneg %p100
        %p209 = pneg %p124
        %p210 = pneg %p121
        %p211 = pneg %p150
        %p212 = pneg %p147
        %s213 = sand.u32 %s137, 1
        %s214 = scalar_lea.sflag [#allocation3], %s213
        %s215 = sand.u32 %s137, 1
        %s216 = smul.addr %s215, 3072
        %s217 = scalar_lea.vmem [#allocation2], %s216
        %p218 = scmp.lt.s32.totalorder %s19, 1
        %s219 = scalar_select %p218, %s19, 1
        %s220 = smul.addr %s219, 128
        %s221 = smul.addr %s220, 4
        %s222 = scalar_lea.vmem %s0, %s221
        %v224 = vld [vmem:[%s222] sm:$0xff]
        %v225 = vld [vmem:[%s222 + $0x8] sm:$0xff]
        %v226 = vld [vmem:[%s222 + $0x10] sm:$0xff]
        %v227 = vld [vmem:[%s222 + $0x18] sm:$0xff]
        %v228 = vld [vmem:[%s222 + $0x20] sm:$0xff]
        %v229 = vld [vmem:[%s222 + $0x28] sm:$0xff]
        %v230 = vld [vmem:[%s222 + $0x30] sm:$0xff]
        %v231 = vld [vmem:[%s222 + $0x38] sm:$0xff]
        %v232 = vld [vmem:[%s222 + $0x40] sm:$0xff]
        %v233 = vld [vmem:[%s222 + $0x48] sm:$0xff]
        %v234 = vld [vmem:[%s222 + $0x50] sm:$0xff]
        %v235 = vld [vmem:[%s222 + $0x58] sm:$0xff]
        %v236 = vld [vmem:[%s222 + $0x60] sm:$0xff]
        %v237 = vld [vmem:[%s222 + $0x68] sm:$0xff]
        %v238 = vld [vmem:[%s222 + $0x70] sm:$0xff]
        %v239 = vld [vmem:[%s222 + $0x78] sm:$0xff]
        %v240 = vld [vmem:[%s222 + $0x80] sm:$0xff]
        %v241 = vld [vmem:[%s222 + $0x88] sm:$0xff]
        %v242 = vld [vmem:[%s222 + $0x90] sm:$0xff]
        %v243 = vld [vmem:[%s222 + $0x98] sm:$0xff]
        %v244 = vld [vmem:[%s222 + $0xa0] sm:$0xff]
        %v245 = vld [vmem:[%s222 + $0xa8] sm:$0xff]
        %v246 = vld [vmem:[%s222 + $0xb0] sm:$0xff]
        %v247 = vld [vmem:[%s222 + $0xb8] sm:$0xff]
        %v248 = vld [vmem:[%s222 + $0xc0] sm:$0xff]
        %v249 = vld [vmem:[%s222 + $0xc8] sm:$0xff]
        %v250 = vld [vmem:[%s222 + $0xd0] sm:$0xff]
        %v251 = vld [vmem:[%s222 + $0xd8] sm:$0xff]
        %v252 = vld [vmem:[%s222 + $0xe0] sm:$0xff]
        %v253 = vld [vmem:[%s222 + $0xe8] sm:$0xff]
        %v254 = vld [vmem:[%s222 + $0xf0] sm:$0xff]
        %v255 = vld [vmem:[%s222 + $0xf8] sm:$0xff]
        %v256 = vld [vmem:[%s222 + $0x100] sm:$0xff]
        %v257 = vld [vmem:[%s222 + $0x108] sm:$0xff]
        %v258 = vld [vmem:[%s222 + $0x110] sm:$0xff]
        %v259 = vld [vmem:[%s222 + $0x118] sm:$0xff]
        %v260 = vld [vmem:[%s222 + $0x120] sm:$0xff]
        %v261 = vld [vmem:[%s222 + $0x128] sm:$0xff]
        %v262 = vld [vmem:[%s222 + $0x130] sm:$0xff]
        %v263 = vld [vmem:[%s222 + $0x138] sm:$0xff]
        %v264 = vld [vmem:[%s222 + $0x140] sm:$0xff]
        %v265 = vld [vmem:[%s222 + $0x148] sm:$0xff]
        %v266 = vld [vmem:[%s222 + $0x150] sm:$0xff]
        %v267 = vld [vmem:[%s222 + $0x158] sm:$0xff]
        %v268 = vld [vmem:[%s222 + $0x160] sm:$0xff]
        %v269 = vld [vmem:[%s222 + $0x168] sm:$0xff]
        %v270 = vld [vmem:[%s222 + $0x170] sm:$0xff]
        %v271 = vld [vmem:[%s222 + $0x178] sm:$0xff]
        %v272 = vld [vmem:[%s222 + $0x180] sm:$0xff]
        %v273 = vld [vmem:[%s222 + $0x188] sm:$0xff]
        %v274 = vld [vmem:[%s222 + $0x190] sm:$0xff]
        %v275 = vld [vmem:[%s222 + $0x198] sm:$0xff]
        %v276 = vld [vmem:[%s222 + $0x1a0] sm:$0xff]
        %v277 = vld [vmem:[%s222 + $0x1a8] sm:$0xff]
        %v278 = vld [vmem:[%s222 + $0x1b0] sm:$0xff]
        %v279 = vld [vmem:[%s222 + $0x1b8] sm:$0xff]
        %v280 = vld [vmem:[%s222 + $0x1c0] sm:$0xff]
        %v281 = vld [vmem:[%s222 + $0x1c8] sm:$0xff]
        %v282 = vld [vmem:[%s222 + $0x1d0] sm:$0xff]
        %v283 = vld [vmem:[%s222 + $0x1d8] sm:$0xff]
        %v284 = vld [vmem:[%s222 + $0x1e0] sm:$0xff]
        %v285 = vld [vmem:[%s222 + $0x1e8] sm:$0xff]
        %v286 = vld [vmem:[%s222 + $0x1f0] sm:$0xff]
        %v287 = vld [vmem:[%s222 + $0x1f8] sm:$0xff]
        %v288 = vld [vmem:[%s1] sm:$0xff]
        %v289 = vld [vmem:[%s1 + $0x8] sm:$0xff]
        %v290 = vld [vmem:[%s1 + $0x10] sm:$0xff]
        %v291 = vld [vmem:[%s1 + $0x18] sm:$0xff]
        %v292 = vld [vmem:[%s1 + $0x20] sm:$0xff]
        %v293 = vld [vmem:[%s1 + $0x28] sm:$0xff]
        %v294 = vld [vmem:[%s1 + $0x30] sm:$0xff]
        %v295 = vld [vmem:[%s1 + $0x38] sm:$0xff]
        %v296 = vld [vmem:[%s1 + $0x40] sm:$0xff]
        %v297 = vld [vmem:[%s1 + $0x48] sm:$0xff]
        %v298 = vld [vmem:[%s1 + $0x50] sm:$0xff]
        %v299 = vld [vmem:[%s1 + $0x58] sm:$0xff]
        %v300 = vld [vmem:[%s1 + $0x60] sm:$0xff]
        %v301 = vld [vmem:[%s1 + $0x68] sm:$0xff]
        %v302 = vld [vmem:[%s1 + $0x70] sm:$0xff]
        %v303 = vld [vmem:[%s1 + $0x78] sm:$0xff]
        %v304 = vld [vmem:[%s1 + $0x80] sm:$0xff]
        %v305 = vld [vmem:[%s1 + $0x88] sm:$0xff]
        %v306 = vld [vmem:[%s1 + $0x90] sm:$0xff]
        %v307 = vld [vmem:[%s1 + $0x98] sm:$0xff]
        %v308 = vld [vmem:[%s1 + $0xa0] sm:$0xff]
        %v309 = vld [vmem:[%s1 + $0xa8] sm:$0xff]
        %v310 = vld [vmem:[%s1 + $0xb0] sm:$0xff]
        %v311 = vld [vmem:[%s1 + $0xb8] sm:$0xff]
        %v312 = vld [vmem:[%s1 + $0xc0] sm:$0xff]
        %v313 = vld [vmem:[%s1 + $0xc8] sm:$0xff]
        %v314 = vld [vmem:[%s1 + $0xd0] sm:$0xff]
        %v315 = vld [vmem:[%s1 + $0xd8] sm:$0xff]
        %v316 = vld [vmem:[%s1 + $0xe0] sm:$0xff]
        %v317 = vld [vmem:[%s1 + $0xe8] sm:$0xff]
        %v318 = vld [vmem:[%s1 + $0xf0] sm:$0xff]
        %v319 = vld [vmem:[%s1 + $0xf8] sm:$0xff]
        %v320 = vld [vmem:[%s1 + $0x100] sm:$0xff]
        %v321 = vld [vmem:[%s1 + $0x108] sm:$0xff]
        %v322 = vld [vmem:[%s1 + $0x110] sm:$0xff]
        %v323 = vld [vmem:[%s1 + $0x118] sm:$0xff]
        %v324 = vld [vmem:[%s1 + $0x120] sm:$0xff]
        %v325 = vld [vmem:[%s1 + $0x128] sm:$0xff]
        %v326 = vld [vmem:[%s1 + $0x130] sm:$0xff]
        %v327 = vld [vmem:[%s1 + $0x138] sm:$0xff]
        %v328 = vld [vmem:[%s1 + $0x140] sm:$0xff]
        %v329 = vld [vmem:[%s1 + $0x148] sm:$0xff]
        %v330 = vld [vmem:[%s1 + $0x150] sm:$0xff]
        %v331 = vld [vmem:[%s1 + $0x158] sm:$0xff]
        %v332 = vld [vmem:[%s1 + $0x160] sm:$0xff]
        %v333 = vld [vmem:[%s1 + $0x168] sm:$0xff]
        %v334 = vld [vmem:[%s1 + $0x170] sm:$0xff]
        %v335 = vld [vmem:[%s1 + $0x178] sm:$0xff]
        %v336 = vld [vmem:[%s1 + $0x180] sm:$0xff]
        %v337 = vld [vmem:[%s1 + $0x188] sm:$0xff]
        %v338 = vld [vmem:[%s1 + $0x190] sm:$0xff]
        %v339 = vld [vmem:[%s1 + $0x198] sm:$0xff]
        %v340 = vld [vmem:[%s1 + $0x1a0] sm:$0xff]
        %v341 = vld [vmem:[%s1 + $0x1a8] sm:$0xff]
        %v342 = vld [vmem:[%s1 + $0x1b0] sm:$0xff]
        %v343 = vld [vmem:[%s1 + $0x1b8] sm:$0xff]
        %v344 = vld [vmem:[%s1 + $0x1c0] sm:$0xff]
        %v345 = vld [vmem:[%s1 + $0x1c8] sm:$0xff]
        %v346 = vld [vmem:[%s1 + $0x1d0] sm:$0xff]
        %v347 = vld [vmem:[%s1 + $0x1d8] sm:$0xff]
        %v348 = vld [vmem:[%s1 + $0x1e0] sm:$0xff]
        %v349 = vld [vmem:[%s1 + $0x1e8] sm:$0xff]
        %v350 = vld [vmem:[%s1 + $0x1f0] sm:$0xff]
        %v351 = vld [vmem:[%s1 + $0x1f8] sm:$0xff]
        %v352 = vld [vmem:[%s1 + $0x200] sm:$0xff]
        %v353 = vld [vmem:[%s1 + $0x208] sm:$0xff]
        %v354 = vld [vmem:[%s1 + $0x210] sm:$0xff]
        %v355 = vld [vmem:[%s1 + $0x218] sm:$0xff]
        %v356 = vld [vmem:[%s1 + $0x220] sm:$0xff]
        %v357 = vld [vmem:[%s1 + $0x228] sm:$0xff]
        %v358 = vld [vmem:[%s1 + $0x230] sm:$0xff]
        %v359 = vld [vmem:[%s1 + $0x238] sm:$0xff]
        %v360 = vld [vmem:[%s1 + $0x240] sm:$0xff]
        %v361 = vld [vmem:[%s1 + $0x248] sm:$0xff]
        %v362 = vld [vmem:[%s1 + $0x250] sm:$0xff]
        %v363 = vld [vmem:[%s1 + $0x258] sm:$0xff]
        %v364 = vld [vmem:[%s1 + $0x260] sm:$0xff]
        %v365 = vld [vmem:[%s1 + $0x268] sm:$0xff]
        %v366 = vld [vmem:[%s1 + $0x270] sm:$0xff]
        %v367 = vld [vmem:[%s1 + $0x278] sm:$0xff]
        %v368 = vld [vmem:[%s1 + $0x280] sm:$0xff]
        %v369 = vld [vmem:[%s1 + $0x288] sm:$0xff]
        %v370 = vld [vmem:[%s1 + $0x290] sm:$0xff]
        %v371 = vld [vmem:[%s1 + $0x298] sm:$0xff]
        %v372 = vld [vmem:[%s1 + $0x2a0] sm:$0xff]
        %v373 = vld [vmem:[%s1 + $0x2a8] sm:$0xff]
        %v374 = vld [vmem:[%s1 + $0x2b0] sm:$0xff]
        %v375 = vld [vmem:[%s1 + $0x2b8] sm:$0xff]
        %v376 = vld [vmem:[%s1 + $0x2c0] sm:$0xff]
        %v377 = vld [vmem:[%s1 + $0x2c8] sm:$0xff]
        %v378 = vld [vmem:[%s1 + $0x2d0] sm:$0xff]
        %v379 = vld [vmem:[%s1 + $0x2d8] sm:$0xff]
        %v380 = vld [vmem:[%s1 + $0x2e0] sm:$0xff]
        %v381 = vld [vmem:[%s1 + $0x2e8] sm:$0xff]
        %v382 = vld [vmem:[%s1 + $0x2f0] sm:$0xff]
        %v383 = vld [vmem:[%s1 + $0x2f8] sm:$0xff]
        %v384 = vld [vmem:[%s1 + $0x300] sm:$0xff]
        %v385 = vld [vmem:[%s1 + $0x308] sm:$0xff]
        %v386 = vld [vmem:[%s1 + $0x310] sm:$0xff]
        %v387 = vld [vmem:[%s1 + $0x318] sm:$0xff]
        %v388 = vld [vmem:[%s1 + $0x320] sm:$0xff]
        %v389 = vld [vmem:[%s1 + $0x328] sm:$0xff]
        %v390 = vld [vmem:[%s1 + $0x330] sm:$0xff]
        %v391 = vld [vmem:[%s1 + $0x338] sm:$0xff]
        %v392 = vld [vmem:[%s1 + $0x340] sm:$0xff]
        %v393 = vld [vmem:[%s1 + $0x348] sm:$0xff]
        %v394 = vld [vmem:[%s1 + $0x350] sm:$0xff]
        %v395 = vld [vmem:[%s1 + $0x358] sm:$0xff]
        %v396 = vld [vmem:[%s1 + $0x360] sm:$0xff]
        %v397 = vld [vmem:[%s1 + $0x368] sm:$0xff]
        %v398 = vld [vmem:[%s1 + $0x370] sm:$0xff]
        %v399 = vld [vmem:[%s1 + $0x378] sm:$0xff]
        %v400 = vld [vmem:[%s1 + $0x380] sm:$0xff]
        %v401 = vld [vmem:[%s1 + $0x388] sm:$0xff]
        %v402 = vld [vmem:[%s1 + $0x390] sm:$0xff]
        %v403 = vld [vmem:[%s1 + $0x398] sm:$0xff]
        %v404 = vld [vmem:[%s1 + $0x3a0] sm:$0xff]
        %v405 = vld [vmem:[%s1 + $0x3a8] sm:$0xff]
        %v406 = vld [vmem:[%s1 + $0x3b0] sm:$0xff]
        %v407 = vld [vmem:[%s1 + $0x3b8] sm:$0xff]
        %v408 = vld [vmem:[%s1 + $0x3c0] sm:$0xff]
        %v409 = vld [vmem:[%s1 + $0x3c8] sm:$0xff]
        %v410 = vld [vmem:[%s1 + $0x3d0] sm:$0xff]
        %v411 = vld [vmem:[%s1 + $0x3d8] sm:$0xff]
        %v412 = vld [vmem:[%s1 + $0x3e0] sm:$0xff]
        %v413 = vld [vmem:[%s1 + $0x3e8] sm:$0xff]
        %v414 = vld [vmem:[%s1 + $0x3f0] sm:$0xff]
        %v415 = vld [vmem:[%s1 + $0x3f8] sm:$0xff]
        %v416 = vld [vmem:[%s1 + $0x400] sm:$0xff]
        %v417 = vld [vmem:[%s1 + $0x408] sm:$0xff]
        %v418 = vld [vmem:[%s1 + $0x410] sm:$0xff]
        %v419 = vld [vmem:[%s1 + $0x418] sm:$0xff]
        %v420 = vld [vmem:[%s1 + $0x420] sm:$0xff]
        %v421 = vld [vmem:[%s1 + $0x428] sm:$0xff]
        %v422 = vld [vmem:[%s1 + $0x430] sm:$0xff]
        %v423 = vld [vmem:[%s1 + $0x438] sm:$0xff]
        %v424 = vld [vmem:[%s1 + $0x440] sm:$0xff]
        %v425 = vld [vmem:[%s1 + $0x448] sm:$0xff]
        %v426 = vld [vmem:[%s1 + $0x450] sm:$0xff]
        %v427 = vld [vmem:[%s1 + $0x458] sm:$0xff]
        %v428 = vld [vmem:[%s1 + $0x460] sm:$0xff]
        %v429 = vld [vmem:[%s1 + $0x468] sm:$0xff]
        %v430 = vld [vmem:[%s1 + $0x470] sm:$0xff]
        %v431 = vld [vmem:[%s1 + $0x478] sm:$0xff]
        %v432 = vld [vmem:[%s1 + $0x480] sm:$0xff]
        %v433 = vld [vmem:[%s1 + $0x488] sm:$0xff]
        %v434 = vld [vmem:[%s1 + $0x490] sm:$0xff]
        %v435 = vld [vmem:[%s1 + $0x498] sm:$0xff]
        %v436 = vld [vmem:[%s1 + $0x4a0] sm:$0xff]
        %v437 = vld [vmem:[%s1 + $0x4a8] sm:$0xff]
        %v438 = vld [vmem:[%s1 + $0x4b0] sm:$0xff]
        %v439 = vld [vmem:[%s1 + $0x4b8] sm:$0xff]
        %v440 = vld [vmem:[%s1 + $0x4c0] sm:$0xff]
        %v441 = vld [vmem:[%s1 + $0x4c8] sm:$0xff]
        %v442 = vld [vmem:[%s1 + $0x4d0] sm:$0xff]
        %v443 = vld [vmem:[%s1 + $0x4d8] sm:$0xff]
        %v444 = vld [vmem:[%s1 + $0x4e0] sm:$0xff]
        %v445 = vld [vmem:[%s1 + $0x4e8] sm:$0xff]
        %v446 = vld [vmem:[%s1 + $0x4f0] sm:$0xff]
        %v447 = vld [vmem:[%s1 + $0x4f8] sm:$0xff]
        %v448 = vld [vmem:[%s1 + $0x500] sm:$0xff]
        %v449 = vld [vmem:[%s1 + $0x508] sm:$0xff]
        %v450 = vld [vmem:[%s1 + $0x510] sm:$0xff]
        %v451 = vld [vmem:[%s1 + $0x518] sm:$0xff]
        %v452 = vld [vmem:[%s1 + $0x520] sm:$0xff]
        %v453 = vld [vmem:[%s1 + $0x528] sm:$0xff]
        %v454 = vld [vmem:[%s1 + $0x530] sm:$0xff]
        %v455 = vld [vmem:[%s1 + $0x538] sm:$0xff]
        %v456 = vld [vmem:[%s1 + $0x540] sm:$0xff]
        %v457 = vld [vmem:[%s1 + $0x548] sm:$0xff]
        %v458 = vld [vmem:[%s1 + $0x550] sm:$0xff]
        %v459 = vld [vmem:[%s1 + $0x558] sm:$0xff]
        %v460 = vld [vmem:[%s1 + $0x560] sm:$0xff]
        %v461 = vld [vmem:[%s1 + $0x568] sm:$0xff]
        %v462 = vld [vmem:[%s1 + $0x570] sm:$0xff]
        %v463 = vld [vmem:[%s1 + $0x578] sm:$0xff]
        %v464 = vld [vmem:[%s1 + $0x580] sm:$0xff]
        %v465 = vld [vmem:[%s1 + $0x588] sm:$0xff]
        %v466 = vld [vmem:[%s1 + $0x590] sm:$0xff]
        %v467 = vld [vmem:[%s1 + $0x598] sm:$0xff]
        %v468 = vld [vmem:[%s1 + $0x5a0] sm:$0xff]
        %v469 = vld [vmem:[%s1 + $0x5a8] sm:$0xff]
        %v470 = vld [vmem:[%s1 + $0x5b0] sm:$0xff]
        %v471 = vld [vmem:[%s1 + $0x5b8] sm:$0xff]
        %v472 = vld [vmem:[%s1 + $0x5c0] sm:$0xff]
        %v473 = vld [vmem:[%s1 + $0x5c8] sm:$0xff]
        %v474 = vld [vmem:[%s1 + $0x5d0] sm:$0xff]
        %v475 = vld [vmem:[%s1 + $0x5d8] sm:$0xff]
        %v476 = vld [vmem:[%s1 + $0x5e0] sm:$0xff]
        %v477 = vld [vmem:[%s1 + $0x5e8] sm:$0xff]
        %v478 = vld [vmem:[%s1 + $0x5f0] sm:$0xff]
        %v479 = vld [vmem:[%s1 + $0x5f8] sm:$0xff]
        %v480 = vld [vmem:[%s1 + $0x600] sm:$0xff]
        %v481 = vld [vmem:[%s1 + $0x608] sm:$0xff]
        %v482 = vld [vmem:[%s1 + $0x610] sm:$0xff]
        %v483 = vld [vmem:[%s1 + $0x618] sm:$0xff]
        %v484 = vld [vmem:[%s1 + $0x620] sm:$0xff]
        %v485 = vld [vmem:[%s1 + $0x628] sm:$0xff]
        %v486 = vld [vmem:[%s1 + $0x630] sm:$0xff]
        %v487 = vld [vmem:[%s1 + $0x638] sm:$0xff]
        %v488 = vld [vmem:[%s1 + $0x640] sm:$0xff]
        %v489 = vld [vmem:[%s1 + $0x648] sm:$0xff]
        %v490 = vld [vmem:[%s1 + $0x650] sm:$0xff]
        %v491 = vld [vmem:[%s1 + $0x658] sm:$0xff]
        %v492 = vld [vmem:[%s1 + $0x660] sm:$0xff]
        %v493 = vld [vmem:[%s1 + $0x668] sm:$0xff]
        %v494 = vld [vmem:[%s1 + $0x670] sm:$0xff]
        %v495 = vld [vmem:[%s1 + $0x678] sm:$0xff]
        %v496 = vld [vmem:[%s1 + $0x680] sm:$0xff]
        %v497 = vld [vmem:[%s1 + $0x688] sm:$0xff]
        %v498 = vld [vmem:[%s1 + $0x690] sm:$0xff]
        %v499 = vld [vmem:[%s1 + $0x698] sm:$0xff]
        %v500 = vld [vmem:[%s1 + $0x6a0] sm:$0xff]
        %v501 = vld [vmem:[%s1 + $0x6a8] sm:$0xff]
        %v502 = vld [vmem:[%s1 + $0x6b0] sm:$0xff]
        %v503 = vld [vmem:[%s1 + $0x6b8] sm:$0xff]
        %v504 = vld [vmem:[%s1 + $0x6c0] sm:$0xff]
        %v505 = vld [vmem:[%s1 + $0x6c8] sm:$0xff]
        %v506 = vld [vmem:[%s1 + $0x6d0] sm:$0xff]
        %v507 = vld [vmem:[%s1 + $0x6d8] sm:$0xff]
        %v508 = vld [vmem:[%s1 + $0x6e0] sm:$0xff]
        %v509 = vld [vmem:[%s1 + $0x6e8] sm:$0xff]
        %v510 = vld [vmem:[%s1 + $0x6f0] sm:$0xff]
        %v511 = vld [vmem:[%s1 + $0x6f8] sm:$0xff]
        %v512 = vld [vmem:[%s1 + $0x700] sm:$0xff]
        %v513 = vld [vmem:[%s1 + $0x708] sm:$0xff]
        %v514 = vld [vmem:[%s1 + $0x710] sm:$0xff]
        %v515 = vld [vmem:[%s1 + $0x718] sm:$0xff]
        %v516 = vld [vmem:[%s1 + $0x720] sm:$0xff]
        %v517 = vld [vmem:[%s1 + $0x728] sm:$0xff]
        %v518 = vld [vmem:[%s1 + $0x730] sm:$0xff]
        %v519 = vld [vmem:[%s1 + $0x738] sm:$0xff]
        %v520 = vld [vmem:[%s1 + $0x740] sm:$0xff]
        %v521 = vld [vmem:[%s1 + $0x748] sm:$0xff]
        %v522 = vld [vmem:[%s1 + $0x750] sm:$0xff]
        %v523 = vld [vmem:[%s1 + $0x758] sm:$0xff]
        %v524 = vld [vmem:[%s1 + $0x760] sm:$0xff]
        %v525 = vld [vmem:[%s1 + $0x768] sm:$0xff]
        %v526 = vld [vmem:[%s1 + $0x770] sm:$0xff]
        %v527 = vld [vmem:[%s1 + $0x778] sm:$0xff]
        %v528 = vld [vmem:[%s1 + $0x780] sm:$0xff]
        %v529 = vld [vmem:[%s1 + $0x788] sm:$0xff]
        %v530 = vld [vmem:[%s1 + $0x790] sm:$0xff]
        %v531 = vld [vmem:[%s1 + $0x798] sm:$0xff]
        %v532 = vld [vmem:[%s1 + $0x7a0] sm:$0xff]
        %v533 = vld [vmem:[%s1 + $0x7a8] sm:$0xff]
        %v534 = vld [vmem:[%s1 + $0x7b0] sm:$0xff]
        %v535 = vld [vmem:[%s1 + $0x7b8] sm:$0xff]
        %v536 = vld [vmem:[%s1 + $0x7c0] sm:$0xff]
        %v537 = vld [vmem:[%s1 + $0x7c8] sm:$0xff]
        %v538 = vld [vmem:[%s1 + $0x7d0] sm:$0xff]
        %v539 = vld [vmem:[%s1 + $0x7d8] sm:$0xff]
        %v540 = vld [vmem:[%s1 + $0x7e0] sm:$0xff]
        %v541 = vld [vmem:[%s1 + $0x7e8] sm:$0xff]
        %v542 = vld [vmem:[%s1 + $0x7f0] sm:$0xff]
        %v543 = vld [vmem:[%s1 + $0x7f8] sm:$0xff]
        %v544 = vld [vmem:[%s1 + $0x800] sm:$0xff]
        %v545 = vld [vmem:[%s1 + $0x808] sm:$0xff]
        %v546 = vld [vmem:[%s1 + $0x810] sm:$0xff]
        %v547 = vld [vmem:[%s1 + $0x818] sm:$0xff]
        %v548 = vld [vmem:[%s1 + $0x820] sm:$0xff]
        %v549 = vld [vmem:[%s1 + $0x828] sm:$0xff]
        %v550 = vld [vmem:[%s1 + $0x830] sm:$0xff]
        %v551 = vld [vmem:[%s1 + $0x838] sm:$0xff]
        %v552 = vld [vmem:[%s1 + $0x840] sm:$0xff]
        %v553 = vld [vmem:[%s1 + $0x848] sm:$0xff]
        %v554 = vld [vmem:[%s1 + $0x850] sm:$0xff]
        %v555 = vld [vmem:[%s1 + $0x858] sm:$0xff]
        %v556 = vld [vmem:[%s1 + $0x860] sm:$0xff]
        %v557 = vld [vmem:[%s1 + $0x868] sm:$0xff]
        %v558 = vld [vmem:[%s1 + $0x870] sm:$0xff]
        %v559 = vld [vmem:[%s1 + $0x878] sm:$0xff]
        %v560 = vld [vmem:[%s1 + $0x880] sm:$0xff]
        %v561 = vld [vmem:[%s1 + $0x888] sm:$0xff]
        %v562 = vld [vmem:[%s1 + $0x890] sm:$0xff]
        %v563 = vld [vmem:[%s1 + $0x898] sm:$0xff]
        %v564 = vld [vmem:[%s1 + $0x8a0] sm:$0xff]
        %v565 = vld [vmem:[%s1 + $0x8a8] sm:$0xff]
        %v566 = vld [vmem:[%s1 + $0x8b0] sm:$0xff]
        %v567 = vld [vmem:[%s1 + $0x8b8] sm:$0xff]
        %v568 = vld [vmem:[%s1 + $0x8c0] sm:$0xff]
        %v569 = vld [vmem:[%s1 + $0x8c8] sm:$0xff]
        %v570 = vld [vmem:[%s1 + $0x8d0] sm:$0xff]
        %v571 = vld [vmem:[%s1 + $0x8d8] sm:$0xff]
        %v572 = vld [vmem:[%s1 + $0x8e0] sm:$0xff]
        %v573 = vld [vmem:[%s1 + $0x8e8] sm:$0xff]
        %v574 = vld [vmem:[%s1 + $0x8f0] sm:$0xff]
        %v575 = vld [vmem:[%s1 + $0x8f8] sm:$0xff]
        %v576 = vld [vmem:[%s1 + $0x900] sm:$0xff]
        %v577 = vld [vmem:[%s1 + $0x908] sm:$0xff]
        %v578 = vld [vmem:[%s1 + $0x910] sm:$0xff]
        %v579 = vld [vmem:[%s1 + $0x918] sm:$0xff]
        %v580 = vld [vmem:[%s1 + $0x920] sm:$0xff]
        %v581 = vld [vmem:[%s1 + $0x928] sm:$0xff]
        %v582 = vld [vmem:[%s1 + $0x930] sm:$0xff]
        %v583 = vld [vmem:[%s1 + $0x938] sm:$0xff]
        %v584 = vld [vmem:[%s1 + $0x940] sm:$0xff]
        %v585 = vld [vmem:[%s1 + $0x948] sm:$0xff]
        %v586 = vld [vmem:[%s1 + $0x950] sm:$0xff]
        %v587 = vld [vmem:[%s1 + $0x958] sm:$0xff]
        %v588 = vld [vmem:[%s1 + $0x960] sm:$0xff]
        %v589 = vld [vmem:[%s1 + $0x968] sm:$0xff]
        %v590 = vld [vmem:[%s1 + $0x970] sm:$0xff]
        %v591 = vld [vmem:[%s1 + $0x978] sm:$0xff]
        %v592 = vld [vmem:[%s1 + $0x980] sm:$0xff]
        %v593 = vld [vmem:[%s1 + $0x988] sm:$0xff]
        %v594 = vld [vmem:[%s1 + $0x990] sm:$0xff]
        %v595 = vld [vmem:[%s1 + $0x998] sm:$0xff]
        %v596 = vld [vmem:[%s1 + $0x9a0] sm:$0xff]
        %v597 = vld [vmem:[%s1 + $0x9a8] sm:$0xff]
        %v598 = vld [vmem:[%s1 + $0x9b0] sm:$0xff]
        %v599 = vld [vmem:[%s1 + $0x9b8] sm:$0xff]
        %v600 = vld [vmem:[%s1 + $0x9c0] sm:$0xff]
        %v601 = vld [vmem:[%s1 + $0x9c8] sm:$0xff]
        %v602 = vld [vmem:[%s1 + $0x9d0] sm:$0xff]
        %v603 = vld [vmem:[%s1 + $0x9d8] sm:$0xff]
        %v604 = vld [vmem:[%s1 + $0x9e0] sm:$0xff]
        %v605 = vld [vmem:[%s1 + $0x9e8] sm:$0xff]
        %v606 = vld [vmem:[%s1 + $0x9f0] sm:$0xff]
        %v607 = vld [vmem:[%s1 + $0x9f8] sm:$0xff]
        %v608 = vld [vmem:[%s1 + $0xa00] sm:$0xff]
        %v609 = vld [vmem:[%s1 + $0xa08] sm:$0xff]
        %v610 = vld [vmem:[%s1 + $0xa10] sm:$0xff]
        %v611 = vld [vmem:[%s1 + $0xa18] sm:$0xff]
        %v612 = vld [vmem:[%s1 + $0xa20] sm:$0xff]
        %v613 = vld [vmem:[%s1 + $0xa28] sm:$0xff]
        %v614 = vld [vmem:[%s1 + $0xa30] sm:$0xff]
        %v615 = vld [vmem:[%s1 + $0xa38] sm:$0xff]
        %v616 = vld [vmem:[%s1 + $0xa40] sm:$0xff]
        %v617 = vld [vmem:[%s1 + $0xa48] sm:$0xff]
        %v618 = vld [vmem:[%s1 + $0xa50] sm:$0xff]
        %v619 = vld [vmem:[%s1 + $0xa58] sm:$0xff]
        %v620 = vld [vmem:[%s1 + $0xa60] sm:$0xff]
        %v621 = vld [vmem:[%s1 + $0xa68] sm:$0xff]
        %v622 = vld [vmem:[%s1 + $0xa70] sm:$0xff]
        %v623 = vld [vmem:[%s1 + $0xa78] sm:$0xff]
        %v624 = vld [vmem:[%s1 + $0xa80] sm:$0xff]
        %v625 = vld [vmem:[%s1 + $0xa88] sm:$0xff]
        %v626 = vld [vmem:[%s1 + $0xa90] sm:$0xff]
        %v627 = vld [vmem:[%s1 + $0xa98] sm:$0xff]
        %v628 = vld [vmem:[%s1 + $0xaa0] sm:$0xff]
        %v629 = vld [vmem:[%s1 + $0xaa8] sm:$0xff]
        %v630 = vld [vmem:[%s1 + $0xab0] sm:$0xff]
        %v631 = vld [vmem:[%s1 + $0xab8] sm:$0xff]
        %v632 = vld [vmem:[%s1 + $0xac0] sm:$0xff]
        %v633 = vld [vmem:[%s1 + $0xac8] sm:$0xff]
        %v634 = vld [vmem:[%s1 + $0xad0] sm:$0xff]
        %v635 = vld [vmem:[%s1 + $0xad8] sm:$0xff]
        %v636 = vld [vmem:[%s1 + $0xae0] sm:$0xff]
        %v637 = vld [vmem:[%s1 + $0xae8] sm:$0xff]
        %v638 = vld [vmem:[%s1 + $0xaf0] sm:$0xff]
        %v639 = vld [vmem:[%s1 + $0xaf8] sm:$0xff]
        %v640 = vld [vmem:[%s1 + $0xb00] sm:$0xff]
        %v641 = vld [vmem:[%s1 + $0xb08] sm:$0xff]
        %v642 = vld [vmem:[%s1 + $0xb10] sm:$0xff]
        %v643 = vld [vmem:[%s1 + $0xb18] sm:$0xff]
        %v644 = vld [vmem:[%s1 + $0xb20] sm:$0xff]
        %v645 = vld [vmem:[%s1 + $0xb28] sm:$0xff]
        %v646 = vld [vmem:[%s1 + $0xb30] sm:$0xff]
        %v647 = vld [vmem:[%s1 + $0xb38] sm:$0xff]
        %v648 = vld [vmem:[%s1 + $0xb40] sm:$0xff]
        %v649 = vld [vmem:[%s1 + $0xb48] sm:$0xff]
        %v650 = vld [vmem:[%s1 + $0xb50] sm:$0xff]
        %v651 = vld [vmem:[%s1 + $0xb58] sm:$0xff]
        %v652 = vld [vmem:[%s1 + $0xb60] sm:$0xff]
        %v653 = vld [vmem:[%s1 + $0xb68] sm:$0xff]
        %v654 = vld [vmem:[%s1 + $0xb70] sm:$0xff]
        %v655 = vld [vmem:[%s1 + $0xb78] sm:$0xff]
        %v656 = vld [vmem:[%s1 + $0xb80] sm:$0xff]
        %v657 = vld [vmem:[%s1 + $0xb88] sm:$0xff]
        %v658 = vld [vmem:[%s1 + $0xb90] sm:$0xff]
        %v659 = vld [vmem:[%s1 + $0xb98] sm:$0xff]
        %v660 = vld [vmem:[%s1 + $0xba0] sm:$0xff]
        %v661 = vld [vmem:[%s1 + $0xba8] sm:$0xff]
        %v662 = vld [vmem:[%s1 + $0xbb0] sm:$0xff]
        %v663 = vld [vmem:[%s1 + $0xbb8] sm:$0xff]
        %v664 = vld [vmem:[%s1 + $0xbc0] sm:$0xff]
        %v665 = vld [vmem:[%s1 + $0xbc8] sm:$0xff]
        %v666 = vld [vmem:[%s1 + $0xbd0] sm:$0xff]
        %v667 = vld [vmem:[%s1 + $0xbd8] sm:$0xff]
        %v668 = vld [vmem:[%s1 + $0xbe0] sm:$0xff]
        %v669 = vld [vmem:[%s1 + $0xbe8] sm:$0xff]
        %v670 = vld [vmem:[%s1 + $0xbf0] sm:$0xff]
        %v671 = vld [vmem:[%s1 + $0xbf8] sm:$0xff]
        %v672 = vld [vmem:[%s1 + $0xc00] sm:$0xff]
        %v673 = vld [vmem:[%s1 + $0xc08] sm:$0xff]
        %v674 = vld [vmem:[%s1 + $0xc10] sm:$0xff]
        %v675 = vld [vmem:[%s1 + $0xc18] sm:$0xff]
        %v676 = vld [vmem:[%s1 + $0xc20] sm:$0xff]
        %v677 = vld [vmem:[%s1 + $0xc28] sm:$0xff]
        %v678 = vld [vmem:[%s1 + $0xc30] sm:$0xff]
        %v679 = vld [vmem:[%s1 + $0xc38] sm:$0xff]
        %v680 = vld [vmem:[%s1 + $0xc40] sm:$0xff]
        %v681 = vld [vmem:[%s1 + $0xc48] sm:$0xff]
        %v682 = vld [vmem:[%s1 + $0xc50] sm:$0xff]
        %v683 = vld [vmem:[%s1 + $0xc58] sm:$0xff]
        %v684 = vld [vmem:[%s1 + $0xc60] sm:$0xff]
        %v685 = vld [vmem:[%s1 + $0xc68] sm:$0xff]
        %v686 = vld [vmem:[%s1 + $0xc70] sm:$0xff]
        %v687 = vld [vmem:[%s1 + $0xc78] sm:$0xff]
        %v688 = vld [vmem:[%s1 + $0xc80] sm:$0xff]
        %v689 = vld [vmem:[%s1 + $0xc88] sm:$0xff]
        %v690 = vld [vmem:[%s1 + $0xc90] sm:$0xff]
        %v691 = vld [vmem:[%s1 + $0xc98] sm:$0xff]
        %v692 = vld [vmem:[%s1 + $0xca0] sm:$0xff]
        %v693 = vld [vmem:[%s1 + $0xca8] sm:$0xff]
        %v694 = vld [vmem:[%s1 + $0xcb0] sm:$0xff]
        %v695 = vld [vmem:[%s1 + $0xcb8] sm:$0xff]
        %v696 = vld [vmem:[%s1 + $0xcc0] sm:$0xff]
        %v697 = vld [vmem:[%s1 + $0xcc8] sm:$0xff]
        %v698 = vld [vmem:[%s1 + $0xcd0] sm:$0xff]
        %v699 = vld [vmem:[%s1 + $0xcd8] sm:$0xff]
        %v700 = vld [vmem:[%s1 + $0xce0] sm:$0xff]
        %v701 = vld [vmem:[%s1 + $0xce8] sm:$0xff]
        %v702 = vld [vmem:[%s1 + $0xcf0] sm:$0xff]
        %v703 = vld [vmem:[%s1 + $0xcf8] sm:$0xff]
        %v704 = vld [vmem:[%s1 + $0xd00] sm:$0xff]
        %v705 = vld [vmem:[%s1 + $0xd08] sm:$0xff]
        %v706 = vld [vmem:[%s1 + $0xd10] sm:$0xff]
        %v707 = vld [vmem:[%s1 + $0xd18] sm:$0xff]
        %v708 = vld [vmem:[%s1 + $0xd20] sm:$0xff]
        %v709 = vld [vmem:[%s1 + $0xd28] sm:$0xff]
        %v710 = vld [vmem:[%s1 + $0xd30] sm:$0xff]
        %v711 = vld [vmem:[%s1 + $0xd38] sm:$0xff]
        %v712 = vld [vmem:[%s1 + $0xd40] sm:$0xff]
        %v713 = vld [vmem:[%s1 + $0xd48] sm:$0xff]
        %v714 = vld [vmem:[%s1 + $0xd50] sm:$0xff]
        %v715 = vld [vmem:[%s1 + $0xd58] sm:$0xff]
        %v716 = vld [vmem:[%s1 + $0xd60] sm:$0xff]
        %v717 = vld [vmem:[%s1 + $0xd68] sm:$0xff]
        %v718 = vld [vmem:[%s1 + $0xd70] sm:$0xff]
        %v719 = vld [vmem:[%s1 + $0xd78] sm:$0xff]
        %v720 = vld [vmem:[%s1 + $0xd80] sm:$0xff]
        %v721 = vld [vmem:[%s1 + $0xd88] sm:$0xff]
        %v722 = vld [vmem:[%s1 + $0xd90] sm:$0xff]
        %v723 = vld [vmem:[%s1 + $0xd98] sm:$0xff]
        %v724 = vld [vmem:[%s1 + $0xda0] sm:$0xff]
        %v725 = vld [vmem:[%s1 + $0xda8] sm:$0xff]
        %v726 = vld [vmem:[%s1 + $0xdb0] sm:$0xff]
        %v727 = vld [vmem:[%s1 + $0xdb8] sm:$0xff]
        %v728 = vld [vmem:[%s1 + $0xdc0] sm:$0xff]
        %v729 = vld [vmem:[%s1 + $0xdc8] sm:$0xff]
        %v730 = vld [vmem:[%s1 + $0xdd0] sm:$0xff]
        %v731 = vld [vmem:[%s1 + $0xdd8] sm:$0xff]
        %v732 = vld [vmem:[%s1 + $0xde0] sm:$0xff]
        %v733 = vld [vmem:[%s1 + $0xde8] sm:$0xff]
        %v734 = vld [vmem:[%s1 + $0xdf0] sm:$0xff]
        %v735 = vld [vmem:[%s1 + $0xdf8] sm:$0xff]
        %v736 = vld [vmem:[%s1 + $0xe00] sm:$0xff]
        %v737 = vld [vmem:[%s1 + $0xe08] sm:$0xff]
        %v738 = vld [vmem:[%s1 + $0xe10] sm:$0xff]
        %v739 = vld [vmem:[%s1 + $0xe18] sm:$0xff]
        %v740 = vld [vmem:[%s1 + $0xe20] sm:$0xff]
        %v741 = vld [vmem:[%s1 + $0xe28] sm:$0xff]
        %v742 = vld [vmem:[%s1 + $0xe30] sm:$0xff]
        %v743 = vld [vmem:[%s1 + $0xe38] sm:$0xff]
        %v744 = vld [vmem:[%s1 + $0xe40] sm:$0xff]
        %v745 = vld [vmem:[%s1 + $0xe48] sm:$0xff]
        %v746 = vld [vmem:[%s1 + $0xe50] sm:$0xff]
        %v747 = vld [vmem:[%s1 + $0xe58] sm:$0xff]
        %v748 = vld [vmem:[%s1 + $0xe60] sm:$0xff]
        %v749 = vld [vmem:[%s1 + $0xe68] sm:$0xff]
        %v750 = vld [vmem:[%s1 + $0xe70] sm:$0xff]
        %v751 = vld [vmem:[%s1 + $0xe78] sm:$0xff]
        %v752 = vld [vmem:[%s1 + $0xe80] sm:$0xff]
        %v753 = vld [vmem:[%s1 + $0xe88] sm:$0xff]
        %v754 = vld [vmem:[%s1 + $0xe90] sm:$0xff]
        %v755 = vld [vmem:[%s1 + $0xe98] sm:$0xff]
        %v756 = vld [vmem:[%s1 + $0xea0] sm:$0xff]
        %v757 = vld [vmem:[%s1 + $0xea8] sm:$0xff]
        %v758 = vld [vmem:[%s1 + $0xeb0] sm:$0xff]
        %v759 = vld [vmem:[%s1 + $0xeb8] sm:$0xff]
        %v760 = vld [vmem:[%s1 + $0xec0] sm:$0xff]
        %v761 = vld [vmem:[%s1 + $0xec8] sm:$0xff]
        %v762 = vld [vmem:[%s1 + $0xed0] sm:$0xff]
        %v763 = vld [vmem:[%s1 + $0xed8] sm:$0xff]
        %v764 = vld [vmem:[%s1 + $0xee0] sm:$0xff]
        %v765 = vld [vmem:[%s1 + $0xee8] sm:$0xff]
        %v766 = vld [vmem:[%s1 + $0xef0] sm:$0xff]
        %v767 = vld [vmem:[%s1 + $0xef8] sm:$0xff]
        %v768 = vld [vmem:[%s1 + $0xf00] sm:$0xff]
        %v769 = vld [vmem:[%s1 + $0xf08] sm:$0xff]
        %v770 = vld [vmem:[%s1 + $0xf10] sm:$0xff]
        %v771 = vld [vmem:[%s1 + $0xf18] sm:$0xff]
        %v772 = vld [vmem:[%s1 + $0xf20] sm:$0xff]
        %v773 = vld [vmem:[%s1 + $0xf28] sm:$0xff]
        %v774 = vld [vmem:[%s1 + $0xf30] sm:$0xff]
        %v775 = vld [vmem:[%s1 + $0xf38] sm:$0xff]
        %v776 = vld [vmem:[%s1 + $0xf40] sm:$0xff]
        %v777 = vld [vmem:[%s1 + $0xf48] sm:$0xff]
        %v778 = vld [vmem:[%s1 + $0xf50] sm:$0xff]
        %v779 = vld [vmem:[%s1 + $0xf58] sm:$0xff]
        %v780 = vld [vmem:[%s1 + $0xf60] sm:$0xff]
        %v781 = vld [vmem:[%s1 + $0xf68] sm:$0xff]
        %v782 = vld [vmem:[%s1 + $0xf70] sm:$0xff]
        %v783 = vld [vmem:[%s1 + $0xf78] sm:$0xff]
        %v784 = vld [vmem:[%s1 + $0xf80] sm:$0xff]
        %v785 = vld [vmem:[%s1 + $0xf88] sm:$0xff]
        %v786 = vld [vmem:[%s1 + $0xf90] sm:$0xff]
        %v787 = vld [vmem:[%s1 + $0xf98] sm:$0xff]
        %v788 = vld [vmem:[%s1 + $0xfa0] sm:$0xff]
        %v789 = vld [vmem:[%s1 + $0xfa8] sm:$0xff]
        %v790 = vld [vmem:[%s1 + $0xfb0] sm:$0xff]
        %v791 = vld [vmem:[%s1 + $0xfb8] sm:$0xff]
        %v792 = vld [vmem:[%s1 + $0xfc0] sm:$0xff]
        %v793 = vld [vmem:[%s1 + $0xfc8] sm:$0xff]
        %v794 = vld [vmem:[%s1 + $0xfd0] sm:$0xff]
        %v795 = vld [vmem:[%s1 + $0xfd8] sm:$0xff]
        %v796 = vld [vmem:[%s1 + $0xfe0] sm:$0xff]
        %v797 = vld [vmem:[%s1 + $0xfe8] sm:$0xff]
        %v798 = vld [vmem:[%s1 + $0xff0] sm:$0xff]
        %v799 = vld [vmem:[%s1 + $0xff8] sm:$0xff]
        %v800 = vld [vmem:[%s1 + $0x1000] sm:$0xff]
        %v801 = vld [vmem:[%s1 + $0x1008] sm:$0xff]
        %v802 = vld [vmem:[%s1 + $0x1010] sm:$0xff]
        %v803 = vld [vmem:[%s1 + $0x1018] sm:$0xff]
        %v804 = vld [vmem:[%s1 + $0x1020] sm:$0xff]
        %v805 = vld [vmem:[%s1 + $0x1028] sm:$0xff]
        %v806 = vld [vmem:[%s1 + $0x1030] sm:$0xff]
        %v807 = vld [vmem:[%s1 + $0x1038] sm:$0xff]
        %v808 = vld [vmem:[%s1 + $0x1040] sm:$0xff]
        %v809 = vld [vmem:[%s1 + $0x1048] sm:$0xff]
        %v810 = vld [vmem:[%s1 + $0x1050] sm:$0xff]
        %v811 = vld [vmem:[%s1 + $0x1058] sm:$0xff]
        %v812 = vld [vmem:[%s1 + $0x1060] sm:$0xff]
        %v813 = vld [vmem:[%s1 + $0x1068] sm:$0xff]
        %v814 = vld [vmem:[%s1 + $0x1070] sm:$0xff]
        %v815 = vld [vmem:[%s1 + $0x1078] sm:$0xff]
        %v816 = vld [vmem:[%s1 + $0x1080] sm:$0xff]
        %v817 = vld [vmem:[%s1 + $0x1088] sm:$0xff]
        %v818 = vld [vmem:[%s1 + $0x1090] sm:$0xff]
        %v819 = vld [vmem:[%s1 + $0x1098] sm:$0xff]
        %v820 = vld [vmem:[%s1 + $0x10a0] sm:$0xff]
        %v821 = vld [vmem:[%s1 + $0x10a8] sm:$0xff]
        %v822 = vld [vmem:[%s1 + $0x10b0] sm:$0xff]
        %v823 = vld [vmem:[%s1 + $0x10b8] sm:$0xff]
        %v824 = vld [vmem:[%s1 + $0x10c0] sm:$0xff]
        %v825 = vld [vmem:[%s1 + $0x10c8] sm:$0xff]
        %v826 = vld [vmem:[%s1 + $0x10d0] sm:$0xff]
        %v827 = vld [vmem:[%s1 + $0x10d8] sm:$0xff]
        %v828 = vld [vmem:[%s1 + $0x10e0] sm:$0xff]
        %v829 = vld [vmem:[%s1 + $0x10e8] sm:$0xff]
        %v830 = vld [vmem:[%s1 + $0x10f0] sm:$0xff]
        %v831 = vld [vmem:[%s1 + $0x10f8] sm:$0xff]
        %v832 = vld [vmem:[%s1 + $0x1100] sm:$0xff]
        %v833 = vld [vmem:[%s1 + $0x1108] sm:$0xff]
        %v834 = vld [vmem:[%s1 + $0x1110] sm:$0xff]
        %v835 = vld [vmem:[%s1 + $0x1118] sm:$0xff]
        %v836 = vld [vmem:[%s1 + $0x1120] sm:$0xff]
        %v837 = vld [vmem:[%s1 + $0x1128] sm:$0xff]
        %v838 = vld [vmem:[%s1 + $0x1130] sm:$0xff]
        %v839 = vld [vmem:[%s1 + $0x1138] sm:$0xff]
        %v840 = vld [vmem:[%s1 + $0x1140] sm:$0xff]
        %v841 = vld [vmem:[%s1 + $0x1148] sm:$0xff]
        %v842 = vld [vmem:[%s1 + $0x1150] sm:$0xff]
        %v843 = vld [vmem:[%s1 + $0x1158] sm:$0xff]
        %v844 = vld [vmem:[%s1 + $0x1160] sm:$0xff]
        %v845 = vld [vmem:[%s1 + $0x1168] sm:$0xff]
        %v846 = vld [vmem:[%s1 + $0x1170] sm:$0xff]
        %v847 = vld [vmem:[%s1 + $0x1178] sm:$0xff]
        %v848 = vld [vmem:[%s1 + $0x1180] sm:$0xff]
        %v849 = vld [vmem:[%s1 + $0x1188] sm:$0xff]
        %v850 = vld [vmem:[%s1 + $0x1190] sm:$0xff]
        %v851 = vld [vmem:[%s1 + $0x1198] sm:$0xff]
        %v852 = vld [vmem:[%s1 + $0x11a0] sm:$0xff]
        %v853 = vld [vmem:[%s1 + $0x11a8] sm:$0xff]
        %v854 = vld [vmem:[%s1 + $0x11b0] sm:$0xff]
        %v855 = vld [vmem:[%s1 + $0x11b8] sm:$0xff]
        %v856 = vld [vmem:[%s1 + $0x11c0] sm:$0xff]
        %v857 = vld [vmem:[%s1 + $0x11c8] sm:$0xff]
        %v858 = vld [vmem:[%s1 + $0x11d0] sm:$0xff]
        %v859 = vld [vmem:[%s1 + $0x11d8] sm:$0xff]
        %v860 = vld [vmem:[%s1 + $0x11e0] sm:$0xff]
        %v861 = vld [vmem:[%s1 + $0x11e8] sm:$0xff]
        %v862 = vld [vmem:[%s1 + $0x11f0] sm:$0xff]
        %v863 = vld [vmem:[%s1 + $0x11f8] sm:$0xff]
        %v864 = vld [vmem:[%s1 + $0x1200] sm:$0xff]
        %v865 = vld [vmem:[%s1 + $0x1208] sm:$0xff]
        %v866 = vld [vmem:[%s1 + $0x1210] sm:$0xff]
        %v867 = vld [vmem:[%s1 + $0x1218] sm:$0xff]
        %v868 = vld [vmem:[%s1 + $0x1220] sm:$0xff]
        %v869 = vld [vmem:[%s1 + $0x1228] sm:$0xff]
        %v870 = vld [vmem:[%s1 + $0x1230] sm:$0xff]
        %v871 = vld [vmem:[%s1 + $0x1238] sm:$0xff]
        %v872 = vld [vmem:[%s1 + $0x1240] sm:$0xff]
        %v873 = vld [vmem:[%s1 + $0x1248] sm:$0xff]
        %v874 = vld [vmem:[%s1 + $0x1250] sm:$0xff]
        %v875 = vld [vmem:[%s1 + $0x1258] sm:$0xff]
        %v876 = vld [vmem:[%s1 + $0x1260] sm:$0xff]
        %v877 = vld [vmem:[%s1 + $0x1268] sm:$0xff]
        %v878 = vld [vmem:[%s1 + $0x1270] sm:$0xff]
        %v879 = vld [vmem:[%s1 + $0x1278] sm:$0xff]
        %v880 = vld [vmem:[%s1 + $0x1280] sm:$0xff]
        %v881 = vld [vmem:[%s1 + $0x1288] sm:$0xff]
        %v882 = vld [vmem:[%s1 + $0x1290] sm:$0xff]
        %v883 = vld [vmem:[%s1 + $0x1298] sm:$0xff]
        %v884 = vld [vmem:[%s1 + $0x12a0] sm:$0xff]
        %v885 = vld [vmem:[%s1 + $0x12a8] sm:$0xff]
        %v886 = vld [vmem:[%s1 + $0x12b0] sm:$0xff]
        %v887 = vld [vmem:[%s1 + $0x12b8] sm:$0xff]
        %v888 = vld [vmem:[%s1 + $0x12c0] sm:$0xff]
        %v889 = vld [vmem:[%s1 + $0x12c8] sm:$0xff]
        %v890 = vld [vmem:[%s1 + $0x12d0] sm:$0xff]
        %v891 = vld [vmem:[%s1 + $0x12d8] sm:$0xff]
        %v892 = vld [vmem:[%s1 + $0x12e0] sm:$0xff]
        %v893 = vld [vmem:[%s1 + $0x12e8] sm:$0xff]
        %v894 = vld [vmem:[%s1 + $0x12f0] sm:$0xff]
        %v895 = vld [vmem:[%s1 + $0x12f8] sm:$0xff]
        %v896 = vld [vmem:[%s1 + $0x1300] sm:$0xff]
        %v897 = vld [vmem:[%s1 + $0x1308] sm:$0xff]
        %v898 = vld [vmem:[%s1 + $0x1310] sm:$0xff]
        %v899 = vld [vmem:[%s1 + $0x1318] sm:$0xff]
        %v900 = vld [vmem:[%s1 + $0x1320] sm:$0xff]
        %v901 = vld [vmem:[%s1 + $0x1328] sm:$0xff]
        %v902 = vld [vmem:[%s1 + $0x1330] sm:$0xff]
        %v903 = vld [vmem:[%s1 + $0x1338] sm:$0xff]
        %v904 = vld [vmem:[%s1 + $0x1340] sm:$0xff]
        %v905 = vld [vmem:[%s1 + $0x1348] sm:$0xff]
        %v906 = vld [vmem:[%s1 + $0x1350] sm:$0xff]
        %v907 = vld [vmem:[%s1 + $0x1358] sm:$0xff]
        %v908 = vld [vmem:[%s1 + $0x1360] sm:$0xff]
        %v909 = vld [vmem:[%s1 + $0x1368] sm:$0xff]
        %v910 = vld [vmem:[%s1 + $0x1370] sm:$0xff]
        %v911 = vld [vmem:[%s1 + $0x1378] sm:$0xff]
        %v912 = vld [vmem:[%s1 + $0x1380] sm:$0xff]
        %v913 = vld [vmem:[%s1 + $0x1388] sm:$0xff]
        %v914 = vld [vmem:[%s1 + $0x1390] sm:$0xff]
        %v915 = vld [vmem:[%s1 + $0x1398] sm:$0xff]
        %v916 = vld [vmem:[%s1 + $0x13a0] sm:$0xff]
        %v917 = vld [vmem:[%s1 + $0x13a8] sm:$0xff]
        %v918 = vld [vmem:[%s1 + $0x13b0] sm:$0xff]
        %v919 = vld [vmem:[%s1 + $0x13b8] sm:$0xff]
        %v920 = vld [vmem:[%s1 + $0x13c0] sm:$0xff]
        %v921 = vld [vmem:[%s1 + $0x13c8] sm:$0xff]
        %v922 = vld [vmem:[%s1 + $0x13d0] sm:$0xff]
        %v923 = vld [vmem:[%s1 + $0x13d8] sm:$0xff]
        %v924 = vld [vmem:[%s1 + $0x13e0] sm:$0xff]
        %v925 = vld [vmem:[%s1 + $0x13e8] sm:$0xff]
        %v926 = vld [vmem:[%s1 + $0x13f0] sm:$0xff]
        %v927 = vld [vmem:[%s1 + $0x13f8] sm:$0xff]
        %v928 = vld [vmem:[%s1 + $0x1400] sm:$0xff]
        %v929 = vld [vmem:[%s1 + $0x1408] sm:$0xff]
        %v930 = vld [vmem:[%s1 + $0x1410] sm:$0xff]
        %v931 = vld [vmem:[%s1 + $0x1418] sm:$0xff]
        %v932 = vld [vmem:[%s1 + $0x1420] sm:$0xff]
        %v933 = vld [vmem:[%s1 + $0x1428] sm:$0xff]
        %v934 = vld [vmem:[%s1 + $0x1430] sm:$0xff]
        %v935 = vld [vmem:[%s1 + $0x1438] sm:$0xff]
        %v936 = vld [vmem:[%s1 + $0x1440] sm:$0xff]
        %v937 = vld [vmem:[%s1 + $0x1448] sm:$0xff]
        %v938 = vld [vmem:[%s1 + $0x1450] sm:$0xff]
        %v939 = vld [vmem:[%s1 + $0x1458] sm:$0xff]
        %v940 = vld [vmem:[%s1 + $0x1460] sm:$0xff]
        %v941 = vld [vmem:[%s1 + $0x1468] sm:$0xff]
        %v942 = vld [vmem:[%s1 + $0x1470] sm:$0xff]
        %v943 = vld [vmem:[%s1 + $0x1478] sm:$0xff]
        %v944 = vld [vmem:[%s1 + $0x1480] sm:$0xff]
        %v945 = vld [vmem:[%s1 + $0x1488] sm:$0xff]
        %v946 = vld [vmem:[%s1 + $0x1490] sm:$0xff]
        %v947 = vld [vmem:[%s1 + $0x1498] sm:$0xff]
        %v948 = vld [vmem:[%s1 + $0x14a0] sm:$0xff]
        %v949 = vld [vmem:[%s1 + $0x14a8] sm:$0xff]
        %v950 = vld [vmem:[%s1 + $0x14b0] sm:$0xff]
        %v951 = vld [vmem:[%s1 + $0x14b8] sm:$0xff]
        %v952 = vld [vmem:[%s1 + $0x14c0] sm:$0xff]
        %v953 = vld [vmem:[%s1 + $0x14c8] sm:$0xff]
        %v954 = vld [vmem:[%s1 + $0x14d0] sm:$0xff]
        %v955 = vld [vmem:[%s1 + $0x14d8] sm:$0xff]
        %v956 = vld [vmem:[%s1 + $0x14e0] sm:$0xff]
        %v957 = vld [vmem:[%s1 + $0x14e8] sm:$0xff]
        %v958 = vld [vmem:[%s1 + $0x14f0] sm:$0xff]
        %v959 = vld [vmem:[%s1 + $0x14f8] sm:$0xff]
        %v960 = vld [vmem:[%s1 + $0x1500] sm:$0xff]
        %v961 = vld [vmem:[%s1 + $0x1508] sm:$0xff]
        %v962 = vld [vmem:[%s1 + $0x1510] sm:$0xff]
        %v963 = vld [vmem:[%s1 + $0x1518] sm:$0xff]
        %v964 = vld [vmem:[%s1 + $0x1520] sm:$0xff]
        %v965 = vld [vmem:[%s1 + $0x1528] sm:$0xff]
        %v966 = vld [vmem:[%s1 + $0x1530] sm:$0xff]
        %v967 = vld [vmem:[%s1 + $0x1538] sm:$0xff]
        %v968 = vld [vmem:[%s1 + $0x1540] sm:$0xff]
        %v969 = vld [vmem:[%s1 + $0x1548] sm:$0xff]
        %v970 = vld [vmem:[%s1 + $0x1550] sm:$0xff]
        %v971 = vld [vmem:[%s1 + $0x1558] sm:$0xff]
        %v972 = vld [vmem:[%s1 + $0x1560] sm:$0xff]
        %v973 = vld [vmem:[%s1 + $0x1568] sm:$0xff]
        %v974 = vld [vmem:[%s1 + $0x1570] sm:$0xff]
        %v975 = vld [vmem:[%s1 + $0x1578] sm:$0xff]
        %v976 = vld [vmem:[%s1 + $0x1580] sm:$0xff]
        %v977 = vld [vmem:[%s1 + $0x1588] sm:$0xff]
        %v978 = vld [vmem:[%s1 + $0x1590] sm:$0xff]
        %v979 = vld [vmem:[%s1 + $0x1598] sm:$0xff]
        %v980 = vld [vmem:[%s1 + $0x15a0] sm:$0xff]
        %v981 = vld [vmem:[%s1 + $0x15a8] sm:$0xff]
        %v982 = vld [vmem:[%s1 + $0x15b0] sm:$0xff]
        %v983 = vld [vmem:[%s1 + $0x15b8] sm:$0xff]
        %v984 = vld [vmem:[%s1 + $0x15c0] sm:$0xff]
        %v985 = vld [vmem:[%s1 + $0x15c8] sm:$0xff]
        %v986 = vld [vmem:[%s1 + $0x15d0] sm:$0xff]
        %v987 = vld [vmem:[%s1 + $0x15d8] sm:$0xff]
        %v988 = vld [vmem:[%s1 + $0x15e0] sm:$0xff]
        %v989 = vld [vmem:[%s1 + $0x15e8] sm:$0xff]
        %v990 = vld [vmem:[%s1 + $0x15f0] sm:$0xff]
        %v991 = vld [vmem:[%s1 + $0x15f8] sm:$0xff]
        %v992 = vld [vmem:[%s1 + $0x1600] sm:$0xff]
        %v993 = vld [vmem:[%s1 + $0x1608] sm:$0xff]
        %v994 = vld [vmem:[%s1 + $0x1610] sm:$0xff]
        %v995 = vld [vmem:[%s1 + $0x1618] sm:$0xff]
        %v996 = vld [vmem:[%s1 + $0x1620] sm:$0xff]
        %v997 = vld [vmem:[%s1 + $0x1628] sm:$0xff]
        %v998 = vld [vmem:[%s1 + $0x1630] sm:$0xff]
        %v999 = vld [vmem:[%s1 + $0x1638] sm:$0xff]
        %v1000 = vld [vmem:[%s1 + $0x1640] sm:$0xff]
        %v1001 = vld [vmem:[%s1 + $0x1648] sm:$0xff]
        %v1002 = vld [vmem:[%s1 + $0x1650] sm:$0xff]
        %v1003 = vld [vmem:[%s1 + $0x1658] sm:$0xff]
        %v1004 = vld [vmem:[%s1 + $0x1660] sm:$0xff]
        %v1005 = vld [vmem:[%s1 + $0x1668] sm:$0xff]
        %v1006 = vld [vmem:[%s1 + $0x1670] sm:$0xff]
        %v1007 = vld [vmem:[%s1 + $0x1678] sm:$0xff]
        %v1008 = vld [vmem:[%s1 + $0x1680] sm:$0xff]
        %v1009 = vld [vmem:[%s1 + $0x1688] sm:$0xff]
        %v1010 = vld [vmem:[%s1 + $0x1690] sm:$0xff]
        %v1011 = vld [vmem:[%s1 + $0x1698] sm:$0xff]
        %v1012 = vld [vmem:[%s1 + $0x16a0] sm:$0xff]
        %v1013 = vld [vmem:[%s1 + $0x16a8] sm:$0xff]
        %v1014 = vld [vmem:[%s1 + $0x16b0] sm:$0xff]
        %v1015 = vld [vmem:[%s1 + $0x16b8] sm:$0xff]
        %v1016 = vld [vmem:[%s1 + $0x16c0] sm:$0xff]
        %v1017 = vld [vmem:[%s1 + $0x16c8] sm:$0xff]
        %v1018 = vld [vmem:[%s1 + $0x16d0] sm:$0xff]
        %v1019 = vld [vmem:[%s1 + $0x16d8] sm:$0xff]
        %v1020 = vld [vmem:[%s1 + $0x16e0] sm:$0xff]
        %v1021 = vld [vmem:[%s1 + $0x16e8] sm:$0xff]
        %v1022 = vld [vmem:[%s1 + $0x16f0] sm:$0xff]
        %v1023 = vld [vmem:[%s1 + $0x16f8] sm:$0xff]
        %v1024 = vld [vmem:[%s1 + $0x1700] sm:$0xff]
        %v1025 = vld [vmem:[%s1 + $0x1708] sm:$0xff]
        %v1026 = vld [vmem:[%s1 + $0x1710] sm:$0xff]
        %v1027 = vld [vmem:[%s1 + $0x1718] sm:$0xff]
        %v1028 = vld [vmem:[%s1 + $0x1720] sm:$0xff]
        %v1029 = vld [vmem:[%s1 + $0x1728] sm:$0xff]
        %v1030 = vld [vmem:[%s1 + $0x1730] sm:$0xff]
        %v1031 = vld [vmem:[%s1 + $0x1738] sm:$0xff]
        %v1032 = vld [vmem:[%s1 + $0x1740] sm:$0xff]
        %v1033 = vld [vmem:[%s1 + $0x1748] sm:$0xff]
        %v1034 = vld [vmem:[%s1 + $0x1750] sm:$0xff]
        %v1035 = vld [vmem:[%s1 + $0x1758] sm:$0xff]
        %v1036 = vld [vmem:[%s1 + $0x1760] sm:$0xff]
        %v1037 = vld [vmem:[%s1 + $0x1768] sm:$0xff]
        %v1038 = vld [vmem:[%s1 + $0x1770] sm:$0xff]
        %v1039 = vld [vmem:[%s1 + $0x1778] sm:$0xff]
        %v1040 = vld [vmem:[%s1 + $0x1780] sm:$0xff]
        %v1041 = vld [vmem:[%s1 + $0x1788] sm:$0xff]
        %v1042 = vld [vmem:[%s1 + $0x1790] sm:$0xff]
        %v1043 = vld [vmem:[%s1 + $0x1798] sm:$0xff]
        %v1044 = vld [vmem:[%s1 + $0x17a0] sm:$0xff]
        %v1045 = vld [vmem:[%s1 + $0x17a8] sm:$0xff]
        %v1046 = vld [vmem:[%s1 + $0x17b0] sm:$0xff]
        %v1047 = vld [vmem:[%s1 + $0x17b8] sm:$0xff]
        %v1048 = vld [vmem:[%s1 + $0x17c0] sm:$0xff]
        %v1049 = vld [vmem:[%s1 + $0x17c8] sm:$0xff]
        %v1050 = vld [vmem:[%s1 + $0x17d0] sm:$0xff]
        %v1051 = vld [vmem:[%s1 + $0x17d8] sm:$0xff]
        %v1052 = vld [vmem:[%s1 + $0x17e0] sm:$0xff]
        %v1053 = vld [vmem:[%s1 + $0x17e8] sm:$0xff]
        %v1054 = vld [vmem:[%s1 + $0x17f0] sm:$0xff]
        %v1055 = vld [vmem:[%s1 + $0x17f8] sm:$0xff]
        %v1056 = vld [vmem:[%s2] sm:$0x3f]
        %v1058 = vlaneseq
        %v1059 = vshrl.u32 %v1058, 7
        %v1060 = vsub.s32 0, %v1059
        %v1061 = vrot.slane %v1056, %v1060
        %v1062 = vlaneseq
        %v1063 = vshrl.u32 %v1062, 7
        %v1064 = vsub.s32 1, %v1063
        %v1065 = vrot.slane %v1056, %v1064
        %v1066 = vlaneseq
        %v1067 = vshrl.u32 %v1066, 7
        %v1068 = vsub.s32 2, %v1067
        %v1069 = vrot.slane %v1056, %v1068
        %v1070 = vlaneseq
        %v1071 = vshrl.u32 %v1070, 7
        %v1072 = vsub.s32 3, %v1071
        %v1073 = vrot.slane %v1056, %v1072
        %v1074 = vlaneseq
        %v1075 = vshrl.u32 %v1074, 7
        %v1076 = vsub.s32 4, %v1075
        %v1077 = vrot.slane %v1056, %v1076
        %v1078 = vlaneseq
        %v1079 = vshrl.u32 %v1078, 7
        %v1080 = vsub.s32 5, %v1079
        %v1081 = vrot.slane %v1056, %v1080
        %v1152 = vunpack.c.l.b16 %v224
        %v1153 = vunpack.c.h.b16 %v224
        %v1154 = vunpack.c.l.b16 %v225
        %v1155 = vunpack.c.h.b16 %v225
        %v1156 = vunpack.c.l.b16 %v226
        %v1157 = vunpack.c.h.b16 %v226
        %v1158 = vunpack.c.l.b16 %v227
        %v1159 = vunpack.c.h.b16 %v227
        %v1160 = vunpack.c.l.b16 %v228
        %v1161 = vunpack.c.h.b16 %v228
        %v1162 = vunpack.c.l.b16 %v229
        %v1163 = vunpack.c.h.b16 %v229
        %v1164 = vunpack.c.l.b16 %v230
        %v1165 = vunpack.c.h.b16 %v230
        %v1166 = vunpack.c.l.b16 %v231
        %v1167 = vunpack.c.h.b16 %v231
        %v1168 = vunpack.c.l.b16 %v232
        %v1169 = vunpack.c.h.b16 %v232
        %v1170 = vunpack.c.l.b16 %v233
        %v1171 = vunpack.c.h.b16 %v233
        %v1172 = vunpack.c.l.b16 %v234
        %v1173 = vunpack.c.h.b16 %v234
        %v1174 = vunpack.c.l.b16 %v235
        %v1175 = vunpack.c.h.b16 %v235
        %v1176 = vunpack.c.l.b16 %v236
        %v1177 = vunpack.c.h.b16 %v236
        %v1178 = vunpack.c.l.b16 %v237
        %v1179 = vunpack.c.h.b16 %v237
        %v1180 = vunpack.c.l.b16 %v238
        %v1181 = vunpack.c.h.b16 %v238
        %v1182 = vunpack.c.l.b16 %v239
        %v1183 = vunpack.c.h.b16 %v239
        %v1184 = vunpack.c.l.b16 %v240
        %v1185 = vunpack.c.h.b16 %v240
        %v1186 = vunpack.c.l.b16 %v241
        %v1187 = vunpack.c.h.b16 %v241
        %v1188 = vunpack.c.l.b16 %v242
        %v1189 = vunpack.c.h.b16 %v242
        %v1190 = vunpack.c.l.b16 %v243
        %v1191 = vunpack.c.h.b16 %v243
        %v1192 = vunpack.c.l.b16 %v244
        %v1193 = vunpack.c.h.b16 %v244
        %v1194 = vunpack.c.l.b16 %v245
        %v1195 = vunpack.c.h.b16 %v245
        %v1196 = vunpack.c.l.b16 %v246
        %v1197 = vunpack.c.h.b16 %v246
        %v1198 = vunpack.c.l.b16 %v247
        %v1199 = vunpack.c.h.b16 %v247
        %v1200 = vunpack.c.l.b16 %v248
        %v1201 = vunpack.c.h.b16 %v248
        %v1202 = vunpack.c.l.b16 %v249
        %v1203 = vunpack.c.h.b16 %v249
        %v1204 = vunpack.c.l.b16 %v250
        %v1205 = vunpack.c.h.b16 %v250
        %v1206 = vunpack.c.l.b16 %v251
        %v1207 = vunpack.c.h.b16 %v251
        %v1208 = vunpack.c.l.b16 %v252
        %v1209 = vunpack.c.h.b16 %v252
        %v1210 = vunpack.c.l.b16 %v253
        %v1211 = vunpack.c.h.b16 %v253
        %v1212 = vunpack.c.l.b16 %v254
        %v1213 = vunpack.c.h.b16 %v254
        %v1214 = vunpack.c.l.b16 %v255
        %v1215 = vunpack.c.h.b16 %v255
        %v1216 = vunpack.c.l.b16 %v256
        %v1217 = vunpack.c.h.b16 %v256
        %v1218 = vunpack.c.l.b16 %v257
        %v1219 = vunpack.c.h.b16 %v257
        %v1220 = vunpack.c.l.b16 %v258
        %v1221 = vunpack.c.h.b16 %v258
        %v1222 = vunpack.c.l.b16 %v259
        %v1223 = vunpack.c.h.b16 %v259
        %v1224 = vunpack.c.l.b16 %v260
        %v1225 = vunpack.c.h.b16 %v260
        %v1226 = vunpack.c.l.b16 %v261
        %v1227 = vunpack.c.h.b16 %v261
        %v1228 = vunpack.c.l.b16 %v262
        %v1229 = vunpack.c.h.b16 %v262
        %v1230 = vunpack.c.l.b16 %v263
        %v1231 = vunpack.c.h.b16 %v263
        %v1232 = vunpack.c.l.b16 %v264
        %v1233 = vunpack.c.h.b16 %v264
        %v1234 = vunpack.c.l.b16 %v265
        %v1235 = vunpack.c.h.b16 %v265
        %v1236 = vunpack.c.l.b16 %v266
        %v1237 = vunpack.c.h.b16 %v266
        %v1238 = vunpack.c.l.b16 %v267
        %v1239 = vunpack.c.h.b16 %v267
        %v1240 = vunpack.c.l.b16 %v268
        %v1241 = vunpack.c.h.b16 %v268
        %v1242 = vunpack.c.l.b16 %v269
        %v1243 = vunpack.c.h.b16 %v269
        %v1244 = vunpack.c.l.b16 %v270
        %v1245 = vunpack.c.h.b16 %v270
        %v1246 = vunpack.c.l.b16 %v271
        %v1247 = vunpack.c.h.b16 %v271
        %v1248 = vunpack.c.l.b16 %v272
        %v1249 = vunpack.c.h.b16 %v272
        %v1250 = vunpack.c.l.b16 %v273
        %v1251 = vunpack.c.h.b16 %v273
        %v1252 = vunpack.c.l.b16 %v274
        %v1253 = vunpack.c.h.b16 %v274
        %v1254 = vunpack.c.l.b16 %v275
        %v1255 = vunpack.c.h.b16 %v275
        %v1256 = vunpack.c.l.b16 %v276
        %v1257 = vunpack.c.h.b16 %v276
        %v1258 = vunpack.c.l.b16 %v277
        %v1259 = vunpack.c.h.b16 %v277
        %v1260 = vunpack.c.l.b16 %v278
        %v1261 = vunpack.c.h.b16 %v278
        %v1262 = vunpack.c.l.b16 %v279
        %v1263 = vunpack.c.h.b16 %v279
        %v1264 = vunpack.c.l.b16 %v280
        %v1265 = vunpack.c.h.b16 %v280
        %v1266 = vunpack.c.l.b16 %v281
        %v1267 = vunpack.c.h.b16 %v281
        %v1268 = vunpack.c.l.b16 %v282
        %v1269 = vunpack.c.h.b16 %v282
        %v1270 = vunpack.c.l.b16 %v283
        %v1271 = vunpack.c.h.b16 %v283
        %v1272 = vunpack.c.l.b16 %v284
        %v1273 = vunpack.c.h.b16 %v284
        %v1274 = vunpack.c.l.b16 %v285
        %v1275 = vunpack.c.h.b16 %v285
        %v1276 = vunpack.c.l.b16 %v286
        %v1277 = vunpack.c.h.b16 %v286
        %v1278 = vunpack.c.l.b16 %v287
        %v1279 = vunpack.c.h.b16 %v287
        %v1280 = vpack.c.b16 %v1168, %v1152
        %v1281 = vpack.c.b16 %v1169, %v1153
        %v1282 = vpack.c.b16 %v1170, %v1154
        %v1283 = vpack.c.b16 %v1171, %v1155
        %v1284 = vpack.c.b16 %v1172, %v1156
        %v1285 = vpack.c.b16 %v1173, %v1157
        %v1286 = vpack.c.b16 %v1174, %v1158
        %v1287 = vpack.c.b16 %v1175, %v1159
        %v1288 = vpack.c.b16 %v1176, %v1160
        %v1289 = vpack.c.b16 %v1177, %v1161
        %v1290 = vpack.c.b16 %v1178, %v1162
        %v1291 = vpack.c.b16 %v1179, %v1163
        %v1292 = vpack.c.b16 %v1180, %v1164
        %v1293 = vpack.c.b16 %v1181, %v1165
        %v1294 = vpack.c.b16 %v1182, %v1166
        %v1295 = vpack.c.b16 %v1183, %v1167
        %v1296 = vpack.c.b16 %v1200, %v1184
        %v1297 = vpack.c.b16 %v1201, %v1185
        %v1298 = vpack.c.b16 %v1202, %v1186
        %v1299 = vpack.c.b16 %v1203, %v1187
        %v1300 = vpack.c.b16 %v1204, %v1188
        %v1301 = vpack.c.b16 %v1205, %v1189
        %v1302 = vpack.c.b16 %v1206, %v1190
        %v1303 = vpack.c.b16 %v1207, %v1191
        %v1304 = vpack.c.b16 %v1208, %v1192
        %v1305 = vpack.c.b16 %v1209, %v1193
        %v1306 = vpack.c.b16 %v1210, %v1194
        %v1307 = vpack.c.b16 %v1211, %v1195
        %v1308 = vpack.c.b16 %v1212, %v1196
        %v1309 = vpack.c.b16 %v1213, %v1197
        %v1310 = vpack.c.b16 %v1214, %v1198
        %v1311 = vpack.c.b16 %v1215, %v1199
        %v1312 = vpack.c.b16 %v1232, %v1216
        %v1313 = vpack.c.b16 %v1233, %v1217
        %v1314 = vpack.c.b16 %v1234, %v1218
        %v1315 = vpack.c.b16 %v1235, %v1219
        %v1316 = vpack.c.b16 %v1236, %v1220
        %v1317 = vpack.c.b16 %v1237, %v1221
        %v1318 = vpack.c.b16 %v1238, %v1222
        %v1319 = vpack.c.b16 %v1239, %v1223
        %v1320 = vpack.c.b16 %v1240, %v1224
        %v1321 = vpack.c.b16 %v1241, %v1225
        %v1322 = vpack.c.b16 %v1242, %v1226
        %v1323 = vpack.c.b16 %v1243, %v1227
        %v1324 = vpack.c.b16 %v1244, %v1228
        %v1325 = vpack.c.b16 %v1245, %v1229
        %v1326 = vpack.c.b16 %v1246, %v1230
        %v1327 = vpack.c.b16 %v1247, %v1231
        %v1328 = vpack.c.b16 %v1264, %v1248
        %v1329 = vpack.c.b16 %v1265, %v1249
        %v1330 = vpack.c.b16 %v1266, %v1250
        %v1331 = vpack.c.b16 %v1267, %v1251
        %v1332 = vpack.c.b16 %v1268, %v1252
        %v1333 = vpack.c.b16 %v1269, %v1253
        %v1334 = vpack.c.b16 %v1270, %v1254
        %v1335 = vpack.c.b16 %v1271, %v1255
        %v1336 = vpack.c.b16 %v1272, %v1256
        %v1337 = vpack.c.b16 %v1273, %v1257
        %v1338 = vpack.c.b16 %v1274, %v1258
        %v1339 = vpack.c.b16 %v1275, %v1259
        %v1340 = vpack.c.b16 %v1276, %v1260
        %v1341 = vpack.c.b16 %v1277, %v1261
        %v1342 = vpack.c.b16 %v1278, %v1262
        %v1343 = vpack.c.b16 %v1279, %v1263
        %v2176 = vunpack.c.l.b16 %v288
        %v2177 = vunpack.c.h.b16 %v288
        %v2178 = vunpack.c.l.b16 %v289
        %v2179 = vunpack.c.h.b16 %v289
        %v2180 = vunpack.c.l.b16 %v290
        %v2181 = vunpack.c.h.b16 %v290
        %v2182 = vunpack.c.l.b16 %v291
        %v2183 = vunpack.c.h.b16 %v291
        %v2184 = vunpack.c.l.b16 %v292
        %v2185 = vunpack.c.h.b16 %v292
        %v2186 = vunpack.c.l.b16 %v293
        %v2187 = vunpack.c.h.b16 %v293
        %v2188 = vunpack.c.l.b16 %v294
        %v2189 = vunpack.c.h.b16 %v294
        %v2190 = vunpack.c.l.b16 %v295
        %v2191 = vunpack.c.h.b16 %v295
        %v2192 = vunpack.c.l.b16 %v296
        %v2193 = vunpack.c.h.b16 %v296
        %v2194 = vunpack.c.l.b16 %v297
        %v2195 = vunpack.c.h.b16 %v297
        %v2196 = vunpack.c.l.b16 %v298
        %v2197 = vunpack.c.h.b16 %v298
        %v2198 = vunpack.c.l.b16 %v299
        %v2199 = vunpack.c.h.b16 %v299
        %v2200 = vunpack.c.l.b16 %v300
        %v2201 = vunpack.c.h.b16 %v300
        %v2202 = vunpack.c.l.b16 %v301
        %v2203 = vunpack.c.h.b16 %v301
        %v2204 = vunpack.c.l.b16 %v302
        %v2205 = vunpack.c.h.b16 %v302
        %v2206 = vunpack.c.l.b16 %v303
        %v2207 = vunpack.c.h.b16 %v303
        %v2208 = vunpack.c.l.b16 %v304
        %v2209 = vunpack.c.h.b16 %v304
        %v2210 = vunpack.c.l.b16 %v305
        %v2211 = vunpack.c.h.b16 %v305
        %v2212 = vunpack.c.l.b16 %v306
        %v2213 = vunpack.c.h.b16 %v306
        %v2214 = vunpack.c.l.b16 %v307
        %v2215 = vunpack.c.h.b16 %v307
        %v2216 = vunpack.c.l.b16 %v308
        %v2217 = vunpack.c.h.b16 %v308
        %v2218 = vunpack.c.l.b16 %v309
        %v2219 = vunpack.c.h.b16 %v309
        %v2220 = vunpack.c.l.b16 %v310
        %v2221 = vunpack.c.h.b16 %v310
        %v2222 = vunpack.c.l.b16 %v311
        %v2223 = vunpack.c.h.b16 %v311
        %v2224 = vunpack.c.l.b16 %v312
        %v2225 = vunpack.c.h.b16 %v312
        %v2226 = vunpack.c.l.b16 %v313
        %v2227 = vunpack.c.h.b16 %v313
        %v2228 = vunpack.c.l.b16 %v314
        %v2229 = vunpack.c.h.b16 %v314
        %v2230 = vunpack.c.l.b16 %v315
        %v2231 = vunpack.c.h.b16 %v315
        %v2232 = vunpack.c.l.b16 %v316
        %v2233 = vunpack.c.h.b16 %v316
        %v2234 = vunpack.c.l.b16 %v317
        %v2235 = vunpack.c.h.b16 %v317
        %v2236 = vunpack.c.l.b16 %v318
        %v2237 = vunpack.c.h.b16 %v318
        %v2238 = vunpack.c.l.b16 %v319
        %v2239 = vunpack.c.h.b16 %v319
        %v2240 = vunpack.c.l.b16 %v320
        %v2241 = vunpack.c.h.b16 %v320
        %v2242 = vunpack.c.l.b16 %v321
        %v2243 = vunpack.c.h.b16 %v321
        %v2244 = vunpack.c.l.b16 %v322
        %v2245 = vunpack.c.h.b16 %v322
        %v2246 = vunpack.c.l.b16 %v323
        %v2247 = vunpack.c.h.b16 %v323
        %v2248 = vunpack.c.l.b16 %v324
        %v2249 = vunpack.c.h.b16 %v324
        %v2250 = vunpack.c.l.b16 %v325
        %v2251 = vunpack.c.h.b16 %v325
        %v2252 = vunpack.c.l.b16 %v326
        %v2253 = vunpack.c.h.b16 %v326
        %v2254 = vunpack.c.l.b16 %v327
        %v2255 = vunpack.c.h.b16 %v327
        %v2256 = vunpack.c.l.b16 %v328
        %v2257 = vunpack.c.h.b16 %v328
        %v2258 = vunpack.c.l.b16 %v329
        %v2259 = vunpack.c.h.b16 %v329
        %v2260 = vunpack.c.l.b16 %v330
        %v2261 = vunpack.c.h.b16 %v330
        %v2262 = vunpack.c.l.b16 %v331
        %v2263 = vunpack.c.h.b16 %v331
        %v2264 = vunpack.c.l.b16 %v332
        %v2265 = vunpack.c.h.b16 %v332
        %v2266 = vunpack.c.l.b16 %v333
        %v2267 = vunpack.c.h.b16 %v333
        %v2268 = vunpack.c.l.b16 %v334
        %v2269 = vunpack.c.h.b16 %v334
        %v2270 = vunpack.c.l.b16 %v335
        %v2271 = vunpack.c.h.b16 %v335
        %v2272 = vunpack.c.l.b16 %v336
        %v2273 = vunpack.c.h.b16 %v336
        %v2274 = vunpack.c.l.b16 %v337
        %v2275 = vunpack.c.h.b16 %v337
        %v2276 = vunpack.c.l.b16 %v338
        %v2277 = vunpack.c.h.b16 %v338
        %v2278 = vunpack.c.l.b16 %v339
        %v2279 = vunpack.c.h.b16 %v339
        %v2280 = vunpack.c.l.b16 %v340
        %v2281 = vunpack.c.h.b16 %v340
        %v2282 = vunpack.c.l.b16 %v341
        %v2283 = vunpack.c.h.b16 %v341
        %v2284 = vunpack.c.l.b16 %v342
        %v2285 = vunpack.c.h.b16 %v342
        %v2286 = vunpack.c.l.b16 %v343
        %v2287 = vunpack.c.h.b16 %v343
        %v2288 = vunpack.c.l.b16 %v344
        %v2289 = vunpack.c.h.b16 %v344
        %v2290 = vunpack.c.l.b16 %v345
        %v2291 = vunpack.c.h.b16 %v345
        %v2292 = vunpack.c.l.b16 %v346
        %v2293 = vunpack.c.h.b16 %v346
        %v2294 = vunpack.c.l.b16 %v347
        %v2295 = vunpack.c.h.b16 %v347
        %v2296 = vunpack.c.l.b16 %v348
        %v2297 = vunpack.c.h.b16 %v348
        %v2298 = vunpack.c.l.b16 %v349
        %v2299 = vunpack.c.h.b16 %v349
        %v2300 = vunpack.c.l.b16 %v350
        %v2301 = vunpack.c.h.b16 %v350
        %v2302 = vunpack.c.l.b16 %v351
        %v2303 = vunpack.c.h.b16 %v351
        %v2304 = vunpack.c.l.b16 %v352
        %v2305 = vunpack.c.h.b16 %v352
        %v2306 = vunpack.c.l.b16 %v353
        %v2307 = vunpack.c.h.b16 %v353
        %v2308 = vunpack.c.l.b16 %v354
        %v2309 = vunpack.c.h.b16 %v354
        %v2310 = vunpack.c.l.b16 %v355
        %v2311 = vunpack.c.h.b16 %v355
        %v2312 = vunpack.c.l.b16 %v356
        %v2313 = vunpack.c.h.b16 %v356
        %v2314 = vunpack.c.l.b16 %v357
        %v2315 = vunpack.c.h.b16 %v357
        %v2316 = vunpack.c.l.b16 %v358
        %v2317 = vunpack.c.h.b16 %v358
        %v2318 = vunpack.c.l.b16 %v359
        %v2319 = vunpack.c.h.b16 %v359
        %v2320 = vunpack.c.l.b16 %v360
        %v2321 = vunpack.c.h.b16 %v360
        %v2322 = vunpack.c.l.b16 %v361
        %v2323 = vunpack.c.h.b16 %v361
        %v2324 = vunpack.c.l.b16 %v362
        %v2325 = vunpack.c.h.b16 %v362
        %v2326 = vunpack.c.l.b16 %v363
        %v2327 = vunpack.c.h.b16 %v363
        %v2328 = vunpack.c.l.b16 %v364
        %v2329 = vunpack.c.h.b16 %v364
        %v2330 = vunpack.c.l.b16 %v365
        %v2331 = vunpack.c.h.b16 %v365
        %v2332 = vunpack.c.l.b16 %v366
        %v2333 = vunpack.c.h.b16 %v366
        %v2334 = vunpack.c.l.b16 %v367
        %v2335 = vunpack.c.h.b16 %v367
        %v2336 = vunpack.c.l.b16 %v368
        %v2337 = vunpack.c.h.b16 %v368
        %v2338 = vunpack.c.l.b16 %v369
        %v2339 = vunpack.c.h.b16 %v369
        %v2340 = vunpack.c.l.b16 %v370
        %v2341 = vunpack.c.h.b16 %v370
        %v2342 = vunpack.c.l.b16 %v371
        %v2343 = vunpack.c.h.b16 %v371
        %v2344 = vunpack.c.l.b16 %v372
        %v2345 = vunpack.c.h.b16 %v372
        %v2346 = vunpack.c.l.b16 %v373
        %v2347 = vunpack.c.h.b16 %v373
        %v2348 = vunpack.c.l.b16 %v374
        %v2349 = vunpack.c.h.b16 %v374
        %v2350 = vunpack.c.l.b16 %v375
        %v2351 = vunpack.c.h.b16 %v375
        %v2352 = vunpack.c.l.b16 %v376
        %v2353 = vunpack.c.h.b16 %v376
        %v2354 = vunpack.c.l.b16 %v377
        %v2355 = vunpack.c.h.b16 %v377
        %v2356 = vunpack.c.l.b16 %v378
        %v2357 = vunpack.c.h.b16 %v378
        %v2358 = vunpack.c.l.b16 %v379
        %v2359 = vunpack.c.h.b16 %v379
        %v2360 = vunpack.c.l.b16 %v380
        %v2361 = vunpack.c.h.b16 %v380
        %v2362 = vunpack.c.l.b16 %v381
        %v2363 = vunpack.c.h.b16 %v381
        %v2364 = vunpack.c.l.b16 %v382
        %v2365 = vunpack.c.h.b16 %v382
        %v2366 = vunpack.c.l.b16 %v383
        %v2367 = vunpack.c.h.b16 %v383
        %v2368 = vunpack.c.l.b16 %v384
        %v2369 = vunpack.c.h.b16 %v384
        %v2370 = vunpack.c.l.b16 %v385
        %v2371 = vunpack.c.h.b16 %v385
        %v2372 = vunpack.c.l.b16 %v386
        %v2373 = vunpack.c.h.b16 %v386
        %v2374 = vunpack.c.l.b16 %v387
        %v2375 = vunpack.c.h.b16 %v387
        %v2376 = vunpack.c.l.b16 %v388
        %v2377 = vunpack.c.h.b16 %v388
        %v2378 = vunpack.c.l.b16 %v389
        %v2379 = vunpack.c.h.b16 %v389
        %v2380 = vunpack.c.l.b16 %v390
        %v2381 = vunpack.c.h.b16 %v390
        %v2382 = vunpack.c.l.b16 %v391
        %v2383 = vunpack.c.h.b16 %v391
        %v2384 = vunpack.c.l.b16 %v392
        %v2385 = vunpack.c.h.b16 %v392
        %v2386 = vunpack.c.l.b16 %v393
        %v2387 = vunpack.c.h.b16 %v393
        %v2388 = vunpack.c.l.b16 %v394
        %v2389 = vunpack.c.h.b16 %v394
        %v2390 = vunpack.c.l.b16 %v395
        %v2391 = vunpack.c.h.b16 %v395
        %v2392 = vunpack.c.l.b16 %v396
        %v2393 = vunpack.c.h.b16 %v396
        %v2394 = vunpack.c.l.b16 %v397
        %v2395 = vunpack.c.h.b16 %v397
        %v2396 = vunpack.c.l.b16 %v398
        %v2397 = vunpack.c.h.b16 %v398
        %v2398 = vunpack.c.l.b16 %v399
        %v2399 = vunpack.c.h.b16 %v399
        %v2400 = vunpack.c.l.b16 %v400
        %v2401 = vunpack.c.h.b16 %v400
        %v2402 = vunpack.c.l.b16 %v401
        %v2403 = vunpack.c.h.b16 %v401
        %v2404 = vunpack.c.l.b16 %v402
        %v2405 = vunpack.c.h.b16 %v402
        %v2406 = vunpack.c.l.b16 %v403
        %v2407 = vunpack.c.h.b16 %v403
        %v2408 = vunpack.c.l.b16 %v404
        %v2409 = vunpack.c.h.b16 %v404
        %v2410 = vunpack.c.l.b16 %v405
        %v2411 = vunpack.c.h.b16 %v405
        %v2412 = vunpack.c.l.b16 %v406
        %v2413 = vunpack.c.h.b16 %v406
        %v2414 = vunpack.c.l.b16 %v407
        %v2415 = vunpack.c.h.b16 %v407
        %v2416 = vunpack.c.l.b16 %v408
        %v2417 = vunpack.c.h.b16 %v408
        %v2418 = vunpack.c.l.b16 %v409
        %v2419 = vunpack.c.h.b16 %v409
        %v2420 = vunpack.c.l.b16 %v410
        %v2421 = vunpack.c.h.b16 %v410
        %v2422 = vunpack.c.l.b16 %v411
        %v2423 = vunpack.c.h.b16 %v411
        %v2424 = vunpack.c.l.b16 %v412
        %v2425 = vunpack.c.h.b16 %v412
        %v2426 = vunpack.c.l.b16 %v413
        %v2427 = vunpack.c.h.b16 %v413
        %v2428 = vunpack.c.l.b16 %v414
        %v2429 = vunpack.c.h.b16 %v414
        %v2430 = vunpack.c.l.b16 %v415
        %v2431 = vunpack.c.h.b16 %v415
        %v2432 = vunpack.c.l.b16 %v416
        %v2433 = vunpack.c.h.b16 %v416
        %v2434 = vunpack.c.l.b16 %v417
        %v2435 = vunpack.c.h.b16 %v417
        %v2436 = vunpack.c.l.b16 %v418
        %v2437 = vunpack.c.h.b16 %v418
        %v2438 = vunpack.c.l.b16 %v419
        %v2439 = vunpack.c.h.b16 %v419
        %v2440 = vunpack.c.l.b16 %v420
        %v2441 = vunpack.c.h.b16 %v420
        %v2442 = vunpack.c.l.b16 %v421
        %v2443 = vunpack.c.h.b16 %v421
        %v2444 = vunpack.c.l.b16 %v422
        %v2445 = vunpack.c.h.b16 %v422
        %v2446 = vunpack.c.l.b16 %v423
        %v2447 = vunpack.c.h.b16 %v423
        %v2448 = vunpack.c.l.b16 %v424
        %v2449 = vunpack.c.h.b16 %v424
        %v2450 = vunpack.c.l.b16 %v425
        %v2451 = vunpack.c.h.b16 %v425
        %v2452 = vunpack.c.l.b16 %v426
        %v2453 = vunpack.c.h.b16 %v426
        %v2454 = vunpack.c.l.b16 %v427
        %v2455 = vunpack.c.h.b16 %v427
        %v2456 = vunpack.c.l.b16 %v428
        %v2457 = vunpack.c.h.b16 %v428
        %v2458 = vunpack.c.l.b16 %v429
        %v2459 = vunpack.c.h.b16 %v429
        %v2460 = vunpack.c.l.b16 %v430
        %v2461 = vunpack.c.h.b16 %v430
        %v2462 = vunpack.c.l.b16 %v431
        %v2463 = vunpack.c.h.b16 %v431
        %v2464 = vunpack.c.l.b16 %v432
        %v2465 = vunpack.c.h.b16 %v432
        %v2466 = vunpack.c.l.b16 %v433
        %v2467 = vunpack.c.h.b16 %v433
        %v2468 = vunpack.c.l.b16 %v434
        %v2469 = vunpack.c.h.b16 %v434
        %v2470 = vunpack.c.l.b16 %v435
        %v2471 = vunpack.c.h.b16 %v435
        %v2472 = vunpack.c.l.b16 %v436
        %v2473 = vunpack.c.h.b16 %v436
        %v2474 = vunpack.c.l.b16 %v437
        %v2475 = vunpack.c.h.b16 %v437
        %v2476 = vunpack.c.l.b16 %v438
        %v2477 = vunpack.c.h.b16 %v438
        %v2478 = vunpack.c.l.b16 %v439
        %v2479 = vunpack.c.h.b16 %v439
        %v2480 = vunpack.c.l.b16 %v440
        %v2481 = vunpack.c.h.b16 %v440
        %v2482 = vunpack.c.l.b16 %v441
        %v2483 = vunpack.c.h.b16 %v441
        %v2484 = vunpack.c.l.b16 %v442
        %v2485 = vunpack.c.h.b16 %v442
        %v2486 = vunpack.c.l.b16 %v443
        %v2487 = vunpack.c.h.b16 %v443
        %v2488 = vunpack.c.l.b16 %v444
        %v2489 = vunpack.c.h.b16 %v444
        %v2490 = vunpack.c.l.b16 %v445
        %v2491 = vunpack.c.h.b16 %v445
        %v2492 = vunpack.c.l.b16 %v446
        %v2493 = vunpack.c.h.b16 %v446
        %v2494 = vunpack.c.l.b16 %v447
        %v2495 = vunpack.c.h.b16 %v447
        %v2496 = vunpack.c.l.b16 %v448
        %v2497 = vunpack.c.h.b16 %v448
        %v2498 = vunpack.c.l.b16 %v449
        %v2499 = vunpack.c.h.b16 %v449
        %v2500 = vunpack.c.l.b16 %v450
        %v2501 = vunpack.c.h.b16 %v450
        %v2502 = vunpack.c.l.b16 %v451
        %v2503 = vunpack.c.h.b16 %v451
        %v2504 = vunpack.c.l.b16 %v452
        %v2505 = vunpack.c.h.b16 %v452
        %v2506 = vunpack.c.l.b16 %v453
        %v2507 = vunpack.c.h.b16 %v453
        %v2508 = vunpack.c.l.b16 %v454
        %v2509 = vunpack.c.h.b16 %v454
        %v2510 = vunpack.c.l.b16 %v455
        %v2511 = vunpack.c.h.b16 %v455
        %v2512 = vunpack.c.l.b16 %v456
        %v2513 = vunpack.c.h.b16 %v456
        %v2514 = vunpack.c.l.b16 %v457
        %v2515 = vunpack.c.h.b16 %v457
        %v2516 = vunpack.c.l.b16 %v458
        %v2517 = vunpack.c.h.b16 %v458
        %v2518 = vunpack.c.l.b16 %v459
        %v2519 = vunpack.c.h.b16 %v459
        %v2520 = vunpack.c.l.b16 %v460
        %v2521 = vunpack.c.h.b16 %v460
        %v2522 = vunpack.c.l.b16 %v461
        %v2523 = vunpack.c.h.b16 %v461
        %v2524 = vunpack.c.l.b16 %v462
        %v2525 = vunpack.c.h.b16 %v462
        %v2526 = vunpack.c.l.b16 %v463
        %v2527 = vunpack.c.h.b16 %v463
        %v2528 = vunpack.c.l.b16 %v464
        %v2529 = vunpack.c.h.b16 %v464
        %v2530 = vunpack.c.l.b16 %v465
        %v2531 = vunpack.c.h.b16 %v465
        %v2532 = vunpack.c.l.b16 %v466
        %v2533 = vunpack.c.h.b16 %v466
        %v2534 = vunpack.c.l.b16 %v467
        %v2535 = vunpack.c.h.b16 %v467
        %v2536 = vunpack.c.l.b16 %v468
        %v2537 = vunpack.c.h.b16 %v468
        %v2538 = vunpack.c.l.b16 %v469
        %v2539 = vunpack.c.h.b16 %v469
        %v2540 = vunpack.c.l.b16 %v470
        %v2541 = vunpack.c.h.b16 %v470
        %v2542 = vunpack.c.l.b16 %v471
        %v2543 = vunpack.c.h.b16 %v471
        %v2544 = vunpack.c.l.b16 %v472
        %v2545 = vunpack.c.h.b16 %v472
        %v2546 = vunpack.c.l.b16 %v473
        %v2547 = vunpack.c.h.b16 %v473
        %v2548 = vunpack.c.l.b16 %v474
        %v2549 = vunpack.c.h.b16 %v474
        %v2550 = vunpack.c.l.b16 %v475
        %v2551 = vunpack.c.h.b16 %v475
        %v2552 = vunpack.c.l.b16 %v476
        %v2553 = vunpack.c.h.b16 %v476
        %v2554 = vunpack.c.l.b16 %v477
        %v2555 = vunpack.c.h.b16 %v477
        %v2556 = vunpack.c.l.b16 %v478
        %v2557 = vunpack.c.h.b16 %v478
        %v2558 = vunpack.c.l.b16 %v479
        %v2559 = vunpack.c.h.b16 %v479
        %v2560 = vunpack.c.l.b16 %v480
        %v2561 = vunpack.c.h.b16 %v480
        %v2562 = vunpack.c.l.b16 %v481
        %v2563 = vunpack.c.h.b16 %v481
        %v2564 = vunpack.c.l.b16 %v482
        %v2565 = vunpack.c.h.b16 %v482
        %v2566 = vunpack.c.l.b16 %v483
        %v2567 = vunpack.c.h.b16 %v483
        %v2568 = vunpack.c.l.b16 %v484
        %v2569 = vunpack.c.h.b16 %v484
        %v2570 = vunpack.c.l.b16 %v485
        %v2571 = vunpack.c.h.b16 %v485
        %v2572 = vunpack.c.l.b16 %v486
        %v2573 = vunpack.c.h.b16 %v486
        %v2574 = vunpack.c.l.b16 %v487
        %v2575 = vunpack.c.h.b16 %v487
        %v2576 = vunpack.c.l.b16 %v488
        %v2577 = vunpack.c.h.b16 %v488
        %v2578 = vunpack.c.l.b16 %v489
        %v2579 = vunpack.c.h.b16 %v489
        %v2580 = vunpack.c.l.b16 %v490
        %v2581 = vunpack.c.h.b16 %v490
        %v2582 = vunpack.c.l.b16 %v491
        %v2583 = vunpack.c.h.b16 %v491
        %v2584 = vunpack.c.l.b16 %v492
        %v2585 = vunpack.c.h.b16 %v492
        %v2586 = vunpack.c.l.b16 %v493
        %v2587 = vunpack.c.h.b16 %v493
        %v2588 = vunpack.c.l.b16 %v494
        %v2589 = vunpack.c.h.b16 %v494
        %v2590 = vunpack.c.l.b16 %v495
        %v2591 = vunpack.c.h.b16 %v495
        %v2592 = vunpack.c.l.b16 %v496
        %v2593 = vunpack.c.h.b16 %v496
        %v2594 = vunpack.c.l.b16 %v497
        %v2595 = vunpack.c.h.b16 %v497
        %v2596 = vunpack.c.l.b16 %v498
        %v2597 = vunpack.c.h.b16 %v498
        %v2598 = vunpack.c.l.b16 %v499
        %v2599 = vunpack.c.h.b16 %v499
        %v2600 = vunpack.c.l.b16 %v500
        %v2601 = vunpack.c.h.b16 %v500
        %v2602 = vunpack.c.l.b16 %v501
        %v2603 = vunpack.c.h.b16 %v501
        %v2604 = vunpack.c.l.b16 %v502
        %v2605 = vunpack.c.h.b16 %v502
        %v2606 = vunpack.c.l.b16 %v503
        %v2607 = vunpack.c.h.b16 %v503
        %v2608 = vunpack.c.l.b16 %v504
        %v2609 = vunpack.c.h.b16 %v504
        %v2610 = vunpack.c.l.b16 %v505
        %v2611 = vunpack.c.h.b16 %v505
        %v2612 = vunpack.c.l.b16 %v506
        %v2613 = vunpack.c.h.b16 %v506
        %v2614 = vunpack.c.l.b16 %v507
        %v2615 = vunpack.c.h.b16 %v507
        %v2616 = vunpack.c.l.b16 %v508
        %v2617 = vunpack.c.h.b16 %v508
        %v2618 = vunpack.c.l.b16 %v509
        %v2619 = vunpack.c.h.b16 %v509
        %v2620 = vunpack.c.l.b16 %v510
        %v2621 = vunpack.c.h.b16 %v510
        %v2622 = vunpack.c.l.b16 %v511
        %v2623 = vunpack.c.h.b16 %v511
        %v2624 = vunpack.c.l.b16 %v512
        %v2625 = vunpack.c.h.b16 %v512
        %v2626 = vunpack.c.l.b16 %v513
        %v2627 = vunpack.c.h.b16 %v513
        %v2628 = vunpack.c.l.b16 %v514
        %v2629 = vunpack.c.h.b16 %v514
        %v2630 = vunpack.c.l.b16 %v515
        %v2631 = vunpack.c.h.b16 %v515
        %v2632 = vunpack.c.l.b16 %v516
        %v2633 = vunpack.c.h.b16 %v516
        %v2634 = vunpack.c.l.b16 %v517
        %v2635 = vunpack.c.h.b16 %v517
        %v2636 = vunpack.c.l.b16 %v518
        %v2637 = vunpack.c.h.b16 %v518
        %v2638 = vunpack.c.l.b16 %v519
        %v2639 = vunpack.c.h.b16 %v519
        %v2640 = vunpack.c.l.b16 %v520
        %v2641 = vunpack.c.h.b16 %v520
        %v2642 = vunpack.c.l.b16 %v521
        %v2643 = vunpack.c.h.b16 %v521
        %v2644 = vunpack.c.l.b16 %v522
        %v2645 = vunpack.c.h.b16 %v522
        %v2646 = vunpack.c.l.b16 %v523
        %v2647 = vunpack.c.h.b16 %v523
        %v2648 = vunpack.c.l.b16 %v524
        %v2649 = vunpack.c.h.b16 %v524
        %v2650 = vunpack.c.l.b16 %v525
        %v2651 = vunpack.c.h.b16 %v525
        %v2652 = vunpack.c.l.b16 %v526
        %v2653 = vunpack.c.h.b16 %v526
        %v2654 = vunpack.c.l.b16 %v527
        %v2655 = vunpack.c.h.b16 %v527
        %v2656 = vunpack.c.l.b16 %v528
        %v2657 = vunpack.c.h.b16 %v528
        %v2658 = vunpack.c.l.b16 %v529
        %v2659 = vunpack.c.h.b16 %v529
        %v2660 = vunpack.c.l.b16 %v530
        %v2661 = vunpack.c.h.b16 %v530
        %v2662 = vunpack.c.l.b16 %v531
        %v2663 = vunpack.c.h.b16 %v531
        %v2664 = vunpack.c.l.b16 %v532
        %v2665 = vunpack.c.h.b16 %v532
        %v2666 = vunpack.c.l.b16 %v533
        %v2667 = vunpack.c.h.b16 %v533
        %v2668 = vunpack.c.l.b16 %v534
        %v2669 = vunpack.c.h.b16 %v534
        %v2670 = vunpack.c.l.b16 %v535
        %v2671 = vunpack.c.h.b16 %v535
        %v2672 = vunpack.c.l.b16 %v536
        %v2673 = vunpack.c.h.b16 %v536
        %v2674 = vunpack.c.l.b16 %v537
        %v2675 = vunpack.c.h.b16 %v537
        %v2676 = vunpack.c.l.b16 %v538
        %v2677 = vunpack.c.h.b16 %v538
        %v2678 = vunpack.c.l.b16 %v539
        %v2679 = vunpack.c.h.b16 %v539
        %v2680 = vunpack.c.l.b16 %v540
        %v2681 = vunpack.c.h.b16 %v540
        %v2682 = vunpack.c.l.b16 %v541
        %v2683 = vunpack.c.h.b16 %v541
        %v2684 = vunpack.c.l.b16 %v542
        %v2685 = vunpack.c.h.b16 %v542
        %v2686 = vunpack.c.l.b16 %v543
        %v2687 = vunpack.c.h.b16 %v543
        %v2688 = vunpack.c.l.b16 %v544
        %v2689 = vunpack.c.h.b16 %v544
        %v2690 = vunpack.c.l.b16 %v545
        %v2691 = vunpack.c.h.b16 %v545
        %v2692 = vunpack.c.l.b16 %v546
        %v2693 = vunpack.c.h.b16 %v546
        %v2694 = vunpack.c.l.b16 %v547
        %v2695 = vunpack.c.h.b16 %v547
        %v2696 = vunpack.c.l.b16 %v548
        %v2697 = vunpack.c.h.b16 %v548
        %v2698 = vunpack.c.l.b16 %v549
        %v2699 = vunpack.c.h.b16 %v549
        %v2700 = vunpack.c.l.b16 %v550
        %v2701 = vunpack.c.h.b16 %v550
        %v2702 = vunpack.c.l.b16 %v551
        %v2703 = vunpack.c.h.b16 %v551
        %v2704 = vunpack.c.l.b16 %v552
        %v2705 = vunpack.c.h.b16 %v552
        %v2706 = vunpack.c.l.b16 %v553
        %v2707 = vunpack.c.h.b16 %v553
        %v2708 = vunpack.c.l.b16 %v554
        %v2709 = vunpack.c.h.b16 %v554
        %v2710 = vunpack.c.l.b16 %v555
        %v2711 = vunpack.c.h.b16 %v555
        %v2712 = vunpack.c.l.b16 %v556
        %v2713 = vunpack.c.h.b16 %v556
        %v2714 = vunpack.c.l.b16 %v557
        %v2715 = vunpack.c.h.b16 %v557
        %v2716 = vunpack.c.l.b16 %v558
        %v2717 = vunpack.c.h.b16 %v558
        %v2718 = vunpack.c.l.b16 %v559
        %v2719 = vunpack.c.h.b16 %v559
        %v2720 = vunpack.c.l.b16 %v560
        %v2721 = vunpack.c.h.b16 %v560
        %v2722 = vunpack.c.l.b16 %v561
        %v2723 = vunpack.c.h.b16 %v561
        %v2724 = vunpack.c.l.b16 %v562
        %v2725 = vunpack.c.h.b16 %v562
        %v2726 = vunpack.c.l.b16 %v563
        %v2727 = vunpack.c.h.b16 %v563
        %v2728 = vunpack.c.l.b16 %v564
        %v2729 = vunpack.c.h.b16 %v564
        %v2730 = vunpack.c.l.b16 %v565
        %v2731 = vunpack.c.h.b16 %v565
        %v2732 = vunpack.c.l.b16 %v566
        %v2733 = vunpack.c.h.b16 %v566
        %v2734 = vunpack.c.l.b16 %v567
        %v2735 = vunpack.c.h.b16 %v567
        %v2736 = vunpack.c.l.b16 %v568
        %v2737 = vunpack.c.h.b16 %v568
        %v2738 = vunpack.c.l.b16 %v569
        %v2739 = vunpack.c.h.b16 %v569
        %v2740 = vunpack.c.l.b16 %v570
        %v2741 = vunpack.c.h.b16 %v570
        %v2742 = vunpack.c.l.b16 %v571
        %v2743 = vunpack.c.h.b16 %v571
        %v2744 = vunpack.c.l.b16 %v572
        %v2745 = vunpack.c.h.b16 %v572
        %v2746 = vunpack.c.l.b16 %v573
        %v2747 = vunpack.c.h.b16 %v573
        %v2748 = vunpack.c.l.b16 %v574
        %v2749 = vunpack.c.h.b16 %v574
        %v2750 = vunpack.c.l.b16 %v575
        %v2751 = vunpack.c.h.b16 %v575
        %v2752 = vunpack.c.l.b16 %v576
        %v2753 = vunpack.c.h.b16 %v576
        %v2754 = vunpack.c.l.b16 %v577
        %v2755 = vunpack.c.h.b16 %v577
        %v2756 = vunpack.c.l.b16 %v578
        %v2757 = vunpack.c.h.b16 %v578
        %v2758 = vunpack.c.l.b16 %v579
        %v2759 = vunpack.c.h.b16 %v579
        %v2760 = vunpack.c.l.b16 %v580
        %v2761 = vunpack.c.h.b16 %v580
        %v2762 = vunpack.c.l.b16 %v581
        %v2763 = vunpack.c.h.b16 %v581
        %v2764 = vunpack.c.l.b16 %v582
        %v2765 = vunpack.c.h.b16 %v582
        %v2766 = vunpack.c.l.b16 %v583
        %v2767 = vunpack.c.h.b16 %v583
        %v2768 = vunpack.c.l.b16 %v584
        %v2769 = vunpack.c.h.b16 %v584
        %v2770 = vunpack.c.l.b16 %v585
        %v2771 = vunpack.c.h.b16 %v585
        %v2772 = vunpack.c.l.b16 %v586
        %v2773 = vunpack.c.h.b16 %v586
        %v2774 = vunpack.c.l.b16 %v587
        %v2775 = vunpack.c.h.b16 %v587
        %v2776 = vunpack.c.l.b16 %v588
        %v2777 = vunpack.c.h.b16 %v588
        %v2778 = vunpack.c.l.b16 %v589
        %v2779 = vunpack.c.h.b16 %v589
        %v2780 = vunpack.c.l.b16 %v590
        %v2781 = vunpack.c.h.b16 %v590
        %v2782 = vunpack.c.l.b16 %v591
        %v2783 = vunpack.c.h.b16 %v591
        %v2784 = vunpack.c.l.b16 %v592
        %v2785 = vunpack.c.h.b16 %v592
        %v2786 = vunpack.c.l.b16 %v593
        %v2787 = vunpack.c.h.b16 %v593
        %v2788 = vunpack.c.l.b16 %v594
        %v2789 = vunpack.c.h.b16 %v594
        %v2790 = vunpack.c.l.b16 %v595
        %v2791 = vunpack.c.h.b16 %v595
        %v2792 = vunpack.c.l.b16 %v596
        %v2793 = vunpack.c.h.b16 %v596
        %v2794 = vunpack.c.l.b16 %v597
        %v2795 = vunpack.c.h.b16 %v597
        %v2796 = vunpack.c.l.b16 %v598
        %v2797 = vunpack.c.h.b16 %v598
        %v2798 = vunpack.c.l.b16 %v599
        %v2799 = vunpack.c.h.b16 %v599
        %v2800 = vunpack.c.l.b16 %v600
        %v2801 = vunpack.c.h.b16 %v600
        %v2802 = vunpack.c.l.b16 %v601
        %v2803 = vunpack.c.h.b16 %v601
        %v2804 = vunpack.c.l.b16 %v602
        %v2805 = vunpack.c.h.b16 %v602
        %v2806 = vunpack.c.l.b16 %v603
        %v2807 = vunpack.c.h.b16 %v603
        %v2808 = vunpack.c.l.b16 %v604
        %v2809 = vunpack.c.h.b16 %v604
        %v2810 = vunpack.c.l.b16 %v605
        %v2811 = vunpack.c.h.b16 %v605
        %v2812 = vunpack.c.l.b16 %v606
        %v2813 = vunpack.c.h.b16 %v606
        %v2814 = vunpack.c.l.b16 %v607
        %v2815 = vunpack.c.h.b16 %v607
        %v2816 = vunpack.c.l.b16 %v608
        %v2817 = vunpack.c.h.b16 %v608
        %v2818 = vunpack.c.l.b16 %v609
        %v2819 = vunpack.c.h.b16 %v609
        %v2820 = vunpack.c.l.b16 %v610
        %v2821 = vunpack.c.h.b16 %v610
        %v2822 = vunpack.c.l.b16 %v611
        %v2823 = vunpack.c.h.b16 %v611
        %v2824 = vunpack.c.l.b16 %v612
        %v2825 = vunpack.c.h.b16 %v612
        %v2826 = vunpack.c.l.b16 %v613
        %v2827 = vunpack.c.h.b16 %v613
        %v2828 = vunpack.c.l.b16 %v614
        %v2829 = vunpack.c.h.b16 %v614
        %v2830 = vunpack.c.l.b16 %v615
        %v2831 = vunpack.c.h.b16 %v615
        %v2832 = vunpack.c.l.b16 %v616
        %v2833 = vunpack.c.h.b16 %v616
        %v2834 = vunpack.c.l.b16 %v617
        %v2835 = vunpack.c.h.b16 %v617
        %v2836 = vunpack.c.l.b16 %v618
        %v2837 = vunpack.c.h.b16 %v618
        %v2838 = vunpack.c.l.b16 %v619
        %v2839 = vunpack.c.h.b16 %v619
        %v2840 = vunpack.c.l.b16 %v620
        %v2841 = vunpack.c.h.b16 %v620
        %v2842 = vunpack.c.l.b16 %v621
        %v2843 = vunpack.c.h.b16 %v621
        %v2844 = vunpack.c.l.b16 %v622
        %v2845 = vunpack.c.h.b16 %v622
        %v2846 = vunpack.c.l.b16 %v623
        %v2847 = vunpack.c.h.b16 %v623
        %v2848 = vunpack.c.l.b16 %v624
        %v2849 = vunpack.c.h.b16 %v624
        %v2850 = vunpack.c.l.b16 %v625
        %v2851 = vunpack.c.h.b16 %v625
        %v2852 = vunpack.c.l.b16 %v626
        %v2853 = vunpack.c.h.b16 %v626
        %v2854 = vunpack.c.l.b16 %v627
        %v2855 = vunpack.c.h.b16 %v627
        %v2856 = vunpack.c.l.b16 %v628
        %v2857 = vunpack.c.h.b16 %v628
        %v2858 = vunpack.c.l.b16 %v629
        %v2859 = vunpack.c.h.b16 %v629
        %v2860 = vunpack.c.l.b16 %v630
        %v2861 = vunpack.c.h.b16 %v630
        %v2862 = vunpack.c.l.b16 %v631
        %v2863 = vunpack.c.h.b16 %v631
        %v2864 = vunpack.c.l.b16 %v632
        %v2865 = vunpack.c.h.b16 %v632
        %v2866 = vunpack.c.l.b16 %v633
        %v2867 = vunpack.c.h.b16 %v633
        %v2868 = vunpack.c.l.b16 %v634
        %v2869 = vunpack.c.h.b16 %v634
        %v2870 = vunpack.c.l.b16 %v635
        %v2871 = vunpack.c.h.b16 %v635
        %v2872 = vunpack.c.l.b16 %v636
        %v2873 = vunpack.c.h.b16 %v636
        %v2874 = vunpack.c.l.b16 %v637
        %v2875 = vunpack.c.h.b16 %v637
        %v2876 = vunpack.c.l.b16 %v638
        %v2877 = vunpack.c.h.b16 %v638
        %v2878 = vunpack.c.l.b16 %v639
        %v2879 = vunpack.c.h.b16 %v639
        %v2880 = vunpack.c.l.b16 %v640
        %v2881 = vunpack.c.h.b16 %v640
        %v2882 = vunpack.c.l.b16 %v641
        %v2883 = vunpack.c.h.b16 %v641
        %v2884 = vunpack.c.l.b16 %v642
        %v2885 = vunpack.c.h.b16 %v642
        %v2886 = vunpack.c.l.b16 %v643
        %v2887 = vunpack.c.h.b16 %v643
        %v2888 = vunpack.c.l.b16 %v644
        %v2889 = vunpack.c.h.b16 %v644
        %v2890 = vunpack.c.l.b16 %v645
        %v2891 = vunpack.c.h.b16 %v645
        %v2892 = vunpack.c.l.b16 %v646
        %v2893 = vunpack.c.h.b16 %v646
        %v2894 = vunpack.c.l.b16 %v647
        %v2895 = vunpack.c.h.b16 %v647
        %v2896 = vunpack.c.l.b16 %v648
        %v2897 = vunpack.c.h.b16 %v648
        %v2898 = vunpack.c.l.b16 %v649
        %v2899 = vunpack.c.h.b16 %v649
        %v2900 = vunpack.c.l.b16 %v650
        %v2901 = vunpack.c.h.b16 %v650
        %v2902 = vunpack.c.l.b16 %v651
        %v2903 = vunpack.c.h.b16 %v651
        %v2904 = vunpack.c.l.b16 %v652
        %v2905 = vunpack.c.h.b16 %v652
        %v2906 = vunpack.c.l.b16 %v653
        %v2907 = vunpack.c.h.b16 %v653
        %v2908 = vunpack.c.l.b16 %v654
        %v2909 = vunpack.c.h.b16 %v654
        %v2910 = vunpack.c.l.b16 %v655
        %v2911 = vunpack.c.h.b16 %v655
        %v2912 = vunpack.c.l.b16 %v656
        %v2913 = vunpack.c.h.b16 %v656
        %v2914 = vunpack.c.l.b16 %v657
        %v2915 = vunpack.c.h.b16 %v657
        %v2916 = vunpack.c.l.b16 %v658
        %v2917 = vunpack.c.h.b16 %v658
        %v2918 = vunpack.c.l.b16 %v659
        %v2919 = vunpack.c.h.b16 %v659
        %v2920 = vunpack.c.l.b16 %v660
        %v2921 = vunpack.c.h.b16 %v660
        %v2922 = vunpack.c.l.b16 %v661
        %v2923 = vunpack.c.h.b16 %v661
        %v2924 = vunpack.c.l.b16 %v662
        %v2925 = vunpack.c.h.b16 %v662
        %v2926 = vunpack.c.l.b16 %v663
        %v2927 = vunpack.c.h.b16 %v663
        %v2928 = vunpack.c.l.b16 %v664
        %v2929 = vunpack.c.h.b16 %v664
        %v2930 = vunpack.c.l.b16 %v665
        %v2931 = vunpack.c.h.b16 %v665
        %v2932 = vunpack.c.l.b16 %v666
        %v2933 = vunpack.c.h.b16 %v666
        %v2934 = vunpack.c.l.b16 %v667
        %v2935 = vunpack.c.h.b16 %v667
        %v2936 = vunpack.c.l.b16 %v668
        %v2937 = vunpack.c.h.b16 %v668
        %v2938 = vunpack.c.l.b16 %v669
        %v2939 = vunpack.c.h.b16 %v669
        %v2940 = vunpack.c.l.b16 %v670
        %v2941 = vunpack.c.h.b16 %v670
        %v2942 = vunpack.c.l.b16 %v671
        %v2943 = vunpack.c.h.b16 %v671
        %v2944 = vunpack.c.l.b16 %v672
        %v2945 = vunpack.c.h.b16 %v672
        %v2946 = vunpack.c.l.b16 %v673
        %v2947 = vunpack.c.h.b16 %v673
        %v2948 = vunpack.c.l.b16 %v674
        %v2949 = vunpack.c.h.b16 %v674
        %v2950 = vunpack.c.l.b16 %v675
        %v2951 = vunpack.c.h.b16 %v675
        %v2952 = vunpack.c.l.b16 %v676
        %v2953 = vunpack.c.h.b16 %v676
        %v2954 = vunpack.c.l.b16 %v677
        %v2955 = vunpack.c.h.b16 %v677
        %v2956 = vunpack.c.l.b16 %v678
        %v2957 = vunpack.c.h.b16 %v678
        %v2958 = vunpack.c.l.b16 %v679
        %v2959 = vunpack.c.h.b16 %v679
        %v2960 = vunpack.c.l.b16 %v680
        %v2961 = vunpack.c.h.b16 %v680
        %v2962 = vunpack.c.l.b16 %v681
        %v2963 = vunpack.c.h.b16 %v681
        %v2964 = vunpack.c.l.b16 %v682
        %v2965 = vunpack.c.h.b16 %v682
        %v2966 = vunpack.c.l.b16 %v683
        %v2967 = vunpack.c.h.b16 %v683
        %v2968 = vunpack.c.l.b16 %v684
        %v2969 = vunpack.c.h.b16 %v684
        %v2970 = vunpack.c.l.b16 %v685
        %v2971 = vunpack.c.h.b16 %v685
        %v2972 = vunpack.c.l.b16 %v686
        %v2973 = vunpack.c.h.b16 %v686
        %v2974 = vunpack.c.l.b16 %v687
        %v2975 = vunpack.c.h.b16 %v687
        %v2976 = vunpack.c.l.b16 %v688
        %v2977 = vunpack.c.h.b16 %v688
        %v2978 = vunpack.c.l.b16 %v689
        %v2979 = vunpack.c.h.b16 %v689
        %v2980 = vunpack.c.l.b16 %v690
        %v2981 = vunpack.c.h.b16 %v690
        %v2982 = vunpack.c.l.b16 %v691
        %v2983 = vunpack.c.h.b16 %v691
        %v2984 = vunpack.c.l.b16 %v692
        %v2985 = vunpack.c.h.b16 %v692
        %v2986 = vunpack.c.l.b16 %v693
        %v2987 = vunpack.c.h.b16 %v693
        %v2988 = vunpack.c.l.b16 %v694
        %v2989 = vunpack.c.h.b16 %v694
        %v2990 = vunpack.c.l.b16 %v695
        %v2991 = vunpack.c.h.b16 %v695
        %v2992 = vunpack.c.l.b16 %v696
        %v2993 = vunpack.c.h.b16 %v696
        %v2994 = vunpack.c.l.b16 %v697
        %v2995 = vunpack.c.h.b16 %v697
        %v2996 = vunpack.c.l.b16 %v698
        %v2997 = vunpack.c.h.b16 %v698
        %v2998 = vunpack.c.l.b16 %v699
        %v2999 = vunpack.c.h.b16 %v699
        %v3000 = vunpack.c.l.b16 %v700
        %v3001 = vunpack.c.h.b16 %v700
        %v3002 = vunpack.c.l.b16 %v701
        %v3003 = vunpack.c.h.b16 %v701
        %v3004 = vunpack.c.l.b16 %v702
        %v3005 = vunpack.c.h.b16 %v702
        %v3006 = vunpack.c.l.b16 %v703
        %v3007 = vunpack.c.h.b16 %v703
        %v3008 = vunpack.c.l.b16 %v704
        %v3009 = vunpack.c.h.b16 %v704
        %v3010 = vunpack.c.l.b16 %v705
        %v3011 = vunpack.c.h.b16 %v705
        %v3012 = vunpack.c.l.b16 %v706
        %v3013 = vunpack.c.h.b16 %v706
        %v3014 = vunpack.c.l.b16 %v707
        %v3015 = vunpack.c.h.b16 %v707
        %v3016 = vunpack.c.l.b16 %v708
        %v3017 = vunpack.c.h.b16 %v708
        %v3018 = vunpack.c.l.b16 %v709
        %v3019 = vunpack.c.h.b16 %v709
        %v3020 = vunpack.c.l.b16 %v710
        %v3021 = vunpack.c.h.b16 %v710
        %v3022 = vunpack.c.l.b16 %v711
        %v3023 = vunpack.c.h.b16 %v711
        %v3024 = vunpack.c.l.b16 %v712
        %v3025 = vunpack.c.h.b16 %v712
        %v3026 = vunpack.c.l.b16 %v713
        %v3027 = vunpack.c.h.b16 %v713
        %v3028 = vunpack.c.l.b16 %v714
        %v3029 = vunpack.c.h.b16 %v714
        %v3030 = vunpack.c.l.b16 %v715
        %v3031 = vunpack.c.h.b16 %v715
        %v3032 = vunpack.c.l.b16 %v716
        %v3033 = vunpack.c.h.b16 %v716
        %v3034 = vunpack.c.l.b16 %v717
        %v3035 = vunpack.c.h.b16 %v717
        %v3036 = vunpack.c.l.b16 %v718
        %v3037 = vunpack.c.h.b16 %v718
        %v3038 = vunpack.c.l.b16 %v719
        %v3039 = vunpack.c.h.b16 %v719
        %v3040 = vunpack.c.l.b16 %v720
        %v3041 = vunpack.c.h.b16 %v720
        %v3042 = vunpack.c.l.b16 %v721
        %v3043 = vunpack.c.h.b16 %v721
        %v3044 = vunpack.c.l.b16 %v722
        %v3045 = vunpack.c.h.b16 %v722
        %v3046 = vunpack.c.l.b16 %v723
        %v3047 = vunpack.c.h.b16 %v723
        %v3048 = vunpack.c.l.b16 %v724
        %v3049 = vunpack.c.h.b16 %v724
        %v3050 = vunpack.c.l.b16 %v725
        %v3051 = vunpack.c.h.b16 %v725
        %v3052 = vunpack.c.l.b16 %v726
        %v3053 = vunpack.c.h.b16 %v726
        %v3054 = vunpack.c.l.b16 %v727
        %v3055 = vunpack.c.h.b16 %v727
        %v3056 = vunpack.c.l.b16 %v728
        %v3057 = vunpack.c.h.b16 %v728
        %v3058 = vunpack.c.l.b16 %v729
        %v3059 = vunpack.c.h.b16 %v729
        %v3060 = vunpack.c.l.b16 %v730
        %v3061 = vunpack.c.h.b16 %v730
        %v3062 = vunpack.c.l.b16 %v731
        %v3063 = vunpack.c.h.b16 %v731
        %v3064 = vunpack.c.l.b16 %v732
        %v3065 = vunpack.c.h.b16 %v732
        %v3066 = vunpack.c.l.b16 %v733
        %v3067 = vunpack.c.h.b16 %v733
        %v3068 = vunpack.c.l.b16 %v734
        %v3069 = vunpack.c.h.b16 %v734
        %v3070 = vunpack.c.l.b16 %v735
        %v3071 = vunpack.c.h.b16 %v735
        %v3072 = vunpack.c.l.b16 %v736
        %v3073 = vunpack.c.h.b16 %v736
        %v3074 = vunpack.c.l.b16 %v737
        %v3075 = vunpack.c.h.b16 %v737
        %v3076 = vunpack.c.l.b16 %v738
        %v3077 = vunpack.c.h.b16 %v738
        %v3078 = vunpack.c.l.b16 %v739
        %v3079 = vunpack.c.h.b16 %v739
        %v3080 = vunpack.c.l.b16 %v740
        %v3081 = vunpack.c.h.b16 %v740
        %v3082 = vunpack.c.l.b16 %v741
        %v3083 = vunpack.c.h.b16 %v741
        %v3084 = vunpack.c.l.b16 %v742
        %v3085 = vunpack.c.h.b16 %v742
        %v3086 = vunpack.c.l.b16 %v743
        %v3087 = vunpack.c.h.b16 %v743
        %v3088 = vunpack.c.l.b16 %v744
        %v3089 = vunpack.c.h.b16 %v744
        %v3090 = vunpack.c.l.b16 %v745
        %v3091 = vunpack.c.h.b16 %v745
        %v3092 = vunpack.c.l.b16 %v746
        %v3093 = vunpack.c.h.b16 %v746
        %v3094 = vunpack.c.l.b16 %v747
        %v3095 = vunpack.c.h.b16 %v747
        %v3096 = vunpack.c.l.b16 %v748
        %v3097 = vunpack.c.h.b16 %v748
        %v3098 = vunpack.c.l.b16 %v749
        %v3099 = vunpack.c.h.b16 %v749
        %v3100 = vunpack.c.l.b16 %v750
        %v3101 = vunpack.c.h.b16 %v750
        %v3102 = vunpack.c.l.b16 %v751
        %v3103 = vunpack.c.h.b16 %v751
        %v3104 = vunpack.c.l.b16 %v752
        %v3105 = vunpack.c.h.b16 %v752
        %v3106 = vunpack.c.l.b16 %v753
        %v3107 = vunpack.c.h.b16 %v753
        %v3108 = vunpack.c.l.b16 %v754
        %v3109 = vunpack.c.h.b16 %v754
        %v3110 = vunpack.c.l.b16 %v755
        %v3111 = vunpack.c.h.b16 %v755
        %v3112 = vunpack.c.l.b16 %v756
        %v3113 = vunpack.c.h.b16 %v756
        %v3114 = vunpack.c.l.b16 %v757
        %v3115 = vunpack.c.h.b16 %v757
        %v3116 = vunpack.c.l.b16 %v758
        %v3117 = vunpack.c.h.b16 %v758
        %v3118 = vunpack.c.l.b16 %v759
        %v3119 = vunpack.c.h.b16 %v759
        %v3120 = vunpack.c.l.b16 %v760
        %v3121 = vunpack.c.h.b16 %v760
        %v3122 = vunpack.c.l.b16 %v761
        %v3123 = vunpack.c.h.b16 %v761
        %v3124 = vunpack.c.l.b16 %v762
        %v3125 = vunpack.c.h.b16 %v762
        %v3126 = vunpack.c.l.b16 %v763
        %v3127 = vunpack.c.h.b16 %v763
        %v3128 = vunpack.c.l.b16 %v764
        %v3129 = vunpack.c.h.b16 %v764
        %v3130 = vunpack.c.l.b16 %v765
        %v3131 = vunpack.c.h.b16 %v765
        %v3132 = vunpack.c.l.b16 %v766
        %v3133 = vunpack.c.h.b16 %v766
        %v3134 = vunpack.c.l.b16 %v767
        %v3135 = vunpack.c.h.b16 %v767
        %v3136 = vunpack.c.l.b16 %v768
        %v3137 = vunpack.c.h.b16 %v768
        %v3138 = vunpack.c.l.b16 %v769
        %v3139 = vunpack.c.h.b16 %v769
        %v3140 = vunpack.c.l.b16 %v770
        %v3141 = vunpack.c.h.b16 %v770
        %v3142 = vunpack.c.l.b16 %v771
        %v3143 = vunpack.c.h.b16 %v771
        %v3144 = vunpack.c.l.b16 %v772
        %v3145 = vunpack.c.h.b16 %v772
        %v3146 = vunpack.c.l.b16 %v773
        %v3147 = vunpack.c.h.b16 %v773
        %v3148 = vunpack.c.l.b16 %v774
        %v3149 = vunpack.c.h.b16 %v774
        %v3150 = vunpack.c.l.b16 %v775
        %v3151 = vunpack.c.h.b16 %v775
        %v3152 = vunpack.c.l.b16 %v776
        %v3153 = vunpack.c.h.b16 %v776
        %v3154 = vunpack.c.l.b16 %v777
        %v3155 = vunpack.c.h.b16 %v777
        %v3156 = vunpack.c.l.b16 %v778
        %v3157 = vunpack.c.h.b16 %v778
        %v3158 = vunpack.c.l.b16 %v779
        %v3159 = vunpack.c.h.b16 %v779
        %v3160 = vunpack.c.l.b16 %v780
        %v3161 = vunpack.c.h.b16 %v780
        %v3162 = vunpack.c.l.b16 %v781
        %v3163 = vunpack.c.h.b16 %v781
        %v3164 = vunpack.c.l.b16 %v782
        %v3165 = vunpack.c.h.b16 %v782
        %v3166 = vunpack.c.l.b16 %v783
        %v3167 = vunpack.c.h.b16 %v783
        %v3168 = vunpack.c.l.b16 %v784
        %v3169 = vunpack.c.h.b16 %v784
        %v3170 = vunpack.c.l.b16 %v785
        %v3171 = vunpack.c.h.b16 %v785
        %v3172 = vunpack.c.l.b16 %v786
        %v3173 = vunpack.c.h.b16 %v786
        %v3174 = vunpack.c.l.b16 %v787
        %v3175 = vunpack.c.h.b16 %v787
        %v3176 = vunpack.c.l.b16 %v788
        %v3177 = vunpack.c.h.b16 %v788
        %v3178 = vunpack.c.l.b16 %v789
        %v3179 = vunpack.c.h.b16 %v789
        %v3180 = vunpack.c.l.b16 %v790
        %v3181 = vunpack.c.h.b16 %v790
        %v3182 = vunpack.c.l.b16 %v791
        %v3183 = vunpack.c.h.b16 %v791
        %v3184 = vunpack.c.l.b16 %v792
        %v3185 = vunpack.c.h.b16 %v792
        %v3186 = vunpack.c.l.b16 %v793
        %v3187 = vunpack.c.h.b16 %v793
        %v3188 = vunpack.c.l.b16 %v794
        %v3189 = vunpack.c.h.b16 %v794
        %v3190 = vunpack.c.l.b16 %v795
        %v3191 = vunpack.c.h.b16 %v795
        %v3192 = vunpack.c.l.b16 %v796
        %v3193 = vunpack.c.h.b16 %v796
        %v3194 = vunpack.c.l.b16 %v797
        %v3195 = vunpack.c.h.b16 %v797
        %v3196 = vunpack.c.l.b16 %v798
        %v3197 = vunpack.c.h.b16 %v798
        %v3198 = vunpack.c.l.b16 %v799
        %v3199 = vunpack.c.h.b16 %v799
        %v3200 = vunpack.c.l.b16 %v800
        %v3201 = vunpack.c.h.b16 %v800
        %v3202 = vunpack.c.l.b16 %v801
        %v3203 = vunpack.c.h.b16 %v801
        %v3204 = vunpack.c.l.b16 %v802
        %v3205 = vunpack.c.h.b16 %v802
        %v3206 = vunpack.c.l.b16 %v803
        %v3207 = vunpack.c.h.b16 %v803
        %v3208 = vunpack.c.l.b16 %v804
        %v3209 = vunpack.c.h.b16 %v804
        %v3210 = vunpack.c.l.b16 %v805
        %v3211 = vunpack.c.h.b16 %v805
        %v3212 = vunpack.c.l.b16 %v806
        %v3213 = vunpack.c.h.b16 %v806
        %v3214 = vunpack.c.l.b16 %v807
        %v3215 = vunpack.c.h.b16 %v807
        %v3216 = vunpack.c.l.b16 %v808
        %v3217 = vunpack.c.h.b16 %v808
        %v3218 = vunpack.c.l.b16 %v809
        %v3219 = vunpack.c.h.b16 %v809
        %v3220 = vunpack.c.l.b16 %v810
        %v3221 = vunpack.c.h.b16 %v810
        %v3222 = vunpack.c.l.b16 %v811
        %v3223 = vunpack.c.h.b16 %v811
        %v3224 = vunpack.c.l.b16 %v812
        %v3225 = vunpack.c.h.b16 %v812
        %v3226 = vunpack.c.l.b16 %v813
        %v3227 = vunpack.c.h.b16 %v813
        %v3228 = vunpack.c.l.b16 %v814
        %v3229 = vunpack.c.h.b16 %v814
        %v3230 = vunpack.c.l.b16 %v815
        %v3231 = vunpack.c.h.b16 %v815
        %v3232 = vunpack.c.l.b16 %v816
        %v3233 = vunpack.c.h.b16 %v816
        %v3234 = vunpack.c.l.b16 %v817
        %v3235 = vunpack.c.h.b16 %v817
        %v3236 = vunpack.c.l.b16 %v818
        %v3237 = vunpack.c.h.b16 %v818
        %v3238 = vunpack.c.l.b16 %v819
        %v3239 = vunpack.c.h.b16 %v819
        %v3240 = vunpack.c.l.b16 %v820
        %v3241 = vunpack.c.h.b16 %v820
        %v3242 = vunpack.c.l.b16 %v821
        %v3243 = vunpack.c.h.b16 %v821
        %v3244 = vunpack.c.l.b16 %v822
        %v3245 = vunpack.c.h.b16 %v822
        %v3246 = vunpack.c.l.b16 %v823
        %v3247 = vunpack.c.h.b16 %v823
        %v3248 = vunpack.c.l.b16 %v824
        %v3249 = vunpack.c.h.b16 %v824
        %v3250 = vunpack.c.l.b16 %v825
        %v3251 = vunpack.c.h.b16 %v825
        %v3252 = vunpack.c.l.b16 %v826
        %v3253 = vunpack.c.h.b16 %v826
        %v3254 = vunpack.c.l.b16 %v827
        %v3255 = vunpack.c.h.b16 %v827
        %v3256 = vunpack.c.l.b16 %v828
        %v3257 = vunpack.c.h.b16 %v828
        %v3258 = vunpack.c.l.b16 %v829
        %v3259 = vunpack.c.h.b16 %v829
        %v3260 = vunpack.c.l.b16 %v830
        %v3261 = vunpack.c.h.b16 %v830
        %v3262 = vunpack.c.l.b16 %v831
        %v3263 = vunpack.c.h.b16 %v831
        %v3264 = vunpack.c.l.b16 %v832
        %v3265 = vunpack.c.h.b16 %v832
        %v3266 = vunpack.c.l.b16 %v833
        %v3267 = vunpack.c.h.b16 %v833
        %v3268 = vunpack.c.l.b16 %v834
        %v3269 = vunpack.c.h.b16 %v834
        %v3270 = vunpack.c.l.b16 %v835
        %v3271 = vunpack.c.h.b16 %v835
        %v3272 = vunpack.c.l.b16 %v836
        %v3273 = vunpack.c.h.b16 %v836
        %v3274 = vunpack.c.l.b16 %v837
        %v3275 = vunpack.c.h.b16 %v837
        %v3276 = vunpack.c.l.b16 %v838
        %v3277 = vunpack.c.h.b16 %v838
        %v3278 = vunpack.c.l.b16 %v839
        %v3279 = vunpack.c.h.b16 %v839
        %v3280 = vunpack.c.l.b16 %v840
        %v3281 = vunpack.c.h.b16 %v840
        %v3282 = vunpack.c.l.b16 %v841
        %v3283 = vunpack.c.h.b16 %v841
        %v3284 = vunpack.c.l.b16 %v842
        %v3285 = vunpack.c.h.b16 %v842
        %v3286 = vunpack.c.l.b16 %v843
        %v3287 = vunpack.c.h.b16 %v843
        %v3288 = vunpack.c.l.b16 %v844
        %v3289 = vunpack.c.h.b16 %v844
        %v3290 = vunpack.c.l.b16 %v845
        %v3291 = vunpack.c.h.b16 %v845
        %v3292 = vunpack.c.l.b16 %v846
        %v3293 = vunpack.c.h.b16 %v846
        %v3294 = vunpack.c.l.b16 %v847
        %v3295 = vunpack.c.h.b16 %v847
        %v3296 = vunpack.c.l.b16 %v848
        %v3297 = vunpack.c.h.b16 %v848
        %v3298 = vunpack.c.l.b16 %v849
        %v3299 = vunpack.c.h.b16 %v849
        %v3300 = vunpack.c.l.b16 %v850
        %v3301 = vunpack.c.h.b16 %v850
        %v3302 = vunpack.c.l.b16 %v851
        %v3303 = vunpack.c.h.b16 %v851
        %v3304 = vunpack.c.l.b16 %v852
        %v3305 = vunpack.c.h.b16 %v852
        %v3306 = vunpack.c.l.b16 %v853
        %v3307 = vunpack.c.h.b16 %v853
        %v3308 = vunpack.c.l.b16 %v854
        %v3309 = vunpack.c.h.b16 %v854
        %v3310 = vunpack.c.l.b16 %v855
        %v3311 = vunpack.c.h.b16 %v855
        %v3312 = vunpack.c.l.b16 %v856
        %v3313 = vunpack.c.h.b16 %v856
        %v3314 = vunpack.c.l.b16 %v857
        %v3315 = vunpack.c.h.b16 %v857
        %v3316 = vunpack.c.l.b16 %v858
        %v3317 = vunpack.c.h.b16 %v858
        %v3318 = vunpack.c.l.b16 %v859
        %v3319 = vunpack.c.h.b16 %v859
        %v3320 = vunpack.c.l.b16 %v860
        %v3321 = vunpack.c.h.b16 %v860
        %v3322 = vunpack.c.l.b16 %v861
        %v3323 = vunpack.c.h.b16 %v861
        %v3324 = vunpack.c.l.b16 %v862
        %v3325 = vunpack.c.h.b16 %v862
        %v3326 = vunpack.c.l.b16 %v863
        %v3327 = vunpack.c.h.b16 %v863
        %v3328 = vunpack.c.l.b16 %v864
        %v3329 = vunpack.c.h.b16 %v864
        %v3330 = vunpack.c.l.b16 %v865
        %v3331 = vunpack.c.h.b16 %v865
        %v3332 = vunpack.c.l.b16 %v866
        %v3333 = vunpack.c.h.b16 %v866
        %v3334 = vunpack.c.l.b16 %v867
        %v3335 = vunpack.c.h.b16 %v867
        %v3336 = vunpack.c.l.b16 %v868
        %v3337 = vunpack.c.h.b16 %v868
        %v3338 = vunpack.c.l.b16 %v869
        %v3339 = vunpack.c.h.b16 %v869
        %v3340 = vunpack.c.l.b16 %v870
        %v3341 = vunpack.c.h.b16 %v870
        %v3342 = vunpack.c.l.b16 %v871
        %v3343 = vunpack.c.h.b16 %v871
        %v3344 = vunpack.c.l.b16 %v872
        %v3345 = vunpack.c.h.b16 %v872
        %v3346 = vunpack.c.l.b16 %v873
        %v3347 = vunpack.c.h.b16 %v873
        %v3348 = vunpack.c.l.b16 %v874
        %v3349 = vunpack.c.h.b16 %v874
        %v3350 = vunpack.c.l.b16 %v875
        %v3351 = vunpack.c.h.b16 %v875
        %v3352 = vunpack.c.l.b16 %v876
        %v3353 = vunpack.c.h.b16 %v876
        %v3354 = vunpack.c.l.b16 %v877
        %v3355 = vunpack.c.h.b16 %v877
        %v3356 = vunpack.c.l.b16 %v878
        %v3357 = vunpack.c.h.b16 %v878
        %v3358 = vunpack.c.l.b16 %v879
        %v3359 = vunpack.c.h.b16 %v879
        %v3360 = vunpack.c.l.b16 %v880
        %v3361 = vunpack.c.h.b16 %v880
        %v3362 = vunpack.c.l.b16 %v881
        %v3363 = vunpack.c.h.b16 %v881
        %v3364 = vunpack.c.l.b16 %v882
        %v3365 = vunpack.c.h.b16 %v882
        %v3366 = vunpack.c.l.b16 %v883
        %v3367 = vunpack.c.h.b16 %v883
        %v3368 = vunpack.c.l.b16 %v884
        %v3369 = vunpack.c.h.b16 %v884
        %v3370 = vunpack.c.l.b16 %v885
        %v3371 = vunpack.c.h.b16 %v885
        %v3372 = vunpack.c.l.b16 %v886
        %v3373 = vunpack.c.h.b16 %v886
        %v3374 = vunpack.c.l.b16 %v887
        %v3375 = vunpack.c.h.b16 %v887
        %v3376 = vunpack.c.l.b16 %v888
        %v3377 = vunpack.c.h.b16 %v888
        %v3378 = vunpack.c.l.b16 %v889
        %v3379 = vunpack.c.h.b16 %v889
        %v3380 = vunpack.c.l.b16 %v890
        %v3381 = vunpack.c.h.b16 %v890
        %v3382 = vunpack.c.l.b16 %v891
        %v3383 = vunpack.c.h.b16 %v891
        %v3384 = vunpack.c.l.b16 %v892
        %v3385 = vunpack.c.h.b16 %v892
        %v3386 = vunpack.c.l.b16 %v893
        %v3387 = vunpack.c.h.b16 %v893
        %v3388 = vunpack.c.l.b16 %v894
        %v3389 = vunpack.c.h.b16 %v894
        %v3390 = vunpack.c.l.b16 %v895
        %v3391 = vunpack.c.h.b16 %v895
        %v3392 = vunpack.c.l.b16 %v896
        %v3393 = vunpack.c.h.b16 %v896
        %v3394 = vunpack.c.l.b16 %v897
        %v3395 = vunpack.c.h.b16 %v897
        %v3396 = vunpack.c.l.b16 %v898
        %v3397 = vunpack.c.h.b16 %v898
        %v3398 = vunpack.c.l.b16 %v899
        %v3399 = vunpack.c.h.b16 %v899
        %v3400 = vunpack.c.l.b16 %v900
        %v3401 = vunpack.c.h.b16 %v900
        %v3402 = vunpack.c.l.b16 %v901
        %v3403 = vunpack.c.h.b16 %v901
        %v3404 = vunpack.c.l.b16 %v902
        %v3405 = vunpack.c.h.b16 %v902
        %v3406 = vunpack.c.l.b16 %v903
        %v3407 = vunpack.c.h.b16 %v903
        %v3408 = vunpack.c.l.b16 %v904
        %v3409 = vunpack.c.h.b16 %v904
        %v3410 = vunpack.c.l.b16 %v905
        %v3411 = vunpack.c.h.b16 %v905
        %v3412 = vunpack.c.l.b16 %v906
        %v3413 = vunpack.c.h.b16 %v906
        %v3414 = vunpack.c.l.b16 %v907
        %v3415 = vunpack.c.h.b16 %v907
        %v3416 = vunpack.c.l.b16 %v908
        %v3417 = vunpack.c.h.b16 %v908
        %v3418 = vunpack.c.l.b16 %v909
        %v3419 = vunpack.c.h.b16 %v909
        %v3420 = vunpack.c.l.b16 %v910
        %v3421 = vunpack.c.h.b16 %v910
        %v3422 = vunpack.c.l.b16 %v911
        %v3423 = vunpack.c.h.b16 %v911
        %v3424 = vunpack.c.l.b16 %v912
        %v3425 = vunpack.c.h.b16 %v912
        %v3426 = vunpack.c.l.b16 %v913
        %v3427 = vunpack.c.h.b16 %v913
        %v3428 = vunpack.c.l.b16 %v914
        %v3429 = vunpack.c.h.b16 %v914
        %v3430 = vunpack.c.l.b16 %v915
        %v3431 = vunpack.c.h.b16 %v915
        %v3432 = vunpack.c.l.b16 %v916
        %v3433 = vunpack.c.h.b16 %v916
        %v3434 = vunpack.c.l.b16 %v917
        %v3435 = vunpack.c.h.b16 %v917
        %v3436 = vunpack.c.l.b16 %v918
        %v3437 = vunpack.c.h.b16 %v918
        %v3438 = vunpack.c.l.b16 %v919
        %v3439 = vunpack.c.h.b16 %v919
        %v3440 = vunpack.c.l.b16 %v920
        %v3441 = vunpack.c.h.b16 %v920
        %v3442 = vunpack.c.l.b16 %v921
        %v3443 = vunpack.c.h.b16 %v921
        %v3444 = vunpack.c.l.b16 %v922
        %v3445 = vunpack.c.h.b16 %v922
        %v3446 = vunpack.c.l.b16 %v923
        %v3447 = vunpack.c.h.b16 %v923
        %v3448 = vunpack.c.l.b16 %v924
        %v3449 = vunpack.c.h.b16 %v924
        %v3450 = vunpack.c.l.b16 %v925
        %v3451 = vunpack.c.h.b16 %v925
        %v3452 = vunpack.c.l.b16 %v926
        %v3453 = vunpack.c.h.b16 %v926
        %v3454 = vunpack.c.l.b16 %v927
        %v3455 = vunpack.c.h.b16 %v927
        %v3456 = vunpack.c.l.b16 %v928
        %v3457 = vunpack.c.h.b16 %v928
        %v3458 = vunpack.c.l.b16 %v929
        %v3459 = vunpack.c.h.b16 %v929
        %v3460 = vunpack.c.l.b16 %v930
        %v3461 = vunpack.c.h.b16 %v930
        %v3462 = vunpack.c.l.b16 %v931
        %v3463 = vunpack.c.h.b16 %v931
        %v3464 = vunpack.c.l.b16 %v932
        %v3465 = vunpack.c.h.b16 %v932
        %v3466 = vunpack.c.l.b16 %v933
        %v3467 = vunpack.c.h.b16 %v933
        %v3468 = vunpack.c.l.b16 %v934
        %v3469 = vunpack.c.h.b16 %v934
        %v3470 = vunpack.c.l.b16 %v935
        %v3471 = vunpack.c.h.b16 %v935
        %v3472 = vunpack.c.l.b16 %v936
        %v3473 = vunpack.c.h.b16 %v936
        %v3474 = vunpack.c.l.b16 %v937
        %v3475 = vunpack.c.h.b16 %v937
        %v3476 = vunpack.c.l.b16 %v938
        %v3477 = vunpack.c.h.b16 %v938
        %v3478 = vunpack.c.l.b16 %v939
        %v3479 = vunpack.c.h.b16 %v939
        %v3480 = vunpack.c.l.b16 %v940
        %v3481 = vunpack.c.h.b16 %v940
        %v3482 = vunpack.c.l.b16 %v941
        %v3483 = vunpack.c.h.b16 %v941
        %v3484 = vunpack.c.l.b16 %v942
        %v3485 = vunpack.c.h.b16 %v942
        %v3486 = vunpack.c.l.b16 %v943
        %v3487 = vunpack.c.h.b16 %v943
        %v3488 = vunpack.c.l.b16 %v944
        %v3489 = vunpack.c.h.b16 %v944
        %v3490 = vunpack.c.l.b16 %v945
        %v3491 = vunpack.c.h.b16 %v945
        %v3492 = vunpack.c.l.b16 %v946
        %v3493 = vunpack.c.h.b16 %v946
        %v3494 = vunpack.c.l.b16 %v947
        %v3495 = vunpack.c.h.b16 %v947
        %v3496 = vunpack.c.l.b16 %v948
        %v3497 = vunpack.c.h.b16 %v948
        %v3498 = vunpack.c.l.b16 %v949
        %v3499 = vunpack.c.h.b16 %v949
        %v3500 = vunpack.c.l.b16 %v950
        %v3501 = vunpack.c.h.b16 %v950
        %v3502 = vunpack.c.l.b16 %v951
        %v3503 = vunpack.c.h.b16 %v951
        %v3504 = vunpack.c.l.b16 %v952
        %v3505 = vunpack.c.h.b16 %v952
        %v3506 = vunpack.c.l.b16 %v953
        %v3507 = vunpack.c.h.b16 %v953
        %v3508 = vunpack.c.l.b16 %v954
        %v3509 = vunpack.c.h.b16 %v954
        %v3510 = vunpack.c.l.b16 %v955
        %v3511 = vunpack.c.h.b16 %v955
        %v3512 = vunpack.c.l.b16 %v956
        %v3513 = vunpack.c.h.b16 %v956
        %v3514 = vunpack.c.l.b16 %v957
        %v3515 = vunpack.c.h.b16 %v957
        %v3516 = vunpack.c.l.b16 %v958
        %v3517 = vunpack.c.h.b16 %v958
        %v3518 = vunpack.c.l.b16 %v959
        %v3519 = vunpack.c.h.b16 %v959
        %v3520 = vunpack.c.l.b16 %v960
        %v3521 = vunpack.c.h.b16 %v960
        %v3522 = vunpack.c.l.b16 %v961
        %v3523 = vunpack.c.h.b16 %v961
        %v3524 = vunpack.c.l.b16 %v962
        %v3525 = vunpack.c.h.b16 %v962
        %v3526 = vunpack.c.l.b16 %v963
        %v3527 = vunpack.c.h.b16 %v963
        %v3528 = vunpack.c.l.b16 %v964
        %v3529 = vunpack.c.h.b16 %v964
        %v3530 = vunpack.c.l.b16 %v965
        %v3531 = vunpack.c.h.b16 %v965
        %v3532 = vunpack.c.l.b16 %v966
        %v3533 = vunpack.c.h.b16 %v966
        %v3534 = vunpack.c.l.b16 %v967
        %v3535 = vunpack.c.h.b16 %v967
        %v3536 = vunpack.c.l.b16 %v968
        %v3537 = vunpack.c.h.b16 %v968
        %v3538 = vunpack.c.l.b16 %v969
        %v3539 = vunpack.c.h.b16 %v969
        %v3540 = vunpack.c.l.b16 %v970
        %v3541 = vunpack.c.h.b16 %v970
        %v3542 = vunpack.c.l.b16 %v971
        %v3543 = vunpack.c.h.b16 %v971
        %v3544 = vunpack.c.l.b16 %v972
        %v3545 = vunpack.c.h.b16 %v972
        %v3546 = vunpack.c.l.b16 %v973
        %v3547 = vunpack.c.h.b16 %v973
        %v3548 = vunpack.c.l.b16 %v974
        %v3549 = vunpack.c.h.b16 %v974
        %v3550 = vunpack.c.l.b16 %v975
        %v3551 = vunpack.c.h.b16 %v975
        %v3552 = vunpack.c.l.b16 %v976
        %v3553 = vunpack.c.h.b16 %v976
        %v3554 = vunpack.c.l.b16 %v977
        %v3555 = vunpack.c.h.b16 %v977
        %v3556 = vunpack.c.l.b16 %v978
        %v3557 = vunpack.c.h.b16 %v978
        %v3558 = vunpack.c.l.b16 %v979
        %v3559 = vunpack.c.h.b16 %v979
        %v3560 = vunpack.c.l.b16 %v980
        %v3561 = vunpack.c.h.b16 %v980
        %v3562 = vunpack.c.l.b16 %v981
        %v3563 = vunpack.c.h.b16 %v981
        %v3564 = vunpack.c.l.b16 %v982
        %v3565 = vunpack.c.h.b16 %v982
        %v3566 = vunpack.c.l.b16 %v983
        %v3567 = vunpack.c.h.b16 %v983
        %v3568 = vunpack.c.l.b16 %v984
        %v3569 = vunpack.c.h.b16 %v984
        %v3570 = vunpack.c.l.b16 %v985
        %v3571 = vunpack.c.h.b16 %v985
        %v3572 = vunpack.c.l.b16 %v986
        %v3573 = vunpack.c.h.b16 %v986
        %v3574 = vunpack.c.l.b16 %v987
        %v3575 = vunpack.c.h.b16 %v987
        %v3576 = vunpack.c.l.b16 %v988
        %v3577 = vunpack.c.h.b16 %v988
        %v3578 = vunpack.c.l.b16 %v989
        %v3579 = vunpack.c.h.b16 %v989
        %v3580 = vunpack.c.l.b16 %v990
        %v3581 = vunpack.c.h.b16 %v990
        %v3582 = vunpack.c.l.b16 %v991
        %v3583 = vunpack.c.h.b16 %v991
        %v3584 = vunpack.c.l.b16 %v992
        %v3585 = vunpack.c.h.b16 %v992
        %v3586 = vunpack.c.l.b16 %v993
        %v3587 = vunpack.c.h.b16 %v993
        %v3588 = vunpack.c.l.b16 %v994
        %v3589 = vunpack.c.h.b16 %v994
        %v3590 = vunpack.c.l.b16 %v995
        %v3591 = vunpack.c.h.b16 %v995
        %v3592 = vunpack.c.l.b16 %v996
        %v3593 = vunpack.c.h.b16 %v996
        %v3594 = vunpack.c.l.b16 %v997
        %v3595 = vunpack.c.h.b16 %v997
        %v3596 = vunpack.c.l.b16 %v998
        %v3597 = vunpack.c.h.b16 %v998
        %v3598 = vunpack.c.l.b16 %v999
        %v3599 = vunpack.c.h.b16 %v999
        %v3600 = vunpack.c.l.b16 %v1000
        %v3601 = vunpack.c.h.b16 %v1000
        %v3602 = vunpack.c.l.b16 %v1001
        %v3603 = vunpack.c.h.b16 %v1001
        %v3604 = vunpack.c.l.b16 %v1002
        %v3605 = vunpack.c.h.b16 %v1002
        %v3606 = vunpack.c.l.b16 %v1003
        %v3607 = vunpack.c.h.b16 %v1003
        %v3608 = vunpack.c.l.b16 %v1004
        %v3609 = vunpack.c.h.b16 %v1004
        %v3610 = vunpack.c.l.b16 %v1005
        %v3611 = vunpack.c.h.b16 %v1005
        %v3612 = vunpack.c.l.b16 %v1006
        %v3613 = vunpack.c.h.b16 %v1006
        %v3614 = vunpack.c.l.b16 %v1007
        %v3615 = vunpack.c.h.b16 %v1007
        %v3616 = vunpack.c.l.b16 %v1008
        %v3617 = vunpack.c.h.b16 %v1008
        %v3618 = vunpack.c.l.b16 %v1009
        %v3619 = vunpack.c.h.b16 %v1009
        %v3620 = vunpack.c.l.b16 %v1010
        %v3621 = vunpack.c.h.b16 %v1010
        %v3622 = vunpack.c.l.b16 %v1011
        %v3623 = vunpack.c.h.b16 %v1011
        %v3624 = vunpack.c.l.b16 %v1012
        %v3625 = vunpack.c.h.b16 %v1012
        %v3626 = vunpack.c.l.b16 %v1013
        %v3627 = vunpack.c.h.b16 %v1013
        %v3628 = vunpack.c.l.b16 %v1014
        %v3629 = vunpack.c.h.b16 %v1014
        %v3630 = vunpack.c.l.b16 %v1015
        %v3631 = vunpack.c.h.b16 %v1015
        %v3632 = vunpack.c.l.b16 %v1016
        %v3633 = vunpack.c.h.b16 %v1016
        %v3634 = vunpack.c.l.b16 %v1017
        %v3635 = vunpack.c.h.b16 %v1017
        %v3636 = vunpack.c.l.b16 %v1018
        %v3637 = vunpack.c.h.b16 %v1018
        %v3638 = vunpack.c.l.b16 %v1019
        %v3639 = vunpack.c.h.b16 %v1019
        %v3640 = vunpack.c.l.b16 %v1020
        %v3641 = vunpack.c.h.b16 %v1020
        %v3642 = vunpack.c.l.b16 %v1021
        %v3643 = vunpack.c.h.b16 %v1021
        %v3644 = vunpack.c.l.b16 %v1022
        %v3645 = vunpack.c.h.b16 %v1022
        %v3646 = vunpack.c.l.b16 %v1023
        %v3647 = vunpack.c.h.b16 %v1023
        %v3648 = vunpack.c.l.b16 %v1024
        %v3649 = vunpack.c.h.b16 %v1024
        %v3650 = vunpack.c.l.b16 %v1025
        %v3651 = vunpack.c.h.b16 %v1025
        %v3652 = vunpack.c.l.b16 %v1026
        %v3653 = vunpack.c.h.b16 %v1026
        %v3654 = vunpack.c.l.b16 %v1027
        %v3655 = vunpack.c.h.b16 %v1027
        %v3656 = vunpack.c.l.b16 %v1028
        %v3657 = vunpack.c.h.b16 %v1028
        %v3658 = vunpack.c.l.b16 %v1029
        %v3659 = vunpack.c.h.b16 %v1029
        %v3660 = vunpack.c.l.b16 %v1030
        %v3661 = vunpack.c.h.b16 %v1030
        %v3662 = vunpack.c.l.b16 %v1031
        %v3663 = vunpack.c.h.b16 %v1031
        %v3664 = vunpack.c.l.b16 %v1032
        %v3665 = vunpack.c.h.b16 %v1032
        %v3666 = vunpack.c.l.b16 %v1033
        %v3667 = vunpack.c.h.b16 %v1033
        %v3668 = vunpack.c.l.b16 %v1034
        %v3669 = vunpack.c.h.b16 %v1034
        %v3670 = vunpack.c.l.b16 %v1035
        %v3671 = vunpack.c.h.b16 %v1035
        %v3672 = vunpack.c.l.b16 %v1036
        %v3673 = vunpack.c.h.b16 %v1036
        %v3674 = vunpack.c.l.b16 %v1037
        %v3675 = vunpack.c.h.b16 %v1037
        %v3676 = vunpack.c.l.b16 %v1038
        %v3677 = vunpack.c.h.b16 %v1038
        %v3678 = vunpack.c.l.b16 %v1039
        %v3679 = vunpack.c.h.b16 %v1039
        %v3680 = vunpack.c.l.b16 %v1040
        %v3681 = vunpack.c.h.b16 %v1040
        %v3682 = vunpack.c.l.b16 %v1041
        %v3683 = vunpack.c.h.b16 %v1041
        %v3684 = vunpack.c.l.b16 %v1042
        %v3685 = vunpack.c.h.b16 %v1042
        %v3686 = vunpack.c.l.b16 %v1043
        %v3687 = vunpack.c.h.b16 %v1043
        %v3688 = vunpack.c.l.b16 %v1044
        %v3689 = vunpack.c.h.b16 %v1044
        %v3690 = vunpack.c.l.b16 %v1045
        %v3691 = vunpack.c.h.b16 %v1045
        %v3692 = vunpack.c.l.b16 %v1046
        %v3693 = vunpack.c.h.b16 %v1046
        %v3694 = vunpack.c.l.b16 %v1047
        %v3695 = vunpack.c.h.b16 %v1047
        %v3696 = vunpack.c.l.b16 %v1048
        %v3697 = vunpack.c.h.b16 %v1048
        %v3698 = vunpack.c.l.b16 %v1049
        %v3699 = vunpack.c.h.b16 %v1049
        %v3700 = vunpack.c.l.b16 %v1050
        %v3701 = vunpack.c.h.b16 %v1050
        %v3702 = vunpack.c.l.b16 %v1051
        %v3703 = vunpack.c.h.b16 %v1051
        %v3704 = vunpack.c.l.b16 %v1052
        %v3705 = vunpack.c.h.b16 %v1052
        %v3706 = vunpack.c.l.b16 %v1053
        %v3707 = vunpack.c.h.b16 %v1053
        %v3708 = vunpack.c.l.b16 %v1054
        %v3709 = vunpack.c.h.b16 %v1054
        %v3710 = vunpack.c.l.b16 %v1055
        %v3711 = vunpack.c.h.b16 %v1055
        %v3712 = vpack.c.b16 %v2182, %v2176
        %v3713 = vpack.c.b16 %v2183, %v2177
        %v3714 = vpack.c.b16 %v2184, %v2178
        %v3715 = vpack.c.b16 %v2185, %v2179
        %v3716 = vpack.c.b16 %v2186, %v2180
        %v3717 = vpack.c.b16 %v2187, %v2181
        %v3718 = vpack.c.b16 %v2194, %v2188
        %v3719 = vpack.c.b16 %v2195, %v2189
        %v3720 = vpack.c.b16 %v2196, %v2190
        %v3721 = vpack.c.b16 %v2197, %v2191
        %v3722 = vpack.c.b16 %v2198, %v2192
        %v3723 = vpack.c.b16 %v2199, %v2193
        %v3724 = vpack.c.b16 %v2206, %v2200
        %v3725 = vpack.c.b16 %v2207, %v2201
        %v3726 = vpack.c.b16 %v2208, %v2202
        %v3727 = vpack.c.b16 %v2209, %v2203
        %v3728 = vpack.c.b16 %v2210, %v2204
        %v3729 = vpack.c.b16 %v2211, %v2205
        %v3730 = vpack.c.b16 %v2218, %v2212
        %v3731 = vpack.c.b16 %v2219, %v2213
        %v3732 = vpack.c.b16 %v2220, %v2214
        %v3733 = vpack.c.b16 %v2221, %v2215
        %v3734 = vpack.c.b16 %v2222, %v2216
        %v3735 = vpack.c.b16 %v2223, %v2217
        %v3736 = vpack.c.b16 %v2230, %v2224
        %v3737 = vpack.c.b16 %v2231, %v2225
        %v3738 = vpack.c.b16 %v2232, %v2226
        %v3739 = vpack.c.b16 %v2233, %v2227
        %v3740 = vpack.c.b16 %v2234, %v2228
        %v3741 = vpack.c.b16 %v2235, %v2229
        %v3742 = vpack.c.b16 %v2242, %v2236
        %v3743 = vpack.c.b16 %v2243, %v2237
        %v3744 = vpack.c.b16 %v2244, %v2238
        %v3745 = vpack.c.b16 %v2245, %v2239
        %v3746 = vpack.c.b16 %v2246, %v2240
        %v3747 = vpack.c.b16 %v2247, %v2241
        %v3748 = vpack.c.b16 %v2254, %v2248
        %v3749 = vpack.c.b16 %v2255, %v2249
        %v3750 = vpack.c.b16 %v2256, %v2250
        %v3751 = vpack.c.b16 %v2257, %v2251
        %v3752 = vpack.c.b16 %v2258, %v2252
        %v3753 = vpack.c.b16 %v2259, %v2253
        %v3754 = vpack.c.b16 %v2266, %v2260
        %v3755 = vpack.c.b16 %v2267, %v2261
        %v3756 = vpack.c.b16 %v2268, %v2262
        %v3757 = vpack.c.b16 %v2269, %v2263
        %v3758 = vpack.c.b16 %v2270, %v2264
        %v3759 = vpack.c.b16 %v2271, %v2265
        %v3760 = vpack.c.b16 %v2278, %v2272
        %v3761 = vpack.c.b16 %v2279, %v2273
        %v3762 = vpack.c.b16 %v2280, %v2274
        %v3763 = vpack.c.b16 %v2281, %v2275
        %v3764 = vpack.c.b16 %v2282, %v2276
        %v3765 = vpack.c.b16 %v2283, %v2277
        %v3766 = vpack.c.b16 %v2290, %v2284
        %v3767 = vpack.c.b16 %v2291, %v2285
        %v3768 = vpack.c.b16 %v2292, %v2286
        %v3769 = vpack.c.b16 %v2293, %v2287
        %v3770 = vpack.c.b16 %v2294, %v2288
        %v3771 = vpack.c.b16 %v2295, %v2289
        %v3772 = vpack.c.b16 %v2302, %v2296
        %v3773 = vpack.c.b16 %v2303, %v2297
        %v3774 = vpack.c.b16 %v2304, %v2298
        %v3775 = vpack.c.b16 %v2305, %v2299
        %v3776 = vpack.c.b16 %v2306, %v2300
        %v3777 = vpack.c.b16 %v2307, %v2301
        %v3778 = vpack.c.b16 %v2314, %v2308
        %v3779 = vpack.c.b16 %v2315, %v2309
        %v3780 = vpack.c.b16 %v2316, %v2310
        %v3781 = vpack.c.b16 %v2317, %v2311
        %v3782 = vpack.c.b16 %v2318, %v2312
        %v3783 = vpack.c.b16 %v2319, %v2313
        %v3784 = vpack.c.b16 %v2326, %v2320
        %v3785 = vpack.c.b16 %v2327, %v2321
        %v3786 = vpack.c.b16 %v2328, %v2322
        %v3787 = vpack.c.b16 %v2329, %v2323
        %v3788 = vpack.c.b16 %v2330, %v2324
        %v3789 = vpack.c.b16 %v2331, %v2325
        %v3790 = vpack.c.b16 %v2338, %v2332
        %v3791 = vpack.c.b16 %v2339, %v2333
        %v3792 = vpack.c.b16 %v2340, %v2334
        %v3793 = vpack.c.b16 %v2341, %v2335
        %v3794 = vpack.c.b16 %v2342, %v2336
        %v3795 = vpack.c.b16 %v2343, %v2337
        %v3796 = vpack.c.b16 %v2350, %v2344
        %v3797 = vpack.c.b16 %v2351, %v2345
        %v3798 = vpack.c.b16 %v2352, %v2346
        %v3799 = vpack.c.b16 %v2353, %v2347
        %v3800 = vpack.c.b16 %v2354, %v2348
        %v3801 = vpack.c.b16 %v2355, %v2349
        %v3802 = vpack.c.b16 %v2362, %v2356
        %v3803 = vpack.c.b16 %v2363, %v2357
        %v3804 = vpack.c.b16 %v2364, %v2358
        %v3805 = vpack.c.b16 %v2365, %v2359
        %v3806 = vpack.c.b16 %v2366, %v2360
        %v3807 = vpack.c.b16 %v2367, %v2361
        %v3808 = vpack.c.b16 %v2374, %v2368
        %v3809 = vpack.c.b16 %v2375, %v2369
        %v3810 = vpack.c.b16 %v2376, %v2370
        %v3811 = vpack.c.b16 %v2377, %v2371
        %v3812 = vpack.c.b16 %v2378, %v2372
        %v3813 = vpack.c.b16 %v2379, %v2373
        %v3814 = vpack.c.b16 %v2386, %v2380
        %v3815 = vpack.c.b16 %v2387, %v2381
        %v3816 = vpack.c.b16 %v2388, %v2382
        %v3817 = vpack.c.b16 %v2389, %v2383
        %v3818 = vpack.c.b16 %v2390, %v2384
        %v3819 = vpack.c.b16 %v2391, %v2385
        %v3820 = vpack.c.b16 %v2398, %v2392
        %v3821 = vpack.c.b16 %v2399, %v2393
        %v3822 = vpack.c.b16 %v2400, %v2394
        %v3823 = vpack.c.b16 %v2401, %v2395
        %v3824 = vpack.c.b16 %v2402, %v2396
        %v3825 = vpack.c.b16 %v2403, %v2397
        %v3826 = vpack.c.b16 %v2410, %v2404
        %v3827 = vpack.c.b16 %v2411, %v2405
        %v3828 = vpack.c.b16 %v2412, %v2406
        %v3829 = vpack.c.b16 %v2413, %v2407
        %v3830 = vpack.c.b16 %v2414, %v2408
        %v3831 = vpack.c.b16 %v2415, %v2409
        %v3832 = vpack.c.b16 %v2422, %v2416
        %v3833 = vpack.c.b16 %v2423, %v2417
        %v3834 = vpack.c.b16 %v2424, %v2418
        %v3835 = vpack.c.b16 %v2425, %v2419
        %v3836 = vpack.c.b16 %v2426, %v2420
        %v3837 = vpack.c.b16 %v2427, %v2421
        %v3838 = vpack.c.b16 %v2434, %v2428
        %v3839 = vpack.c.b16 %v2435, %v2429
        %v3840 = vpack.c.b16 %v2436, %v2430
        %v3841 = vpack.c.b16 %v2437, %v2431
        %v3842 = vpack.c.b16 %v2438, %v2432
        %v3843 = vpack.c.b16 %v2439, %v2433
        %v3844 = vpack.c.b16 %v2446, %v2440
        %v3845 = vpack.c.b16 %v2447, %v2441
        %v3846 = vpack.c.b16 %v2448, %v2442
        %v3847 = vpack.c.b16 %v2449, %v2443
        %v3848 = vpack.c.b16 %v2450, %v2444
        %v3849 = vpack.c.b16 %v2451, %v2445
        %v3850 = vpack.c.b16 %v2458, %v2452
        %v3851 = vpack.c.b16 %v2459, %v2453
        %v3852 = vpack.c.b16 %v2460, %v2454
        %v3853 = vpack.c.b16 %v2461, %v2455
        %v3854 = vpack.c.b16 %v2462, %v2456
        %v3855 = vpack.c.b16 %v2463, %v2457
        %v3856 = vpack.c.b16 %v2470, %v2464
        %v3857 = vpack.c.b16 %v2471, %v2465
        %v3858 = vpack.c.b16 %v2472, %v2466
        %v3859 = vpack.c.b16 %v2473, %v2467
        %v3860 = vpack.c.b16 %v2474, %v2468
        %v3861 = vpack.c.b16 %v2475, %v2469
        %v3862 = vpack.c.b16 %v2482, %v2476
        %v3863 = vpack.c.b16 %v2483, %v2477
        %v3864 = vpack.c.b16 %v2484, %v2478
        %v3865 = vpack.c.b16 %v2485, %v2479
        %v3866 = vpack.c.b16 %v2486, %v2480
        %v3867 = vpack.c.b16 %v2487, %v2481
        %v3868 = vpack.c.b16 %v2494, %v2488
        %v3869 = vpack.c.b16 %v2495, %v2489
        %v3870 = vpack.c.b16 %v2496, %v2490
        %v3871 = vpack.c.b16 %v2497, %v2491
        %v3872 = vpack.c.b16 %v2498, %v2492
        %v3873 = vpack.c.b16 %v2499, %v2493
        %v3874 = vpack.c.b16 %v2506, %v2500
        %v3875 = vpack.c.b16 %v2507, %v2501
        %v3876 = vpack.c.b16 %v2508, %v2502
        %v3877 = vpack.c.b16 %v2509, %v2503
        %v3878 = vpack.c.b16 %v2510, %v2504
        %v3879 = vpack.c.b16 %v2511, %v2505
        %v3880 = vpack.c.b16 %v2518, %v2512
        %v3881 = vpack.c.b16 %v2519, %v2513
        %v3882 = vpack.c.b16 %v2520, %v2514
        %v3883 = vpack.c.b16 %v2521, %v2515
        %v3884 = vpack.c.b16 %v2522, %v2516
        %v3885 = vpack.c.b16 %v2523, %v2517
        %v3886 = vpack.c.b16 %v2530, %v2524
        %v3887 = vpack.c.b16 %v2531, %v2525
        %v3888 = vpack.c.b16 %v2532, %v2526
        %v3889 = vpack.c.b16 %v2533, %v2527
        %v3890 = vpack.c.b16 %v2534, %v2528
        %v3891 = vpack.c.b16 %v2535, %v2529
        %v3892 = vpack.c.b16 %v2542, %v2536
        %v3893 = vpack.c.b16 %v2543, %v2537
        %v3894 = vpack.c.b16 %v2544, %v2538
        %v3895 = vpack.c.b16 %v2545, %v2539
        %v3896 = vpack.c.b16 %v2546, %v2540
        %v3897 = vpack.c.b16 %v2547, %v2541
        %v3898 = vpack.c.b16 %v2554, %v2548
        %v3899 = vpack.c.b16 %v2555, %v2549
        %v3900 = vpack.c.b16 %v2556, %v2550
        %v3901 = vpack.c.b16 %v2557, %v2551
        %v3902 = vpack.c.b16 %v2558, %v2552
        %v3903 = vpack.c.b16 %v2559, %v2553
        %v3904 = vpack.c.b16 %v2566, %v2560
        %v3905 = vpack.c.b16 %v2567, %v2561
        %v3906 = vpack.c.b16 %v2568, %v2562
        %v3907 = vpack.c.b16 %v2569, %v2563
        %v3908 = vpack.c.b16 %v2570, %v2564
        %v3909 = vpack.c.b16 %v2571, %v2565
        %v3910 = vpack.c.b16 %v2578, %v2572
        %v3911 = vpack.c.b16 %v2579, %v2573
        %v3912 = vpack.c.b16 %v2580, %v2574
        %v3913 = vpack.c.b16 %v2581, %v2575
        %v3914 = vpack.c.b16 %v2582, %v2576
        %v3915 = vpack.c.b16 %v2583, %v2577
        %v3916 = vpack.c.b16 %v2590, %v2584
        %v3917 = vpack.c.b16 %v2591, %v2585
        %v3918 = vpack.c.b16 %v2592, %v2586
        %v3919 = vpack.c.b16 %v2593, %v2587
        %v3920 = vpack.c.b16 %v2594, %v2588
        %v3921 = vpack.c.b16 %v2595, %v2589
        %v3922 = vpack.c.b16 %v2602, %v2596
        %v3923 = vpack.c.b16 %v2603, %v2597
        %v3924 = vpack.c.b16 %v2604, %v2598
        %v3925 = vpack.c.b16 %v2605, %v2599
        %v3926 = vpack.c.b16 %v2606, %v2600
        %v3927 = vpack.c.b16 %v2607, %v2601
        %v3928 = vpack.c.b16 %v2614, %v2608
        %v3929 = vpack.c.b16 %v2615, %v2609
        %v3930 = vpack.c.b16 %v2616, %v2610
        %v3931 = vpack.c.b16 %v2617, %v2611
        %v3932 = vpack.c.b16 %v2618, %v2612
        %v3933 = vpack.c.b16 %v2619, %v2613
        %v3934 = vpack.c.b16 %v2626, %v2620
        %v3935 = vpack.c.b16 %v2627, %v2621
        %v3936 = vpack.c.b16 %v2628, %v2622
        %v3937 = vpack.c.b16 %v2629, %v2623
        %v3938 = vpack.c.b16 %v2630, %v2624
        %v3939 = vpack.c.b16 %v2631, %v2625
        %v3940 = vpack.c.b16 %v2638, %v2632
        %v3941 = vpack.c.b16 %v2639, %v2633
        %v3942 = vpack.c.b16 %v2640, %v2634
        %v3943 = vpack.c.b16 %v2641, %v2635
        %v3944 = vpack.c.b16 %v2642, %v2636
        %v3945 = vpack.c.b16 %v2643, %v2637
        %v3946 = vpack.c.b16 %v2650, %v2644
        %v3947 = vpack.c.b16 %v2651, %v2645
        %v3948 = vpack.c.b16 %v2652, %v2646
        %v3949 = vpack.c.b16 %v2653, %v2647
        %v3950 = vpack.c.b16 %v2654, %v2648
        %v3951 = vpack.c.b16 %v2655, %v2649
        %v3952 = vpack.c.b16 %v2662, %v2656
        %v3953 = vpack.c.b16 %v2663, %v2657
        %v3954 = vpack.c.b16 %v2664, %v2658
        %v3955 = vpack.c.b16 %v2665, %v2659
        %v3956 = vpack.c.b16 %v2666, %v2660
        %v3957 = vpack.c.b16 %v2667, %v2661
        %v3958 = vpack.c.b16 %v2674, %v2668
        %v3959 = vpack.c.b16 %v2675, %v2669
        %v3960 = vpack.c.b16 %v2676, %v2670
        %v3961 = vpack.c.b16 %v2677, %v2671
        %v3962 = vpack.c.b16 %v2678, %v2672
        %v3963 = vpack.c.b16 %v2679, %v2673
        %v3964 = vpack.c.b16 %v2686, %v2680
        %v3965 = vpack.c.b16 %v2687, %v2681
        %v3966 = vpack.c.b16 %v2688, %v2682
        %v3967 = vpack.c.b16 %v2689, %v2683
        %v3968 = vpack.c.b16 %v2690, %v2684
        %v3969 = vpack.c.b16 %v2691, %v2685
        %v3970 = vpack.c.b16 %v2698, %v2692
        %v3971 = vpack.c.b16 %v2699, %v2693
        %v3972 = vpack.c.b16 %v2700, %v2694
        %v3973 = vpack.c.b16 %v2701, %v2695
        %v3974 = vpack.c.b16 %v2702, %v2696
        %v3975 = vpack.c.b16 %v2703, %v2697
        %v3976 = vpack.c.b16 %v2710, %v2704
        %v3977 = vpack.c.b16 %v2711, %v2705
        %v3978 = vpack.c.b16 %v2712, %v2706
        %v3979 = vpack.c.b16 %v2713, %v2707
        %v3980 = vpack.c.b16 %v2714, %v2708
        %v3981 = vpack.c.b16 %v2715, %v2709
        %v3982 = vpack.c.b16 %v2722, %v2716
        %v3983 = vpack.c.b16 %v2723, %v2717
        %v3984 = vpack.c.b16 %v2724, %v2718
        %v3985 = vpack.c.b16 %v2725, %v2719
        %v3986 = vpack.c.b16 %v2726, %v2720
        %v3987 = vpack.c.b16 %v2727, %v2721
        %v3988 = vpack.c.b16 %v2734, %v2728
        %v3989 = vpack.c.b16 %v2735, %v2729
        %v3990 = vpack.c.b16 %v2736, %v2730
        %v3991 = vpack.c.b16 %v2737, %v2731
        %v3992 = vpack.c.b16 %v2738, %v2732
        %v3993 = vpack.c.b16 %v2739, %v2733
        %v3994 = vpack.c.b16 %v2746, %v2740
        %v3995 = vpack.c.b16 %v2747, %v2741
        %v3996 = vpack.c.b16 %v2748, %v2742
        %v3997 = vpack.c.b16 %v2749, %v2743
        %v3998 = vpack.c.b16 %v2750, %v2744
        %v3999 = vpack.c.b16 %v2751, %v2745
        %v4000 = vpack.c.b16 %v2758, %v2752
        %v4001 = vpack.c.b16 %v2759, %v2753
        %v4002 = vpack.c.b16 %v2760, %v2754
        %v4003 = vpack.c.b16 %v2761, %v2755
        %v4004 = vpack.c.b16 %v2762, %v2756
        %v4005 = vpack.c.b16 %v2763, %v2757
        %v4006 = vpack.c.b16 %v2770, %v2764
        %v4007 = vpack.c.b16 %v2771, %v2765
        %v4008 = vpack.c.b16 %v2772, %v2766
        %v4009 = vpack.c.b16 %v2773, %v2767
        %v4010 = vpack.c.b16 %v2774, %v2768
        %v4011 = vpack.c.b16 %v2775, %v2769
        %v4012 = vpack.c.b16 %v2782, %v2776
        %v4013 = vpack.c.b16 %v2783, %v2777
        %v4014 = vpack.c.b16 %v2784, %v2778
        %v4015 = vpack.c.b16 %v2785, %v2779
        %v4016 = vpack.c.b16 %v2786, %v2780
        %v4017 = vpack.c.b16 %v2787, %v2781
        %v4018 = vpack.c.b16 %v2794, %v2788
        %v4019 = vpack.c.b16 %v2795, %v2789
        %v4020 = vpack.c.b16 %v2796, %v2790
        %v4021 = vpack.c.b16 %v2797, %v2791
        %v4022 = vpack.c.b16 %v2798, %v2792
        %v4023 = vpack.c.b16 %v2799, %v2793
        %v4024 = vpack.c.b16 %v2806, %v2800
        %v4025 = vpack.c.b16 %v2807, %v2801
        %v4026 = vpack.c.b16 %v2808, %v2802
        %v4027 = vpack.c.b16 %v2809, %v2803
        %v4028 = vpack.c.b16 %v2810, %v2804
        %v4029 = vpack.c.b16 %v2811, %v2805
        %v4030 = vpack.c.b16 %v2818, %v2812
        %v4031 = vpack.c.b16 %v2819, %v2813
        %v4032 = vpack.c.b16 %v2820, %v2814
        %v4033 = vpack.c.b16 %v2821, %v2815
        %v4034 = vpack.c.b16 %v2822, %v2816
        %v4035 = vpack.c.b16 %v2823, %v2817
        %v4036 = vpack.c.b16 %v2830, %v2824
        %v4037 = vpack.c.b16 %v2831, %v2825
        %v4038 = vpack.c.b16 %v2832, %v2826
        %v4039 = vpack.c.b16 %v2833, %v2827
        %v4040 = vpack.c.b16 %v2834, %v2828
        %v4041 = vpack.c.b16 %v2835, %v2829
        %v4042 = vpack.c.b16 %v2842, %v2836
        %v4043 = vpack.c.b16 %v2843, %v2837
        %v4044 = vpack.c.b16 %v2844, %v2838
        %v4045 = vpack.c.b16 %v2845, %v2839
        %v4046 = vpack.c.b16 %v2846, %v2840
        %v4047 = vpack.c.b16 %v2847, %v2841
        %v4048 = vpack.c.b16 %v2854, %v2848
        %v4049 = vpack.c.b16 %v2855, %v2849
        %v4050 = vpack.c.b16 %v2856, %v2850
        %v4051 = vpack.c.b16 %v2857, %v2851
        %v4052 = vpack.c.b16 %v2858, %v2852
        %v4053 = vpack.c.b16 %v2859, %v2853
        %v4054 = vpack.c.b16 %v2866, %v2860
        %v4055 = vpack.c.b16 %v2867, %v2861
        %v4056 = vpack.c.b16 %v2868, %v2862
        %v4057 = vpack.c.b16 %v2869, %v2863
        %v4058 = vpack.c.b16 %v2870, %v2864
        %v4059 = vpack.c.b16 %v2871, %v2865
        %v4060 = vpack.c.b16 %v2878, %v2872
        %v4061 = vpack.c.b16 %v2879, %v2873
        %v4062 = vpack.c.b16 %v2880, %v2874
        %v4063 = vpack.c.b16 %v2881, %v2875
        %v4064 = vpack.c.b16 %v2882, %v2876
        %v4065 = vpack.c.b16 %v2883, %v2877
        %v4066 = vpack.c.b16 %v2890, %v2884
        %v4067 = vpack.c.b16 %v2891, %v2885
        %v4068 = vpack.c.b16 %v2892, %v2886
        %v4069 = vpack.c.b16 %v2893, %v2887
        %v4070 = vpack.c.b16 %v2894, %v2888
        %v4071 = vpack.c.b16 %v2895, %v2889
        %v4072 = vpack.c.b16 %v2902, %v2896
        %v4073 = vpack.c.b16 %v2903, %v2897
        %v4074 = vpack.c.b16 %v2904, %v2898
        %v4075 = vpack.c.b16 %v2905, %v2899
        %v4076 = vpack.c.b16 %v2906, %v2900
        %v4077 = vpack.c.b16 %v2907, %v2901
        %v4078 = vpack.c.b16 %v2914, %v2908
        %v4079 = vpack.c.b16 %v2915, %v2909
        %v4080 = vpack.c.b16 %v2916, %v2910
        %v4081 = vpack.c.b16 %v2917, %v2911
        %v4082 = vpack.c.b16 %v2918, %v2912
        %v4083 = vpack.c.b16 %v2919, %v2913
        %v4084 = vpack.c.b16 %v2926, %v2920
        %v4085 = vpack.c.b16 %v2927, %v2921
        %v4086 = vpack.c.b16 %v2928, %v2922
        %v4087 = vpack.c.b16 %v2929, %v2923
        %v4088 = vpack.c.b16 %v2930, %v2924
        %v4089 = vpack.c.b16 %v2931, %v2925
        %v4090 = vpack.c.b16 %v2938, %v2932
        %v4091 = vpack.c.b16 %v2939, %v2933
        %v4092 = vpack.c.b16 %v2940, %v2934
        %v4093 = vpack.c.b16 %v2941, %v2935
        %v4094 = vpack.c.b16 %v2942, %v2936
        %v4095 = vpack.c.b16 %v2943, %v2937
        %v4096 = vpack.c.b16 %v2950, %v2944
        %v4097 = vpack.c.b16 %v2951, %v2945
        %v4098 = vpack.c.b16 %v2952, %v2946
        %v4099 = vpack.c.b16 %v2953, %v2947
        %v4100 = vpack.c.b16 %v2954, %v2948
        %v4101 = vpack.c.b16 %v2955, %v2949
        %v4102 = vpack.c.b16 %v2962, %v2956
        %v4103 = vpack.c.b16 %v2963, %v2957
        %v4104 = vpack.c.b16 %v2964, %v2958
        %v4105 = vpack.c.b16 %v2965, %v2959
        %v4106 = vpack.c.b16 %v2966, %v2960
        %v4107 = vpack.c.b16 %v2967, %v2961
        %v4108 = vpack.c.b16 %v2974, %v2968
        %v4109 = vpack.c.b16 %v2975, %v2969
        %v4110 = vpack.c.b16 %v2976, %v2970
        %v4111 = vpack.c.b16 %v2977, %v2971
        %v4112 = vpack.c.b16 %v2978, %v2972
        %v4113 = vpack.c.b16 %v2979, %v2973
        %v4114 = vpack.c.b16 %v2986, %v2980
        %v4115 = vpack.c.b16 %v2987, %v2981
        %v4116 = vpack.c.b16 %v2988, %v2982
        %v4117 = vpack.c.b16 %v2989, %v2983
        %v4118 = vpack.c.b16 %v2990, %v2984
        %v4119 = vpack.c.b16 %v2991, %v2985
        %v4120 = vpack.c.b16 %v2998, %v2992
        %v4121 = vpack.c.b16 %v2999, %v2993
        %v4122 = vpack.c.b16 %v3000, %v2994
        %v4123 = vpack.c.b16 %v3001, %v2995
        %v4124 = vpack.c.b16 %v3002, %v2996
        %v4125 = vpack.c.b16 %v3003, %v2997
        %v4126 = vpack.c.b16 %v3010, %v3004
        %v4127 = vpack.c.b16 %v3011, %v3005
        %v4128 = vpack.c.b16 %v3012, %v3006
        %v4129 = vpack.c.b16 %v3013, %v3007
        %v4130 = vpack.c.b16 %v3014, %v3008
        %v4131 = vpack.c.b16 %v3015, %v3009
        %v4132 = vpack.c.b16 %v3022, %v3016
        %v4133 = vpack.c.b16 %v3023, %v3017
        %v4134 = vpack.c.b16 %v3024, %v3018
        %v4135 = vpack.c.b16 %v3025, %v3019
        %v4136 = vpack.c.b16 %v3026, %v3020
        %v4137 = vpack.c.b16 %v3027, %v3021
        %v4138 = vpack.c.b16 %v3034, %v3028
        %v4139 = vpack.c.b16 %v3035, %v3029
        %v4140 = vpack.c.b16 %v3036, %v3030
        %v4141 = vpack.c.b16 %v3037, %v3031
        %v4142 = vpack.c.b16 %v3038, %v3032
        %v4143 = vpack.c.b16 %v3039, %v3033
        %v4144 = vpack.c.b16 %v3046, %v3040
        %v4145 = vpack.c.b16 %v3047, %v3041
        %v4146 = vpack.c.b16 %v3048, %v3042
        %v4147 = vpack.c.b16 %v3049, %v3043
        %v4148 = vpack.c.b16 %v3050, %v3044
        %v4149 = vpack.c.b16 %v3051, %v3045
        %v4150 = vpack.c.b16 %v3058, %v3052
        %v4151 = vpack.c.b16 %v3059, %v3053
        %v4152 = vpack.c.b16 %v3060, %v3054
        %v4153 = vpack.c.b16 %v3061, %v3055
        %v4154 = vpack.c.b16 %v3062, %v3056
        %v4155 = vpack.c.b16 %v3063, %v3057
        %v4156 = vpack.c.b16 %v3070, %v3064
        %v4157 = vpack.c.b16 %v3071, %v3065
        %v4158 = vpack.c.b16 %v3072, %v3066
        %v4159 = vpack.c.b16 %v3073, %v3067
        %v4160 = vpack.c.b16 %v3074, %v3068
        %v4161 = vpack.c.b16 %v3075, %v3069
        %v4162 = vpack.c.b16 %v3082, %v3076
        %v4163 = vpack.c.b16 %v3083, %v3077
        %v4164 = vpack.c.b16 %v3084, %v3078
        %v4165 = vpack.c.b16 %v3085, %v3079
        %v4166 = vpack.c.b16 %v3086, %v3080
        %v4167 = vpack.c.b16 %v3087, %v3081
        %v4168 = vpack.c.b16 %v3094, %v3088
        %v4169 = vpack.c.b16 %v3095, %v3089
        %v4170 = vpack.c.b16 %v3096, %v3090
        %v4171 = vpack.c.b16 %v3097, %v3091
        %v4172 = vpack.c.b16 %v3098, %v3092
        %v4173 = vpack.c.b16 %v3099, %v3093
        %v4174 = vpack.c.b16 %v3106, %v3100
        %v4175 = vpack.c.b16 %v3107, %v3101
        %v4176 = vpack.c.b16 %v3108, %v3102
        %v4177 = vpack.c.b16 %v3109, %v3103
        %v4178 = vpack.c.b16 %v3110, %v3104
        %v4179 = vpack.c.b16 %v3111, %v3105
        %v4180 = vpack.c.b16 %v3118, %v3112
        %v4181 = vpack.c.b16 %v3119, %v3113
        %v4182 = vpack.c.b16 %v3120, %v3114
        %v4183 = vpack.c.b16 %v3121, %v3115
        %v4184 = vpack.c.b16 %v3122, %v3116
        %v4185 = vpack.c.b16 %v3123, %v3117
        %v4186 = vpack.c.b16 %v3130, %v3124
        %v4187 = vpack.c.b16 %v3131, %v3125
        %v4188 = vpack.c.b16 %v3132, %v3126
        %v4189 = vpack.c.b16 %v3133, %v3127
        %v4190 = vpack.c.b16 %v3134, %v3128
        %v4191 = vpack.c.b16 %v3135, %v3129
        %v4192 = vpack.c.b16 %v3142, %v3136
        %v4193 = vpack.c.b16 %v3143, %v3137
        %v4194 = vpack.c.b16 %v3144, %v3138
        %v4195 = vpack.c.b16 %v3145, %v3139
        %v4196 = vpack.c.b16 %v3146, %v3140
        %v4197 = vpack.c.b16 %v3147, %v3141
        %v4198 = vpack.c.b16 %v3154, %v3148
        %v4199 = vpack.c.b16 %v3155, %v3149
        %v4200 = vpack.c.b16 %v3156, %v3150
        %v4201 = vpack.c.b16 %v3157, %v3151
        %v4202 = vpack.c.b16 %v3158, %v3152
        %v4203 = vpack.c.b16 %v3159, %v3153
        %v4204 = vpack.c.b16 %v3166, %v3160
        %v4205 = vpack.c.b16 %v3167, %v3161
        %v4206 = vpack.c.b16 %v3168, %v3162
        %v4207 = vpack.c.b16 %v3169, %v3163
        %v4208 = vpack.c.b16 %v3170, %v3164
        %v4209 = vpack.c.b16 %v3171, %v3165
        %v4210 = vpack.c.b16 %v3178, %v3172
        %v4211 = vpack.c.b16 %v3179, %v3173
        %v4212 = vpack.c.b16 %v3180, %v3174
        %v4213 = vpack.c.b16 %v3181, %v3175
        %v4214 = vpack.c.b16 %v3182, %v3176
        %v4215 = vpack.c.b16 %v3183, %v3177
        %v4216 = vpack.c.b16 %v3190, %v3184
        %v4217 = vpack.c.b16 %v3191, %v3185
        %v4218 = vpack.c.b16 %v3192, %v3186
        %v4219 = vpack.c.b16 %v3193, %v3187
        %v4220 = vpack.c.b16 %v3194, %v3188
        %v4221 = vpack.c.b16 %v3195, %v3189
        %v4222 = vpack.c.b16 %v3202, %v3196
        %v4223 = vpack.c.b16 %v3203, %v3197
        %v4224 = vpack.c.b16 %v3204, %v3198
        %v4225 = vpack.c.b16 %v3205, %v3199
        %v4226 = vpack.c.b16 %v3206, %v3200
        %v4227 = vpack.c.b16 %v3207, %v3201
        %v4228 = vpack.c.b16 %v3214, %v3208
        %v4229 = vpack.c.b16 %v3215, %v3209
        %v4230 = vpack.c.b16 %v3216, %v3210
        %v4231 = vpack.c.b16 %v3217, %v3211
        %v4232 = vpack.c.b16 %v3218, %v3212
        %v4233 = vpack.c.b16 %v3219, %v3213
        %v4234 = vpack.c.b16 %v3226, %v3220
        %v4235 = vpack.c.b16 %v3227, %v3221
        %v4236 = vpack.c.b16 %v3228, %v3222
        %v4237 = vpack.c.b16 %v3229, %v3223
        %v4238 = vpack.c.b16 %v3230, %v3224
        %v4239 = vpack.c.b16 %v3231, %v3225
        %v4240 = vpack.c.b16 %v3238, %v3232
        %v4241 = vpack.c.b16 %v3239, %v3233
        %v4242 = vpack.c.b16 %v3240, %v3234
        %v4243 = vpack.c.b16 %v3241, %v3235
        %v4244 = vpack.c.b16 %v3242, %v3236
        %v4245 = vpack.c.b16 %v3243, %v3237
        %v4246 = vpack.c.b16 %v3250, %v3244
        %v4247 = vpack.c.b16 %v3251, %v3245
        %v4248 = vpack.c.b16 %v3252, %v3246
        %v4249 = vpack.c.b16 %v3253, %v3247
        %v4250 = vpack.c.b16 %v3254, %v3248
        %v4251 = vpack.c.b16 %v3255, %v3249
        %v4252 = vpack.c.b16 %v3262, %v3256
        %v4253 = vpack.c.b16 %v3263, %v3257
        %v4254 = vpack.c.b16 %v3264, %v3258
        %v4255 = vpack.c.b16 %v3265, %v3259
        %v4256 = vpack.c.b16 %v3266, %v3260
        %v4257 = vpack.c.b16 %v3267, %v3261
        %v4258 = vpack.c.b16 %v3274, %v3268
        %v4259 = vpack.c.b16 %v3275, %v3269
        %v4260 = vpack.c.b16 %v3276, %v3270
        %v4261 = vpack.c.b16 %v3277, %v3271
        %v4262 = vpack.c.b16 %v3278, %v3272
        %v4263 = vpack.c.b16 %v3279, %v3273
        %v4264 = vpack.c.b16 %v3286, %v3280
        %v4265 = vpack.c.b16 %v3287, %v3281
        %v4266 = vpack.c.b16 %v3288, %v3282
        %v4267 = vpack.c.b16 %v3289, %v3283
        %v4268 = vpack.c.b16 %v3290, %v3284
        %v4269 = vpack.c.b16 %v3291, %v3285
        %v4270 = vpack.c.b16 %v3298, %v3292
        %v4271 = vpack.c.b16 %v3299, %v3293
        %v4272 = vpack.c.b16 %v3300, %v3294
        %v4273 = vpack.c.b16 %v3301, %v3295
        %v4274 = vpack.c.b16 %v3302, %v3296
        %v4275 = vpack.c.b16 %v3303, %v3297
        %v4276 = vpack.c.b16 %v3310, %v3304
        %v4277 = vpack.c.b16 %v3311, %v3305
        %v4278 = vpack.c.b16 %v3312, %v3306
        %v4279 = vpack.c.b16 %v3313, %v3307
        %v4280 = vpack.c.b16 %v3314, %v3308
        %v4281 = vpack.c.b16 %v3315, %v3309
        %v4282 = vpack.c.b16 %v3322, %v3316
        %v4283 = vpack.c.b16 %v3323, %v3317
        %v4284 = vpack.c.b16 %v3324, %v3318
        %v4285 = vpack.c.b16 %v3325, %v3319
        %v4286 = vpack.c.b16 %v3326, %v3320
        %v4287 = vpack.c.b16 %v3327, %v3321
        %v4288 = vpack.c.b16 %v3334, %v3328
        %v4289 = vpack.c.b16 %v3335, %v3329
        %v4290 = vpack.c.b16 %v3336, %v3330
        %v4291 = vpack.c.b16 %v3337, %v3331
        %v4292 = vpack.c.b16 %v3338, %v3332
        %v4293 = vpack.c.b16 %v3339, %v3333
        %v4294 = vpack.c.b16 %v3346, %v3340
        %v4295 = vpack.c.b16 %v3347, %v3341
        %v4296 = vpack.c.b16 %v3348, %v3342
        %v4297 = vpack.c.b16 %v3349, %v3343
        %v4298 = vpack.c.b16 %v3350, %v3344
        %v4299 = vpack.c.b16 %v3351, %v3345
        %v4300 = vpack.c.b16 %v3358, %v3352
        %v4301 = vpack.c.b16 %v3359, %v3353
        %v4302 = vpack.c.b16 %v3360, %v3354
        %v4303 = vpack.c.b16 %v3361, %v3355
        %v4304 = vpack.c.b16 %v3362, %v3356
        %v4305 = vpack.c.b16 %v3363, %v3357
        %v4306 = vpack.c.b16 %v3370, %v3364
        %v4307 = vpack.c.b16 %v3371, %v3365
        %v4308 = vpack.c.b16 %v3372, %v3366
        %v4309 = vpack.c.b16 %v3373, %v3367
        %v4310 = vpack.c.b16 %v3374, %v3368
        %v4311 = vpack.c.b16 %v3375, %v3369
        %v4312 = vpack.c.b16 %v3382, %v3376
        %v4313 = vpack.c.b16 %v3383, %v3377
        %v4314 = vpack.c.b16 %v3384, %v3378
        %v4315 = vpack.c.b16 %v3385, %v3379
        %v4316 = vpack.c.b16 %v3386, %v3380
        %v4317 = vpack.c.b16 %v3387, %v3381
        %v4318 = vpack.c.b16 %v3394, %v3388
        %v4319 = vpack.c.b16 %v3395, %v3389
        %v4320 = vpack.c.b16 %v3396, %v3390
        %v4321 = vpack.c.b16 %v3397, %v3391
        %v4322 = vpack.c.b16 %v3398, %v3392
        %v4323 = vpack.c.b16 %v3399, %v3393
        %v4324 = vpack.c.b16 %v3406, %v3400
        %v4325 = vpack.c.b16 %v3407, %v3401
        %v4326 = vpack.c.b16 %v3408, %v3402
        %v4327 = vpack.c.b16 %v3409, %v3403
        %v4328 = vpack.c.b16 %v3410, %v3404
        %v4329 = vpack.c.b16 %v3411, %v3405
        %v4330 = vpack.c.b16 %v3418, %v3412
        %v4331 = vpack.c.b16 %v3419, %v3413
        %v4332 = vpack.c.b16 %v3420, %v3414
        %v4333 = vpack.c.b16 %v3421, %v3415
        %v4334 = vpack.c.b16 %v3422, %v3416
        %v4335 = vpack.c.b16 %v3423, %v3417
        %v4336 = vpack.c.b16 %v3430, %v3424
        %v4337 = vpack.c.b16 %v3431, %v3425
        %v4338 = vpack.c.b16 %v3432, %v3426
        %v4339 = vpack.c.b16 %v3433, %v3427
        %v4340 = vpack.c.b16 %v3434, %v3428
        %v4341 = vpack.c.b16 %v3435, %v3429
        %v4342 = vpack.c.b16 %v3442, %v3436
        %v4343 = vpack.c.b16 %v3443, %v3437
        %v4344 = vpack.c.b16 %v3444, %v3438
        %v4345 = vpack.c.b16 %v3445, %v3439
        %v4346 = vpack.c.b16 %v3446, %v3440
        %v4347 = vpack.c.b16 %v3447, %v3441
        %v4348 = vpack.c.b16 %v3454, %v3448
        %v4349 = vpack.c.b16 %v3455, %v3449
        %v4350 = vpack.c.b16 %v3456, %v3450
        %v4351 = vpack.c.b16 %v3457, %v3451
        %v4352 = vpack.c.b16 %v3458, %v3452
        %v4353 = vpack.c.b16 %v3459, %v3453
        %v4354 = vpack.c.b16 %v3466, %v3460
        %v4355 = vpack.c.b16 %v3467, %v3461
        %v4356 = vpack.c.b16 %v3468, %v3462
        %v4357 = vpack.c.b16 %v3469, %v3463
        %v4358 = vpack.c.b16 %v3470, %v3464
        %v4359 = vpack.c.b16 %v3471, %v3465
        %v4360 = vpack.c.b16 %v3478, %v3472
        %v4361 = vpack.c.b16 %v3479, %v3473
        %v4362 = vpack.c.b16 %v3480, %v3474
        %v4363 = vpack.c.b16 %v3481, %v3475
        %v4364 = vpack.c.b16 %v3482, %v3476
        %v4365 = vpack.c.b16 %v3483, %v3477
        %v4366 = vpack.c.b16 %v3490, %v3484
        %v4367 = vpack.c.b16 %v3491, %v3485
        %v4368 = vpack.c.b16 %v3492, %v3486
        %v4369 = vpack.c.b16 %v3493, %v3487
        %v4370 = vpack.c.b16 %v3494, %v3488
        %v4371 = vpack.c.b16 %v3495, %v3489
        %v4372 = vpack.c.b16 %v3502, %v3496
        %v4373 = vpack.c.b16 %v3503, %v3497
        %v4374 = vpack.c.b16 %v3504, %v3498
        %v4375 = vpack.c.b16 %v3505, %v3499
        %v4376 = vpack.c.b16 %v3506, %v3500
        %v4377 = vpack.c.b16 %v3507, %v3501
        %v4378 = vpack.c.b16 %v3514, %v3508
        %v4379 = vpack.c.b16 %v3515, %v3509
        %v4380 = vpack.c.b16 %v3516, %v3510
        %v4381 = vpack.c.b16 %v3517, %v3511
        %v4382 = vpack.c.b16 %v3518, %v3512
        %v4383 = vpack.c.b16 %v3519, %v3513
        %v4384 = vpack.c.b16 %v3526, %v3520
        %v4385 = vpack.c.b16 %v3527, %v3521
        %v4386 = vpack.c.b16 %v3528, %v3522
        %v4387 = vpack.c.b16 %v3529, %v3523
        %v4388 = vpack.c.b16 %v3530, %v3524
        %v4389 = vpack.c.b16 %v3531, %v3525
        %v4390 = vpack.c.b16 %v3538, %v3532
        %v4391 = vpack.c.b16 %v3539, %v3533
        %v4392 = vpack.c.b16 %v3540, %v3534
        %v4393 = vpack.c.b16 %v3541, %v3535
        %v4394 = vpack.c.b16 %v3542, %v3536
        %v4395 = vpack.c.b16 %v3543, %v3537
        %v4396 = vpack.c.b16 %v3550, %v3544
        %v4397 = vpack.c.b16 %v3551, %v3545
        %v4398 = vpack.c.b16 %v3552, %v3546
        %v4399 = vpack.c.b16 %v3553, %v3547
        %v4400 = vpack.c.b16 %v3554, %v3548
        %v4401 = vpack.c.b16 %v3555, %v3549
        %v4402 = vpack.c.b16 %v3562, %v3556
        %v4403 = vpack.c.b16 %v3563, %v3557
        %v4404 = vpack.c.b16 %v3564, %v3558
        %v4405 = vpack.c.b16 %v3565, %v3559
        %v4406 = vpack.c.b16 %v3566, %v3560
        %v4407 = vpack.c.b16 %v3567, %v3561
        %v4408 = vpack.c.b16 %v3574, %v3568
        %v4409 = vpack.c.b16 %v3575, %v3569
        %v4410 = vpack.c.b16 %v3576, %v3570
        %v4411 = vpack.c.b16 %v3577, %v3571
        %v4412 = vpack.c.b16 %v3578, %v3572
        %v4413 = vpack.c.b16 %v3579, %v3573
        %v4414 = vpack.c.b16 %v3586, %v3580
        %v4415 = vpack.c.b16 %v3587, %v3581
        %v4416 = vpack.c.b16 %v3588, %v3582
        %v4417 = vpack.c.b16 %v3589, %v3583
        %v4418 = vpack.c.b16 %v3590, %v3584
        %v4419 = vpack.c.b16 %v3591, %v3585
        %v4420 = vpack.c.b16 %v3598, %v3592
        %v4421 = vpack.c.b16 %v3599, %v3593
        %v4422 = vpack.c.b16 %v3600, %v3594
        %v4423 = vpack.c.b16 %v3601, %v3595
        %v4424 = vpack.c.b16 %v3602, %v3596
        %v4425 = vpack.c.b16 %v3603, %v3597
        %v4426 = vpack.c.b16 %v3610, %v3604
        %v4427 = vpack.c.b16 %v3611, %v3605
        %v4428 = vpack.c.b16 %v3612, %v3606
        %v4429 = vpack.c.b16 %v3613, %v3607
        %v4430 = vpack.c.b16 %v3614, %v3608
        %v4431 = vpack.c.b16 %v3615, %v3609
        %v4432 = vpack.c.b16 %v3622, %v3616
        %v4433 = vpack.c.b16 %v3623, %v3617
        %v4434 = vpack.c.b16 %v3624, %v3618
        %v4435 = vpack.c.b16 %v3625, %v3619
        %v4436 = vpack.c.b16 %v3626, %v3620
        %v4437 = vpack.c.b16 %v3627, %v3621
        %v4438 = vpack.c.b16 %v3634, %v3628
        %v4439 = vpack.c.b16 %v3635, %v3629
        %v4440 = vpack.c.b16 %v3636, %v3630
        %v4441 = vpack.c.b16 %v3637, %v3631
        %v4442 = vpack.c.b16 %v3638, %v3632
        %v4443 = vpack.c.b16 %v3639, %v3633
        %v4444 = vpack.c.b16 %v3646, %v3640
        %v4445 = vpack.c.b16 %v3647, %v3641
        %v4446 = vpack.c.b16 %v3648, %v3642
        %v4447 = vpack.c.b16 %v3649, %v3643
        %v4448 = vpack.c.b16 %v3650, %v3644
        %v4449 = vpack.c.b16 %v3651, %v3645
        %v4450 = vpack.c.b16 %v3658, %v3652
        %v4451 = vpack.c.b16 %v3659, %v3653
        %v4452 = vpack.c.b16 %v3660, %v3654
        %v4453 = vpack.c.b16 %v3661, %v3655
        %v4454 = vpack.c.b16 %v3662, %v3656
        %v4455 = vpack.c.b16 %v3663, %v3657
        %v4456 = vpack.c.b16 %v3670, %v3664
        %v4457 = vpack.c.b16 %v3671, %v3665
        %v4458 = vpack.c.b16 %v3672, %v3666
        %v4459 = vpack.c.b16 %v3673, %v3667
        %v4460 = vpack.c.b16 %v3674, %v3668
        %v4461 = vpack.c.b16 %v3675, %v3669
        %v4462 = vpack.c.b16 %v3682, %v3676
        %v4463 = vpack.c.b16 %v3683, %v3677
        %v4464 = vpack.c.b16 %v3684, %v3678
        %v4465 = vpack.c.b16 %v3685, %v3679
        %v4466 = vpack.c.b16 %v3686, %v3680
        %v4467 = vpack.c.b16 %v3687, %v3681
        %v4468 = vpack.c.b16 %v3694, %v3688
        %v4469 = vpack.c.b16 %v3695, %v3689
        %v4470 = vpack.c.b16 %v3696, %v3690
        %v4471 = vpack.c.b16 %v3697, %v3691
        %v4472 = vpack.c.b16 %v3698, %v3692
        %v4473 = vpack.c.b16 %v3699, %v3693
        %v4474 = vpack.c.b16 %v3706, %v3700
        %v4475 = vpack.c.b16 %v3707, %v3701
        %v4476 = vpack.c.b16 %v3708, %v3702
        %v4477 = vpack.c.b16 %v3709, %v3703
        %v4478 = vpack.c.b16 %v3710, %v3704
        %v4479 = vpack.c.b16 %v3711, %v3705
        %5248 = vmatprep.subr.bf16.mxu0 %v3713
        %5249 = vmatpush1.bf16.msra.mxu0 %v3712
        %5250 = vmatprep.subr.bf16.mxu0 %v3719
        %5251 = vmatpush1.bf16.msra.mxu0 %v3718
        %5252 = vmatprep.subr.bf16.mxu0 %v3725
        %5253 = vmatpush1.bf16.msra.mxu0 %v3724
        %5254 = vmatprep.subr.bf16.mxu0 %v3731
        %5255 = vmatpush1.bf16.msra.mxu0 %v3730
        %5256 = vmatprep.subr.bf16.mxu0 %v3737
        %5257 = vmatpush1.bf16.msra.mxu0 %v3736
        %5258 = vmatprep.subr.bf16.mxu0 %v3743
        %5259 = vmatpush1.bf16.msra.mxu0 %v3742
        %5260 = vmatprep.subr.bf16.mxu0 %v3749
        %5261 = vmatpush1.bf16.msra.mxu0 %v3748
        %5262 = vmatprep.subr.bf16.mxu0 %v3755
        %5263 = vmatpush1.bf16.msra.mxu0 %v3754
        %5264 = vmatprep.subr.bf16.mxu0 %v3761
        %5265 = vmatpush1.bf16.msra.mxu0 %v3760
        %5266 = vmatprep.subr.bf16.mxu0 %v3767
        %5267 = vmatpush1.bf16.msra.mxu0 %v3766
        %5268 = vmatprep.subr.bf16.mxu0 %v3773
        %5269 = vmatpush1.bf16.msra.mxu0 %v3772
        %5270 = vmatprep.subr.bf16.mxu0 %v3779
        %5271 = vmatpush1.bf16.msra.mxu0 %v3778
        %5272 = vmatprep.subr.bf16.mxu0 %v3785
        %5273 = vmatpush1.bf16.msra.mxu0 %v3784
        %5274 = vmatprep.subr.bf16.mxu0 %v3791
        %5275 = vmatpush1.bf16.msra.mxu0 %v3790
        %5276 = vmatprep.subr.bf16.mxu0 %v3797
        %5277 = vmatpush1.bf16.msra.mxu0 %v3796
        %5278 = vmatprep.subr.bf16.mxu0 %v3803
        %5279 = vmatpush1.bf16.msra.mxu0 %v3802
        %5280 = vmatprep.mubr.bf16.mxu0 %v1281
        %5281 = vmatmul.mubr.bf16.gmra.mrb[0].mxu0 %v1280
        %v5282 = vpop.f32.mrb[0].mxu0
        %v5283 = vadd.f32 %v1061, %v5282
        %v5284 = vpop.f32.mrb[0].mxu0
        %v5285 = vadd.f32 %v1065, %v5284
        %v5286 = vpop.f32.mrb[0].mxu0
        %v5287 = vadd.f32 %v1061, %v5286
        %v5288 = vpop.f32.mrb[0].mxu0
        %v5289 = vadd.f32 %v1065, %v5288
        %5290 = vmatprep.mubr.bf16.mxu0 %v1297
        %5291 = vmatmul.mubr.bf16.gmra.mrb[0].mxu0 %v1296
        %v5292 = vpop.f32.mrb[0].mxu0
        %v5293 = vadd.f32 %v1061, %v5292
        %v5294 = vpop.f32.mrb[0].mxu0
        %v5295 = vadd.f32 %v1065, %v5294
        %v5296 = vpop.f32.mrb[0].mxu0
        %v5297 = vadd.f32 %v1061, %v5296
        %v5298 = vpop.f32.mrb[0].mxu0
        %v5299 = vadd.f32 %v1065, %v5298
        %5300 = vmatprep.mubr.bf16.mxu0 %v1313
        %5301 = vmatmul.mubr.bf16.gmra.mrb[0].mxu0 %v1312
        %v5302 = vpop.f32.mrb[0].mxu0
        %v5303 = vadd.f32 %v1061, %v5302
        %v5304 = vpop.f32.mrb[0].mxu0
        %v5305 = vadd.f32 %v1065, %v5304
        %v5306 = vpop.f32.mrb[0].mxu0
        %v5307 = vadd.f32 %v1061, %v5306
        %v5308 = vpop.f32.mrb[0].mxu0
        %v5309 = vadd.f32 %v1065, %v5308
        %5310 = vmatprep.mubr.bf16.mxu0 %v1329
        %5311 = vmatmul.mubr.bf16.gmra.mrb[0].mxu0 %v1328
        %v5312 = vpop.f32.mrb[0].mxu0
        %v5313 = vadd.f32 %v1061, %v5312
        %v5314 = vpop.f32.mrb[0].mxu0
        %v5315 = vadd.f32 %v1065, %v5314
        %v5316 = vpop.f32.mrb[0].mxu0
        %v5317 = vadd.f32 %v1061, %v5316
        %v5318 = vpop.f32.mrb[0].mxu0
        %v5319 = vadd.f32 %v1065, %v5318
        %5320 = vdwg.mxu0
        %5321 = vmatprep.subr.bf16.mxu0 %v3809
        %5322 = vmatpush1.bf16.msra.mxu0 %v3808
        %5323 = vmatprep.subr.bf16.mxu0 %v3815
        %5324 = vmatpush1.bf16.msra.mxu0 %v3814
        %5325 = vmatprep.subr.bf16.mxu0 %v3821
        %5326 = vmatpush1.bf16.msra.mxu0 %v3820
        %5327 = vmatprep.subr.bf16.mxu0 %v3827
        %5328 = vmatpush1.bf16.msra.mxu0 %v3826
        %5329 = vmatprep.subr.bf16.mxu0 %v3833
        %5330 = vmatpush1.bf16.msra.mxu0 %v3832
        %5331 = vmatprep.subr.bf16.mxu0 %v3839
        %5332 = vmatpush1.bf16.msra.mxu0 %v3838
        %5333 = vmatprep.subr.bf16.mxu0 %v3845
        %5334 = vmatpush1.bf16.msra.mxu0 %v3844
        %5335 = vmatprep.subr.bf16.mxu0 %v3851
        %5336 = vmatpush1.bf16.msra.mxu0 %v3850
        %5337 = vmatprep.subr.bf16.mxu0 %v3857
        %5338 = vmatpush1.bf16.msra.mxu0 %v3856
        %5339 = vmatprep.subr.bf16.mxu0 %v3863
        %5340 = vmatpush1.bf16.msra.mxu0 %v3862
        %5341 = vmatprep.subr.bf16.mxu0 %v3869
        %5342 = vmatpush1.bf16.msra.mxu0 %v3868
        %5343 = vmatprep.subr.bf16.mxu0 %v3875
        %5344 = vmatpush1.bf16.msra.mxu0 %v3874
        %5345 = vmatprep.subr.bf16.mxu0 %v3881
        %5346 = vmatpush1.bf16.msra.mxu0 %v3880
        %5347 = vmatprep.subr.bf16.mxu0 %v3887
        %5348 = vmatpush1.bf16.msra.mxu0 %v3886
        %5349 = vmatprep.subr.bf16.mxu0 %v3893
        %5350 = vmatpush1.bf16.msra.mxu0 %v3892
        %5351 = vmatprep.subr.bf16.mxu0 %v3899
        %5352 = vmatpush1.bf16.msra.mxu0 %v3898
        %5353 = vmatprep.mubr.bf16.mxu0 %v1283
        %5354 = vmatmul.mubr.bf16.gmra.mrb[0].mxu0 %v1282
        %v5355 = vpop.f32.mrb[0].mxu0
        %v5356 = vadd.f32 %v5283, %v5355
        %v5357 = vpop.f32.mrb[0].mxu0
        %v5358 = vadd.f32 %v5285, %v5357
        %v5359 = vpop.f32.mrb[0].mxu0
        %v5360 = vadd.f32 %v5287, %v5359
        %v5361 = vpop.f32.mrb[0].mxu0
        %v5362 = vadd.f32 %v5289, %v5361
        %5363 = vmatprep.mubr.bf16.mxu0 %v1299
        %5364 = vmatmul.mubr.bf16.gmra.mrb[0].mxu0 %v1298
        %v5365 = vpop.f32.mrb[0].mxu0
        %v5366 = vadd.f32 %v5293, %v5365
        %v5367 = vpop.f32.mrb[0].mxu0
        %v5368 = vadd.f32 %v5295, %v5367
        %v5369 = vpop.f32.mrb[0].mxu0
        %v5370 = vadd.f32 %v5297, %v5369
        %v5371 = vpop.f32.mrb[0].mxu0
        %v5372 = vadd.f32 %v5299, %v5371
        %5373 = vmatprep.mubr.bf16.mxu0 %v1315
        %5374 = vmatmul.mubr.bf16.gmra.mrb[0].mxu0 %v1314
        %v5375 = vpop.f32.mrb[0].mxu0
        %v5376 = vadd.f32 %v5303, %v5375
        %v5377 = vpop.f32.mrb[0].mxu0
        %v5378 = vadd.f32 %v5305, %v5377
        %v5379 = vpop.f32.mrb[0].mxu0
        %v5380 = vadd.f32 %v5307, %v5379
        %v5381 = vpop.f32.mrb[0].mxu0
        %v5382 = vadd.f32 %v5309, %v5381
        %5383 = vmatprep.mubr.bf16.mxu0 %v1331
        %5384 = vmatmul.mubr.bf16.gmra.mrb[0].mxu0 %v1330
        %v5385 = vpop.f32.mrb[0].mxu0
        %v5386 = vadd.f32 %v5313, %v5385
        %v5387 = vpop.f32.mrb[0].mxu0
        %v5388 = vadd.f32 %v5315, %v5387
        %v5389 = vpop.f32.mrb[0].mxu0
        %v5390 = vadd.f32 %v5317, %v5389
        %v5391 = vpop.f32.mrb[0].mxu0
        %v5392 = vadd.f32 %v5319, %v5391
        %5393 = vdwg.mxu0
        %5394 = vmatprep.subr.bf16.mxu0 %v3905
        %5395 = vmatpush1.bf16.msra.mxu0 %v3904
        %5396 = vmatprep.subr.bf16.mxu0 %v3911
        %5397 = vmatpush1.bf16.msra.mxu0 %v3910
        %5398 = vmatprep.subr.bf16.mxu0 %v3917
        %5399 = vmatpush1.bf16.msra.mxu0 %v3916
        %5400 = vmatprep.subr.bf16.mxu0 %v3923
        %5401 = vmatpush1.bf16.msra.mxu0 %v3922
        %5402 = vmatprep.subr.bf16.mxu0 %v3929
        %5403 = vmatpush1.bf16.msra.mxu0 %v3928
        %5404 = vmatprep.subr.bf16.mxu0 %v3935
        %5405 = vmatpush1.bf16.msra.mxu0 %v3934
        %5406 = vmatprep.subr.bf16.mxu0 %v3941
        %5407 = vmatpush1.bf16.msra.mxu0 %v3940
        %5408 = vmatprep.subr.bf16.mxu0 %v3947
        %5409 = vmatpush1.bf16.msra.mxu0 %v3946
        %5410 = vmatprep.subr.bf16.mxu0 %v3953
        %5411 = vmatpush1.bf16.msra.mxu0 %v3952
        %5412 = vmatprep.subr.bf16.mxu0 %v3959
        %5413 = vmatpush1.bf16.msra.mxu0 %v3958
        %5414 = vmatprep.subr.bf16.mxu0 %v3965
        %5415 = vmatpush1.bf16.msra.mxu0 %v3964
        %5416 = vmatprep.subr.bf16.mxu0 %v3971
        %5417 = vmatpush1.bf16.msra.mxu0 %v3970
        %5418 = vmatprep.subr.bf16.mxu0 %v3977
        %5419 = vmatpush1.bf16.msra.mxu0 %v3976
        %5420 = vmatprep.subr.bf16.mxu0 %v3983
        %5421 = vmatpush1.bf16.msra.mxu0 %v3982
        %5422 = vmatprep.subr.bf16.mxu0 %v3989
        %5423 = vmatpush1.bf16.msra.mxu0 %v3988
        %5424 = vmatprep.subr.bf16.mxu0 %v3995
        %5425 = vmatpush1.bf16.msra.mxu0 %v3994
        %5426 = vmatprep.mubr.bf16.mxu0 %v1285
        %5427 = vmatmul.mubr.bf16.gmra.mrb[0].mxu0 %v1284
        %v5428 = vpop.f32.mrb[0].mxu0
        %v5429 = vadd.f32 %v5356, %v5428
        %v5430 = vpop.f32.mrb[0].mxu0
        %v5431 = vadd.f32 %v5358, %v5430
        %v5432 = vpop.f32.mrb[0].mxu0
        %v5433 = vadd.f32 %v5360, %v5432
        %v5434 = vpop.f32.mrb[0].mxu0
        %v5435 = vadd.f32 %v5362, %v5434
        %5436 = vmatprep.mubr.bf16.mxu0 %v1301
        %5437 = vmatmul.mubr.bf16.gmra.mrb[0].mxu0 %v1300
        %v5438 = vpop.f32.mrb[0].mxu0
        %v5439 = vadd.f32 %v5366, %v5438
        %v5440 = vpop.f32.mrb[0].mxu0
        %v5441 = vadd.f32 %v5368, %v5440
        %v5442 = vpop.f32.mrb[0].mxu0
        %v5443 = vadd.f32 %v5370, %v5442
        %v5444 = vpop.f32.mrb[0].mxu0
        %v5445 = vadd.f32 %v5372, %v5444
        %5446 = vmatprep.mubr.bf16.mxu0 %v1317
        %5447 = vmatmul.mubr.bf16.gmra.mrb[0].mxu0 %v1316
        %v5448 = vpop.f32.mrb[0].mxu0
        %v5449 = vadd.f32 %v5376, %v5448
        %v5450 = vpop.f32.mrb[0].mxu0
        %v5451 = vadd.f32 %v5378, %v5450
        %v5452 = vpop.f32.mrb[0].mxu0
        %v5453 = vadd.f32 %v5380, %v5452
        %v5454 = vpop.f32.mrb[0].mxu0
        %v5455 = vadd.f32 %v5382, %v5454
        %5456 = vmatprep.mubr.bf16.mxu0 %v1333
        %5457 = vmatmul.mubr.bf16.gmra.mrb[0].mxu0 %v1332
        %v5458 = vpop.f32.mrb[0].mxu0
        %v5459 = vadd.f32 %v5386, %v5458
        %v5460 = vpop.f32.mrb[0].mxu0
        %v5461 = vadd.f32 %v5388, %v5460
        %v5462 = vpop.f32.mrb[0].mxu0
        %v5463 = vadd.f32 %v5390, %v5462
        %v5464 = vpop.f32.mrb[0].mxu0
        %v5465 = vadd.f32 %v5392, %v5464
        %5466 = vdwg.mxu0
        %5467 = vmatprep.subr.bf16.mxu0 %v4001
        %5468 = vmatpush1.bf16.msra.mxu0 %v4000
        %5469 = vmatprep.subr.bf16.mxu0 %v4007
        %5470 = vmatpush1.bf16.msra.mxu0 %v4006
        %5471 = vmatprep.subr.bf16.mxu0 %v4013
        %5472 = vmatpush1.bf16.msra.mxu0 %v4012
        %5473 = vmatprep.subr.bf16.mxu0 %v4019
        %5474 = vmatpush1.bf16.msra.mxu0 %v4018
        %5475 = vmatprep.subr.bf16.mxu0 %v4025
        %5476 = vmatpush1.bf16.msra.mxu0 %v4024
        %5477 = vmatprep.subr.bf16.mxu0 %v4031
        %5478 = vmatpush1.bf16.msra.mxu0 %v4030
        %5479 = vmatprep.subr.bf16.mxu0 %v4037
        %5480 = vmatpush1.bf16.msra.mxu0 %v4036
        %5481 = vmatprep.subr.bf16.mxu0 %v4043
        %5482 = vmatpush1.bf16.msra.mxu0 %v4042
        %5483 = vmatprep.subr.bf16.mxu0 %v4049
        %5484 = vmatpush1.bf16.msra.mxu0 %v4048
        %5485 = vmatprep.subr.bf16.mxu0 %v4055
        %5486 = vmatpush1.bf16.msra.mxu0 %v4054
        %5487 = vmatprep.subr.bf16.mxu0 %v4061
        %5488 = vmatpush1.bf16.msra.mxu0 %v4060
        %5489 = vmatprep.subr.bf16.mxu0 %v4067
        %5490 = vmatpush1.bf16.msra.mxu0 %v4066
        %5491 = vmatprep.subr.bf16.mxu0 %v4073
        %5492 = vmatpush1.bf16.msra.mxu0 %v4072
        %5493 = vmatprep.subr.bf16.mxu0 %v4079
        %5494 = vmatpush1.bf16.msra.mxu0 %v4078
        %5495 = vmatprep.subr.bf16.mxu0 %v4085
        %5496 = vmatpush1.bf16.msra.mxu0 %v4084
        %5497 = vmatprep.subr.bf16.mxu0 %v4091
        %5498 = vmatpush1.bf16.msra.mxu0 %v4090
        %5499 = vmatprep.mubr.bf16.mxu0 %v1287
        %5500 = vmatmul.mubr.bf16.gmra.mrb[0].mxu0 %v1286
        %v5501 = vpop.f32.mrb[0].mxu0
        %v5502 = vadd.f32 %v5429, %v5501
        %v5503 = vpop.f32.mrb[0].mxu0
        %v5504 = vadd.f32 %v5431, %v5503
        %v5505 = vpop.f32.mrb[0].mxu0
        %v5506 = vadd.f32 %v5433, %v5505
        %v5507 = vpop.f32.mrb[0].mxu0
        %v5508 = vadd.f32 %v5435, %v5507
        %5509 = vmatprep.mubr.bf16.mxu0 %v1303
        %5510 = vmatmul.mubr.bf16.gmra.mrb[0].mxu0 %v1302
        %v5511 = vpop.f32.mrb[0].mxu0
        %v5512 = vadd.f32 %v5439, %v5511
        %v5513 = vpop.f32.mrb[0].mxu0
        %v5514 = vadd.f32 %v5441, %v5513
        %v5515 = vpop.f32.mrb[0].mxu0
        %v5516 = vadd.f32 %v5443, %v5515
        %v5517 = vpop.f32.mrb[0].mxu0
        %v5518 = vadd.f32 %v5445, %v5517
        %5519 = vmatprep.mubr.bf16.mxu0 %v1319
        %5520 = vmatmul.mubr.bf16.gmra.mrb[0].mxu0 %v1318
        %v5521 = vpop.f32.mrb[0].mxu0
        %v5522 = vadd.f32 %v5449, %v5521
        %v5523 = vpop.f32.mrb[0].mxu0
        %v5524 = vadd.f32 %v5451, %v5523
        %v5525 = vpop.f32.mrb[0].mxu0
        %v5526 = vadd.f32 %v5453, %v5525
        %v5527 = vpop.f32.mrb[0].mxu0
        %v5528 = vadd.f32 %v5455, %v5527
        %5529 = vmatprep.mubr.bf16.mxu0 %v1335
        %5530 = vmatmul.mubr.bf16.gmra.mrb[0].mxu0 %v1334
        %v5531 = vpop.f32.mrb[0].mxu0
        %v5532 = vadd.f32 %v5459, %v5531
        %v5533 = vpop.f32.mrb[0].mxu0
        %v5534 = vadd.f32 %v5461, %v5533
        %v5535 = vpop.f32.mrb[0].mxu0
        %v5536 = vadd.f32 %v5463, %v5535
        %v5537 = vpop.f32.mrb[0].mxu0
        %v5538 = vadd.f32 %v5465, %v5537
        %5539 = vdwg.mxu0
        %5540 = vmatprep.subr.bf16.mxu0 %v4097
        %5541 = vmatpush1.bf16.msra.mxu0 %v4096
        %5542 = vmatprep.subr.bf16.mxu0 %v4103
        %5543 = vmatpush1.bf16.msra.mxu0 %v4102
        %5544 = vmatprep.subr.bf16.mxu0 %v4109
        %5545 = vmatpush1.bf16.msra.mxu0 %v4108
        %5546 = vmatprep.subr.bf16.mxu0 %v4115
        %5547 = vmatpush1.bf16.msra.mxu0 %v4114
        %5548 = vmatprep.subr.bf16.mxu0 %v4121
        %5549 = vmatpush1.bf16.msra.mxu0 %v4120
        %5550 = vmatprep.subr.bf16.mxu0 %v4127
        %5551 = vmatpush1.bf16.msra.mxu0 %v4126
        %5552 = vmatprep.subr.bf16.mxu0 %v4133
        %5553 = vmatpush1.bf16.msra.mxu0 %v4132
        %5554 = vmatprep.subr.bf16.mxu0 %v4139
        %5555 = vmatpush1.bf16.msra.mxu0 %v4138
        %5556 = vmatprep.subr.bf16.mxu0 %v4145
        %5557 = vmatpush1.bf16.msra.mxu0 %v4144
        %5558 = vmatprep.subr.bf16.mxu0 %v4151
        %5559 = vmatpush1.bf16.msra.mxu0 %v4150
        %5560 = vmatprep.subr.bf16.mxu0 %v4157
        %5561 = vmatpush1.bf16.msra.mxu0 %v4156
        %5562 = vmatprep.subr.bf16.mxu0 %v4163
        %5563 = vmatpush1.bf16.msra.mxu0 %v4162
        %5564 = vmatprep.subr.bf16.mxu0 %v4169
        %5565 = vmatpush1.bf16.msra.mxu0 %v4168
        %5566 = vmatprep.subr.bf16.mxu0 %v4175
        %5567 = vmatpush1.bf16.msra.mxu0 %v4174
        %5568 = vmatprep.subr.bf16.mxu0 %v4181
        %5569 = vmatpush1.bf16.msra.mxu0 %v4180
        %5570 = vmatprep.subr.bf16.mxu0 %v4187
        %5571 = vmatpush1.bf16.msra.mxu0 %v4186
        %5572 = vmatprep.mubr.bf16.mxu0 %v1289
        %5573 = vmatmul.mubr.bf16.gmra.mrb[0].mxu0 %v1288
        %v5574 = vpop.f32.mrb[0].mxu0
        %v5575 = vadd.f32 %v5502, %v5574
        %v5576 = vpop.f32.mrb[0].mxu0
        %v5577 = vadd.f32 %v5504, %v5576
        %v5578 = vpop.f32.mrb[0].mxu0
        %v5579 = vadd.f32 %v5506, %v5578
        %v5580 = vpop.f32.mrb[0].mxu0
        %v5581 = vadd.f32 %v5508, %v5580
        %5582 = vmatprep.mubr.bf16.mxu0 %v1305
        %5583 = vmatmul.mubr.bf16.gmra.mrb[0].mxu0 %v1304
        %v5584 = vpop.f32.mrb[0].mxu0
        %v5585 = vadd.f32 %v5512, %v5584
        %v5586 = vpop.f32.mrb[0].mxu0
        %v5587 = vadd.f32 %v5514, %v5586
        %v5588 = vpop.f32.mrb[0].mxu0
        %v5589 = vadd.f32 %v5516, %v5588
        %v5590 = vpop.f32.mrb[0].mxu0
        %v5591 = vadd.f32 %v5518, %v5590
        %5592 = vmatprep.mubr.bf16.mxu0 %v1321
        %5593 = vmatmul.mubr.bf16.gmra.mrb[0].mxu0 %v1320
        %v5594 = vpop.f32.mrb[0].mxu0
        %v5595 = vadd.f32 %v5522, %v5594
        %v5596 = vpop.f32.mrb[0].mxu0
        %v5597 = vadd.f32 %v5524, %v5596
        %v5598 = vpop.f32.mrb[0].mxu0
        %v5599 = vadd.f32 %v5526, %v5598
        %v5600 = vpop.f32.mrb[0].mxu0
        %v5601 = vadd.f32 %v5528, %v5600
        %5602 = vmatprep.mubr.bf16.mxu0 %v1337
        %5603 = vmatmul.mubr.bf16.gmra.mrb[0].mxu0 %v1336
        %v5604 = vpop.f32.mrb[0].mxu0
        %v5605 = vadd.f32 %v5532, %v5604
        %v5606 = vpop.f32.mrb[0].mxu0
        %v5607 = vadd.f32 %v5534, %v5606
        %v5608 = vpop.f32.mrb[0].mxu0
        %v5609 = vadd.f32 %v5536, %v5608
        %v5610 = vpop.f32.mrb[0].mxu0
        %v5611 = vadd.f32 %v5538, %v5610
        %5612 = vdwg.mxu0
        %5613 = vmatprep.subr.bf16.mxu0 %v4193
        %5614 = vmatpush1.bf16.msra.mxu0 %v4192
        %5615 = vmatprep.subr.bf16.mxu0 %v4199
        %5616 = vmatpush1.bf16.msra.mxu0 %v4198
        %5617 = vmatprep.subr.bf16.mxu0 %v4205
        %5618 = vmatpush1.bf16.msra.mxu0 %v4204
        %5619 = vmatprep.subr.bf16.mxu0 %v4211
        %5620 = vmatpush1.bf16.msra.mxu0 %v4210
        %5621 = vmatprep.subr.bf16.mxu0 %v4217
        %5622 = vmatpush1.bf16.msra.mxu0 %v4216
        %5623 = vmatprep.subr.bf16.mxu0 %v4223
        %5624 = vmatpush1.bf16.msra.mxu0 %v4222
        %5625 = vmatprep.subr.bf16.mxu0 %v4229
        %5626 = vmatpush1.bf16.msra.mxu0 %v4228
        %5627 = vmatprep.subr.bf16.mxu0 %v4235
        %5628 = vmatpush1.bf16.msra.mxu0 %v4234
        %5629 = vmatprep.subr.bf16.mxu0 %v4241
        %5630 = vmatpush1.bf16.msra.mxu0 %v4240
        %5631 = vmatprep.subr.bf16.mxu0 %v4247
        %5632 = vmatpush1.bf16.msra.mxu0 %v4246
        %5633 = vmatprep.subr.bf16.mxu0 %v4253
        %5634 = vmatpush1.bf16.msra.mxu0 %v4252
        %5635 = vmatprep.subr.bf16.mxu0 %v4259
        %5636 = vmatpush1.bf16.msra.mxu0 %v4258
        %5637 = vmatprep.subr.bf16.mxu0 %v4265
        %5638 = vmatpush1.bf16.msra.mxu0 %v4264
        %5639 = vmatprep.subr.bf16.mxu0 %v4271
        %5640 = vmatpush1.bf16.msra.mxu0 %v4270
        %5641 = vmatprep.subr.bf16.mxu0 %v4277
        %5642 = vmatpush1.bf16.msra.mxu0 %v4276
        %5643 = vmatprep.subr.bf16.mxu0 %v4283
        %5644 = vmatpush1.bf16.msra.mxu0 %v4282
        %5645 = vmatprep.mubr.bf16.mxu0 %v1291
        %5646 = vmatmul.mubr.bf16.gmra.mrb[0].mxu0 %v1290
        %v5647 = vpop.f32.mrb[0].mxu0
        %v5648 = vadd.f32 %v5575, %v5647
        %v5649 = vpop.f32.mrb[0].mxu0
        %v5650 = vadd.f32 %v5577, %v5649
        %v5651 = vpop.f32.mrb[0].mxu0
        %v5652 = vadd.f32 %v5579, %v5651
        %v5653 = vpop.f32.mrb[0].mxu0
        %v5654 = vadd.f32 %v5581, %v5653
        %5655 = vmatprep.mubr.bf16.mxu0 %v1307
        %5656 = vmatmul.mubr.bf16.gmra.mrb[0].mxu0 %v1306
        %v5657 = vpop.f32.mrb[0].mxu0
        %v5658 = vadd.f32 %v5585, %v5657
        %v5659 = vpop.f32.mrb[0].mxu0
        %v5660 = vadd.f32 %v5587, %v5659
        %v5661 = vpop.f32.mrb[0].mxu0
        %v5662 = vadd.f32 %v5589, %v5661
        %v5663 = vpop.f32.mrb[0].mxu0
        %v5664 = vadd.f32 %v5591, %v5663
        %5665 = vmatprep.mubr.bf16.mxu0 %v1323
        %5666 = vmatmul.mubr.bf16.gmra.mrb[0].mxu0 %v1322
        %v5667 = vpop.f32.mrb[0].mxu0
        %v5668 = vadd.f32 %v5595, %v5667
        %v5669 = vpop.f32.mrb[0].mxu0
        %v5670 = vadd.f32 %v5597, %v5669
        %v5671 = vpop.f32.mrb[0].mxu0
        %v5672 = vadd.f32 %v5599, %v5671
        %v5673 = vpop.f32.mrb[0].mxu0
        %v5674 = vadd.f32 %v5601, %v5673
        %5675 = vmatprep.mubr.bf16.mxu0 %v1339
        %5676 = vmatmul.mubr.bf16.gmra.mrb[0].mxu0 %v1338
        %v5677 = vpop.f32.mrb[0].mxu0
        %v5678 = vadd.f32 %v5605, %v5677
        %v5679 = vpop.f32.mrb[0].mxu0
        %v5680 = vadd.f32 %v5607, %v5679
        %v5681 = vpop.f32.mrb[0].mxu0
        %v5682 = vadd.f32 %v5609, %v5681
        %v5683 = vpop.f32.mrb[0].mxu0
        %v5684 = vadd.f32 %v5611, %v5683
        %5685 = vdwg.mxu0
        %5686 = vmatprep.subr.bf16.mxu0 %v4289
        %5687 = vmatpush1.bf16.msra.mxu0 %v4288
        %5688 = vmatprep.subr.bf16.mxu0 %v4295
        %5689 = vmatpush1.bf16.msra.mxu0 %v4294
        %5690 = vmatprep.subr.bf16.mxu0 %v4301
        %5691 = vmatpush1.bf16.msra.mxu0 %v4300
        %5692 = vmatprep.subr.bf16.mxu0 %v4307
        %5693 = vmatpush1.bf16.msra.mxu0 %v4306
        %5694 = vmatprep.subr.bf16.mxu0 %v4313
        %5695 = vmatpush1.bf16.msra.mxu0 %v4312
        %5696 = vmatprep.subr.bf16.mxu0 %v4319
        %5697 = vmatpush1.bf16.msra.mxu0 %v4318
        %5698 = vmatprep.subr.bf16.mxu0 %v4325
        %5699 = vmatpush1.bf16.msra.mxu0 %v4324
        %5700 = vmatprep.subr.bf16.mxu0 %v4331
        %5701 = vmatpush1.bf16.msra.mxu0 %v4330
        %5702 = vmatprep.subr.bf16.mxu0 %v4337
        %5703 = vmatpush1.bf16.msra.mxu0 %v4336
        %5704 = vmatprep.subr.bf16.mxu0 %v4343
        %5705 = vmatpush1.bf16.msra.mxu0 %v4342
        %5706 = vmatprep.subr.bf16.mxu0 %v4349
        %5707 = vmatpush1.bf16.msra.mxu0 %v4348
        %5708 = vmatprep.subr.bf16.mxu0 %v4355
        %5709 = vmatpush1.bf16.msra.mxu0 %v4354
        %5710 = vmatprep.subr.bf16.mxu0 %v4361
        %5711 = vmatpush1.bf16.msra.mxu0 %v4360
        %5712 = vmatprep.subr.bf16.mxu0 %v4367
        %5713 = vmatpush1.bf16.msra.mxu0 %v4366
        %5714 = vmatprep.subr.bf16.mxu0 %v4373
        %5715 = vmatpush1.bf16.msra.mxu0 %v4372
        %5716 = vmatprep.subr.bf16.mxu0 %v4379
        %5717 = vmatpush1.bf16.msra.mxu0 %v4378
        %5718 = vmatprep.mubr.bf16.mxu0 %v1293
        %5719 = vmatmul.mubr.bf16.gmra.mrb[0].mxu0 %v1292
        %v5720 = vpop.f32.mrb[0].mxu0
        %v5721 = vadd.f32 %v5648, %v5720
        %v5722 = vpop.f32.mrb[0].mxu0
        %v5723 = vadd.f32 %v5650, %v5722
        %v5724 = vpop.f32.mrb[0].mxu0
        %v5725 = vadd.f32 %v5652, %v5724
        %v5726 = vpop.f32.mrb[0].mxu0
        %v5727 = vadd.f32 %v5654, %v5726
        %5728 = vmatprep.mubr.bf16.mxu0 %v1309
        %5729 = vmatmul.mubr.bf16.gmra.mrb[0].mxu0 %v1308
        %v5730 = vpop.f32.mrb[0].mxu0
        %v5731 = vadd.f32 %v5658, %v5730
        %v5732 = vpop.f32.mrb[0].mxu0
        %v5733 = vadd.f32 %v5660, %v5732
        %v5734 = vpop.f32.mrb[0].mxu0
        %v5735 = vadd.f32 %v5662, %v5734
        %v5736 = vpop.f32.mrb[0].mxu0
        %v5737 = vadd.f32 %v5664, %v5736
        %5738 = vmatprep.mubr.bf16.mxu0 %v1325
        %5739 = vmatmul.mubr.bf16.gmra.mrb[0].mxu0 %v1324
        %v5740 = vpop.f32.mrb[0].mxu0
        %v5741 = vadd.f32 %v5668, %v5740
        %v5742 = vpop.f32.mrb[0].mxu0
        %v5743 = vadd.f32 %v5670, %v5742
        %v5744 = vpop.f32.mrb[0].mxu0
        %v5745 = vadd.f32 %v5672, %v5744
        %v5746 = vpop.f32.mrb[0].mxu0
        %v5747 = vadd.f32 %v5674, %v5746
        %5748 = vmatprep.mubr.bf16.mxu0 %v1341
        %5749 = vmatmul.mubr.bf16.gmra.mrb[0].mxu0 %v1340
        %v5750 = vpop.f32.mrb[0].mxu0
        %v5751 = vadd.f32 %v5678, %v5750
        %v5752 = vpop.f32.mrb[0].mxu0
        %v5753 = vadd.f32 %v5680, %v5752
        %v5754 = vpop.f32.mrb[0].mxu0
        %v5755 = vadd.f32 %v5682, %v5754
        %v5756 = vpop.f32.mrb[0].mxu0
        %v5757 = vadd.f32 %v5684, %v5756
        %5758 = vdwg.mxu0
        %5759 = vmatprep.subr.bf16.mxu0 %v4385
        %5760 = vmatpush1.bf16.msra.mxu0 %v4384
        %5761 = vmatprep.subr.bf16.mxu0 %v4391
        %5762 = vmatpush1.bf16.msra.mxu0 %v4390
        %5763 = vmatprep.subr.bf16.mxu0 %v4397
        %5764 = vmatpush1.bf16.msra.mxu0 %v4396
        %5765 = vmatprep.subr.bf16.mxu0 %v4403
        %5766 = vmatpush1.bf16.msra.mxu0 %v4402
        %5767 = vmatprep.subr.bf16.mxu0 %v4409
        %5768 = vmatpush1.bf16.msra.mxu0 %v4408
        %5769 = vmatprep.subr.bf16.mxu0 %v4415
        %5770 = vmatpush1.bf16.msra.mxu0 %v4414
        %5771 = vmatprep.subr.bf16.mxu0 %v4421
        %5772 = vmatpush1.bf16.msra.mxu0 %v4420
        %5773 = vmatprep.subr.bf16.mxu0 %v4427
        %5774 = vmatpush1.bf16.msra.mxu0 %v4426
        %5775 = vmatprep.subr.bf16.mxu0 %v4433
        %5776 = vmatpush1.bf16.msra.mxu0 %v4432
        %5777 = vmatprep.subr.bf16.mxu0 %v4439
        %5778 = vmatpush1.bf16.msra.mxu0 %v4438
        %5779 = vmatprep.subr.bf16.mxu0 %v4445
        %5780 = vmatpush1.bf16.msra.mxu0 %v4444
        %5781 = vmatprep.subr.bf16.mxu0 %v4451
        %5782 = vmatpush1.bf16.msra.mxu0 %v4450
        %5783 = vmatprep.subr.bf16.mxu0 %v4457
        %5784 = vmatpush1.bf16.msra.mxu0 %v4456
        %5785 = vmatprep.subr.bf16.mxu0 %v4463
        %5786 = vmatpush1.bf16.msra.mxu0 %v4462
        %5787 = vmatprep.subr.bf16.mxu0 %v4469
        %5788 = vmatpush1.bf16.msra.mxu0 %v4468
        %5789 = vmatprep.subr.bf16.mxu0 %v4475
        %5790 = vmatpush1.bf16.msra.mxu0 %v4474
        %5791 = vmatprep.mubr.bf16.mxu0 %v1295
        %5792 = vmatmul.mubr.bf16.gmra.mrb[0].mxu0 %v1294
        %v5793 = vpop.f32.mrb[0].mxu0
        %v5794 = vadd.f32 %v5721, %v5793
        %v5795 = vpop.f32.mrb[0].mxu0
        %v5796 = vadd.f32 %v5723, %v5795
        %v5797 = vpop.f32.mrb[0].mxu0
        %v5798 = vadd.f32 %v5725, %v5797
        %v5799 = vpop.f32.mrb[0].mxu0
        %v5800 = vadd.f32 %v5727, %v5799
        %5801 = vmatprep.mubr.bf16.mxu0 %v1311
        %5802 = vmatmul.mubr.bf16.gmra.mrb[0].mxu0 %v1310
        %v5803 = vpop.f32.mrb[0].mxu0
        %v5804 = vadd.f32 %v5731, %v5803
        %v5805 = vpop.f32.mrb[0].mxu0
        %v5806 = vadd.f32 %v5733, %v5805
        %v5807 = vpop.f32.mrb[0].mxu0
        %v5808 = vadd.f32 %v5735, %v5807
        %v5809 = vpop.f32.mrb[0].mxu0
        %v5810 = vadd.f32 %v5737, %v5809
        %5811 = vmatprep.mubr.bf16.mxu0 %v1327
        %5812 = vmatmul.mubr.bf16.gmra.mrb[0].mxu0 %v1326
        %v5813 = vpop.f32.mrb[0].mxu0
        %v5814 = vadd.f32 %v5741, %v5813
        %v5815 = vpop.f32.mrb[0].mxu0
        %v5816 = vadd.f32 %v5743, %v5815
        %v5817 = vpop.f32.mrb[0].mxu0
        %v5818 = vadd.f32 %v5745, %v5817
        %v5819 = vpop.f32.mrb[0].mxu0
        %v5820 = vadd.f32 %v5747, %v5819
        %5821 = vmatprep.mubr.bf16.mxu0 %v1343
        %5822 = vmatmul.mubr.bf16.gmra.mrb[0].mxu0 %v1342
        %v5823 = vpop.f32.mrb[0].mxu0
        %v5824 = vadd.f32 %v5751, %v5823
        %v5825 = vpop.f32.mrb[0].mxu0
        %v5826 = vadd.f32 %v5753, %v5825
        %v5827 = vpop.f32.mrb[0].mxu0
        %v5828 = vadd.f32 %v5755, %v5827
        %v5829 = vpop.f32.mrb[0].mxu0
        %v5830 = vadd.f32 %v5757, %v5829
        %5831 = vdwg.mxu0
        %5832 = vmatprep.subr.bf16.mxu0 %v3715
        %5833 = vmatpush1.bf16.msra.mxu0 %v3714
        %5834 = vmatprep.subr.bf16.mxu0 %v3721
        %5835 = vmatpush1.bf16.msra.mxu0 %v3720
        %5836 = vmatprep.subr.bf16.mxu0 %v3727
        %5837 = vmatpush1.bf16.msra.mxu0 %v3726
        %5838 = vmatprep.subr.bf16.mxu0 %v3733
        %5839 = vmatpush1.bf16.msra.mxu0 %v3732
        %5840 = vmatprep.subr.bf16.mxu0 %v3739
        %5841 = vmatpush1.bf16.msra.mxu0 %v3738
        %5842 = vmatprep.subr.bf16.mxu0 %v3745
        %5843 = vmatpush1.bf16.msra.mxu0 %v3744
        %5844 = vmatprep.subr.bf16.mxu0 %v3751
        %5845 = vmatpush1.bf16.msra.mxu0 %v3750
        %5846 = vmatprep.subr.bf16.mxu0 %v3757
        %5847 = vmatpush1.bf16.msra.mxu0 %v3756
        %5848 = vmatprep.subr.bf16.mxu0 %v3763
        %5849 = vmatpush1.bf16.msra.mxu0 %v3762
        %5850 = vmatprep.subr.bf16.mxu0 %v3769
        %5851 = vmatpush1.bf16.msra.mxu0 %v3768
        %5852 = vmatprep.subr.bf16.mxu0 %v3775
        %5853 = vmatpush1.bf16.msra.mxu0 %v3774
        %5854 = vmatprep.subr.bf16.mxu0 %v3781
        %5855 = vmatpush1.bf16.msra.mxu0 %v3780
        %5856 = vmatprep.subr.bf16.mxu0 %v3787
        %5857 = vmatpush1.bf16.msra.mxu0 %v3786
        %5858 = vmatprep.subr.bf16.mxu0 %v3793
        %5859 = vmatpush1.bf16.msra.mxu0 %v3792
        %5860 = vmatprep.subr.bf16.mxu0 %v3799
        %5861 = vmatpush1.bf16.msra.mxu0 %v3798
        %5862 = vmatprep.subr.bf16.mxu0 %v3805
        %5863 = vmatpush1.bf16.msra.mxu0 %v3804
        %5864 = vmatprep.mubr.bf16.mxu0 %v1281
        %5865 = vmatmul.mubr.bf16.gmra.mrb[0].mxu0 %v1280
        %v5866 = vpop.f32.mrb[0].mxu0
        %v5867 = vadd.f32 %v1069, %v5866
        %v5868 = vpop.f32.mrb[0].mxu0
        %v5869 = vadd.f32 %v1073, %v5868
        %v5870 = vpop.f32.mrb[0].mxu0
        %v5871 = vadd.f32 %v1069, %v5870
        %v5872 = vpop.f32.mrb[0].mxu0
        %v5873 = vadd.f32 %v1073, %v5872
        %5874 = vmatprep.mubr.bf16.mxu0 %v1297
        %5875 = vmatmul.mubr.bf16.gmra.mrb[0].mxu0 %v1296
        %v5876 = vpop.f32.mrb[0].mxu0
        %v5877 = vadd.f32 %v1069, %v5876
        %v5878 = vpop.f32.mrb[0].mxu0
        %v5879 = vadd.f32 %v1073, %v5878
        %v5880 = vpop.f32.mrb[0].mxu0
        %v5881 = vadd.f32 %v1069, %v5880
        %v5882 = vpop.f32.mrb[0].mxu0
        %v5883 = vadd.f32 %v1073, %v5882
        %5884 = vmatprep.mubr.bf16.mxu0 %v1313
        %5885 = vmatmul.mubr.bf16.gmra.mrb[0].mxu0 %v1312
        %v5886 = vpop.f32.mrb[0].mxu0
        %v5887 = vadd.f32 %v1069, %v5886
        %v5888 = vpop.f32.mrb[0].mxu0
        %v5889 = vadd.f32 %v1073, %v5888
        %v5890 = vpop.f32.mrb[0].mxu0
        %v5891 = vadd.f32 %v1069, %v5890
        %v5892 = vpop.f32.mrb[0].mxu0
        %v5893 = vadd.f32 %v1073, %v5892
        %5894 = vmatprep.mubr.bf16.mxu0 %v1329
        %5895 = vmatmul.mubr.bf16.gmra.mrb[0].mxu0 %v1328
        %v5896 = vpop.f32.mrb[0].mxu0
        %v5897 = vadd.f32 %v1069, %v5896
        %v5898 = vpop.f32.mrb[0].mxu0
        %v5899 = vadd.f32 %v1073, %v5898
        %v5900 = vpop.f32.mrb[0].mxu0
        %v5901 = vadd.f32 %v1069, %v5900
        %v5902 = vpop.f32.mrb[0].mxu0
        %v5903 = vadd.f32 %v1073, %v5902
        %5904 = vdwg.mxu0
        %5905 = vmatprep.subr.bf16.mxu0 %v3811
        %5906 = vmatpush1.bf16.msra.mxu0 %v3810
        %5907 = vmatprep.subr.bf16.mxu0 %v3817
        %5908 = vmatpush1.bf16.msra.mxu0 %v3816
        %5909 = vmatprep.subr.bf16.mxu0 %v3823
        %5910 = vmatpush1.bf16.msra.mxu0 %v3822
        %5911 = vmatprep.subr.bf16.mxu0 %v3829
        %5912 = vmatpush1.bf16.msra.mxu0 %v3828
        %5913 = vmatprep.subr.bf16.mxu0 %v3835
        %5914 = vmatpush1.bf16.msra.mxu0 %v3834
        %5915 = vmatprep.subr.bf16.mxu0 %v3841
        %5916 = vmatpush1.bf16.msra.mxu0 %v3840
        %5917 = vmatprep.subr.bf16.mxu0 %v3847
        %5918 = vmatpush1.bf16.msra.mxu0 %v3846
        %5919 = vmatprep.subr.bf16.mxu0 %v3853
        %5920 = vmatpush1.bf16.msra.mxu0 %v3852
        %5921 = vmatprep.subr.bf16.mxu0 %v3859
        %5922 = vmatpush1.bf16.msra.mxu0 %v3858
        %5923 = vmatprep.subr.bf16.mxu0 %v3865
        %5924 = vmatpush1.bf16.msra.mxu0 %v3864
        %5925 = vmatprep.subr.bf16.mxu0 %v3871
        %5926 = vmatpush1.bf16.msra.mxu0 %v3870
        %5927 = vmatprep.subr.bf16.mxu0 %v3877
        %5928 = vmatpush1.bf16.msra.mxu0 %v3876
        %5929 = vmatprep.subr.bf16.mxu0 %v3883
        %5930 = vmatpush1.bf16.msra.mxu0 %v3882
        %5931 = vmatprep.subr.bf16.mxu0 %v3889
        %5932 = vmatpush1.bf16.msra.mxu0 %v3888
        %5933 = vmatprep.subr.bf16.mxu0 %v3895
        %5934 = vmatpush1.bf16.msra.mxu0 %v3894
        %5935 = vmatprep.subr.bf16.mxu0 %v3901
        %5936 = vmatpush1.bf16.msra.mxu0 %v3900
        %5937 = vmatprep.mubr.bf16.mxu0 %v1283
        %5938 = vmatmul.mubr.bf16.gmra.mrb[0].mxu0 %v1282
        %v5939 = vpop.f32.mrb[0].mxu0
        %v5940 = vadd.f32 %v5867, %v5939
        %v5941 = vpop.f32.mrb[0].mxu0
        %v5942 = vadd.f32 %v5869, %v5941
        %v5943 = vpop.f32.mrb[0].mxu0
        %v5944 = vadd.f32 %v5871, %v5943
        %v5945 = vpop.f32.mrb[0].mxu0
        %v5946 = vadd.f32 %v5873, %v5945
        %5947 = vmatprep.mubr.bf16.mxu0 %v1299
        %5948 = vmatmul.mubr.bf16.gmra.mrb[0].mxu0 %v1298
        %v5949 = vpop.f32.mrb[0].mxu0
        %v5950 = vadd.f32 %v5877, %v5949
        %v5951 = vpop.f32.mrb[0].mxu0
        %v5952 = vadd.f32 %v5879, %v5951
        %v5953 = vpop.f32.mrb[0].mxu0
        %v5954 = vadd.f32 %v5881, %v5953
        %v5955 = vpop.f32.mrb[0].mxu0
        %v5956 = vadd.f32 %v5883, %v5955
        %5957 = vmatprep.mubr.bf16.mxu0 %v1315
        %5958 = vmatmul.mubr.bf16.gmra.mrb[0].mxu0 %v1314
        %v5959 = vpop.f32.mrb[0].mxu0
        %v5960 = vadd.f32 %v5887, %v5959
        %v5961 = vpop.f32.mrb[0].mxu0
        %v5962 = vadd.f32 %v5889, %v5961
        %v5963 = vpop.f32.mrb[0].mxu0
        %v5964 = vadd.f32 %v5891, %v5963
        %v5965 = vpop.f32.mrb[0].mxu0
        %v5966 = vadd.f32 %v5893, %v5965
        %5967 = vmatprep.mubr.bf16.mxu0 %v1331
        %5968 = vmatmul.mubr.bf16.gmra.mrb[0].mxu0 %v1330
        %v5969 = vpop.f32.mrb[0].mxu0
        %v5970 = vadd.f32 %v5897, %v5969
        %v5971 = vpop.f32.mrb[0].mxu0
        %v5972 = vadd.f32 %v5899, %v5971
        %v5973 = vpop.f32.mrb[0].mxu0
        %v5974 = vadd.f32 %v5901, %v5973
        %v5975 = vpop.f32.mrb[0].mxu0
        %v5976 = vadd.f32 %v5903, %v5975
        %5977 = vdwg.mxu0
        %5978 = vmatprep.subr.bf16.mxu0 %v3907
        %5979 = vmatpush1.bf16.msra.mxu0 %v3906
        %5980 = vmatprep.subr.bf16.mxu0 %v3913
        %5981 = vmatpush1.bf16.msra.mxu0 %v3912
        %5982 = vmatprep.subr.bf16.mxu0 %v3919
        %5983 = vmatpush1.bf16.msra.mxu0 %v3918
        %5984 = vmatprep.subr.bf16.mxu0 %v3925
        %5985 = vmatpush1.bf16.msra.mxu0 %v3924
        %5986 = vmatprep.subr.bf16.mxu0 %v3931
        %5987 = vmatpush1.bf16.msra.mxu0 %v3930
        %5988 = vmatprep.subr.bf16.mxu0 %v3937
        %5989 = vmatpush1.bf16.msra.mxu0 %v3936
        %5990 = vmatprep.subr.bf16.mxu0 %v3943
        %5991 = vmatpush1.bf16.msra.mxu0 %v3942
        %5992 = vmatprep.subr.bf16.mxu0 %v3949
        %5993 = vmatpush1.bf16.msra.mxu0 %v3948
        %5994 = vmatprep.subr.bf16.mxu0 %v3955
        %5995 = vmatpush1.bf16.msra.mxu0 %v3954
        %5996 = vmatprep.subr.bf16.mxu0 %v3961
        %5997 = vmatpush1.bf16.msra.mxu0 %v3960
        %5998 = vmatprep.subr.bf16.mxu0 %v3967
        %5999 = vmatpush1.bf16.msra.mxu0 %v3966
        %6000 = vmatprep.subr.bf16.mxu0 %v3973
        %6001 = vmatpush1.bf16.msra.mxu0 %v3972
        %6002 = vmatprep.subr.bf16.mxu0 %v3979
        %6003 = vmatpush1.bf16.msra.mxu0 %v3978
        %6004 = vmatprep.subr.bf16.mxu0 %v3985
        %6005 = vmatpush1.bf16.msra.mxu0 %v3984
        %6006 = vmatprep.subr.bf16.mxu0 %v3991
        %6007 = vmatpush1.bf16.msra.mxu0 %v3990
        %6008 = vmatprep.subr.bf16.mxu0 %v3997
        %6009 = vmatpush1.bf16.msra.mxu0 %v3996
        %6010 = vmatprep.mubr.bf16.mxu0 %v1285
        %6011 = vmatmul.mubr.bf16.gmra.mrb[0].mxu0 %v1284
        %v6012 = vpop.f32.mrb[0].mxu0
        %v6013 = vadd.f32 %v5940, %v6012
        %v6014 = vpop.f32.mrb[0].mxu0
        %v6015 = vadd.f32 %v5942, %v6014
        %v6016 = vpop.f32.mrb[0].mxu0
        %v6017 = vadd.f32 %v5944, %v6016
        %v6018 = vpop.f32.mrb[0].mxu0
        %v6019 = vadd.f32 %v5946, %v6018
        %6020 = vmatprep.mubr.bf16.mxu0 %v1301
        %6021 = vmatmul.mubr.bf16.gmra.mrb[0].mxu0 %v1300
        %v6022 = vpop.f32.mrb[0].mxu0
        %v6023 = vadd.f32 %v5950, %v6022
        %v6024 = vpop.f32.mrb[0].mxu0
        %v6025 = vadd.f32 %v5952, %v6024
        %v6026 = vpop.f32.mrb[0].mxu0
        %v6027 = vadd.f32 %v5954, %v6026
        %v6028 = vpop.f32.mrb[0].mxu0
        %v6029 = vadd.f32 %v5956, %v6028
        %6030 = vmatprep.mubr.bf16.mxu0 %v1317
        %6031 = vmatmul.mubr.bf16.gmra.mrb[0].mxu0 %v1316
        %v6032 = vpop.f32.mrb[0].mxu0
        %v6033 = vadd.f32 %v5960, %v6032
        %v6034 = vpop.f32.mrb[0].mxu0
        %v6035 = vadd.f32 %v5962, %v6034
        %v6036 = vpop.f32.mrb[0].mxu0
        %v6037 = vadd.f32 %v5964, %v6036
        %v6038 = vpop.f32.mrb[0].mxu0
        %v6039 = vadd.f32 %v5966, %v6038
        %6040 = vmatprep.mubr.bf16.mxu0 %v1333
        %6041 = vmatmul.mubr.bf16.gmra.mrb[0].mxu0 %v1332
        %v6042 = vpop.f32.mrb[0].mxu0
        %v6043 = vadd.f32 %v5970, %v6042
        %v6044 = vpop.f32.mrb[0].mxu0
        %v6045 = vadd.f32 %v5972, %v6044
        %v6046 = vpop.f32.mrb[0].mxu0
        %v6047 = vadd.f32 %v5974, %v6046
        %v6048 = vpop.f32.mrb[0].mxu0
        %v6049 = vadd.f32 %v5976, %v6048
        %6050 = vdwg.mxu0
        %6051 = vmatprep.subr.bf16.mxu0 %v4003
        %6052 = vmatpush1.bf16.msra.mxu0 %v4002
        %6053 = vmatprep.subr.bf16.mxu0 %v4009
        %6054 = vmatpush1.bf16.msra.mxu0 %v4008
        %6055 = vmatprep.subr.bf16.mxu0 %v4015
        %6056 = vmatpush1.bf16.msra.mxu0 %v4014
        %6057 = vmatprep.subr.bf16.mxu0 %v4021
        %6058 = vmatpush1.bf16.msra.mxu0 %v4020
        %6059 = vmatprep.subr.bf16.mxu0 %v4027
        %6060 = vmatpush1.bf16.msra.mxu0 %v4026
        %6061 = vmatprep.subr.bf16.mxu0 %v4033
        %6062 = vmatpush1.bf16.msra.mxu0 %v4032
        %6063 = vmatprep.subr.bf16.mxu0 %v4039
        %6064 = vmatpush1.bf16.msra.mxu0 %v4038
        %6065 = vmatprep.subr.bf16.mxu0 %v4045
        %6066 = vmatpush1.bf16.msra.mxu0 %v4044
        %6067 = vmatprep.subr.bf16.mxu0 %v4051
        %6068 = vmatpush1.bf16.msra.mxu0 %v4050
        %6069 = vmatprep.subr.bf16.mxu0 %v4057
        %6070 = vmatpush1.bf16.msra.mxu0 %v4056
        %6071 = vmatprep.subr.bf16.mxu0 %v4063
        %6072 = vmatpush1.bf16.msra.mxu0 %v4062
        %6073 = vmatprep.subr.bf16.mxu0 %v4069
        %6074 = vmatpush1.bf16.msra.mxu0 %v4068
        %6075 = vmatprep.subr.bf16.mxu0 %v4075
        %6076 = vmatpush1.bf16.msra.mxu0 %v4074
        %6077 = vmatprep.subr.bf16.mxu0 %v4081
        %6078 = vmatpush1.bf16.msra.mxu0 %v4080
        %6079 = vmatprep.subr.bf16.mxu0 %v4087
        %6080 = vmatpush1.bf16.msra.mxu0 %v4086
        %6081 = vmatprep.subr.bf16.mxu0 %v4093
        %6082 = vmatpush1.bf16.msra.mxu0 %v4092
        %6083 = vmatprep.mubr.bf16.mxu0 %v1287
        %6084 = vmatmul.mubr.bf16.gmra.mrb[0].mxu0 %v1286
        %v6085 = vpop.f32.mrb[0].mxu0
        %v6086 = vadd.f32 %v6013, %v6085
        %v6087 = vpop.f32.mrb[0].mxu0
        %v6088 = vadd.f32 %v6015, %v6087
        %v6089 = vpop.f32.mrb[0].mxu0
        %v6090 = vadd.f32 %v6017, %v6089
        %v6091 = vpop.f32.mrb[0].mxu0
        %v6092 = vadd.f32 %v6019, %v6091
        %6093 = vmatprep.mubr.bf16.mxu0 %v1303
        %6094 = vmatmul.mubr.bf16.gmra.mrb[0].mxu0 %v1302
        %v6095 = vpop.f32.mrb[0].mxu0
        %v6096 = vadd.f32 %v6023, %v6095
        %v6097 = vpop.f32.mrb[0].mxu0
        %v6098 = vadd.f32 %v6025, %v6097
        %v6099 = vpop.f32.mrb[0].mxu0
        %v6100 = vadd.f32 %v6027, %v6099
        %v6101 = vpop.f32.mrb[0].mxu0
        %v6102 = vadd.f32 %v6029, %v6101
        %6103 = vmatprep.mubr.bf16.mxu0 %v1319
        %6104 = vmatmul.mubr.bf16.gmra.mrb[0].mxu0 %v1318
        %v6105 = vpop.f32.mrb[0].mxu0
        %v6106 = vadd.f32 %v6033, %v6105
        %v6107 = vpop.f32.mrb[0].mxu0
        %v6108 = vadd.f32 %v6035, %v6107
        %v6109 = vpop.f32.mrb[0].mxu0
        %v6110 = vadd.f32 %v6037, %v6109
        %v6111 = vpop.f32.mrb[0].mxu0
        %v6112 = vadd.f32 %v6039, %v6111
        %6113 = vmatprep.mubr.bf16.mxu0 %v1335
        %6114 = vmatmul.mubr.bf16.gmra.mrb[0].mxu0 %v1334
        %v6115 = vpop.f32.mrb[0].mxu0
        %v6116 = vadd.f32 %v6043, %v6115
        %v6117 = vpop.f32.mrb[0].mxu0
        %v6118 = vadd.f32 %v6045, %v6117
        %v6119 = vpop.f32.mrb[0].mxu0
        %v6120 = vadd.f32 %v6047, %v6119
        %v6121 = vpop.f32.mrb[0].mxu0
        %v6122 = vadd.f32 %v6049, %v6121
        %6123 = vdwg.mxu0
        %6124 = vmatprep.subr.bf16.mxu0 %v4099
        %6125 = vmatpush1.bf16.msra.mxu0 %v4098
        %6126 = vmatprep.subr.bf16.mxu0 %v4105
        %6127 = vmatpush1.bf16.msra.mxu0 %v4104
        %6128 = vmatprep.subr.bf16.mxu0 %v4111
        %6129 = vmatpush1.bf16.msra.mxu0 %v4110
        %6130 = vmatprep.subr.bf16.mxu0 %v4117
        %6131 = vmatpush1.bf16.msra.mxu0 %v4116
        %6132 = vmatprep.subr.bf16.mxu0 %v4123
        %6133 = vmatpush1.bf16.msra.mxu0 %v4122
        %6134 = vmatprep.subr.bf16.mxu0 %v4129
        %6135 = vmatpush1.bf16.msra.mxu0 %v4128
        %6136 = vmatprep.subr.bf16.mxu0 %v4135
        %6137 = vmatpush1.bf16.msra.mxu0 %v4134
        %6138 = vmatprep.subr.bf16.mxu0 %v4141
        %6139 = vmatpush1.bf16.msra.mxu0 %v4140
        %6140 = vmatprep.subr.bf16.mxu0 %v4147
        %6141 = vmatpush1.bf16.msra.mxu0 %v4146
        %6142 = vmatprep.subr.bf16.mxu0 %v4153
        %6143 = vmatpush1.bf16.msra.mxu0 %v4152
        %6144 = vmatprep.subr.bf16.mxu0 %v4159
        %6145 = vmatpush1.bf16.msra.mxu0 %v4158
        %6146 = vmatprep.subr.bf16.mxu0 %v4165
        %6147 = vmatpush1.bf16.msra.mxu0 %v4164
        %6148 = vmatprep.subr.bf16.mxu0 %v4171
        %6149 = vmatpush1.bf16.msra.mxu0 %v4170
        %6150 = vmatprep.subr.bf16.mxu0 %v4177
        %6151 = vmatpush1.bf16.msra.mxu0 %v4176
        %6152 = vmatprep.subr.bf16.mxu0 %v4183
        %6153 = vmatpush1.bf16.msra.mxu0 %v4182
        %6154 = vmatprep.subr.bf16.mxu0 %v4189
        %6155 = vmatpush1.bf16.msra.mxu0 %v4188
        %6156 = vmatprep.mubr.bf16.mxu0 %v1289
        %6157 = vmatmul.mubr.bf16.gmra.mrb[0].mxu0 %v1288
        %v6158 = vpop.f32.mrb[0].mxu0
        %v6159 = vadd.f32 %v6086, %v6158
        %v6160 = vpop.f32.mrb[0].mxu0
        %v6161 = vadd.f32 %v6088, %v6160
        %v6162 = vpop.f32.mrb[0].mxu0
        %v6163 = vadd.f32 %v6090, %v6162
        %v6164 = vpop.f32.mrb[0].mxu0
        %v6165 = vadd.f32 %v6092, %v6164
        %6166 = vmatprep.mubr.bf16.mxu0 %v1305
        %6167 = vmatmul.mubr.bf16.gmra.mrb[0].mxu0 %v1304
        %v6168 = vpop.f32.mrb[0].mxu0
        %v6169 = vadd.f32 %v6096, %v6168
        %v6170 = vpop.f32.mrb[0].mxu0
        %v6171 = vadd.f32 %v6098, %v6170
        %v6172 = vpop.f32.mrb[0].mxu0
        %v6173 = vadd.f32 %v6100, %v6172
        %v6174 = vpop.f32.mrb[0].mxu0
        %v6175 = vadd.f32 %v6102, %v6174
        %6176 = vmatprep.mubr.bf16.mxu0 %v1321
        %6177 = vmatmul.mubr.bf16.gmra.mrb[0].mxu0 %v1320
        %v6178 = vpop.f32.mrb[0].mxu0
        %v6179 = vadd.f32 %v6106, %v6178
        %v6180 = vpop.f32.mrb[0].mxu0
        %v6181 = vadd.f32 %v6108, %v6180
        %v6182 = vpop.f32.mrb[0].mxu0
        %v6183 = vadd.f32 %v6110, %v6182
        %v6184 = vpop.f32.mrb[0].mxu0
        %v6185 = vadd.f32 %v6112, %v6184
        %6186 = vmatprep.mubr.bf16.mxu0 %v1337
        %6187 = vmatmul.mubr.bf16.gmra.mrb[0].mxu0 %v1336
        %v6188 = vpop.f32.mrb[0].mxu0
        %v6189 = vadd.f32 %v6116, %v6188
        %v6190 = vpop.f32.mrb[0].mxu0
        %v6191 = vadd.f32 %v6118, %v6190
        %v6192 = vpop.f32.mrb[0].mxu0
        %v6193 = vadd.f32 %v6120, %v6192
        %v6194 = vpop.f32.mrb[0].mxu0
        %v6195 = vadd.f32 %v6122, %v6194
        %6196 = vdwg.mxu0
        %6197 = vmatprep.subr.bf16.mxu0 %v4195
        %6198 = vmatpush1.bf16.msra.mxu0 %v4194
        %6199 = vmatprep.subr.bf16.mxu0 %v4201
        %6200 = vmatpush1.bf16.msra.mxu0 %v4200
        %6201 = vmatprep.subr.bf16.mxu0 %v4207
        %6202 = vmatpush1.bf16.msra.mxu0 %v4206
        %6203 = vmatprep.subr.bf16.mxu0 %v4213
        %6204 = vmatpush1.bf16.msra.mxu0 %v4212
        %6205 = vmatprep.subr.bf16.mxu0 %v4219
        %6206 = vmatpush1.bf16.msra.mxu0 %v4218
        %6207 = vmatprep.subr.bf16.mxu0 %v4225
        %6208 = vmatpush1.bf16.msra.mxu0 %v4224
        %6209 = vmatprep.subr.bf16.mxu0 %v4231
        %6210 = vmatpush1.bf16.msra.mxu0 %v4230
        %6211 = vmatprep.subr.bf16.mxu0 %v4237
        %6212 = vmatpush1.bf16.msra.mxu0 %v4236
        %6213 = vmatprep.subr.bf16.mxu0 %v4243
        %6214 = vmatpush1.bf16.msra.mxu0 %v4242
        %6215 = vmatprep.subr.bf16.mxu0 %v4249
        %6216 = vmatpush1.bf16.msra.mxu0 %v4248
        %6217 = vmatprep.subr.bf16.mxu0 %v4255
        %6218 = vmatpush1.bf16.msra.mxu0 %v4254
        %6219 = vmatprep.subr.bf16.mxu0 %v4261
        %6220 = vmatpush1.bf16.msra.mxu0 %v4260
        %6221 = vmatprep.subr.bf16.mxu0 %v4267
        %6222 = vmatpush1.bf16.msra.mxu0 %v4266
        %6223 = vmatprep.subr.bf16.mxu0 %v4273
        %6224 = vmatpush1.bf16.msra.mxu0 %v4272
        %6225 = vmatprep.subr.bf16.mxu0 %v4279
        %6226 = vmatpush1.bf16.msra.mxu0 %v4278
        %6227 = vmatprep.subr.bf16.mxu0 %v4285
        %6228 = vmatpush1.bf16.msra.mxu0 %v4284
        %6229 = vmatprep.mubr.bf16.mxu0 %v1291
        %6230 = vmatmul.mubr.bf16.gmra.mrb[0].mxu0 %v1290
        %v6231 = vpop.f32.mrb[0].mxu0
        %v6232 = vadd.f32 %v6159, %v6231
        %v6233 = vpop.f32.mrb[0].mxu0
        %v6234 = vadd.f32 %v6161, %v6233
        %v6235 = vpop.f32.mrb[0].mxu0
        %v6236 = vadd.f32 %v6163, %v6235
        %v6237 = vpop.f32.mrb[0].mxu0
        %v6238 = vadd.f32 %v6165, %v6237
        %6239 = vmatprep.mubr.bf16.mxu0 %v1307
        %6240 = vmatmul.mubr.bf16.gmra.mrb[0].mxu0 %v1306
        %v6241 = vpop.f32.mrb[0].mxu0
        %v6242 = vadd.f32 %v6169, %v6241
        %v6243 = vpop.f32.mrb[0].mxu0
        %v6244 = vadd.f32 %v6171, %v6243
        %v6245 = vpop.f32.mrb[0].mxu0
        %v6246 = vadd.f32 %v6173, %v6245
        %v6247 = vpop.f32.mrb[0].mxu0
        %v6248 = vadd.f32 %v6175, %v6247
        %6249 = vmatprep.mubr.bf16.mxu0 %v1323
        %6250 = vmatmul.mubr.bf16.gmra.mrb[0].mxu0 %v1322
        %v6251 = vpop.f32.mrb[0].mxu0
        %v6252 = vadd.f32 %v6179, %v6251
        %v6253 = vpop.f32.mrb[0].mxu0
        %v6254 = vadd.f32 %v6181, %v6253
        %v6255 = vpop.f32.mrb[0].mxu0
        %v6256 = vadd.f32 %v6183, %v6255
        %v6257 = vpop.f32.mrb[0].mxu0
        %v6258 = vadd.f32 %v6185, %v6257
        %6259 = vmatprep.mubr.bf16.mxu0 %v1339
        %6260 = vmatmul.mubr.bf16.gmra.mrb[0].mxu0 %v1338
        %v6261 = vpop.f32.mrb[0].mxu0
        %v6262 = vadd.f32 %v6189, %v6261
        %v6263 = vpop.f32.mrb[0].mxu0
        %v6264 = vadd.f32 %v6191, %v6263
        %v6265 = vpop.f32.mrb[0].mxu0
        %v6266 = vadd.f32 %v6193, %v6265
        %v6267 = vpop.f32.mrb[0].mxu0
        %v6268 = vadd.f32 %v6195, %v6267
        %6269 = vdwg.mxu0
        %6270 = vmatprep.subr.bf16.mxu0 %v4291
        %6271 = vmatpush1.bf16.msra.mxu0 %v4290
        %6272 = vmatprep.subr.bf16.mxu0 %v4297
        %6273 = vmatpush1.bf16.msra.mxu0 %v4296
        %6274 = vmatprep.subr.bf16.mxu0 %v4303
        %6275 = vmatpush1.bf16.msra.mxu0 %v4302
        %6276 = vmatprep.subr.bf16.mxu0 %v4309
        %6277 = vmatpush1.bf16.msra.mxu0 %v4308
        %6278 = vmatprep.subr.bf16.mxu0 %v4315
        %6279 = vmatpush1.bf16.msra.mxu0 %v4314
        %6280 = vmatprep.subr.bf16.mxu0 %v4321
        %6281 = vmatpush1.bf16.msra.mxu0 %v4320
        %6282 = vmatprep.subr.bf16.mxu0 %v4327
        %6283 = vmatpush1.bf16.msra.mxu0 %v4326
        %6284 = vmatprep.subr.bf16.mxu0 %v4333
        %6285 = vmatpush1.bf16.msra.mxu0 %v4332
        %6286 = vmatprep.subr.bf16.mxu0 %v4339
        %6287 = vmatpush1.bf16.msra.mxu0 %v4338
        %6288 = vmatprep.subr.bf16.mxu0 %v4345
        %6289 = vmatpush1.bf16.msra.mxu0 %v4344
        %6290 = vmatprep.subr.bf16.mxu0 %v4351
        %6291 = vmatpush1.bf16.msra.mxu0 %v4350
        %6292 = vmatprep.subr.bf16.mxu0 %v4357
        %6293 = vmatpush1.bf16.msra.mxu0 %v4356
        %6294 = vmatprep.subr.bf16.mxu0 %v4363
        %6295 = vmatpush1.bf16.msra.mxu0 %v4362
        %6296 = vmatprep.subr.bf16.mxu0 %v4369
        %6297 = vmatpush1.bf16.msra.mxu0 %v4368
        %6298 = vmatprep.subr.bf16.mxu0 %v4375
        %6299 = vmatpush1.bf16.msra.mxu0 %v4374
        %6300 = vmatprep.subr.bf16.mxu0 %v4381
        %6301 = vmatpush1.bf16.msra.mxu0 %v4380
        %6302 = vmatprep.mubr.bf16.mxu0 %v1293
        %6303 = vmatmul.mubr.bf16.gmra.mrb[0].mxu0 %v1292
        %v6304 = vpop.f32.mrb[0].mxu0
        %v6305 = vadd.f32 %v6232, %v6304
        %v6306 = vpop.f32.mrb[0].mxu0
        %v6307 = vadd.f32 %v6234, %v6306
        %v6308 = vpop.f32.mrb[0].mxu0
        %v6309 = vadd.f32 %v6236, %v6308
        %v6310 = vpop.f32.mrb[0].mxu0
        %v6311 = vadd.f32 %v6238, %v6310
        %6312 = vmatprep.mubr.bf16.mxu0 %v1309
        %6313 = vmatmul.mubr.bf16.gmra.mrb[0].mxu0 %v1308
        %v6314 = vpop.f32.mrb[0].mxu0
        %v6315 = vadd.f32 %v6242, %v6314
        %v6316 = vpop.f32.mrb[0].mxu0
        %v6317 = vadd.f32 %v6244, %v6316
        %v6318 = vpop.f32.mrb[0].mxu0
        %v6319 = vadd.f32 %v6246, %v6318
        %v6320 = vpop.f32.mrb[0].mxu0
        %v6321 = vadd.f32 %v6248, %v6320
        %6322 = vmatprep.mubr.bf16.mxu0 %v1325
        %6323 = vmatmul.mubr.bf16.gmra.mrb[0].mxu0 %v1324
        %v6324 = vpop.f32.mrb[0].mxu0
        %v6325 = vadd.f32 %v6252, %v6324
        %v6326 = vpop.f32.mrb[0].mxu0
        %v6327 = vadd.f32 %v6254, %v6326
        %v6328 = vpop.f32.mrb[0].mxu0
        %v6329 = vadd.f32 %v6256, %v6328
        %v6330 = vpop.f32.mrb[0].mxu0
        %v6331 = vadd.f32 %v6258, %v6330
        %6332 = vmatprep.mubr.bf16.mxu0 %v1341
        %6333 = vmatmul.mubr.bf16.gmra.mrb[0].mxu0 %v1340
        %v6334 = vpop.f32.mrb[0].mxu0
        %v6335 = vadd.f32 %v6262, %v6334
        %v6336 = vpop.f32.mrb[0].mxu0
        %v6337 = vadd.f32 %v6264, %v6336
        %v6338 = vpop.f32.mrb[0].mxu0
        %v6339 = vadd.f32 %v6266, %v6338
        %v6340 = vpop.f32.mrb[0].mxu0
        %v6341 = vadd.f32 %v6268, %v6340
        %6342 = vdwg.mxu0
        %6343 = vmatprep.subr.bf16.mxu0 %v4387
        %6344 = vmatpush1.bf16.msra.mxu0 %v4386
        %6345 = vmatprep.subr.bf16.mxu0 %v4393
        %6346 = vmatpush1.bf16.msra.mxu0 %v4392
        %6347 = vmatprep.subr.bf16.mxu0 %v4399
        %6348 = vmatpush1.bf16.msra.mxu0 %v4398
        %6349 = vmatprep.subr.bf16.mxu0 %v4405
        %6350 = vmatpush1.bf16.msra.mxu0 %v4404
        %6351 = vmatprep.subr.bf16.mxu0 %v4411
        %6352 = vmatpush1.bf16.msra.mxu0 %v4410
        %6353 = vmatprep.subr.bf16.mxu0 %v4417
        %6354 = vmatpush1.bf16.msra.mxu0 %v4416
        %6355 = vmatprep.subr.bf16.mxu0 %v4423
        %6356 = vmatpush1.bf16.msra.mxu0 %v4422
        %6357 = vmatprep.subr.bf16.mxu0 %v4429
        %6358 = vmatpush1.bf16.msra.mxu0 %v4428
        %6359 = vmatprep.subr.bf16.mxu0 %v4435
        %6360 = vmatpush1.bf16.msra.mxu0 %v4434
        %6361 = vmatprep.subr.bf16.mxu0 %v4441
        %6362 = vmatpush1.bf16.msra.mxu0 %v4440
        %6363 = vmatprep.subr.bf16.mxu0 %v4447
        %6364 = vmatpush1.bf16.msra.mxu0 %v4446
        %6365 = vmatprep.subr.bf16.mxu0 %v4453
        %6366 = vmatpush1.bf16.msra.mxu0 %v4452
        %6367 = vmatprep.subr.bf16.mxu0 %v4459
        %6368 = vmatpush1.bf16.msra.mxu0 %v4458
        %6369 = vmatprep.subr.bf16.mxu0 %v4465
        %6370 = vmatpush1.bf16.msra.mxu0 %v4464
        %6371 = vmatprep.subr.bf16.mxu0 %v4471
        %6372 = vmatpush1.bf16.msra.mxu0 %v4470
        %6373 = vmatprep.subr.bf16.mxu0 %v4477
        %6374 = vmatpush1.bf16.msra.mxu0 %v4476
        %6375 = vmatprep.mubr.bf16.mxu0 %v1295
        %6376 = vmatmul.mubr.bf16.gmra.mrb[0].mxu0 %v1294
        %v6377 = vpop.f32.mrb[0].mxu0
        %v6378 = vadd.f32 %v6305, %v6377
        %v6379 = vpop.f32.mrb[0].mxu0
        %v6380 = vadd.f32 %v6307, %v6379
        %v6381 = vpop.f32.mrb[0].mxu0
        %v6382 = vadd.f32 %v6309, %v6381
        %v6383 = vpop.f32.mrb[0].mxu0
        %v6384 = vadd.f32 %v6311, %v6383
        %6385 = vmatprep.mubr.bf16.mxu0 %v1311
        %6386 = vmatmul.mubr.bf16.gmra.mrb[0].mxu0 %v1310
        %v6387 = vpop.f32.mrb[0].mxu0
        %v6388 = vadd.f32 %v6315, %v6387
        %v6389 = vpop.f32.mrb[0].mxu0
        %v6390 = vadd.f32 %v6317, %v6389
        %v6391 = vpop.f32.mrb[0].mxu0
        %v6392 = vadd.f32 %v6319, %v6391
        %v6393 = vpop.f32.mrb[0].mxu0
        %v6394 = vadd.f32 %v6321, %v6393
        %6395 = vmatprep.mubr.bf16.mxu0 %v1327
        %6396 = vmatmul.mubr.bf16.gmra.mrb[0].mxu0 %v1326
        %v6397 = vpop.f32.mrb[0].mxu0
        %v6398 = vadd.f32 %v6325, %v6397
        %v6399 = vpop.f32.mrb[0].mxu0
        %v6400 = vadd.f32 %v6327, %v6399
        %v6401 = vpop.f32.mrb[0].mxu0
        %v6402 = vadd.f32 %v6329, %v6401
        %v6403 = vpop.f32.mrb[0].mxu0
        %v6404 = vadd.f32 %v6331, %v6403
        %6405 = vmatprep.mubr.bf16.mxu0 %v1343
        %6406 = vmatmul.mubr.bf16.gmra.mrb[0].mxu0 %v1342
        %v6407 = vpop.f32.mrb[0].mxu0
        %v6408 = vadd.f32 %v6335, %v6407
        %v6409 = vpop.f32.mrb[0].mxu0
        %v6410 = vadd.f32 %v6337, %v6409
        %v6411 = vpop.f32.mrb[0].mxu0
        %v6412 = vadd.f32 %v6339, %v6411
        %v6413 = vpop.f32.mrb[0].mxu0
        %v6414 = vadd.f32 %v6341, %v6413
        %6415 = vdwg.mxu0
        %6416 = vmatprep.subr.bf16.mxu0 %v3717
        %6417 = vmatpush1.bf16.msra.mxu0 %v3716
        %6418 = vmatprep.subr.bf16.mxu0 %v3723
        %6419 = vmatpush1.bf16.msra.mxu0 %v3722
        %6420 = vmatprep.subr.bf16.mxu0 %v3729
        %6421 = vmatpush1.bf16.msra.mxu0 %v3728
        %6422 = vmatprep.subr.bf16.mxu0 %v3735
        %6423 = vmatpush1.bf16.msra.mxu0 %v3734
        %6424 = vmatprep.subr.bf16.mxu0 %v3741
        %6425 = vmatpush1.bf16.msra.mxu0 %v3740
        %6426 = vmatprep.subr.bf16.mxu0 %v3747
        %6427 = vmatpush1.bf16.msra.mxu0 %v3746
        %6428 = vmatprep.subr.bf16.mxu0 %v3753
        %6429 = vmatpush1.bf16.msra.mxu0 %v3752
        %6430 = vmatprep.subr.bf16.mxu0 %v3759
        %6431 = vmatpush1.bf16.msra.mxu0 %v3758
        %6432 = vmatprep.subr.bf16.mxu0 %v3765
        %6433 = vmatpush1.bf16.msra.mxu0 %v3764
        %6434 = vmatprep.subr.bf16.mxu0 %v3771
        %6435 = vmatpush1.bf16.msra.mxu0 %v3770
        %6436 = vmatprep.subr.bf16.mxu0 %v3777
        %6437 = vmatpush1.bf16.msra.mxu0 %v3776
        %6438 = vmatprep.subr.bf16.mxu0 %v3783
        %6439 = vmatpush1.bf16.msra.mxu0 %v3782
        %6440 = vmatprep.subr.bf16.mxu0 %v3789
        %6441 = vmatpush1.bf16.msra.mxu0 %v3788
        %6442 = vmatprep.subr.bf16.mxu0 %v3795
        %6443 = vmatpush1.bf16.msra.mxu0 %v3794
        %6444 = vmatprep.subr.bf16.mxu0 %v3801
        %6445 = vmatpush1.bf16.msra.mxu0 %v3800
        %6446 = vmatprep.subr.bf16.mxu0 %v3807
        %6447 = vmatpush1.bf16.msra.mxu0 %v3806
        %6448 = vmatprep.mubr.bf16.mxu0 %v1281
        %6449 = vmatmul.mubr.bf16.gmra.mrb[0].mxu0 %v1280
        %v6450 = vpop.f32.mrb[0].mxu0
        %v6451 = vadd.f32 %v1077, %v6450
        %v6452 = vpop.f32.mrb[0].mxu0
        %v6453 = vadd.f32 %v1081, %v6452
        %v6454 = vpop.f32.mrb[0].mxu0
        %v6455 = vadd.f32 %v1077, %v6454
        %v6456 = vpop.f32.mrb[0].mxu0
        %v6457 = vadd.f32 %v1081, %v6456
        %6458 = vmatprep.mubr.bf16.mxu0 %v1297
        %6459 = vmatmul.mubr.bf16.gmra.mrb[0].mxu0 %v1296
        %v6460 = vpop.f32.mrb[0].mxu0
        %v6461 = vadd.f32 %v1077, %v6460
        %v6462 = vpop.f32.mrb[0].mxu0
        %v6463 = vadd.f32 %v1081, %v6462
        %v6464 = vpop.f32.mrb[0].mxu0
        %v6465 = vadd.f32 %v1077, %v6464
        %v6466 = vpop.f32.mrb[0].mxu0
        %v6467 = vadd.f32 %v1081, %v6466
        %6468 = vmatprep.mubr.bf16.mxu0 %v1313
        %6469 = vmatmul.mubr.bf16.gmra.mrb[0].mxu0 %v1312
        %v6470 = vpop.f32.mrb[0].mxu0
        %v6471 = vadd.f32 %v1077, %v6470
        %v6472 = vpop.f32.mrb[0].mxu0
        %v6473 = vadd.f32 %v1081, %v6472
        %v6474 = vpop.f32.mrb[0].mxu0
        %v6475 = vadd.f32 %v1077, %v6474
        %v6476 = vpop.f32.mrb[0].mxu0
        %v6477 = vadd.f32 %v1081, %v6476
        %6478 = vmatprep.mubr.bf16.mxu0 %v1329
        %6479 = vmatmul.mubr.bf16.gmra.mrb[0].mxu0 %v1328
        %v6480 = vpop.f32.mrb[0].mxu0
        %v6481 = vadd.f32 %v1077, %v6480
        %v6482 = vpop.f32.mrb[0].mxu0
        %v6483 = vadd.f32 %v1081, %v6482
        %v6484 = vpop.f32.mrb[0].mxu0
        %v6485 = vadd.f32 %v1077, %v6484
        %v6486 = vpop.f32.mrb[0].mxu0
        %v6487 = vadd.f32 %v1081, %v6486
        %6488 = vdwg.mxu0
        %6489 = vmatprep.subr.bf16.mxu0 %v3813
        %6490 = vmatpush1.bf16.msra.mxu0 %v3812
        %6491 = vmatprep.subr.bf16.mxu0 %v3819
        %6492 = vmatpush1.bf16.msra.mxu0 %v3818
        %6493 = vmatprep.subr.bf16.mxu0 %v3825
        %6494 = vmatpush1.bf16.msra.mxu0 %v3824
        %6495 = vmatprep.subr.bf16.mxu0 %v3831
        %6496 = vmatpush1.bf16.msra.mxu0 %v3830
        %6497 = vmatprep.subr.bf16.mxu0 %v3837
        %6498 = vmatpush1.bf16.msra.mxu0 %v3836
        %6499 = vmatprep.subr.bf16.mxu0 %v3843
        %6500 = vmatpush1.bf16.msra.mxu0 %v3842
        %6501 = vmatprep.subr.bf16.mxu0 %v3849
        %6502 = vmatpush1.bf16.msra.mxu0 %v3848
        %6503 = vmatprep.subr.bf16.mxu0 %v3855
        %6504 = vmatpush1.bf16.msra.mxu0 %v3854
        %6505 = vmatprep.subr.bf16.mxu0 %v3861
        %6506 = vmatpush1.bf16.msra.mxu0 %v3860
        %6507 = vmatprep.subr.bf16.mxu0 %v3867
        %6508 = vmatpush1.bf16.msra.mxu0 %v3866
        %6509 = vmatprep.subr.bf16.mxu0 %v3873
        %6510 = vmatpush1.bf16.msra.mxu0 %v3872
        %6511 = vmatprep.subr.bf16.mxu0 %v3879
        %6512 = vmatpush1.bf16.msra.mxu0 %v3878
        %6513 = vmatprep.subr.bf16.mxu0 %v3885
        %6514 = vmatpush1.bf16.msra.mxu0 %v3884
        %6515 = vmatprep.subr.bf16.mxu0 %v3891
        %6516 = vmatpush1.bf16.msra.mxu0 %v3890
        %6517 = vmatprep.subr.bf16.mxu0 %v3897
        %6518 = vmatpush1.bf16.msra.mxu0 %v3896
        %6519 = vmatprep.subr.bf16.mxu0 %v3903
        %6520 = vmatpush1.bf16.msra.mxu0 %v3902
        %6521 = vmatprep.mubr.bf16.mxu0 %v1283
        %6522 = vmatmul.mubr.bf16.gmra.mrb[0].mxu0 %v1282
        %v6523 = vpop.f32.mrb[0].mxu0
        %v6524 = vadd.f32 %v6451, %v6523
        %v6525 = vpop.f32.mrb[0].mxu0
        %v6526 = vadd.f32 %v6453, %v6525
        %v6527 = vpop.f32.mrb[0].mxu0
        %v6528 = vadd.f32 %v6455, %v6527
        %v6529 = vpop.f32.mrb[0].mxu0
        %v6530 = vadd.f32 %v6457, %v6529
        %6531 = vmatprep.mubr.bf16.mxu0 %v1299
        %6532 = vmatmul.mubr.bf16.gmra.mrb[0].mxu0 %v1298
        %v6533 = vpop.f32.mrb[0].mxu0
        %v6534 = vadd.f32 %v6461, %v6533
        %v6535 = vpop.f32.mrb[0].mxu0
        %v6536 = vadd.f32 %v6463, %v6535
        %v6537 = vpop.f32.mrb[0].mxu0
        %v6538 = vadd.f32 %v6465, %v6537
        %v6539 = vpop.f32.mrb[0].mxu0
        %v6540 = vadd.f32 %v6467, %v6539
        %6541 = vmatprep.mubr.bf16.mxu0 %v1315
        %6542 = vmatmul.mubr.bf16.gmra.mrb[0].mxu0 %v1314
        %v6543 = vpop.f32.mrb[0].mxu0
        %v6544 = vadd.f32 %v6471, %v6543
        %v6545 = vpop.f32.mrb[0].mxu0
        %v6546 = vadd.f32 %v6473, %v6545
        %v6547 = vpop.f32.mrb[0].mxu0
        %v6548 = vadd.f32 %v6475, %v6547
        %v6549 = vpop.f32.mrb[0].mxu0
        %v6550 = vadd.f32 %v6477, %v6549
        %6551 = vmatprep.mubr.bf16.mxu0 %v1331
        %6552 = vmatmul.mubr.bf16.gmra.mrb[0].mxu0 %v1330
        %v6553 = vpop.f32.mrb[0].mxu0
        %v6554 = vadd.f32 %v6481, %v6553
        %v6555 = vpop.f32.mrb[0].mxu0
        %v6556 = vadd.f32 %v6483, %v6555
        %v6557 = vpop.f32.mrb[0].mxu0
        %v6558 = vadd.f32 %v6485, %v6557
        %v6559 = vpop.f32.mrb[0].mxu0
        %v6560 = vadd.f32 %v6487, %v6559
        %6561 = vdwg.mxu0
        %6562 = vmatprep.subr.bf16.mxu0 %v3909
        %6563 = vmatpush1.bf16.msra.mxu0 %v3908
        %6564 = vmatprep.subr.bf16.mxu0 %v3915
        %6565 = vmatpush1.bf16.msra.mxu0 %v3914
        %6566 = vmatprep.subr.bf16.mxu0 %v3921
        %6567 = vmatpush1.bf16.msra.mxu0 %v3920
        %6568 = vmatprep.subr.bf16.mxu0 %v3927
        %6569 = vmatpush1.bf16.msra.mxu0 %v3926
        %6570 = vmatprep.subr.bf16.mxu0 %v3933
        %6571 = vmatpush1.bf16.msra.mxu0 %v3932
        %6572 = vmatprep.subr.bf16.mxu0 %v3939
        %6573 = vmatpush1.bf16.msra.mxu0 %v3938
        %6574 = vmatprep.subr.bf16.mxu0 %v3945
        %6575 = vmatpush1.bf16.msra.mxu0 %v3944
        %6576 = vmatprep.subr.bf16.mxu0 %v3951
        %6577 = vmatpush1.bf16.msra.mxu0 %v3950
        %6578 = vmatprep.subr.bf16.mxu0 %v3957
        %6579 = vmatpush1.bf16.msra.mxu0 %v3956
        %6580 = vmatprep.subr.bf16.mxu0 %v3963
        %6581 = vmatpush1.bf16.msra.mxu0 %v3962
        %6582 = vmatprep.subr.bf16.mxu0 %v3969
        %6583 = vmatpush1.bf16.msra.mxu0 %v3968
        %6584 = vmatprep.subr.bf16.mxu0 %v3975
        %6585 = vmatpush1.bf16.msra.mxu0 %v3974
        %6586 = vmatprep.subr.bf16.mxu0 %v3981
        %6587 = vmatpush1.bf16.msra.mxu0 %v3980
        %6588 = vmatprep.subr.bf16.mxu0 %v3987
        %6589 = vmatpush1.bf16.msra.mxu0 %v3986
        %6590 = vmatprep.subr.bf16.mxu0 %v3993
        %6591 = vmatpush1.bf16.msra.mxu0 %v3992
        %6592 = vmatprep.subr.bf16.mxu0 %v3999
        %6593 = vmatpush1.bf16.msra.mxu0 %v3998
        %6594 = vmatprep.mubr.bf16.mxu0 %v1285
        %6595 = vmatmul.mubr.bf16.gmra.mrb[0].mxu0 %v1284
        %v6596 = vpop.f32.mrb[0].mxu0
        %v6597 = vadd.f32 %v6524, %v6596
        %v6598 = vpop.f32.mrb[0].mxu0
        %v6599 = vadd.f32 %v6526, %v6598
        %v6600 = vpop.f32.mrb[0].mxu0
        %v6601 = vadd.f32 %v6528, %v6600
        %v6602 = vpop.f32.mrb[0].mxu0
        %v6603 = vadd.f32 %v6530, %v6602
        %6604 = vmatprep.mubr.bf16.mxu0 %v1301
        %6605 = vmatmul.mubr.bf16.gmra.mrb[0].mxu0 %v1300
        %v6606 = vpop.f32.mrb[0].mxu0
        %v6607 = vadd.f32 %v6534, %v6606
        %v6608 = vpop.f32.mrb[0].mxu0
        %v6609 = vadd.f32 %v6536, %v6608
        %v6610 = vpop.f32.mrb[0].mxu0
        %v6611 = vadd.f32 %v6538, %v6610
        %v6612 = vpop.f32.mrb[0].mxu0
        %v6613 = vadd.f32 %v6540, %v6612
        %6614 = vmatprep.mubr.bf16.mxu0 %v1317
        %6615 = vmatmul.mubr.bf16.gmra.mrb[0].mxu0 %v1316
        %v6616 = vpop.f32.mrb[0].mxu0
        %v6617 = vadd.f32 %v6544, %v6616
        %v6618 = vpop.f32.mrb[0].mxu0
        %v6619 = vadd.f32 %v6546, %v6618
        %v6620 = vpop.f32.mrb[0].mxu0
        %v6621 = vadd.f32 %v6548, %v6620
        %v6622 = vpop.f32.mrb[0].mxu0
        %v6623 = vadd.f32 %v6550, %v6622
        %6624 = vmatprep.mubr.bf16.mxu0 %v1333
        %6625 = vmatmul.mubr.bf16.gmra.mrb[0].mxu0 %v1332
        %v6626 = vpop.f32.mrb[0].mxu0
        %v6627 = vadd.f32 %v6554, %v6626
        %v6628 = vpop.f32.mrb[0].mxu0
        %v6629 = vadd.f32 %v6556, %v6628
        %v6630 = vpop.f32.mrb[0].mxu0
        %v6631 = vadd.f32 %v6558, %v6630
        %v6632 = vpop.f32.mrb[0].mxu0
        %v6633 = vadd.f32 %v6560, %v6632
        %6634 = vdwg.mxu0
        %6635 = vmatprep.subr.bf16.mxu0 %v4005
        %6636 = vmatpush1.bf16.msra.mxu0 %v4004
        %6637 = vmatprep.subr.bf16.mxu0 %v4011
        %6638 = vmatpush1.bf16.msra.mxu0 %v4010
        %6639 = vmatprep.subr.bf16.mxu0 %v4017
        %6640 = vmatpush1.bf16.msra.mxu0 %v4016
        %6641 = vmatprep.subr.bf16.mxu0 %v4023
        %6642 = vmatpush1.bf16.msra.mxu0 %v4022
        %6643 = vmatprep.subr.bf16.mxu0 %v4029
        %6644 = vmatpush1.bf16.msra.mxu0 %v4028
        %6645 = vmatprep.subr.bf16.mxu0 %v4035
        %6646 = vmatpush1.bf16.msra.mxu0 %v4034
        %6647 = vmatprep.subr.bf16.mxu0 %v4041
        %6648 = vmatpush1.bf16.msra.mxu0 %v4040
        %6649 = vmatprep.subr.bf16.mxu0 %v4047
        %6650 = vmatpush1.bf16.msra.mxu0 %v4046
        %6651 = vmatprep.subr.bf16.mxu0 %v4053
        %6652 = vmatpush1.bf16.msra.mxu0 %v4052
        %6653 = vmatprep.subr.bf16.mxu0 %v4059
        %6654 = vmatpush1.bf16.msra.mxu0 %v4058
        %6655 = vmatprep.subr.bf16.mxu0 %v4065
        %6656 = vmatpush1.bf16.msra.mxu0 %v4064
        %6657 = vmatprep.subr.bf16.mxu0 %v4071
        %6658 = vmatpush1.bf16.msra.mxu0 %v4070
        %6659 = vmatprep.subr.bf16.mxu0 %v4077
        %6660 = vmatpush1.bf16.msra.mxu0 %v4076
        %6661 = vmatprep.subr.bf16.mxu0 %v4083
        %6662 = vmatpush1.bf16.msra.mxu0 %v4082
        %6663 = vmatprep.subr.bf16.mxu0 %v4089
        %6664 = vmatpush1.bf16.msra.mxu0 %v4088
        %6665 = vmatprep.subr.bf16.mxu0 %v4095
        %6666 = vmatpush1.bf16.msra.mxu0 %v4094
        %6667 = vmatprep.mubr.bf16.mxu0 %v1287
        %6668 = vmatmul.mubr.bf16.gmra.mrb[0].mxu0 %v1286
        %v6669 = vpop.f32.mrb[0].mxu0
        %v6670 = vadd.f32 %v6597, %v6669
        %v6671 = vpop.f32.mrb[0].mxu0
        %v6672 = vadd.f32 %v6599, %v6671
        %v6673 = vpop.f32.mrb[0].mxu0
        %v6674 = vadd.f32 %v6601, %v6673
        %v6675 = vpop.f32.mrb[0].mxu0
        %v6676 = vadd.f32 %v6603, %v6675
        %6677 = vmatprep.mubr.bf16.mxu0 %v1303
        %6678 = vmatmul.mubr.bf16.gmra.mrb[0].mxu0 %v1302
        %v6679 = vpop.f32.mrb[0].mxu0
        %v6680 = vadd.f32 %v6607, %v6679
        %v6681 = vpop.f32.mrb[0].mxu0
        %v6682 = vadd.f32 %v6609, %v6681
        %v6683 = vpop.f32.mrb[0].mxu0
        %v6684 = vadd.f32 %v6611, %v6683
        %v6685 = vpop.f32.mrb[0].mxu0
        %v6686 = vadd.f32 %v6613, %v6685
        %6687 = vmatprep.mubr.bf16.mxu0 %v1319
        %6688 = vmatmul.mubr.bf16.gmra.mrb[0].mxu0 %v1318
        %v6689 = vpop.f32.mrb[0].mxu0
        %v6690 = vadd.f32 %v6617, %v6689
        %v6691 = vpop.f32.mrb[0].mxu0
        %v6692 = vadd.f32 %v6619, %v6691
        %v6693 = vpop.f32.mrb[0].mxu0
        %v6694 = vadd.f32 %v6621, %v6693
        %v6695 = vpop.f32.mrb[0].mxu0
        %v6696 = vadd.f32 %v6623, %v6695
        %6697 = vmatprep.mubr.bf16.mxu0 %v1335
        %6698 = vmatmul.mubr.bf16.gmra.mrb[0].mxu0 %v1334
        %v6699 = vpop.f32.mrb[0].mxu0
        %v6700 = vadd.f32 %v6627, %v6699
        %v6701 = vpop.f32.mrb[0].mxu0
        %v6702 = vadd.f32 %v6629, %v6701
        %v6703 = vpop.f32.mrb[0].mxu0
        %v6704 = vadd.f32 %v6631, %v6703
        %v6705 = vpop.f32.mrb[0].mxu0
        %v6706 = vadd.f32 %v6633, %v6705
        %6707 = vdwg.mxu0
        %6708 = vmatprep.subr.bf16.mxu0 %v4101
        %6709 = vmatpush1.bf16.msra.mxu0 %v4100
        %6710 = vmatprep.subr.bf16.mxu0 %v4107
        %6711 = vmatpush1.bf16.msra.mxu0 %v4106
        %6712 = vmatprep.subr.bf16.mxu0 %v4113
        %6713 = vmatpush1.bf16.msra.mxu0 %v4112
        %6714 = vmatprep.subr.bf16.mxu0 %v4119
        %6715 = vmatpush1.bf16.msra.mxu0 %v4118
        %6716 = vmatprep.subr.bf16.mxu0 %v4125
        %6717 = vmatpush1.bf16.msra.mxu0 %v4124
        %6718 = vmatprep.subr.bf16.mxu0 %v4131
        %6719 = vmatpush1.bf16.msra.mxu0 %v4130
        %6720 = vmatprep.subr.bf16.mxu0 %v4137
        %6721 = vmatpush1.bf16.msra.mxu0 %v4136
        %6722 = vmatprep.subr.bf16.mxu0 %v4143
        %6723 = vmatpush1.bf16.msra.mxu0 %v4142
        %6724 = vmatprep.subr.bf16.mxu0 %v4149
        %6725 = vmatpush1.bf16.msra.mxu0 %v4148
        %6726 = vmatprep.subr.bf16.mxu0 %v4155
        %6727 = vmatpush1.bf16.msra.mxu0 %v4154
        %6728 = vmatprep.subr.bf16.mxu0 %v4161
        %6729 = vmatpush1.bf16.msra.mxu0 %v4160
        %6730 = vmatprep.subr.bf16.mxu0 %v4167
        %6731 = vmatpush1.bf16.msra.mxu0 %v4166
        %6732 = vmatprep.subr.bf16.mxu0 %v4173
        %6733 = vmatpush1.bf16.msra.mxu0 %v4172
        %6734 = vmatprep.subr.bf16.mxu0 %v4179
        %6735 = vmatpush1.bf16.msra.mxu0 %v4178
        %6736 = vmatprep.subr.bf16.mxu0 %v4185
        %6737 = vmatpush1.bf16.msra.mxu0 %v4184
        %6738 = vmatprep.subr.bf16.mxu0 %v4191
        %6739 = vmatpush1.bf16.msra.mxu0 %v4190
        %6740 = vmatprep.mubr.bf16.mxu0 %v1289
        %6741 = vmatmul.mubr.bf16.gmra.mrb[0].mxu0 %v1288
        %v6742 = vpop.f32.mrb[0].mxu0
        %v6743 = vadd.f32 %v6670, %v6742
        %v6744 = vpop.f32.mrb[0].mxu0
        %v6745 = vadd.f32 %v6672, %v6744
        %v6746 = vpop.f32.mrb[0].mxu0
        %v6747 = vadd.f32 %v6674, %v6746
        %v6748 = vpop.f32.mrb[0].mxu0
        %v6749 = vadd.f32 %v6676, %v6748
        %6750 = vmatprep.mubr.bf16.mxu0 %v1305
        %6751 = vmatmul.mubr.bf16.gmra.mrb[0].mxu0 %v1304
        %v6752 = vpop.f32.mrb[0].mxu0
        %v6753 = vadd.f32 %v6680, %v6752
        %v6754 = vpop.f32.mrb[0].mxu0
        %v6755 = vadd.f32 %v6682, %v6754
        %v6756 = vpop.f32.mrb[0].mxu0
        %v6757 = vadd.f32 %v6684, %v6756
        %v6758 = vpop.f32.mrb[0].mxu0
        %v6759 = vadd.f32 %v6686, %v6758
        %6760 = vmatprep.mubr.bf16.mxu0 %v1321
        %6761 = vmatmul.mubr.bf16.gmra.mrb[0].mxu0 %v1320
        %v6762 = vpop.f32.mrb[0].mxu0
        %v6763 = vadd.f32 %v6690, %v6762
        %v6764 = vpop.f32.mrb[0].mxu0
        %v6765 = vadd.f32 %v6692, %v6764
        %v6766 = vpop.f32.mrb[0].mxu0
        %v6767 = vadd.f32 %v6694, %v6766
        %v6768 = vpop.f32.mrb[0].mxu0
        %v6769 = vadd.f32 %v6696, %v6768
        %6770 = vmatprep.mubr.bf16.mxu0 %v1337
        %6771 = vmatmul.mubr.bf16.gmra.mrb[0].mxu0 %v1336
        %v6772 = vpop.f32.mrb[0].mxu0
        %v6773 = vadd.f32 %v6700, %v6772
        %v6774 = vpop.f32.mrb[0].mxu0
        %v6775 = vadd.f32 %v6702, %v6774
        %v6776 = vpop.f32.mrb[0].mxu0
        %v6777 = vadd.f32 %v6704, %v6776
        %v6778 = vpop.f32.mrb[0].mxu0
        %v6779 = vadd.f32 %v6706, %v6778
        %6780 = vdwg.mxu0
        %6781 = vmatprep.subr.bf16.mxu0 %v4197
        %6782 = vmatpush1.bf16.msra.mxu0 %v4196
        %6783 = vmatprep.subr.bf16.mxu0 %v4203
        %6784 = vmatpush1.bf16.msra.mxu0 %v4202
        %6785 = vmatprep.subr.bf16.mxu0 %v4209
        %6786 = vmatpush1.bf16.msra.mxu0 %v4208
        %6787 = vmatprep.subr.bf16.mxu0 %v4215
        %6788 = vmatpush1.bf16.msra.mxu0 %v4214
        %6789 = vmatprep.subr.bf16.mxu0 %v4221
        %6790 = vmatpush1.bf16.msra.mxu0 %v4220
        %6791 = vmatprep.subr.bf16.mxu0 %v4227
        %6792 = vmatpush1.bf16.msra.mxu0 %v4226
        %6793 = vmatprep.subr.bf16.mxu0 %v4233
        %6794 = vmatpush1.bf16.msra.mxu0 %v4232
        %6795 = vmatprep.subr.bf16.mxu0 %v4239
        %6796 = vmatpush1.bf16.msra.mxu0 %v4238
        %6797 = vmatprep.subr.bf16.mxu0 %v4245
        %6798 = vmatpush1.bf16.msra.mxu0 %v4244
        %6799 = vmatprep.subr.bf16.mxu0 %v4251
        %6800 = vmatpush1.bf16.msra.mxu0 %v4250
        %6801 = vmatprep.subr.bf16.mxu0 %v4257
        %6802 = vmatpush1.bf16.msra.mxu0 %v4256
        %6803 = vmatprep.subr.bf16.mxu0 %v4263
        %6804 = vmatpush1.bf16.msra.mxu0 %v4262
        %6805 = vmatprep.subr.bf16.mxu0 %v4269
        %6806 = vmatpush1.bf16.msra.mxu0 %v4268
        %6807 = vmatprep.subr.bf16.mxu0 %v4275
        %6808 = vmatpush1.bf16.msra.mxu0 %v4274
        %6809 = vmatprep.subr.bf16.mxu0 %v4281
        %6810 = vmatpush1.bf16.msra.mxu0 %v4280
        %6811 = vmatprep.subr.bf16.mxu0 %v4287
        %6812 = vmatpush1.bf16.msra.mxu0 %v4286
        %6813 = vmatprep.mubr.bf16.mxu0 %v1291
        %6814 = vmatmul.mubr.bf16.gmra.mrb[0].mxu0 %v1290
        %v6815 = vpop.f32.mrb[0].mxu0
        %v6816 = vadd.f32 %v6743, %v6815
        %v6817 = vpop.f32.mrb[0].mxu0
        %v6818 = vadd.f32 %v6745, %v6817
        %v6819 = vpop.f32.mrb[0].mxu0
        %v6820 = vadd.f32 %v6747, %v6819
        %v6821 = vpop.f32.mrb[0].mxu0
        %v6822 = vadd.f32 %v6749, %v6821
        %6823 = vmatprep.mubr.bf16.mxu0 %v1307
        %6824 = vmatmul.mubr.bf16.gmra.mrb[0].mxu0 %v1306
        %v6825 = vpop.f32.mrb[0].mxu0
        %v6826 = vadd.f32 %v6753, %v6825
        %v6827 = vpop.f32.mrb[0].mxu0
        %v6828 = vadd.f32 %v6755, %v6827
        %v6829 = vpop.f32.mrb[0].mxu0
        %v6830 = vadd.f32 %v6757, %v6829
        %v6831 = vpop.f32.mrb[0].mxu0
        %v6832 = vadd.f32 %v6759, %v6831
        %6833 = vmatprep.mubr.bf16.mxu0 %v1323
        %6834 = vmatmul.mubr.bf16.gmra.mrb[0].mxu0 %v1322
        %v6835 = vpop.f32.mrb[0].mxu0
        %v6836 = vadd.f32 %v6763, %v6835
        %v6837 = vpop.f32.mrb[0].mxu0
        %v6838 = vadd.f32 %v6765, %v6837
        %v6839 = vpop.f32.mrb[0].mxu0
        %v6840 = vadd.f32 %v6767, %v6839
        %v6841 = vpop.f32.mrb[0].mxu0
        %v6842 = vadd.f32 %v6769, %v6841
        %6843 = vmatprep.mubr.bf16.mxu0 %v1339
        %6844 = vmatmul.mubr.bf16.gmra.mrb[0].mxu0 %v1338
        %v6845 = vpop.f32.mrb[0].mxu0
        %v6846 = vadd.f32 %v6773, %v6845
        %v6847 = vpop.f32.mrb[0].mxu0
        %v6848 = vadd.f32 %v6775, %v6847
        %v6849 = vpop.f32.mrb[0].mxu0
        %v6850 = vadd.f32 %v6777, %v6849
        %v6851 = vpop.f32.mrb[0].mxu0
        %v6852 = vadd.f32 %v6779, %v6851
        %6853 = vdwg.mxu0
        %6854 = vmatprep.subr.bf16.mxu0 %v4293
        %6855 = vmatpush1.bf16.msra.mxu0 %v4292
        %6856 = vmatprep.subr.bf16.mxu0 %v4299
        %6857 = vmatpush1.bf16.msra.mxu0 %v4298
        %6858 = vmatprep.subr.bf16.mxu0 %v4305
        %6859 = vmatpush1.bf16.msra.mxu0 %v4304
        %6860 = vmatprep.subr.bf16.mxu0 %v4311
        %6861 = vmatpush1.bf16.msra.mxu0 %v4310
        %6862 = vmatprep.subr.bf16.mxu0 %v4317
        %6863 = vmatpush1.bf16.msra.mxu0 %v4316
        %6864 = vmatprep.subr.bf16.mxu0 %v4323
        %6865 = vmatpush1.bf16.msra.mxu0 %v4322
        %6866 = vmatprep.subr.bf16.mxu0 %v4329
        %6867 = vmatpush1.bf16.msra.mxu0 %v4328
        %6868 = vmatprep.subr.bf16.mxu0 %v4335
        %6869 = vmatpush1.bf16.msra.mxu0 %v4334
        %6870 = vmatprep.subr.bf16.mxu0 %v4341
        %6871 = vmatpush1.bf16.msra.mxu0 %v4340
        %6872 = vmatprep.subr.bf16.mxu0 %v4347
        %6873 = vmatpush1.bf16.msra.mxu0 %v4346
        %6874 = vmatprep.subr.bf16.mxu0 %v4353
        %6875 = vmatpush1.bf16.msra.mxu0 %v4352
        %6876 = vmatprep.subr.bf16.mxu0 %v4359
        %6877 = vmatpush1.bf16.msra.mxu0 %v4358
        %6878 = vmatprep.subr.bf16.mxu0 %v4365
        %6879 = vmatpush1.bf16.msra.mxu0 %v4364
        %6880 = vmatprep.subr.bf16.mxu0 %v4371
        %6881 = vmatpush1.bf16.msra.mxu0 %v4370
        %6882 = vmatprep.subr.bf16.mxu0 %v4377
        %6883 = vmatpush1.bf16.msra.mxu0 %v4376
        %6884 = vmatprep.subr.bf16.mxu0 %v4383
        %6885 = vmatpush1.bf16.msra.mxu0 %v4382
        %6886 = vmatprep.mubr.bf16.mxu0 %v1293
        %6887 = vmatmul.mubr.bf16.gmra.mrb[0].mxu0 %v1292
        %v6888 = vpop.f32.mrb[0].mxu0
        %v6889 = vadd.f32 %v6816, %v6888
        %v6890 = vpop.f32.mrb[0].mxu0
        %v6891 = vadd.f32 %v6818, %v6890
        %v6892 = vpop.f32.mrb[0].mxu0
        %v6893 = vadd.f32 %v6820, %v6892
        %v6894 = vpop.f32.mrb[0].mxu0
        %v6895 = vadd.f32 %v6822, %v6894
        %6896 = vmatprep.mubr.bf16.mxu0 %v1309
        %6897 = vmatmul.mubr.bf16.gmra.mrb[0].mxu0 %v1308
        %v6898 = vpop.f32.mrb[0].mxu0
        %v6899 = vadd.f32 %v6826, %v6898
        %v6900 = vpop.f32.mrb[0].mxu0
        %v6901 = vadd.f32 %v6828, %v6900
        %v6902 = vpop.f32.mrb[0].mxu0
        %v6903 = vadd.f32 %v6830, %v6902
        %v6904 = vpop.f32.mrb[0].mxu0
        %v6905 = vadd.f32 %v6832, %v6904
        %6906 = vmatprep.mubr.bf16.mxu0 %v1325
        %6907 = vmatmul.mubr.bf16.gmra.mrb[0].mxu0 %v1324
        %v6908 = vpop.f32.mrb[0].mxu0
        %v6909 = vadd.f32 %v6836, %v6908
        %v6910 = vpop.f32.mrb[0].mxu0
        %v6911 = vadd.f32 %v6838, %v6910
        %v6912 = vpop.f32.mrb[0].mxu0
        %v6913 = vadd.f32 %v6840, %v6912
        %v6914 = vpop.f32.mrb[0].mxu0
        %v6915 = vadd.f32 %v6842, %v6914
        %6916 = vmatprep.mubr.bf16.mxu0 %v1341
        %6917 = vmatmul.mubr.bf16.gmra.mrb[0].mxu0 %v1340
        %v6918 = vpop.f32.mrb[0].mxu0
        %v6919 = vadd.f32 %v6846, %v6918
        %v6920 = vpop.f32.mrb[0].mxu0
        %v6921 = vadd.f32 %v6848, %v6920
        %v6922 = vpop.f32.mrb[0].mxu0
        %v6923 = vadd.f32 %v6850, %v6922
        %v6924 = vpop.f32.mrb[0].mxu0
        %v6925 = vadd.f32 %v6852, %v6924
        %6926 = vdwg.mxu0
        %6927 = vmatprep.subr.bf16.mxu0 %v4389
        %6928 = vmatpush1.bf16.msra.mxu0 %v4388
        %6929 = vmatprep.subr.bf16.mxu0 %v4395
        %6930 = vmatpush1.bf16.msra.mxu0 %v4394
        %6931 = vmatprep.subr.bf16.mxu0 %v4401
        %6932 = vmatpush1.bf16.msra.mxu0 %v4400
        %6933 = vmatprep.subr.bf16.mxu0 %v4407
        %6934 = vmatpush1.bf16.msra.mxu0 %v4406
        %6935 = vmatprep.subr.bf16.mxu0 %v4413
        %6936 = vmatpush1.bf16.msra.mxu0 %v4412
        %6937 = vmatprep.subr.bf16.mxu0 %v4419
        %6938 = vmatpush1.bf16.msra.mxu0 %v4418
        %6939 = vmatprep.subr.bf16.mxu0 %v4425
        %6940 = vmatpush1.bf16.msra.mxu0 %v4424
        %6941 = vmatprep.subr.bf16.mxu0 %v4431
        %6942 = vmatpush1.bf16.msra.mxu0 %v4430
        %6943 = vmatprep.subr.bf16.mxu0 %v4437
        %6944 = vmatpush1.bf16.msra.mxu0 %v4436
        %6945 = vmatprep.subr.bf16.mxu0 %v4443
        %6946 = vmatpush1.bf16.msra.mxu0 %v4442
        %6947 = vmatprep.subr.bf16.mxu0 %v4449
        %6948 = vmatpush1.bf16.msra.mxu0 %v4448
        %6949 = vmatprep.subr.bf16.mxu0 %v4455
        %6950 = vmatpush1.bf16.msra.mxu0 %v4454
        %6951 = vmatprep.subr.bf16.mxu0 %v4461
        %6952 = vmatpush1.bf16.msra.mxu0 %v4460
        %6953 = vmatprep.subr.bf16.mxu0 %v4467
        %6954 = vmatpush1.bf16.msra.mxu0 %v4466
        %6955 = vmatprep.subr.bf16.mxu0 %v4473
        %6956 = vmatpush1.bf16.msra.mxu0 %v4472
        %6957 = vmatprep.subr.bf16.mxu0 %v4479
        %6958 = vmatpush1.bf16.msra.mxu0 %v4478
        %6959 = vmatprep.mubr.bf16.mxu0 %v1295
        %6960 = vmatmul.mubr.bf16.gmra.mrb[0].mxu0 %v1294
        %v6961 = vpop.f32.mrb[0].mxu0
        %v6962 = vadd.f32 %v6889, %v6961
        %v6963 = vpop.f32.mrb[0].mxu0
        %v6964 = vadd.f32 %v6891, %v6963
        %v6965 = vpop.f32.mrb[0].mxu0
        %v6966 = vadd.f32 %v6893, %v6965
        %v6967 = vpop.f32.mrb[0].mxu0
        %v6968 = vadd.f32 %v6895, %v6967
        %6969 = vmatprep.mubr.bf16.mxu0 %v1311
        %6970 = vmatmul.mubr.bf16.gmra.mrb[0].mxu0 %v1310
        %v6971 = vpop.f32.mrb[0].mxu0
        %v6972 = vadd.f32 %v6899, %v6971
        %v6973 = vpop.f32.mrb[0].mxu0
        %v6974 = vadd.f32 %v6901, %v6973
        %v6975 = vpop.f32.mrb[0].mxu0
        %v6976 = vadd.f32 %v6903, %v6975
        %v6977 = vpop.f32.mrb[0].mxu0
        %v6978 = vadd.f32 %v6905, %v6977
        %6979 = vmatprep.mubr.bf16.mxu0 %v1327
        %6980 = vmatmul.mubr.bf16.gmra.mrb[0].mxu0 %v1326
        %v6981 = vpop.f32.mrb[0].mxu0
        %v6982 = vadd.f32 %v6909, %v6981
        %v6983 = vpop.f32.mrb[0].mxu0
        %v6984 = vadd.f32 %v6911, %v6983
        %v6985 = vpop.f32.mrb[0].mxu0
        %v6986 = vadd.f32 %v6913, %v6985
        %v6987 = vpop.f32.mrb[0].mxu0
        %v6988 = vadd.f32 %v6915, %v6987
        %6989 = vmatprep.mubr.bf16.mxu0 %v1343
        %6990 = vmatmul.mubr.bf16.gmra.mrb[0].mxu0 %v1342
        %v6991 = vpop.f32.mrb[0].mxu0
        %v6992 = vadd.f32 %v6919, %v6991
        %v6993 = vpop.f32.mrb[0].mxu0
        %v6994 = vadd.f32 %v6921, %v6993
        %v6995 = vpop.f32.mrb[0].mxu0
        %v6996 = vadd.f32 %v6923, %v6995
        %v6997 = vpop.f32.mrb[0].mxu0
        %v6998 = vadd.f32 %v6925, %v6997
        %6999 = vdwg.mxu0
        %v7000 = vmax.f32 %v5794, 0.0
        %v7001 = vmax.f32 %v5796, 0.0
        %v7002 = vmax.f32 %v6378, 0.0
        %v7003 = vmax.f32 %v6380, 0.0
        %v7004 = vmax.f32 %v6962, 0.0
        %v7005 = vmax.f32 %v6964, 0.0
        %v7006 = vmax.f32 %v5798, 0.0
        %v7007 = vmax.f32 %v5800, 0.0
        %v7008 = vmax.f32 %v6382, 0.0
        %v7009 = vmax.f32 %v6384, 0.0
        %v7010 = vmax.f32 %v6966, 0.0
        %v7011 = vmax.f32 %v6968, 0.0
        %v7012 = vmax.f32 %v5804, 0.0
        %v7013 = vmax.f32 %v5806, 0.0
        %v7014 = vmax.f32 %v6388, 0.0
        %v7015 = vmax.f32 %v6390, 0.0
        %v7016 = vmax.f32 %v6972, 0.0
        %v7017 = vmax.f32 %v6974, 0.0
        %v7018 = vmax.f32 %v5808, 0.0
        %v7019 = vmax.f32 %v5810, 0.0
        %v7020 = vmax.f32 %v6392, 0.0
        %v7021 = vmax.f32 %v6394, 0.0
        %v7022 = vmax.f32 %v6976, 0.0
        %v7023 = vmax.f32 %v6978, 0.0
        %v7024 = vmax.f32 %v5814, 0.0
        %v7025 = vmax.f32 %v5816, 0.0
        %v7026 = vmax.f32 %v6398, 0.0
        %v7027 = vmax.f32 %v6400, 0.0
        %v7028 = vmax.f32 %v6982, 0.0
        %v7029 = vmax.f32 %v6984, 0.0
        %v7030 = vmax.f32 %v5818, 0.0
        %v7031 = vmax.f32 %v5820, 0.0
        %v7032 = vmax.f32 %v6402, 0.0
        %v7033 = vmax.f32 %v6404, 0.0
        %v7034 = vmax.f32 %v6986, 0.0
        %v7035 = vmax.f32 %v6988, 0.0
        %v7036 = vmax.f32 %v5824, 0.0
        %v7037 = vmax.f32 %v5826, 0.0
        %v7038 = vmax.f32 %v6408, 0.0
        %v7039 = vmax.f32 %v6410, 0.0
        %v7040 = vmax.f32 %v6992, 0.0
        %v7041 = vmax.f32 %v6994, 0.0
        %v7042 = vmax.f32 %v5828, 0.0
        %v7043 = vmax.f32 %v5830, 0.0
        %v7044 = vmax.f32 %v6412, 0.0
        %v7045 = vmax.f32 %v6414, 0.0
        %v7046 = vmax.f32 %v6996, 0.0
        %v7047 = vmax.f32 %v6998, 0.0
        %v7048 = vpack.c.bf16 %v7006, %v7000
        %v7049 = vpack.c.bf16 %v7007, %v7001
        %v7050 = vpack.c.bf16 %v7008, %v7002
        %v7051 = vpack.c.bf16 %v7009, %v7003
        %v7052 = vpack.c.bf16 %v7010, %v7004
        %v7053 = vpack.c.bf16 %v7011, %v7005
        %v7054 = vpack.c.bf16 %v7018, %v7012
        %v7055 = vpack.c.bf16 %v7019, %v7013
        %v7056 = vpack.c.bf16 %v7020, %v7014
        %v7057 = vpack.c.bf16 %v7021, %v7015
        %v7058 = vpack.c.bf16 %v7022, %v7016
        %v7059 = vpack.c.bf16 %v7023, %v7017
        %v7060 = vpack.c.bf16 %v7030, %v7024
        %v7061 = vpack.c.bf16 %v7031, %v7025
        %v7062 = vpack.c.bf16 %v7032, %v7026
        %v7063 = vpack.c.bf16 %v7033, %v7027
        %v7064 = vpack.c.bf16 %v7034, %v7028
        %v7065 = vpack.c.bf16 %v7035, %v7029
        %v7066 = vpack.c.bf16 %v7042, %v7036
        %v7067 = vpack.c.bf16 %v7043, %v7037
        %v7068 = vpack.c.bf16 %v7044, %v7038
        %v7069 = vpack.c.bf16 %v7045, %v7039
        %v7070 = vpack.c.bf16 %v7046, %v7040
        %v7071 = vpack.c.bf16 %v7047, %v7041
        %v7072 = vld [vmem:[%s3] sm:$0xf]
        %v7073 = vld [vmem:[%s3 + $0x4] sm:$0xf]
        %v7074 = vld [vmem:[%s3 + $0x8] sm:$0xf]
        %v7075 = vld [vmem:[%s3 + $0xc] sm:$0xf]
        %v7076 = vld [vmem:[%s3 + $0x10] sm:$0xf]
        %v7077 = vld [vmem:[%s3 + $0x14] sm:$0xf]
        %v7078 = vld [vmem:[%s3 + $0x18] sm:$0xf]
        %v7079 = vld [vmem:[%s3 + $0x1c] sm:$0xf]
        %v7080 = vld [vmem:[%s3 + $0x20] sm:$0xf]
        %v7081 = vld [vmem:[%s3 + $0x24] sm:$0xf]
        %v7082 = vld [vmem:[%s3 + $0x28] sm:$0xf]
        %v7083 = vld [vmem:[%s3 + $0x2c] sm:$0xf]
        %v7084 = vld [vmem:[%s3 + $0x30] sm:$0xf]
        %v7085 = vld [vmem:[%s3 + $0x34] sm:$0xf]
        %v7086 = vld [vmem:[%s3 + $0x38] sm:$0xf]
        %v7087 = vld [vmem:[%s3 + $0x3c] sm:$0xf]
        %v7088 = vld [vmem:[%s3 + $0x40] sm:$0xf]
        %v7089 = vld [vmem:[%s3 + $0x44] sm:$0xf]
        %v7090 = vld [vmem:[%s3 + $0x48] sm:$0xf]
        %v7091 = vld [vmem:[%s3 + $0x4c] sm:$0xf]
        %v7092 = vld [vmem:[%s3 + $0x50] sm:$0xf]
        %v7093 = vld [vmem:[%s3 + $0x54] sm:$0xf]
        %v7094 = vld [vmem:[%s3 + $0x58] sm:$0xf]
        %v7095 = vld [vmem:[%s3 + $0x5c] sm:$0xf]
        %v7096 = vld [vmem:[%s3 + $0x60] sm:$0xf]
        %v7097 = vld [vmem:[%s3 + $0x64] sm:$0xf]
        %v7098 = vld [vmem:[%s3 + $0x68] sm:$0xf]
        %v7099 = vld [vmem:[%s3 + $0x6c] sm:$0xf]
        %v7100 = vld [vmem:[%s3 + $0x70] sm:$0xf]
        %v7101 = vld [vmem:[%s3 + $0x74] sm:$0xf]
        %v7102 = vld [vmem:[%s3 + $0x78] sm:$0xf]
        %v7103 = vld [vmem:[%s3 + $0x7c] sm:$0xf]
        %v7104 = vld [vmem:[%s3 + $0x80] sm:$0xf]
        %v7105 = vld [vmem:[%s3 + $0x84] sm:$0xf]
        %v7106 = vld [vmem:[%s3 + $0x88] sm:$0xf]
        %v7107 = vld [vmem:[%s3 + $0x8c] sm:$0xf]
        %v7108 = vld [vmem:[%s3 + $0x90] sm:$0xf]
        %v7109 = vld [vmem:[%s3 + $0x94] sm:$0xf]
        %v7110 = vld [vmem:[%s3 + $0x98] sm:$0xf]
        %v7111 = vld [vmem:[%s3 + $0x9c] sm:$0xf]
        %v7112 = vld [vmem:[%s3 + $0xa0] sm:$0xf]
        %v7113 = vld [vmem:[%s3 + $0xa4] sm:$0xf]
        %v7114 = vld [vmem:[%s3 + $0xa8] sm:$0xf]
        %v7115 = vld [vmem:[%s3 + $0xac] sm:$0xf]
        %v7116 = vld [vmem:[%s3 + $0xb0] sm:$0xf]
        %v7117 = vld [vmem:[%s3 + $0xb4] sm:$0xf]
        %v7118 = vld [vmem:[%s3 + $0xb8] sm:$0xf]
        %v7119 = vld [vmem:[%s3 + $0xbc] sm:$0xf]
        %v7120 = vld [vmem:[%s3 + $0xc0] sm:$0xf]
        %v7121 = vld [vmem:[%s3 + $0xc4] sm:$0xf]
        %v7122 = vld [vmem:[%s3 + $0xc8] sm:$0xf]
        %v7123 = vld [vmem:[%s3 + $0xcc] sm:$0xf]
        %v7124 = vld [vmem:[%s3 + $0xd0] sm:$0xf]
        %v7125 = vld [vmem:[%s3 + $0xd4] sm:$0xf]
        %v7126 = vld [vmem:[%s3 + $0xd8] sm:$0xf]
        %v7127 = vld [vmem:[%s3 + $0xdc] sm:$0xf]
        %v7128 = vld [vmem:[%s3 + $0xe0] sm:$0xf]
        %v7129 = vld [vmem:[%s3 + $0xe4] sm:$0xf]
        %v7130 = vld [vmem:[%s3 + $0xe8] sm:$0xf]
        %v7131 = vld [vmem:[%s3 + $0xec] sm:$0xf]
        %v7132 = vld [vmem:[%s3 + $0xf0] sm:$0xf]
        %v7133 = vld [vmem:[%s3 + $0xf4] sm:$0xf]
        %v7134 = vld [vmem:[%s3 + $0xf8] sm:$0xf]
        %v7135 = vld [vmem:[%s3 + $0xfc] sm:$0xf]
        %v7136 = vld [vmem:[%s4] sm:$0xff]
        %v7137 = vld [vmem:[%s4 + $0x8] sm:$0xff]
        %v7138 = vld [vmem:[%s4 + $0x10] sm:$0xff]
        %v7139 = vld [vmem:[%s4 + $0x18] sm:$0xff]
        %v7140 = vld [vmem:[%s4 + $0x20] sm:$0xff]
        %v7141 = vld [vmem:[%s4 + $0x28] sm:$0xff]
        %v7142 = vld [vmem:[%s4 + $0x30] sm:$0xff]
        %v7143 = vld [vmem:[%s4 + $0x38] sm:$0xff]
        %v7144 = vld [vmem:[%s4 + $0x40] sm:$0xff]
        %v7145 = vld [vmem:[%s4 + $0x48] sm:$0xff]
        %v7146 = vld [vmem:[%s4 + $0x50] sm:$0xff]
        %v7147 = vld [vmem:[%s4 + $0x58] sm:$0xff]
        %v7148 = vld [vmem:[%s4 + $0x60] sm:$0xff]
        %v7149 = vld [vmem:[%s4 + $0x68] sm:$0xff]
        %v7150 = vld [vmem:[%s4 + $0x70] sm:$0xff]
        %v7151 = vld [vmem:[%s4 + $0x78] sm:$0xff]
        %v7152 = vld [vmem:[%s4 + $0x80] sm:$0xff]
        %v7153 = vld [vmem:[%s4 + $0x88] sm:$0xff]
        %v7154 = vld [vmem:[%s4 + $0x90] sm:$0xff]
        %v7155 = vld [vmem:[%s4 + $0x98] sm:$0xff]
        %v7156 = vld [vmem:[%s4 + $0xa0] sm:$0xff]
        %v7157 = vld [vmem:[%s4 + $0xa8] sm:$0xff]
        %v7158 = vld [vmem:[%s4 + $0xb0] sm:$0xff]
        %v7159 = vld [vmem:[%s4 + $0xb8] sm:$0xff]
        %v7160 = vld [vmem:[%s4 + $0xc0] sm:$0xff]
        %v7161 = vld [vmem:[%s4 + $0xc8] sm:$0xff]
        %v7162 = vld [vmem:[%s4 + $0xd0] sm:$0xff]
        %v7163 = vld [vmem:[%s4 + $0xd8] sm:$0xff]
        %v7164 = vld [vmem:[%s4 + $0xe0] sm:$0xff]
        %v7165 = vld [vmem:[%s4 + $0xe8] sm:$0xff]
        %v7166 = vld [vmem:[%s4 + $0xf0] sm:$0xff]
        %v7167 = vld [vmem:[%s4 + $0xf8] sm:$0xff]
        %v7168 = vld [vmem:[%s4 + $0x100] sm:$0xff]
        %v7169 = vld [vmem:[%s4 + $0x108] sm:$0xff]
        %v7170 = vld [vmem:[%s4 + $0x110] sm:$0xff]
        %v7171 = vld [vmem:[%s4 + $0x118] sm:$0xff]
        %v7172 = vld [vmem:[%s4 + $0x120] sm:$0xff]
        %v7173 = vld [vmem:[%s4 + $0x128] sm:$0xff]
        %v7174 = vld [vmem:[%s4 + $0x130] sm:$0xff]
        %v7175 = vld [vmem:[%s4 + $0x138] sm:$0xff]
        %v7176 = vld [vmem:[%s4 + $0x140] sm:$0xff]
        %v7177 = vld [vmem:[%s4 + $0x148] sm:$0xff]
        %v7178 = vld [vmem:[%s4 + $0x150] sm:$0xff]
        %v7179 = vld [vmem:[%s4 + $0x158] sm:$0xff]
        %v7180 = vld [vmem:[%s4 + $0x160] sm:$0xff]
        %v7181 = vld [vmem:[%s4 + $0x168] sm:$0xff]
        %v7182 = vld [vmem:[%s4 + $0x170] sm:$0xff]
        %v7183 = vld [vmem:[%s4 + $0x178] sm:$0xff]
        %v7184 = vld [vmem:[%s4 + $0x180] sm:$0xff]
        %v7185 = vld [vmem:[%s4 + $0x188] sm:$0xff]
        %v7186 = vld [vmem:[%s4 + $0x190] sm:$0xff]
        %v7187 = vld [vmem:[%s4 + $0x198] sm:$0xff]
        %v7188 = vld [vmem:[%s4 + $0x1a0] sm:$0xff]
        %v7189 = vld [vmem:[%s4 + $0x1a8] sm:$0xff]
        %v7190 = vld [vmem:[%s4 + $0x1b0] sm:$0xff]
        %v7191 = vld [vmem:[%s4 + $0x1b8] sm:$0xff]
        %v7192 = vld [vmem:[%s4 + $0x1c0] sm:$0xff]
        %v7193 = vld [vmem:[%s4 + $0x1c8] sm:$0xff]
        %v7194 = vld [vmem:[%s4 + $0x1d0] sm:$0xff]
        %v7195 = vld [vmem:[%s4 + $0x1d8] sm:$0xff]
        %v7196 = vld [vmem:[%s4 + $0x1e0] sm:$0xff]
        %v7197 = vld [vmem:[%s4 + $0x1e8] sm:$0xff]
        %v7198 = vld [vmem:[%s4 + $0x1f0] sm:$0xff]
        %v7199 = vld [vmem:[%s4 + $0x1f8] sm:$0xff]
        %7201 = vset.pattern.permute.xlu0 0
        %7202 = vperm.xlu0 %7201, %v7136
        %v7203 = vpop.permute.xlu0 %7202
        %7206 = vset.pattern.permute.xlu0 0
        %7207 = vperm.xlu0 %7206, %v7137
        %v7208 = vpop.permute.xlu0 %7207
        %7211 = vset.pattern.permute.xlu0 0
        %7212 = vperm.xlu0 %7211, %v7138
        %v7213 = vpop.permute.xlu0 %7212
        %7216 = vset.pattern.permute.xlu0 0
        %7217 = vperm.xlu0 %7216, %v7139
        %v7218 = vpop.permute.xlu0 %7217
        %7221 = vset.pattern.permute.xlu0 0
        %7222 = vperm.xlu0 %7221, %v7140
        %v7223 = vpop.permute.xlu0 %7222
        %7226 = vset.pattern.permute.xlu0 0
        %7227 = vperm.xlu0 %7226, %v7141
        %v7228 = vpop.permute.xlu0 %7227
        %7231 = vset.pattern.permute.xlu0 0
        %7232 = vperm.xlu0 %7231, %v7142
        %v7233 = vpop.permute.xlu0 %7232
        %7236 = vset.pattern.permute.xlu0 0
        %7237 = vperm.xlu0 %7236, %v7143
        %v7238 = vpop.permute.xlu0 %7237
        %7241 = vset.pattern.permute.xlu0 0
        %7242 = vperm.xlu0 %7241, %v7144
        %v7243 = vpop.permute.xlu0 %7242
        %7246 = vset.pattern.permute.xlu0 0
        %7247 = vperm.xlu0 %7246, %v7145
        %v7248 = vpop.permute.xlu0 %7247
        %7251 = vset.pattern.permute.xlu0 0
        %7252 = vperm.xlu0 %7251, %v7146
        %v7253 = vpop.permute.xlu0 %7252
        %7256 = vset.pattern.permute.xlu0 0
        %7257 = vperm.xlu0 %7256, %v7147
        %v7258 = vpop.permute.xlu0 %7257
        %7261 = vset.pattern.permute.xlu0 0
        %7262 = vperm.xlu0 %7261, %v7148
        %v7263 = vpop.permute.xlu0 %7262
        %7266 = vset.pattern.permute.xlu0 0
        %7267 = vperm.xlu0 %7266, %v7149
        %v7268 = vpop.permute.xlu0 %7267
        %7271 = vset.pattern.permute.xlu0 0
        %7272 = vperm.xlu0 %7271, %v7150
        %v7273 = vpop.permute.xlu0 %7272
        %7276 = vset.pattern.permute.xlu0 0
        %7277 = vperm.xlu0 %7276, %v7151
        %v7278 = vpop.permute.xlu0 %7277
        %7281 = vset.pattern.permute.xlu0 0
        %7282 = vperm.xlu0 %7281, %v7152
        %v7283 = vpop.permute.xlu0 %7282
        %7286 = vset.pattern.permute.xlu0 0
        %7287 = vperm.xlu0 %7286, %v7153
        %v7288 = vpop.permute.xlu0 %7287
        %7291 = vset.pattern.permute.xlu0 0
        %7292 = vperm.xlu0 %7291, %v7154
        %v7293 = vpop.permute.xlu0 %7292
        %7296 = vset.pattern.permute.xlu0 0
        %7297 = vperm.xlu0 %7296, %v7155
        %v7298 = vpop.permute.xlu0 %7297
        %7301 = vset.pattern.permute.xlu0 0
        %7302 = vperm.xlu0 %7301, %v7156
        %v7303 = vpop.permute.xlu0 %7302
        %7306 = vset.pattern.permute.xlu0 0
        %7307 = vperm.xlu0 %7306, %v7157
        %v7308 = vpop.permute.xlu0 %7307
        %7311 = vset.pattern.permute.xlu0 0
        %7312 = vperm.xlu0 %7311, %v7158
        %v7313 = vpop.permute.xlu0 %7312
        %7316 = vset.pattern.permute.xlu0 0
        %7317 = vperm.xlu0 %7316, %v7159
        %v7318 = vpop.permute.xlu0 %7317
        %7321 = vset.pattern.permute.xlu0 0
        %7322 = vperm.xlu0 %7321, %v7160
        %v7323 = vpop.permute.xlu0 %7322
        %7326 = vset.pattern.permute.xlu0 0
        %7327 = vperm.xlu0 %7326, %v7161
        %v7328 = vpop.permute.xlu0 %7327
        %7331 = vset.pattern.permute.xlu0 0
        %7332 = vperm.xlu0 %7331, %v7162
        %v7333 = vpop.permute.xlu0 %7332
        %7336 = vset.pattern.permute.xlu0 0
        %7337 = vperm.xlu0 %7336, %v7163
        %v7338 = vpop.permute.xlu0 %7337
        %7341 = vset.pattern.permute.xlu0 0
        %7342 = vperm.xlu0 %7341, %v7164
        %v7343 = vpop.permute.xlu0 %7342
        %7346 = vset.pattern.permute.xlu0 0
        %7347 = vperm.xlu0 %7346, %v7165
        %v7348 = vpop.permute.xlu0 %7347
        %7351 = vset.pattern.permute.xlu0 0
        %7352 = vperm.xlu0 %7351, %v7166
        %v7353 = vpop.permute.xlu0 %7352
        %7356 = vset.pattern.permute.xlu0 0
        %7357 = vperm.xlu0 %7356, %v7167
        %v7358 = vpop.permute.xlu0 %7357
        %7361 = vset.pattern.permute.xlu0 0
        %7362 = vperm.xlu0 %7361, %v7168
        %v7363 = vpop.permute.xlu0 %7362
        %7366 = vset.pattern.permute.xlu0 0
        %7367 = vperm.xlu0 %7366, %v7169
        %v7368 = vpop.permute.xlu0 %7367
        %7371 = vset.pattern.permute.xlu0 0
        %7372 = vperm.xlu0 %7371, %v7170
        %v7373 = vpop.permute.xlu0 %7372
        %7376 = vset.pattern.permute.xlu0 0
        %7377 = vperm.xlu0 %7376, %v7171
        %v7378 = vpop.permute.xlu0 %7377
        %7381 = vset.pattern.permute.xlu0 0
        %7382 = vperm.xlu0 %7381, %v7172
        %v7383 = vpop.permute.xlu0 %7382
        %7386 = vset.pattern.permute.xlu0 0
        %7387 = vperm.xlu0 %7386, %v7173
        %v7388 = vpop.permute.xlu0 %7387
        %7391 = vset.pattern.permute.xlu0 0
        %7392 = vperm.xlu0 %7391, %v7174
        %v7393 = vpop.permute.xlu0 %7392
        %7396 = vset.pattern.permute.xlu0 0
        %7397 = vperm.xlu0 %7396, %v7175
        %v7398 = vpop.permute.xlu0 %7397
        %7401 = vset.pattern.permute.xlu0 0
        %7402 = vperm.xlu0 %7401, %v7176
        %v7403 = vpop.permute.xlu0 %7402
        %7406 = vset.pattern.permute.xlu0 0
        %7407 = vperm.xlu0 %7406, %v7177
        %v7408 = vpop.permute.xlu0 %7407
        %7411 = vset.pattern.permute.xlu0 0
        %7412 = vperm.xlu0 %7411, %v7178
        %v7413 = vpop.permute.xlu0 %7412
        %7416 = vset.pattern.permute.xlu0 0
        %7417 = vperm.xlu0 %7416, %v7179
        %v7418 = vpop.permute.xlu0 %7417
        %7421 = vset.pattern.permute.xlu0 0
        %7422 = vperm.xlu0 %7421, %v7180
        %v7423 = vpop.permute.xlu0 %7422
        %7426 = vset.pattern.permute.xlu0 0
        %7427 = vperm.xlu0 %7426, %v7181
        %v7428 = vpop.permute.xlu0 %7427
        %7431 = vset.pattern.permute.xlu0 0
        %7432 = vperm.xlu0 %7431, %v7182
        %v7433 = vpop.permute.xlu0 %7432
        %7436 = vset.pattern.permute.xlu0 0
        %7437 = vperm.xlu0 %7436, %v7183
        %v7438 = vpop.permute.xlu0 %7437
        %7441 = vset.pattern.permute.xlu0 0
        %7442 = vperm.xlu0 %7441, %v7184
        %v7443 = vpop.permute.xlu0 %7442
        %7446 = vset.pattern.permute.xlu0 0
        %7447 = vperm.xlu0 %7446, %v7185
        %v7448 = vpop.permute.xlu0 %7447
        %7451 = vset.pattern.permute.xlu0 0
        %7452 = vperm.xlu0 %7451, %v7186
        %v7453 = vpop.permute.xlu0 %7452
        %7456 = vset.pattern.permute.xlu0 0
        %7457 = vperm.xlu0 %7456, %v7187
        %v7458 = vpop.permute.xlu0 %7457
        %7461 = vset.pattern.permute.xlu0 0
        %7462 = vperm.xlu0 %7461, %v7188
        %v7463 = vpop.permute.xlu0 %7462
        %7466 = vset.pattern.permute.xlu0 0
        %7467 = vperm.xlu0 %7466, %v7189
        %v7468 = vpop.permute.xlu0 %7467
        %7471 = vset.pattern.permute.xlu0 0
        %7472 = vperm.xlu0 %7471, %v7190
        %v7473 = vpop.permute.xlu0 %7472
        %7476 = vset.pattern.permute.xlu0 0
        %7477 = vperm.xlu0 %7476, %v7191
        %v7478 = vpop.permute.xlu0 %7477
        %7481 = vset.pattern.permute.xlu0 0
        %7482 = vperm.xlu0 %7481, %v7192
        %v7483 = vpop.permute.xlu0 %7482
        %7486 = vset.pattern.permute.xlu0 0
        %7487 = vperm.xlu0 %7486, %v7193
        %v7488 = vpop.permute.xlu0 %7487
        %7491 = vset.pattern.permute.xlu0 0
        %7492 = vperm.xlu0 %7491, %v7194
        %v7493 = vpop.permute.xlu0 %7492
        %7496 = vset.pattern.permute.xlu0 0
        %7497 = vperm.xlu0 %7496, %v7195
        %v7498 = vpop.permute.xlu0 %7497
        %7501 = vset.pattern.permute.xlu0 0
        %7502 = vperm.xlu0 %7501, %v7196
        %v7503 = vpop.permute.xlu0 %7502
        %7506 = vset.pattern.permute.xlu0 0
        %7507 = vperm.xlu0 %7506, %v7197
        %v7508 = vpop.permute.xlu0 %7507
        %7511 = vset.pattern.permute.xlu0 0
        %7512 = vperm.xlu0 %7511, %v7198
        %v7513 = vpop.permute.xlu0 %7512
        %7516 = vset.pattern.permute.xlu0 0
        %7517 = vperm.xlu0 %7516, %v7199
        %v7518 = vpop.permute.xlu0 %7517
        %v7584 = vunpack.c.l.b16 %v7072
        %v7585 = vunpack.c.l.b16 %v7073
        %v7586 = vunpack.c.l.b16 %v7074
        %v7587 = vunpack.c.l.b16 %v7075
        %v7588 = vunpack.c.l.b16 %v7076
        %v7589 = vunpack.c.l.b16 %v7077
        %v7590 = vunpack.c.l.b16 %v7078
        %v7591 = vunpack.c.l.b16 %v7079
        %v7592 = vunpack.c.l.b16 %v7080
        %v7593 = vunpack.c.l.b16 %v7081
        %v7594 = vunpack.c.l.b16 %v7082
        %v7595 = vunpack.c.l.b16 %v7083
        %v7596 = vunpack.c.l.b16 %v7084
        %v7597 = vunpack.c.l.b16 %v7085
        %v7598 = vunpack.c.l.b16 %v7086
        %v7599 = vunpack.c.l.b16 %v7087
        %v7600 = vunpack.c.l.b16 %v7088
        %v7601 = vunpack.c.l.b16 %v7089
        %v7602 = vunpack.c.l.b16 %v7090
        %v7603 = vunpack.c.l.b16 %v7091
        %v7604 = vunpack.c.l.b16 %v7092
        %v7605 = vunpack.c.l.b16 %v7093
        %v7606 = vunpack.c.l.b16 %v7094
        %v7607 = vunpack.c.l.b16 %v7095
        %v7608 = vunpack.c.l.b16 %v7096
        %v7609 = vunpack.c.l.b16 %v7097
        %v7610 = vunpack.c.l.b16 %v7098
        %v7611 = vunpack.c.l.b16 %v7099
        %v7612 = vunpack.c.l.b16 %v7100
        %v7613 = vunpack.c.l.b16 %v7101
        %v7614 = vunpack.c.l.b16 %v7102
        %v7615 = vunpack.c.l.b16 %v7103
        %v7616 = vunpack.c.l.b16 %v7104
        %v7617 = vunpack.c.l.b16 %v7105
        %v7618 = vunpack.c.l.b16 %v7106
        %v7619 = vunpack.c.l.b16 %v7107
        %v7620 = vunpack.c.l.b16 %v7108
        %v7621 = vunpack.c.l.b16 %v7109
        %v7622 = vunpack.c.l.b16 %v7110
        %v7623 = vunpack.c.l.b16 %v7111
        %v7624 = vunpack.c.l.b16 %v7112
        %v7625 = vunpack.c.l.b16 %v7113
        %v7626 = vunpack.c.l.b16 %v7114
        %v7627 = vunpack.c.l.b16 %v7115
        %v7628 = vunpack.c.l.b16 %v7116
        %v7629 = vunpack.c.l.b16 %v7117
        %v7630 = vunpack.c.l.b16 %v7118
        %v7631 = vunpack.c.l.b16 %v7119
        %v7632 = vunpack.c.l.b16 %v7120
        %v7633 = vunpack.c.l.b16 %v7121
        %v7634 = vunpack.c.l.b16 %v7122
        %v7635 = vunpack.c.l.b16 %v7123
        %v7636 = vunpack.c.l.b16 %v7124
        %v7637 = vunpack.c.l.b16 %v7125
        %v7638 = vunpack.c.l.b16 %v7126
        %v7639 = vunpack.c.l.b16 %v7127
        %v7640 = vunpack.c.l.b16 %v7128
        %v7641 = vunpack.c.l.b16 %v7129
        %v7642 = vunpack.c.l.b16 %v7130
        %v7643 = vunpack.c.l.b16 %v7131
        %v7644 = vunpack.c.l.b16 %v7132
        %v7645 = vunpack.c.l.b16 %v7133
        %v7646 = vunpack.c.l.b16 %v7134
        %v7647 = vunpack.c.l.b16 %v7135
        %v7648 = vpack.c.b16 %v7585, %v7584
        %v7649 = vpack.c.b16 %v7587, %v7586
        %v7650 = vpack.c.b16 %v7589, %v7588
        %v7651 = vpack.c.b16 %v7591, %v7590
        %v7652 = vpack.c.b16 %v7593, %v7592
        %v7653 = vpack.c.b16 %v7595, %v7594
        %v7654 = vpack.c.b16 %v7597, %v7596
        %v7655 = vpack.c.b16 %v7599, %v7598
        %v7656 = vpack.c.b16 %v7601, %v7600
        %v7657 = vpack.c.b16 %v7603, %v7602
        %v7658 = vpack.c.b16 %v7605, %v7604
        %v7659 = vpack.c.b16 %v7607, %v7606
        %v7660 = vpack.c.b16 %v7609, %v7608
        %v7661 = vpack.c.b16 %v7611, %v7610
        %v7662 = vpack.c.b16 %v7613, %v7612
        %v7663 = vpack.c.b16 %v7615, %v7614
        %v7664 = vpack.c.b16 %v7617, %v7616
        %v7665 = vpack.c.b16 %v7619, %v7618
        %v7666 = vpack.c.b16 %v7621, %v7620
        %v7667 = vpack.c.b16 %v7623, %v7622
        %v7668 = vpack.c.b16 %v7625, %v7624
        %v7669 = vpack.c.b16 %v7627, %v7626
        %v7670 = vpack.c.b16 %v7629, %v7628
        %v7671 = vpack.c.b16 %v7631, %v7630
        %v7672 = vpack.c.b16 %v7633, %v7632
        %v7673 = vpack.c.b16 %v7635, %v7634
        %v7674 = vpack.c.b16 %v7637, %v7636
        %v7675 = vpack.c.b16 %v7639, %v7638
        %v7676 = vpack.c.b16 %v7641, %v7640
        %v7677 = vpack.c.b16 %v7643, %v7642
        %v7678 = vpack.c.b16 %v7645, %v7644
        %v7679 = vpack.c.b16 %v7647, %v7646
        %vm7680 = vcmask 523264
        %v7682 = vsel %vm7680, %v7648, 0
        %v7685 = vsel %vm7680, %v7649, 0
        %v7688 = vsel %vm7680, %v7650, 0
        %v7691 = vsel %vm7680, %v7651, 0
        %v7694 = vsel %vm7680, %v7652, 0
        %v7697 = vsel %vm7680, %v7653, 0
        %v7700 = vsel %vm7680, %v7654, 0
        %v7703 = vsel %vm7680, %v7655, 0
        %v7706 = vsel %vm7680, %v7656, 0
        %v7709 = vsel %vm7680, %v7657, 0
        %v7712 = vsel %vm7680, %v7658, 0
        %v7715 = vsel %vm7680, %v7659, 0
        %v7718 = vsel %vm7680, %v7660, 0
        %v7721 = vsel %vm7680, %v7661, 0
        %v7724 = vsel %vm7680, %v7662, 0
        %v7727 = vsel %vm7680, %v7663, 0
        %v7730 = vsel %vm7680, %v7664, 0
        %v7733 = vsel %vm7680, %v7665, 0
        %v7736 = vsel %vm7680, %v7666, 0
        %v7739 = vsel %vm7680, %v7667, 0
        %v7742 = vsel %vm7680, %v7668, 0
        %v7745 = vsel %vm7680, %v7669, 0
        %v7748 = vsel %vm7680, %v7670, 0
        %v7751 = vsel %vm7680, %v7671, 0
        %v7754 = vsel %vm7680, %v7672, 0
        %v7757 = vsel %vm7680, %v7673, 0
        %v7760 = vsel %vm7680, %v7674, 0
        %v7763 = vsel %vm7680, %v7675, 0
        %v7766 = vsel %vm7680, %v7676, 0
        %v7769 = vsel %vm7680, %v7677, 0
        %v7772 = vsel %vm7680, %v7678, 0
        %v7775 = vsel %vm7680, %v7679, 0
        %7777 = vmatprep.subr.bf16.mxu0 %v7049
        %7778 = vmatpush1.bf16.msra.mxu0 %v7048
        %7779 = vmatprep.subr.bf16.mxu0 %v7055
        %7780 = vmatpush1.bf16.msra.mxu0 %v7054
        %7781 = vmatprep.subr.bf16.mxu0 %v7061
        %7782 = vmatpush1.bf16.msra.mxu0 %v7060
        %7783 = vmatprep.subr.bf16.mxu0 %v7067
        %7784 = vmatpush1.bf16.msra.mxu0 %v7066
        %7785 = vmatprep.subr.bf16.mxu0 0
        %7786 = vmatpush1.bf16.msra.mxu0 0
        %7787 = vmatprep.subr.bf16.mxu0 0
        %7788 = vmatpush1.bf16.msra.mxu0 0
        %7789 = vmatprep.subr.bf16.mxu0 0
        %7790 = vmatpush1.bf16.msra.mxu0 0
        %7791 = vmatprep.subr.bf16.mxu0 0
        %7792 = vmatpush1.bf16.msra.mxu0 0
        %7793 = vmatprep.subr.bf16.mxu0 0
        %7794 = vmatpush1.bf16.msra.mxu0 0
        %7795 = vmatprep.subr.bf16.mxu0 0
        %7796 = vmatpush1.bf16.msra.mxu0 0
        %7797 = vmatprep.subr.bf16.mxu0 0
        %7798 = vmatpush1.bf16.msra.mxu0 0
        %7799 = vmatprep.subr.bf16.mxu0 0
        %7800 = vmatpush1.bf16.msra.mxu0 0
        %7801 = vmatprep.subr.bf16.mxu0 0
        %7802 = vmatpush1.bf16.msra.mxu0 0
        %7803 = vmatprep.subr.bf16.mxu0 0
        %7804 = vmatpush1.bf16.msra.mxu0 0
        %7805 = vmatprep.subr.bf16.mxu0 0
        %7806 = vmatpush1.bf16.msra.mxu0 0
        %7807 = vmatprep.subr.bf16.mxu0 0
        %7808 = vmatpush1.bf16.msra.mxu0 0
        %7809 = vmatprep.mubr.bf16.mxu0 0
        %7810 = vmatmul.mubr.bf16.gmra.mrb[0].mxu0 %v7682
        %v7811 = vpop.f32.mrb[0].mxu0
        %v7812 = vadd.f32 %v7203, %v7811
        %v7813 = vpop.f32.mrb[0].mxu0
        %v7814 = vadd.f32 %v7203, %v7813
        %v7815 = vpop.f32.mrb[0].mxu0
        %v7816 = vadd.f32 %v7208, %v7815
        %v7817 = vpop.f32.mrb[0].mxu0
        %v7818 = vadd.f32 %v7208, %v7817
        %7819 = vmatprep.mubr.bf16.mxu0 0
        %7820 = vmatmul.mubr.bf16.gmra.mrb[0].mxu0 %v7685
        %v7821 = vpop.f32.mrb[0].mxu0
        %v7822 = vadd.f32 %v7213, %v7821
        %v7823 = vpop.f32.mrb[0].mxu0
        %v7824 = vadd.f32 %v7213, %v7823
        %v7825 = vpop.f32.mrb[0].mxu0
        %v7826 = vadd.f32 %v7218, %v7825
        %v7827 = vpop.f32.mrb[0].mxu0
        %v7828 = vadd.f32 %v7218, %v7827
        %7829 = vmatprep.mubr.bf16.mxu0 0
        %7830 = vmatmul.mubr.bf16.gmra.mrb[0].mxu0 %v7688
        %v7831 = vpop.f32.mrb[0].mxu0
        %v7832 = vadd.f32 %v7223, %v7831
        %v7833 = vpop.f32.mrb[0].mxu0
        %v7834 = vadd.f32 %v7223, %v7833
        %v7835 = vpop.f32.mrb[0].mxu0
        %v7836 = vadd.f32 %v7228, %v7835
        %v7837 = vpop.f32.mrb[0].mxu0
        %v7838 = vadd.f32 %v7228, %v7837
        %7839 = vmatprep.mubr.bf16.mxu0 0
        %7840 = vmatmul.mubr.bf16.gmra.mrb[0].mxu0 %v7691
        %v7841 = vpop.f32.mrb[0].mxu0
        %v7842 = vadd.f32 %v7233, %v7841
        %v7843 = vpop.f32.mrb[0].mxu0
        %v7844 = vadd.f32 %v7233, %v7843
        %v7845 = vpop.f32.mrb[0].mxu0
        %v7846 = vadd.f32 %v7238, %v7845
        %v7847 = vpop.f32.mrb[0].mxu0
        %v7848 = vadd.f32 %v7238, %v7847
        %7849 = vmatprep.mubr.bf16.mxu0 0
        %7850 = vmatmul.mubr.bf16.gmra.mrb[0].mxu0 %v7694
        %v7851 = vpop.f32.mrb[0].mxu0
        %v7852 = vadd.f32 %v7243, %v7851
        %v7853 = vpop.f32.mrb[0].mxu0
        %v7854 = vadd.f32 %v7243, %v7853
        %v7855 = vpop.f32.mrb[0].mxu0
        %v7856 = vadd.f32 %v7248, %v7855
        %v7857 = vpop.f32.mrb[0].mxu0
        %v7858 = vadd.f32 %v7248, %v7857
        %7859 = vmatprep.mubr.bf16.mxu0 0
        %7860 = vmatmul.mubr.bf16.gmra.mrb[0].mxu0 %v7697
        %v7861 = vpop.f32.mrb[0].mxu0
        %v7862 = vadd.f32 %v7253, %v7861
        %v7863 = vpop.f32.mrb[0].mxu0
        %v7864 = vadd.f32 %v7253, %v7863
        %v7865 = vpop.f32.mrb[0].mxu0
        %v7866 = vadd.f32 %v7258, %v7865
        %v7867 = vpop.f32.mrb[0].mxu0
        %v7868 = vadd.f32 %v7258, %v7867
        %7869 = vmatprep.mubr.bf16.mxu0 0
        %7870 = vmatmul.mubr.bf16.gmra.mrb[0].mxu0 %v7700
        %v7871 = vpop.f32.mrb[0].mxu0
        %v7872 = vadd.f32 %v7263, %v7871
        %v7873 = vpop.f32.mrb[0].mxu0
        %v7874 = vadd.f32 %v7263, %v7873
        %v7875 = vpop.f32.mrb[0].mxu0
        %v7876 = vadd.f32 %v7268, %v7875
        %v7877 = vpop.f32.mrb[0].mxu0
        %v7878 = vadd.f32 %v7268, %v7877
        %7879 = vmatprep.mubr.bf16.mxu0 0
        %7880 = vmatmul.mubr.bf16.gmra.mrb[0].mxu0 %v7703
        %v7881 = vpop.f32.mrb[0].mxu0
        %v7882 = vadd.f32 %v7273, %v7881
        %v7883 = vpop.f32.mrb[0].mxu0
        %v7884 = vadd.f32 %v7273, %v7883
        %v7885 = vpop.f32.mrb[0].mxu0
        %v7886 = vadd.f32 %v7278, %v7885
        %v7887 = vpop.f32.mrb[0].mxu0
        %v7888 = vadd.f32 %v7278, %v7887
        %7889 = vmatprep.mubr.bf16.mxu0 0
        %7890 = vmatmul.mubr.bf16.gmra.mrb[0].mxu0 %v7706
        %v7891 = vpop.f32.mrb[0].mxu0
        %v7892 = vadd.f32 %v7283, %v7891
        %v7893 = vpop.f32.mrb[0].mxu0
        %v7894 = vadd.f32 %v7283, %v7893
        %v7895 = vpop.f32.mrb[0].mxu0
        %v7896 = vadd.f32 %v7288, %v7895
        %v7897 = vpop.f32.mrb[0].mxu0
        %v7898 = vadd.f32 %v7288, %v7897
        %7899 = vmatprep.mubr.bf16.mxu0 0
        %7900 = vmatmul.mubr.bf16.gmra.mrb[0].mxu0 %v7709
        %v7901 = vpop.f32.mrb[0].mxu0
        %v7902 = vadd.f32 %v7293, %v7901
        %v7903 = vpop.f32.mrb[0].mxu0
        %v7904 = vadd.f32 %v7293, %v7903
        %v7905 = vpop.f32.mrb[0].mxu0
        %v7906 = vadd.f32 %v7298, %v7905
        %v7907 = vpop.f32.mrb[0].mxu0
        %v7908 = vadd.f32 %v7298, %v7907
        %7909 = vmatprep.mubr.bf16.mxu0 0
        %7910 = vmatmul.mubr.bf16.gmra.mrb[0].mxu0 %v7712
        %v7911 = vpop.f32.mrb[0].mxu0
        %v7912 = vadd.f32 %v7303, %v7911
        %v7913 = vpop.f32.mrb[0].mxu0
        %v7914 = vadd.f32 %v7303, %v7913
        %v7915 = vpop.f32.mrb[0].mxu0
        %v7916 = vadd.f32 %v7308, %v7915
        %v7917 = vpop.f32.mrb[0].mxu0
        %v7918 = vadd.f32 %v7308, %v7917
        %7919 = vmatprep.mubr.bf16.mxu0 0
        %7920 = vmatmul.mubr.bf16.gmra.mrb[0].mxu0 %v7715
        %v7921 = vpop.f32.mrb[0].mxu0
        %v7922 = vadd.f32 %v7313, %v7921
        %v7923 = vpop.f32.mrb[0].mxu0
        %v7924 = vadd.f32 %v7313, %v7923
        %v7925 = vpop.f32.mrb[0].mxu0
        %v7926 = vadd.f32 %v7318, %v7925
        %v7927 = vpop.f32.mrb[0].mxu0
        %v7928 = vadd.f32 %v7318, %v7927
        %7929 = vmatprep.mubr.bf16.mxu0 0
        %7930 = vmatmul.mubr.bf16.gmra.mrb[0].mxu0 %v7718
        %v7931 = vpop.f32.mrb[0].mxu0
        %v7932 = vadd.f32 %v7323, %v7931
        %v7933 = vpop.f32.mrb[0].mxu0
        %v7934 = vadd.f32 %v7323, %v7933
        %v7935 = vpop.f32.mrb[0].mxu0
        %v7936 = vadd.f32 %v7328, %v7935
        %v7937 = vpop.f32.mrb[0].mxu0
        %v7938 = vadd.f32 %v7328, %v7937
        %7939 = vmatprep.mubr.bf16.mxu0 0
        %7940 = vmatmul.mubr.bf16.gmra.mrb[0].mxu0 %v7721
        %v7941 = vpop.f32.mrb[0].mxu0
        %v7942 = vadd.f32 %v7333, %v7941
        %v7943 = vpop.f32.mrb[0].mxu0
        %v7944 = vadd.f32 %v7333, %v7943
        %v7945 = vpop.f32.mrb[0].mxu0
        %v7946 = vadd.f32 %v7338, %v7945
        %v7947 = vpop.f32.mrb[0].mxu0
        %v7948 = vadd.f32 %v7338, %v7947
        %7949 = vmatprep.mubr.bf16.mxu0 0
        %7950 = vmatmul.mubr.bf16.gmra.mrb[0].mxu0 %v7724
        %v7951 = vpop.f32.mrb[0].mxu0
        %v7952 = vadd.f32 %v7343, %v7951
        %v7953 = vpop.f32.mrb[0].mxu0
        %v7954 = vadd.f32 %v7343, %v7953
        %v7955 = vpop.f32.mrb[0].mxu0
        %v7956 = vadd.f32 %v7348, %v7955
        %v7957 = vpop.f32.mrb[0].mxu0
        %v7958 = vadd.f32 %v7348, %v7957
        %7959 = vmatprep.mubr.bf16.mxu0 0
        %7960 = vmatmul.mubr.bf16.gmra.mrb[0].mxu0 %v7727
        %v7961 = vpop.f32.mrb[0].mxu0
        %v7962 = vadd.f32 %v7353, %v7961
        %v7963 = vpop.f32.mrb[0].mxu0
        %v7964 = vadd.f32 %v7353, %v7963
        %v7965 = vpop.f32.mrb[0].mxu0
        %v7966 = vadd.f32 %v7358, %v7965
        %v7967 = vpop.f32.mrb[0].mxu0
        %v7968 = vadd.f32 %v7358, %v7967
        %7969 = vmatprep.mubr.bf16.mxu0 0
        %7970 = vmatmul.mubr.bf16.gmra.mrb[0].mxu0 %v7730
        %v7971 = vpop.f32.mrb[0].mxu0
        %v7972 = vadd.f32 %v7363, %v7971
        %v7973 = vpop.f32.mrb[0].mxu0
        %v7974 = vadd.f32 %v7363, %v7973
        %v7975 = vpop.f32.mrb[0].mxu0
        %v7976 = vadd.f32 %v7368, %v7975
        %v7977 = vpop.f32.mrb[0].mxu0
        %v7978 = vadd.f32 %v7368, %v7977
        %7979 = vmatprep.mubr.bf16.mxu0 0
        %7980 = vmatmul.mubr.bf16.gmra.mrb[0].mxu0 %v7733
        %v7981 = vpop.f32.mrb[0].mxu0
        %v7982 = vadd.f32 %v7373, %v7981
        %v7983 = vpop.f32.mrb[0].mxu0
        %v7984 = vadd.f32 %v7373, %v7983
        %v7985 = vpop.f32.mrb[0].mxu0
        %v7986 = vadd.f32 %v7378, %v7985
        %v7987 = vpop.f32.mrb[0].mxu0
        %v7988 = vadd.f32 %v7378, %v7987
        %7989 = vmatprep.mubr.bf16.mxu0 0
        %7990 = vmatmul.mubr.bf16.gmra.mrb[0].mxu0 %v7736
        %v7991 = vpop.f32.mrb[0].mxu0
        %v7992 = vadd.f32 %v7383, %v7991
        %v7993 = vpop.f32.mrb[0].mxu0
        %v7994 = vadd.f32 %v7383, %v7993
        %v7995 = vpop.f32.mrb[0].mxu0
        %v7996 = vadd.f32 %v7388, %v7995
        %v7997 = vpop.f32.mrb[0].mxu0
        %v7998 = vadd.f32 %v7388, %v7997
        %7999 = vmatprep.mubr.bf16.mxu0 0
        %8000 = vmatmul.mubr.bf16.gmra.mrb[0].mxu0 %v7739
        %v8001 = vpop.f32.mrb[0].mxu0
        %v8002 = vadd.f32 %v7393, %v8001
        %v8003 = vpop.f32.mrb[0].mxu0
        %v8004 = vadd.f32 %v7393, %v8003
        %v8005 = vpop.f32.mrb[0].mxu0
        %v8006 = vadd.f32 %v7398, %v8005
        %v8007 = vpop.f32.mrb[0].mxu0
        %v8008 = vadd.f32 %v7398, %v8007
        %8009 = vmatprep.mubr.bf16.mxu0 0
        %8010 = vmatmul.mubr.bf16.gmra.mrb[0].mxu0 %v7742
        %v8011 = vpop.f32.mrb[0].mxu0
        %v8012 = vadd.f32 %v7403, %v8011
        %v8013 = vpop.f32.mrb[0].mxu0
        %v8014 = vadd.f32 %v7403, %v8013
        %v8015 = vpop.f32.mrb[0].mxu0
        %v8016 = vadd.f32 %v7408, %v8015
        %v8017 = vpop.f32.mrb[0].mxu0
        %v8018 = vadd.f32 %v7408, %v8017
        %8019 = vmatprep.mubr.bf16.mxu0 0
        %8020 = vmatmul.mubr.bf16.gmra.mrb[0].mxu0 %v7745
        %v8021 = vpop.f32.mrb[0].mxu0
        %v8022 = vadd.f32 %v7413, %v8021
        %v8023 = vpop.f32.mrb[0].mxu0
        %v8024 = vadd.f32 %v7413, %v8023
        %v8025 = vpop.f32.mrb[0].mxu0
        %v8026 = vadd.f32 %v7418, %v8025
        %v8027 = vpop.f32.mrb[0].mxu0
        %v8028 = vadd.f32 %v7418, %v8027
        %8029 = vmatprep.mubr.bf16.mxu0 0
        %8030 = vmatmul.mubr.bf16.gmra.mrb[0].mxu0 %v7748
        %v8031 = vpop.f32.mrb[0].mxu0
        %v8032 = vadd.f32 %v7423, %v8031
        %v8033 = vpop.f32.mrb[0].mxu0
        %v8034 = vadd.f32 %v7423, %v8033
        %v8035 = vpop.f32.mrb[0].mxu0
        %v8036 = vadd.f32 %v7428, %v8035
        %v8037 = vpop.f32.mrb[0].mxu0
        %v8038 = vadd.f32 %v7428, %v8037
        %8039 = vmatprep.mubr.bf16.mxu0 0
        %8040 = vmatmul.mubr.bf16.gmra.mrb[0].mxu0 %v7751
        %v8041 = vpop.f32.mrb[0].mxu0
        %v8042 = vadd.f32 %v7433, %v8041
        %v8043 = vpop.f32.mrb[0].mxu0
        %v8044 = vadd.f32 %v7433, %v8043
        %v8045 = vpop.f32.mrb[0].mxu0
        %v8046 = vadd.f32 %v7438, %v8045
        %v8047 = vpop.f32.mrb[0].mxu0
        %v8048 = vadd.f32 %v7438, %v8047
        %8049 = vmatprep.mubr.bf16.mxu0 0
        %8050 = vmatmul.mubr.bf16.gmra.mrb[0].mxu0 %v7754
        %v8051 = vpop.f32.mrb[0].mxu0
        %v8052 = vadd.f32 %v7443, %v8051
        %v8053 = vpop.f32.mrb[0].mxu0
        %v8054 = vadd.f32 %v7443, %v8053
        %v8055 = vpop.f32.mrb[0].mxu0
        %v8056 = vadd.f32 %v7448, %v8055
        %v8057 = vpop.f32.mrb[0].mxu0
        %v8058 = vadd.f32 %v7448, %v8057
        %8059 = vmatprep.mubr.bf16.mxu0 0
        %8060 = vmatmul.mubr.bf16.gmra.mrb[0].mxu0 %v7757
        %v8061 = vpop.f32.mrb[0].mxu0
        %v8062 = vadd.f32 %v7453, %v8061
        %v8063 = vpop.f32.mrb[0].mxu0
        %v8064 = vadd.f32 %v7453, %v8063
        %v8065 = vpop.f32.mrb[0].mxu0
        %v8066 = vadd.f32 %v7458, %v8065
        %v8067 = vpop.f32.mrb[0].mxu0
        %v8068 = vadd.f32 %v7458, %v8067
        %8069 = vmatprep.mubr.bf16.mxu0 0
        %8070 = vmatmul.mubr.bf16.gmra.mrb[0].mxu0 %v7760
        %v8071 = vpop.f32.mrb[0].mxu0
        %v8072 = vadd.f32 %v7463, %v8071
        %v8073 = vpop.f32.mrb[0].mxu0
        %v8074 = vadd.f32 %v7463, %v8073
        %v8075 = vpop.f32.mrb[0].mxu0
        %v8076 = vadd.f32 %v7468, %v8075
        %v8077 = vpop.f32.mrb[0].mxu0
        %v8078 = vadd.f32 %v7468, %v8077
        %8079 = vmatprep.mubr.bf16.mxu0 0
        %8080 = vmatmul.mubr.bf16.gmra.mrb[0].mxu0 %v7763
        %v8081 = vpop.f32.mrb[0].mxu0
        %v8082 = vadd.f32 %v7473, %v8081
        %v8083 = vpop.f32.mrb[0].mxu0
        %v8084 = vadd.f32 %v7473, %v8083
        %v8085 = vpop.f32.mrb[0].mxu0
        %v8086 = vadd.f32 %v7478, %v8085
        %v8087 = vpop.f32.mrb[0].mxu0
        %v8088 = vadd.f32 %v7478, %v8087
        %8089 = vmatprep.mubr.bf16.mxu0 0
        %8090 = vmatmul.mubr.bf16.gmra.mrb[0].mxu0 %v7766
        %v8091 = vpop.f32.mrb[0].mxu0
        %v8092 = vadd.f32 %v7483, %v8091
        %v8093 = vpop.f32.mrb[0].mxu0
        %v8094 = vadd.f32 %v7483, %v8093
        %v8095 = vpop.f32.mrb[0].mxu0
        %v8096 = vadd.f32 %v7488, %v8095
        %v8097 = vpop.f32.mrb[0].mxu0
        %v8098 = vadd.f32 %v7488, %v8097
        %8099 = vmatprep.mubr.bf16.mxu0 0
        %8100 = vmatmul.mubr.bf16.gmra.mrb[0].mxu0 %v7769
        %v8101 = vpop.f32.mrb[0].mxu0
        %v8102 = vadd.f32 %v7493, %v8101
        %v8103 = vpop.f32.mrb[0].mxu0
        %v8104 = vadd.f32 %v7493, %v8103
        %v8105 = vpop.f32.mrb[0].mxu0
        %v8106 = vadd.f32 %v7498, %v8105
        %v8107 = vpop.f32.mrb[0].mxu0
        %v8108 = vadd.f32 %v7498, %v8107
        %8109 = vmatprep.mubr.bf16.mxu0 0
        %8110 = vmatmul.mubr.bf16.gmra.mrb[0].mxu0 %v7772
        %v8111 = vpop.f32.mrb[0].mxu0
        %v8112 = vadd.f32 %v7503, %v8111
        %v8113 = vpop.f32.mrb[0].mxu0
        %v8114 = vadd.f32 %v7503, %v8113
        %v8115 = vpop.f32.mrb[0].mxu0
        %v8116 = vadd.f32 %v7508, %v8115
        %v8117 = vpop.f32.mrb[0].mxu0
        %v8118 = vadd.f32 %v7508, %v8117
        %8119 = vmatprep.mubr.bf16.mxu0 0
        %8120 = vmatmul.mubr.bf16.gmra.mrb[0].mxu0 %v7775
        %v8121 = vpop.f32.mrb[0].mxu0
        %v8122 = vadd.f32 %v7513, %v8121
        %v8123 = vpop.f32.mrb[0].mxu0
        %v8124 = vadd.f32 %v7513, %v8123
        %v8125 = vpop.f32.mrb[0].mxu0
        %v8126 = vadd.f32 %v7518, %v8125
        %v8127 = vpop.f32.mrb[0].mxu0
        %v8128 = vadd.f32 %v7518, %v8127
        %8129 = vdwg.mxu0
        %8130 = vmatprep.subr.bf16.mxu0 %v7051
        %8131 = vmatpush1.bf16.msra.mxu0 %v7050
        %8132 = vmatprep.subr.bf16.mxu0 %v7057
        %8133 = vmatpush1.bf16.msra.mxu0 %v7056
        %8134 = vmatprep.subr.bf16.mxu0 %v7063
        %8135 = vmatpush1.bf16.msra.mxu0 %v7062
        %8136 = vmatprep.subr.bf16.mxu0 %v7069
        %8137 = vmatpush1.bf16.msra.mxu0 %v7068
        %8138 = vmatprep.subr.bf16.mxu0 0
        %8139 = vmatpush1.bf16.msra.mxu0 0
        %8140 = vmatprep.subr.bf16.mxu0 0
        %8141 = vmatpush1.bf16.msra.mxu0 0
        %8142 = vmatprep.subr.bf16.mxu0 0
        %8143 = vmatpush1.bf16.msra.mxu0 0
        %8144 = vmatprep.subr.bf16.mxu0 0
        %8145 = vmatpush1.bf16.msra.mxu0 0
        %8146 = vmatprep.subr.bf16.mxu0 0
        %8147 = vmatpush1.bf16.msra.mxu0 0
        %8148 = vmatprep.subr.bf16.mxu0 0
        %8149 = vmatpush1.bf16.msra.mxu0 0
        %8150 = vmatprep.subr.bf16.mxu0 0
        %8151 = vmatpush1.bf16.msra.mxu0 0
        %8152 = vmatprep.subr.bf16.mxu0 0
        %8153 = vmatpush1.bf16.msra.mxu0 0
        %8154 = vmatprep.subr.bf16.mxu0 0
        %8155 = vmatpush1.bf16.msra.mxu0 0
        %8156 = vmatprep.subr.bf16.mxu0 0
        %8157 = vmatpush1.bf16.msra.mxu0 0
        %8158 = vmatprep.subr.bf16.mxu0 0
        %8159 = vmatpush1.bf16.msra.mxu0 0
        %8160 = vmatprep.subr.bf16.mxu0 0
        %8161 = vmatpush1.bf16.msra.mxu0 0
        %8162 = vmatprep.mubr.bf16.mxu0 0
        %8163 = vmatmul.mubr.bf16.gmra.mrb[0].mxu0 %v7682
        %v8164 = vpop.f32.mrb[0].mxu0
        %v8165 = vadd.f32 %v7203, %v8164
        %v8166 = vpop.f32.mrb[0].mxu0
        %v8167 = vadd.f32 %v7203, %v8166
        %v8168 = vpop.f32.mrb[0].mxu0
        %v8169 = vadd.f32 %v7208, %v8168
        %v8170 = vpop.f32.mrb[0].mxu0
        %v8171 = vadd.f32 %v7208, %v8170
        %8172 = vmatprep.mubr.bf16.mxu0 0
        %8173 = vmatmul.mubr.bf16.gmra.mrb[0].mxu0 %v7685
        %v8174 = vpop.f32.mrb[0].mxu0
        %v8175 = vadd.f32 %v7213, %v8174
        %v8176 = vpop.f32.mrb[0].mxu0
        %v8177 = vadd.f32 %v7213, %v8176
        %v8178 = vpop.f32.mrb[0].mxu0
        %v8179 = vadd.f32 %v7218, %v8178
        %v8180 = vpop.f32.mrb[0].mxu0
        %v8181 = vadd.f32 %v7218, %v8180
        %8182 = vmatprep.mubr.bf16.mxu0 0
        %8183 = vmatmul.mubr.bf16.gmra.mrb[0].mxu0 %v7688
        %v8184 = vpop.f32.mrb[0].mxu0
        %v8185 = vadd.f32 %v7223, %v8184
        %v8186 = vpop.f32.mrb[0].mxu0
        %v8187 = vadd.f32 %v7223, %v8186
        %v8188 = vpop.f32.mrb[0].mxu0
        %v8189 = vadd.f32 %v7228, %v8188
        %v8190 = vpop.f32.mrb[0].mxu0
        %v8191 = vadd.f32 %v7228, %v8190
        %8192 = vmatprep.mubr.bf16.mxu0 0
        %8193 = vmatmul.mubr.bf16.gmra.mrb[0].mxu0 %v7691
        %v8194 = vpop.f32.mrb[0].mxu0
        %v8195 = vadd.f32 %v7233, %v8194
        %v8196 = vpop.f32.mrb[0].mxu0
        %v8197 = vadd.f32 %v7233, %v8196
        %v8198 = vpop.f32.mrb[0].mxu0
        %v8199 = vadd.f32 %v7238, %v8198
        %v8200 = vpop.f32.mrb[0].mxu0
        %v8201 = vadd.f32 %v7238, %v8200
        %8202 = vmatprep.mubr.bf16.mxu0 0
        %8203 = vmatmul.mubr.bf16.gmra.mrb[0].mxu0 %v7694
        %v8204 = vpop.f32.mrb[0].mxu0
        %v8205 = vadd.f32 %v7243, %v8204
        %v8206 = vpop.f32.mrb[0].mxu0
        %v8207 = vadd.f32 %v7243, %v8206
        %v8208 = vpop.f32.mrb[0].mxu0
        %v8209 = vadd.f32 %v7248, %v8208
        %v8210 = vpop.f32.mrb[0].mxu0
        %v8211 = vadd.f32 %v7248, %v8210
        %8212 = vmatprep.mubr.bf16.mxu0 0
        %8213 = vmatmul.mubr.bf16.gmra.mrb[0].mxu0 %v7697
        %v8214 = vpop.f32.mrb[0].mxu0
        %v8215 = vadd.f32 %v7253, %v8214
        %v8216 = vpop.f32.mrb[0].mxu0
        %v8217 = vadd.f32 %v7253, %v8216
        %v8218 = vpop.f32.mrb[0].mxu0
        %v8219 = vadd.f32 %v7258, %v8218
        %v8220 = vpop.f32.mrb[0].mxu0
        %v8221 = vadd.f32 %v7258, %v8220
        %8222 = vmatprep.mubr.bf16.mxu0 0
        %8223 = vmatmul.mubr.bf16.gmra.mrb[0].mxu0 %v7700
        %v8224 = vpop.f32.mrb[0].mxu0
        %v8225 = vadd.f32 %v7263, %v8224
        %v8226 = vpop.f32.mrb[0].mxu0
        %v8227 = vadd.f32 %v7263, %v8226
        %v8228 = vpop.f32.mrb[0].mxu0
        %v8229 = vadd.f32 %v7268, %v8228
        %v8230 = vpop.f32.mrb[0].mxu0
        %v8231 = vadd.f32 %v7268, %v8230
        %8232 = vmatprep.mubr.bf16.mxu0 0
        %8233 = vmatmul.mubr.bf16.gmra.mrb[0].mxu0 %v7703
        %v8234 = vpop.f32.mrb[0].mxu0
        %v8235 = vadd.f32 %v7273, %v8234
        %v8236 = vpop.f32.mrb[0].mxu0
        %v8237 = vadd.f32 %v7273, %v8236
        %v8238 = vpop.f32.mrb[0].mxu0
        %v8239 = vadd.f32 %v7278, %v8238
        %v8240 = vpop.f32.mrb[0].mxu0
        %v8241 = vadd.f32 %v7278, %v8240
        %8242 = vmatprep.mubr.bf16.mxu0 0
        %8243 = vmatmul.mubr.bf16.gmra.mrb[0].mxu0 %v7706
        %v8244 = vpop.f32.mrb[0].mxu0
        %v8245 = vadd.f32 %v7283, %v8244
        %v8246 = vpop.f32.mrb[0].mxu0
        %v8247 = vadd.f32 %v7283, %v8246
        %v8248 = vpop.f32.mrb[0].mxu0
        %v8249 = vadd.f32 %v7288, %v8248
        %v8250 = vpop.f32.mrb[0].mxu0
        %v8251 = vadd.f32 %v7288, %v8250
        %8252 = vmatprep.mubr.bf16.mxu0 0
        %8253 = vmatmul.mubr.bf16.gmra.mrb[0].mxu0 %v7709
        %v8254 = vpop.f32.mrb[0].mxu0
        %v8255 = vadd.f32 %v7293, %v8254
        %v8256 = vpop.f32.mrb[0].mxu0
        %v8257 = vadd.f32 %v7293, %v8256
        %v8258 = vpop.f32.mrb[0].mxu0
        %v8259 = vadd.f32 %v7298, %v8258
        %v8260 = vpop.f32.mrb[0].mxu0
        %v8261 = vadd.f32 %v7298, %v8260
        %8262 = vmatprep.mubr.bf16.mxu0 0
        %8263 = vmatmul.mubr.bf16.gmra.mrb[0].mxu0 %v7712
        %v8264 = vpop.f32.mrb[0].mxu0
        %v8265 = vadd.f32 %v7303, %v8264
        %v8266 = vpop.f32.mrb[0].mxu0
        %v8267 = vadd.f32 %v7303, %v8266
        %v8268 = vpop.f32.mrb[0].mxu0
        %v8269 = vadd.f32 %v7308, %v8268
        %v8270 = vpop.f32.mrb[0].mxu0
        %v8271 = vadd.f32 %v7308, %v8270
        %8272 = vmatprep.mubr.bf16.mxu0 0
        %8273 = vmatmul.mubr.bf16.gmra.mrb[0].mxu0 %v7715
        %v8274 = vpop.f32.mrb[0].mxu0
        %v8275 = vadd.f32 %v7313, %v8274
        %v8276 = vpop.f32.mrb[0].mxu0
        %v8277 = vadd.f32 %v7313, %v8276
        %v8278 = vpop.f32.mrb[0].mxu0
        %v8279 = vadd.f32 %v7318, %v8278
        %v8280 = vpop.f32.mrb[0].mxu0
        %v8281 = vadd.f32 %v7318, %v8280
        %8282 = vmatprep.mubr.bf16.mxu0 0
        %8283 = vmatmul.mubr.bf16.gmra.mrb[0].mxu0 %v7718
        %v8284 = vpop.f32.mrb[0].mxu0
        %v8285 = vadd.f32 %v7323, %v8284
        %v8286 = vpop.f32.mrb[0].mxu0
        %v8287 = vadd.f32 %v7323, %v8286
        %v8288 = vpop.f32.mrb[0].mxu0
        %v8289 = vadd.f32 %v7328, %v8288
        %v8290 = vpop.f32.mrb[0].mxu0
        %v8291 = vadd.f32 %v7328, %v8290
        %8292 = vmatprep.mubr.bf16.mxu0 0
        %8293 = vmatmul.mubr.bf16.gmra.mrb[0].mxu0 %v7721
        %v8294 = vpop.f32.mrb[0].mxu0
        %v8295 = vadd.f32 %v7333, %v8294
        %v8296 = vpop.f32.mrb[0].mxu0
        %v8297 = vadd.f32 %v7333, %v8296
        %v8298 = vpop.f32.mrb[0].mxu0
        %v8299 = vadd.f32 %v7338, %v8298
        %v8300 = vpop.f32.mrb[0].mxu0
        %v8301 = vadd.f32 %v7338, %v8300
        %8302 = vmatprep.mubr.bf16.mxu0 0
        %8303 = vmatmul.mubr.bf16.gmra.mrb[0].mxu0 %v7724
        %v8304 = vpop.f32.mrb[0].mxu0
        %v8305 = vadd.f32 %v7343, %v8304
        %v8306 = vpop.f32.mrb[0].mxu0
        %v8307 = vadd.f32 %v7343, %v8306
        %v8308 = vpop.f32.mrb[0].mxu0
        %v8309 = vadd.f32 %v7348, %v8308
        %v8310 = vpop.f32.mrb[0].mxu0
        %v8311 = vadd.f32 %v7348, %v8310
        %8312 = vmatprep.mubr.bf16.mxu0 0
        %8313 = vmatmul.mubr.bf16.gmra.mrb[0].mxu0 %v7727
        %v8314 = vpop.f32.mrb[0].mxu0
        %v8315 = vadd.f32 %v7353, %v8314
        %v8316 = vpop.f32.mrb[0].mxu0
        %v8317 = vadd.f32 %v7353, %v8316
        %v8318 = vpop.f32.mrb[0].mxu0
        %v8319 = vadd.f32 %v7358, %v8318
        %v8320 = vpop.f32.mrb[0].mxu0
        %v8321 = vadd.f32 %v7358, %v8320
        %8322 = vmatprep.mubr.bf16.mxu0 0
        %8323 = vmatmul.mubr.bf16.gmra.mrb[0].mxu0 %v7730
        %v8324 = vpop.f32.mrb[0].mxu0
        %v8325 = vadd.f32 %v7363, %v8324
        %v8326 = vpop.f32.mrb[0].mxu0
        %v8327 = vadd.f32 %v7363, %v8326
        %v8328 = vpop.f32.mrb[0].mxu0
        %v8329 = vadd.f32 %v7368, %v8328
        %v8330 = vpop.f32.mrb[0].mxu0
        %v8331 = vadd.f32 %v7368, %v8330
        %8332 = vmatprep.mubr.bf16.mxu0 0
        %8333 = vmatmul.mubr.bf16.gmra.mrb[0].mxu0 %v7733
        %v8334 = vpop.f32.mrb[0].mxu0
        %v8335 = vadd.f32 %v7373, %v8334
        %v8336 = vpop.f32.mrb[0].mxu0
        %v8337 = vadd.f32 %v7373, %v8336
        %v8338 = vpop.f32.mrb[0].mxu0
        %v8339 = vadd.f32 %v7378, %v8338
        %v8340 = vpop.f32.mrb[0].mxu0
        %v8341 = vadd.f32 %v7378, %v8340
        %8342 = vmatprep.mubr.bf16.mxu0 0
        %8343 = vmatmul.mubr.bf16.gmra.mrb[0].mxu0 %v7736
        %v8344 = vpop.f32.mrb[0].mxu0
        %v8345 = vadd.f32 %v7383, %v8344
        %v8346 = vpop.f32.mrb[0].mxu0
        %v8347 = vadd.f32 %v7383, %v8346
        %v8348 = vpop.f32.mrb[0].mxu0
        %v8349 = vadd.f32 %v7388, %v8348
        %v8350 = vpop.f32.mrb[0].mxu0
        %v8351 = vadd.f32 %v7388, %v8350
        %8352 = vmatprep.mubr.bf16.mxu0 0
        %8353 = vmatmul.mubr.bf16.gmra.mrb[0].mxu0 %v7739
        %v8354 = vpop.f32.mrb[0].mxu0
        %v8355 = vadd.f32 %v7393, %v8354
        %v8356 = vpop.f32.mrb[0].mxu0
        %v8357 = vadd.f32 %v7393, %v8356
        %v8358 = vpop.f32.mrb[0].mxu0
        %v8359 = vadd.f32 %v7398, %v8358
        %v8360 = vpop.f32.mrb[0].mxu0
        %v8361 = vadd.f32 %v7398, %v8360
        %8362 = vmatprep.mubr.bf16.mxu0 0
        %8363 = vmatmul.mubr.bf16.gmra.mrb[0].mxu0 %v7742
        %v8364 = vpop.f32.mrb[0].mxu0
        %v8365 = vadd.f32 %v7403, %v8364
        %v8366 = vpop.f32.mrb[0].mxu0
        %v8367 = vadd.f32 %v7403, %v8366
        %v8368 = vpop.f32.mrb[0].mxu0
        %v8369 = vadd.f32 %v7408, %v8368
        %v8370 = vpop.f32.mrb[0].mxu0
        %v8371 = vadd.f32 %v7408, %v8370
        %8372 = vmatprep.mubr.bf16.mxu0 0
        %8373 = vmatmul.mubr.bf16.gmra.mrb[0].mxu0 %v7745
        %v8374 = vpop.f32.mrb[0].mxu0
        %v8375 = vadd.f32 %v7413, %v8374
        %v8376 = vpop.f32.mrb[0].mxu0
        %v8377 = vadd.f32 %v7413, %v8376
        %v8378 = vpop.f32.mrb[0].mxu0
        %v8379 = vadd.f32 %v7418, %v8378
        %v8380 = vpop.f32.mrb[0].mxu0
        %v8381 = vadd.f32 %v7418, %v8380
        %8382 = vmatprep.mubr.bf16.mxu0 0
        %8383 = vmatmul.mubr.bf16.gmra.mrb[0].mxu0 %v7748
        %v8384 = vpop.f32.mrb[0].mxu0
        %v8385 = vadd.f32 %v7423, %v8384
        %v8386 = vpop.f32.mrb[0].mxu0
        %v8387 = vadd.f32 %v7423, %v8386
        %v8388 = vpop.f32.mrb[0].mxu0
        %v8389 = vadd.f32 %v7428, %v8388
        %v8390 = vpop.f32.mrb[0].mxu0
        %v8391 = vadd.f32 %v7428, %v8390
        %8392 = vmatprep.mubr.bf16.mxu0 0
        %8393 = vmatmul.mubr.bf16.gmra.mrb[0].mxu0 %v7751
        %v8394 = vpop.f32.mrb[0].mxu0
        %v8395 = vadd.f32 %v7433, %v8394
        %v8396 = vpop.f32.mrb[0].mxu0
        %v8397 = vadd.f32 %v7433, %v8396
        %v8398 = vpop.f32.mrb[0].mxu0
        %v8399 = vadd.f32 %v7438, %v8398
        %v8400 = vpop.f32.mrb[0].mxu0
        %v8401 = vadd.f32 %v7438, %v8400
        %8402 = vmatprep.mubr.bf16.mxu0 0
        %8403 = vmatmul.mubr.bf16.gmra.mrb[0].mxu0 %v7754
        %v8404 = vpop.f32.mrb[0].mxu0
        %v8405 = vadd.f32 %v7443, %v8404
        %v8406 = vpop.f32.mrb[0].mxu0
        %v8407 = vadd.f32 %v7443, %v8406
        %v8408 = vpop.f32.mrb[0].mxu0
        %v8409 = vadd.f32 %v7448, %v8408
        %v8410 = vpop.f32.mrb[0].mxu0
        %v8411 = vadd.f32 %v7448, %v8410
        %8412 = vmatprep.mubr.bf16.mxu0 0
        %8413 = vmatmul.mubr.bf16.gmra.mrb[0].mxu0 %v7757
        %v8414 = vpop.f32.mrb[0].mxu0
        %v8415 = vadd.f32 %v7453, %v8414
        %v8416 = vpop.f32.mrb[0].mxu0
        %v8417 = vadd.f32 %v7453, %v8416
        %v8418 = vpop.f32.mrb[0].mxu0
        %v8419 = vadd.f32 %v7458, %v8418
        %v8420 = vpop.f32.mrb[0].mxu0
        %v8421 = vadd.f32 %v7458, %v8420
        %8422 = vmatprep.mubr.bf16.mxu0 0
        %8423 = vmatmul.mubr.bf16.gmra.mrb[0].mxu0 %v7760
        %v8424 = vpop.f32.mrb[0].mxu0
        %v8425 = vadd.f32 %v7463, %v8424
        %v8426 = vpop.f32.mrb[0].mxu0
        %v8427 = vadd.f32 %v7463, %v8426
        %v8428 = vpop.f32.mrb[0].mxu0
        %v8429 = vadd.f32 %v7468, %v8428
        %v8430 = vpop.f32.mrb[0].mxu0
        %v8431 = vadd.f32 %v7468, %v8430
        %8432 = vmatprep.mubr.bf16.mxu0 0
        %8433 = vmatmul.mubr.bf16.gmra.mrb[0].mxu0 %v7763
        %v8434 = vpop.f32.mrb[0].mxu0
        %v8435 = vadd.f32 %v7473, %v8434
        %v8436 = vpop.f32.mrb[0].mxu0
        %v8437 = vadd.f32 %v7473, %v8436
        %v8438 = vpop.f32.mrb[0].mxu0
        %v8439 = vadd.f32 %v7478, %v8438
        %v8440 = vpop.f32.mrb[0].mxu0
        %v8441 = vadd.f32 %v7478, %v8440
        %8442 = vmatprep.mubr.bf16.mxu0 0
        %8443 = vmatmul.mubr.bf16.gmra.mrb[0].mxu0 %v7766
        %v8444 = vpop.f32.mrb[0].mxu0
        %v8445 = vadd.f32 %v7483, %v8444
        %v8446 = vpop.f32.mrb[0].mxu0
        %v8447 = vadd.f32 %v7483, %v8446
        %v8448 = vpop.f32.mrb[0].mxu0
        %v8449 = vadd.f32 %v7488, %v8448
        %v8450 = vpop.f32.mrb[0].mxu0
        %v8451 = vadd.f32 %v7488, %v8450
        %8452 = vmatprep.mubr.bf16.mxu0 0
        %8453 = vmatmul.mubr.bf16.gmra.mrb[0].mxu0 %v7769
        %v8454 = vpop.f32.mrb[0].mxu0
        %v8455 = vadd.f32 %v7493, %v8454
        %v8456 = vpop.f32.mrb[0].mxu0
        %v8457 = vadd.f32 %v7493, %v8456
        %v8458 = vpop.f32.mrb[0].mxu0
        %v8459 = vadd.f32 %v7498, %v8458
        %v8460 = vpop.f32.mrb[0].mxu0
        %v8461 = vadd.f32 %v7498, %v8460
        %8462 = vmatprep.mubr.bf16.mxu0 0
        %8463 = vmatmul.mubr.bf16.gmra.mrb[0].mxu0 %v7772
        %v8464 = vpop.f32.mrb[0].mxu0
        %v8465 = vadd.f32 %v7503, %v8464
        %v8466 = vpop.f32.mrb[0].mxu0
        %v8467 = vadd.f32 %v7503, %v8466
        %v8468 = vpop.f32.mrb[0].mxu0
        %v8469 = vadd.f32 %v7508, %v8468
        %v8470 = vpop.f32.mrb[0].mxu0
        %v8471 = vadd.f32 %v7508, %v8470
        %8472 = vmatprep.mubr.bf16.mxu0 0
        %8473 = vmatmul.mubr.bf16.gmra.mrb[0].mxu0 %v7775
        %v8474 = vpop.f32.mrb[0].mxu0
        %v8475 = vadd.f32 %v7513, %v8474
        %v8476 = vpop.f32.mrb[0].mxu0
        %v8477 = vadd.f32 %v7513, %v8476
        %v8478 = vpop.f32.mrb[0].mxu0
        %v8479 = vadd.f32 %v7518, %v8478
        %v8480 = vpop.f32.mrb[0].mxu0
        %v8481 = vadd.f32 %v7518, %v8480
        %8482 = vdwg.mxu0
        %8483 = vmatprep.subr.bf16.mxu0 %v7053
        %8484 = vmatpush1.bf16.msra.mxu0 %v7052
        %8485 = vmatprep.subr.bf16.mxu0 %v7059
        %8486 = vmatpush1.bf16.msra.mxu0 %v7058
        %8487 = vmatprep.subr.bf16.mxu0 %v7065
        %8488 = vmatpush1.bf16.msra.mxu0 %v7064
        %8489 = vmatprep.subr.bf16.mxu0 %v7071
        %8490 = vmatpush1.bf16.msra.mxu0 %v7070
        %8491 = vmatprep.subr.bf16.mxu0 0
        %8492 = vmatpush1.bf16.msra.mxu0 0
        %8493 = vmatprep.subr.bf16.mxu0 0
        %8494 = vmatpush1.bf16.msra.mxu0 0
        %8495 = vmatprep.subr.bf16.mxu0 0
        %8496 = vmatpush1.bf16.msra.mxu0 0
        %8497 = vmatprep.subr.bf16.mxu0 0
        %8498 = vmatpush1.bf16.msra.mxu0 0
        %8499 = vmatprep.subr.bf16.mxu0 0
        %8500 = vmatpush1.bf16.msra.mxu0 0
        %8501 = vmatprep.subr.bf16.mxu0 0
        %8502 = vmatpush1.bf16.msra.mxu0 0
        %8503 = vmatprep.subr.bf16.mxu0 0
        %8504 = vmatpush1.bf16.msra.mxu0 0
        %8505 = vmatprep.subr.bf16.mxu0 0
        %8506 = vmatpush1.bf16.msra.mxu0 0
        %8507 = vmatprep.subr.bf16.mxu0 0
        %8508 = vmatpush1.bf16.msra.mxu0 0
        %8509 = vmatprep.subr.bf16.mxu0 0
        %8510 = vmatpush1.bf16.msra.mxu0 0
        %8511 = vmatprep.subr.bf16.mxu0 0
        %8512 = vmatpush1.bf16.msra.mxu0 0
        %8513 = vmatprep.subr.bf16.mxu0 0
        %8514 = vmatpush1.bf16.msra.mxu0 0
        %8515 = vmatprep.mubr.bf16.mxu0 0
        %8516 = vmatmul.mubr.bf16.gmra.mrb[0].mxu0 %v7682
        %v8517 = vpop.f32.mrb[0].mxu0
        %v8518 = vadd.f32 %v7203, %v8517
        %v8519 = vpop.f32.mrb[0].mxu0
        %v8520 = vadd.f32 %v7203, %v8519
        %v8521 = vpop.f32.mrb[0].mxu0
        %v8522 = vadd.f32 %v7208, %v8521
        %v8523 = vpop.f32.mrb[0].mxu0
        %v8524 = vadd.f32 %v7208, %v8523
        %8525 = vmatprep.mubr.bf16.mxu0 0
        %8526 = vmatmul.mubr.bf16.gmra.mrb[0].mxu0 %v7685
        %v8527 = vpop.f32.mrb[0].mxu0
        %v8528 = vadd.f32 %v7213, %v8527
        %v8529 = vpop.f32.mrb[0].mxu0
        %v8530 = vadd.f32 %v7213, %v8529
        %v8531 = vpop.f32.mrb[0].mxu0
        %v8532 = vadd.f32 %v7218, %v8531
        %v8533 = vpop.f32.mrb[0].mxu0
        %v8534 = vadd.f32 %v7218, %v8533
        %8535 = vmatprep.mubr.bf16.mxu0 0
        %8536 = vmatmul.mubr.bf16.gmra.mrb[0].mxu0 %v7688
        %v8537 = vpop.f32.mrb[0].mxu0
        %v8538 = vadd.f32 %v7223, %v8537
        %v8539 = vpop.f32.mrb[0].mxu0
        %v8540 = vadd.f32 %v7223, %v8539
        %v8541 = vpop.f32.mrb[0].mxu0
        %v8542 = vadd.f32 %v7228, %v8541
        %v8543 = vpop.f32.mrb[0].mxu0
        %v8544 = vadd.f32 %v7228, %v8543
        %8545 = vmatprep.mubr.bf16.mxu0 0
        %8546 = vmatmul.mubr.bf16.gmra.mrb[0].mxu0 %v7691
        %v8547 = vpop.f32.mrb[0].mxu0
        %v8548 = vadd.f32 %v7233, %v8547
        %v8549 = vpop.f32.mrb[0].mxu0
        %v8550 = vadd.f32 %v7233, %v8549
        %v8551 = vpop.f32.mrb[0].mxu0
        %v8552 = vadd.f32 %v7238, %v8551
        %v8553 = vpop.f32.mrb[0].mxu0
        %v8554 = vadd.f32 %v7238, %v8553
        %8555 = vmatprep.mubr.bf16.mxu0 0
        %8556 = vmatmul.mubr.bf16.gmra.mrb[0].mxu0 %v7694
        %v8557 = vpop.f32.mrb[0].mxu0
        %v8558 = vadd.f32 %v7243, %v8557
        %v8559 = vpop.f32.mrb[0].mxu0
        %v8560 = vadd.f32 %v7243, %v8559
        %v8561 = vpop.f32.mrb[0].mxu0
        %v8562 = vadd.f32 %v7248, %v8561
        %v8563 = vpop.f32.mrb[0].mxu0
        %v8564 = vadd.f32 %v7248, %v8563
        %8565 = vmatprep.mubr.bf16.mxu0 0
        %8566 = vmatmul.mubr.bf16.gmra.mrb[0].mxu0 %v7697
        %v8567 = vpop.f32.mrb[0].mxu0
        %v8568 = vadd.f32 %v7253, %v8567
        %v8569 = vpop.f32.mrb[0].mxu0
        %v8570 = vadd.f32 %v7253, %v8569
        %v8571 = vpop.f32.mrb[0].mxu0
        %v8572 = vadd.f32 %v7258, %v8571
        %v8573 = vpop.f32.mrb[0].mxu0
        %v8574 = vadd.f32 %v7258, %v8573
        %8575 = vmatprep.mubr.bf16.mxu0 0
        %8576 = vmatmul.mubr.bf16.gmra.mrb[0].mxu0 %v7700
        %v8577 = vpop.f32.mrb[0].mxu0
        %v8578 = vadd.f32 %v7263, %v8577
        %v8579 = vpop.f32.mrb[0].mxu0
        %v8580 = vadd.f32 %v7263, %v8579
        %v8581 = vpop.f32.mrb[0].mxu0
        %v8582 = vadd.f32 %v7268, %v8581
        %v8583 = vpop.f32.mrb[0].mxu0
        %v8584 = vadd.f32 %v7268, %v8583
        %8585 = vmatprep.mubr.bf16.mxu0 0
        %8586 = vmatmul.mubr.bf16.gmra.mrb[0].mxu0 %v7703
        %v8587 = vpop.f32.mrb[0].mxu0
        %v8588 = vadd.f32 %v7273, %v8587
        %v8589 = vpop.f32.mrb[0].mxu0
        %v8590 = vadd.f32 %v7273, %v8589
        %v8591 = vpop.f32.mrb[0].mxu0
        %v8592 = vadd.f32 %v7278, %v8591
        %v8593 = vpop.f32.mrb[0].mxu0
        %v8594 = vadd.f32 %v7278, %v8593
        %8595 = vmatprep.mubr.bf16.mxu0 0
        %8596 = vmatmul.mubr.bf16.gmra.mrb[0].mxu0 %v7706
        %v8597 = vpop.f32.mrb[0].mxu0
        %v8598 = vadd.f32 %v7283, %v8597
        %v8599 = vpop.f32.mrb[0].mxu0
        %v8600 = vadd.f32 %v7283, %v8599
        %v8601 = vpop.f32.mrb[0].mxu0
        %v8602 = vadd.f32 %v7288, %v8601
        %v8603 = vpop.f32.mrb[0].mxu0
        %v8604 = vadd.f32 %v7288, %v8603
        %8605 = vmatprep.mubr.bf16.mxu0 0
        %8606 = vmatmul.mubr.bf16.gmra.mrb[0].mxu0 %v7709
        %v8607 = vpop.f32.mrb[0].mxu0
        %v8608 = vadd.f32 %v7293, %v8607
        %v8609 = vpop.f32.mrb[0].mxu0
        %v8610 = vadd.f32 %v7293, %v8609
        %v8611 = vpop.f32.mrb[0].mxu0
        %v8612 = vadd.f32 %v7298, %v8611
        %v8613 = vpop.f32.mrb[0].mxu0
        %v8614 = vadd.f32 %v7298, %v8613
        %8615 = vmatprep.mubr.bf16.mxu0 0
        %8616 = vmatmul.mubr.bf16.gmra.mrb[0].mxu0 %v7712
        %v8617 = vpop.f32.mrb[0].mxu0
        %v8618 = vadd.f32 %v7303, %v8617
        %v8619 = vpop.f32.mrb[0].mxu0
        %v8620 = vadd.f32 %v7303, %v8619
        %v8621 = vpop.f32.mrb[0].mxu0
        %v8622 = vadd.f32 %v7308, %v8621
        %v8623 = vpop.f32.mrb[0].mxu0
        %v8624 = vadd.f32 %v7308, %v8623
        %8625 = vmatprep.mubr.bf16.mxu0 0
        %8626 = vmatmul.mubr.bf16.gmra.mrb[0].mxu0 %v7715
        %v8627 = vpop.f32.mrb[0].mxu0
        %v8628 = vadd.f32 %v7313, %v8627
        %v8629 = vpop.f32.mrb[0].mxu0
        %v8630 = vadd.f32 %v7313, %v8629
        %v8631 = vpop.f32.mrb[0].mxu0
        %v8632 = vadd.f32 %v7318, %v8631
        %v8633 = vpop.f32.mrb[0].mxu0
        %v8634 = vadd.f32 %v7318, %v8633
        %8635 = vmatprep.mubr.bf16.mxu0 0
        %8636 = vmatmul.mubr.bf16.gmra.mrb[0].mxu0 %v7718
        %v8637 = vpop.f32.mrb[0].mxu0
        %v8638 = vadd.f32 %v7323, %v8637
        %v8639 = vpop.f32.mrb[0].mxu0
        %v8640 = vadd.f32 %v7323, %v8639
        %v8641 = vpop.f32.mrb[0].mxu0
        %v8642 = vadd.f32 %v7328, %v8641
        %v8643 = vpop.f32.mrb[0].mxu0
        %v8644 = vadd.f32 %v7328, %v8643
        %8645 = vmatprep.mubr.bf16.mxu0 0
        %8646 = vmatmul.mubr.bf16.gmra.mrb[0].mxu0 %v7721
        %v8647 = vpop.f32.mrb[0].mxu0
        %v8648 = vadd.f32 %v7333, %v8647
        %v8649 = vpop.f32.mrb[0].mxu0
        %v8650 = vadd.f32 %v7333, %v8649
        %v8651 = vpop.f32.mrb[0].mxu0
        %v8652 = vadd.f32 %v7338, %v8651
        %v8653 = vpop.f32.mrb[0].mxu0
        %v8654 = vadd.f32 %v7338, %v8653
        %8655 = vmatprep.mubr.bf16.mxu0 0
        %8656 = vmatmul.mubr.bf16.gmra.mrb[0].mxu0 %v7724
        %v8657 = vpop.f32.mrb[0].mxu0
        %v8658 = vadd.f32 %v7343, %v8657
        %v8659 = vpop.f32.mrb[0].mxu0
        %v8660 = vadd.f32 %v7343, %v8659
        %v8661 = vpop.f32.mrb[0].mxu0
        %v8662 = vadd.f32 %v7348, %v8661
        %v8663 = vpop.f32.mrb[0].mxu0
        %v8664 = vadd.f32 %v7348, %v8663
        %8665 = vmatprep.mubr.bf16.mxu0 0
        %8666 = vmatmul.mubr.bf16.gmra.mrb[0].mxu0 %v7727
        %v8667 = vpop.f32.mrb[0].mxu0
        %v8668 = vadd.f32 %v7353, %v8667
        %v8669 = vpop.f32.mrb[0].mxu0
        %v8670 = vadd.f32 %v7353, %v8669
        %v8671 = vpop.f32.mrb[0].mxu0
        %v8672 = vadd.f32 %v7358, %v8671
        %v8673 = vpop.f32.mrb[0].mxu0
        %v8674 = vadd.f32 %v7358, %v8673
        %8675 = vmatprep.mubr.bf16.mxu0 0
        %8676 = vmatmul.mubr.bf16.gmra.mrb[0].mxu0 %v7730
        %v8677 = vpop.f32.mrb[0].mxu0
        %v8678 = vadd.f32 %v7363, %v8677
        %v8679 = vpop.f32.mrb[0].mxu0
        %v8680 = vadd.f32 %v7363, %v8679
        %v8681 = vpop.f32.mrb[0].mxu0
        %v8682 = vadd.f32 %v7368, %v8681
        %v8683 = vpop.f32.mrb[0].mxu0
        %v8684 = vadd.f32 %v7368, %v8683
        %8685 = vmatprep.mubr.bf16.mxu0 0
        %8686 = vmatmul.mubr.bf16.gmra.mrb[0].mxu0 %v7733
        %v8687 = vpop.f32.mrb[0].mxu0
        %v8688 = vadd.f32 %v7373, %v8687
        %v8689 = vpop.f32.mrb[0].mxu0
        %v8690 = vadd.f32 %v7373, %v8689
        %v8691 = vpop.f32.mrb[0].mxu0
        %v8692 = vadd.f32 %v7378, %v8691
        %v8693 = vpop.f32.mrb[0].mxu0
        %v8694 = vadd.f32 %v7378, %v8693
        %8695 = vmatprep.mubr.bf16.mxu0 0
        %8696 = vmatmul.mubr.bf16.gmra.mrb[0].mxu0 %v7736
        %v8697 = vpop.f32.mrb[0].mxu0
        %v8698 = vadd.f32 %v7383, %v8697
        %v8699 = vpop.f32.mrb[0].mxu0
        %v8700 = vadd.f32 %v7383, %v8699
        %v8701 = vpop.f32.mrb[0].mxu0
        %v8702 = vadd.f32 %v7388, %v8701
        %v8703 = vpop.f32.mrb[0].mxu0
        %v8704 = vadd.f32 %v7388, %v8703
        %8705 = vmatprep.mubr.bf16.mxu0 0
        %8706 = vmatmul.mubr.bf16.gmra.mrb[0].mxu0 %v7739
        %v8707 = vpop.f32.mrb[0].mxu0
        %v8708 = vadd.f32 %v7393, %v8707
        %v8709 = vpop.f32.mrb[0].mxu0
        %v8710 = vadd.f32 %v7393, %v8709
        %v8711 = vpop.f32.mrb[0].mxu0
        %v8712 = vadd.f32 %v7398, %v8711
        %v8713 = vpop.f32.mrb[0].mxu0
        %v8714 = vadd.f32 %v7398, %v8713
        %8715 = vmatprep.mubr.bf16.mxu0 0
        %8716 = vmatmul.mubr.bf16.gmra.mrb[0].mxu0 %v7742
        %v8717 = vpop.f32.mrb[0].mxu0
        %v8718 = vadd.f32 %v7403, %v8717
        %v8719 = vpop.f32.mrb[0].mxu0
        %v8720 = vadd.f32 %v7403, %v8719
        %v8721 = vpop.f32.mrb[0].mxu0
        %v8722 = vadd.f32 %v7408, %v8721
        %v8723 = vpop.f32.mrb[0].mxu0
        %v8724 = vadd.f32 %v7408, %v8723
        %8725 = vmatprep.mubr.bf16.mxu0 0
        %8726 = vmatmul.mubr.bf16.gmra.mrb[0].mxu0 %v7745
        %v8727 = vpop.f32.mrb[0].mxu0
        %v8728 = vadd.f32 %v7413, %v8727
        %v8729 = vpop.f32.mrb[0].mxu0
        %v8730 = vadd.f32 %v7413, %v8729
        %v8731 = vpop.f32.mrb[0].mxu0
        %v8732 = vadd.f32 %v7418, %v8731
        %v8733 = vpop.f32.mrb[0].mxu0
        %v8734 = vadd.f32 %v7418, %v8733
        %8735 = vmatprep.mubr.bf16.mxu0 0
        %8736 = vmatmul.mubr.bf16.gmra.mrb[0].mxu0 %v7748
        %v8737 = vpop.f32.mrb[0].mxu0
        %v8738 = vadd.f32 %v7423, %v8737
        %v8739 = vpop.f32.mrb[0].mxu0
        %v8740 = vadd.f32 %v7423, %v8739
        %v8741 = vpop.f32.mrb[0].mxu0
        %v8742 = vadd.f32 %v7428, %v8741
        %v8743 = vpop.f32.mrb[0].mxu0
        %v8744 = vadd.f32 %v7428, %v8743
        %8745 = vmatprep.mubr.bf16.mxu0 0
        %8746 = vmatmul.mubr.bf16.gmra.mrb[0].mxu0 %v7751
        %v8747 = vpop.f32.mrb[0].mxu0
        %v8748 = vadd.f32 %v7433, %v8747
        %v8749 = vpop.f32.mrb[0].mxu0
        %v8750 = vadd.f32 %v7433, %v8749
        %v8751 = vpop.f32.mrb[0].mxu0
        %v8752 = vadd.f32 %v7438, %v8751
        %v8753 = vpop.f32.mrb[0].mxu0
        %v8754 = vadd.f32 %v7438, %v8753
        %8755 = vmatprep.mubr.bf16.mxu0 0
        %8756 = vmatmul.mubr.bf16.gmra.mrb[0].mxu0 %v7754
        %v8757 = vpop.f32.mrb[0].mxu0
        %v8758 = vadd.f32 %v7443, %v8757
        %v8759 = vpop.f32.mrb[0].mxu0
        %v8760 = vadd.f32 %v7443, %v8759
        %v8761 = vpop.f32.mrb[0].mxu0
        %v8762 = vadd.f32 %v7448, %v8761
        %v8763 = vpop.f32.mrb[0].mxu0
        %v8764 = vadd.f32 %v7448, %v8763
        %8765 = vmatprep.mubr.bf16.mxu0 0
        %8766 = vmatmul.mubr.bf16.gmra.mrb[0].mxu0 %v7757
        %v8767 = vpop.f32.mrb[0].mxu0
        %v8768 = vadd.f32 %v7453, %v8767
        %v8769 = vpop.f32.mrb[0].mxu0
        %v8770 = vadd.f32 %v7453, %v8769
        %v8771 = vpop.f32.mrb[0].mxu0
        %v8772 = vadd.f32 %v7458, %v8771
        %v8773 = vpop.f32.mrb[0].mxu0
        %v8774 = vadd.f32 %v7458, %v8773
        %8775 = vmatprep.mubr.bf16.mxu0 0
        %8776 = vmatmul.mubr.bf16.gmra.mrb[0].mxu0 %v7760
        %v8777 = vpop.f32.mrb[0].mxu0
        %v8778 = vadd.f32 %v7463, %v8777
        %v8779 = vpop.f32.mrb[0].mxu0
        %v8780 = vadd.f32 %v7463, %v8779
        %v8781 = vpop.f32.mrb[0].mxu0
        %v8782 = vadd.f32 %v7468, %v8781
        %v8783 = vpop.f32.mrb[0].mxu0
        %v8784 = vadd.f32 %v7468, %v8783
        %8785 = vmatprep.mubr.bf16.mxu0 0
        %8786 = vmatmul.mubr.bf16.gmra.mrb[0].mxu0 %v7763
        %v8787 = vpop.f32.mrb[0].mxu0
        %v8788 = vadd.f32 %v7473, %v8787
        %v8789 = vpop.f32.mrb[0].mxu0
        %v8790 = vadd.f32 %v7473, %v8789
        %v8791 = vpop.f32.mrb[0].mxu0
        %v8792 = vadd.f32 %v7478, %v8791
        %v8793 = vpop.f32.mrb[0].mxu0
        %v8794 = vadd.f32 %v7478, %v8793
        %8795 = vmatprep.mubr.bf16.mxu0 0
        %8796 = vmatmul.mubr.bf16.gmra.mrb[0].mxu0 %v7766
        %v8797 = vpop.f32.mrb[0].mxu0
        %v8798 = vadd.f32 %v7483, %v8797
        %v8799 = vpop.f32.mrb[0].mxu0
        %v8800 = vadd.f32 %v7483, %v8799
        %v8801 = vpop.f32.mrb[0].mxu0
        %v8802 = vadd.f32 %v7488, %v8801
        %v8803 = vpop.f32.mrb[0].mxu0
        %v8804 = vadd.f32 %v7488, %v8803
        %8805 = vmatprep.mubr.bf16.mxu0 0
        %8806 = vmatmul.mubr.bf16.gmra.mrb[0].mxu0 %v7769
        %v8807 = vpop.f32.mrb[0].mxu0
        %v8808 = vadd.f32 %v7493, %v8807
        %v8809 = vpop.f32.mrb[0].mxu0
        %v8810 = vadd.f32 %v7493, %v8809
        %v8811 = vpop.f32.mrb[0].mxu0
        %v8812 = vadd.f32 %v7498, %v8811
        %v8813 = vpop.f32.mrb[0].mxu0
        %v8814 = vadd.f32 %v7498, %v8813
        %8815 = vmatprep.mubr.bf16.mxu0 0
        %8816 = vmatmul.mubr.bf16.gmra.mrb[0].mxu0 %v7772
        %v8817 = vpop.f32.mrb[0].mxu0
        %v8818 = vadd.f32 %v7503, %v8817
        %v8819 = vpop.f32.mrb[0].mxu0
        %v8820 = vadd.f32 %v7503, %v8819
        %v8821 = vpop.f32.mrb[0].mxu0
        %v8822 = vadd.f32 %v7508, %v8821
        %v8823 = vpop.f32.mrb[0].mxu0
        %v8824 = vadd.f32 %v7508, %v8823
        %8825 = vmatprep.mubr.bf16.mxu0 0
        %8826 = vmatmul.mubr.bf16.gmra.mrb[0].mxu0 %v7775
        %v8827 = vpop.f32.mrb[0].mxu0
        %v8828 = vadd.f32 %v7513, %v8827
        %v8829 = vpop.f32.mrb[0].mxu0
        %v8830 = vadd.f32 %v7513, %v8829
        %v8831 = vpop.f32.mrb[0].mxu0
        %v8832 = vadd.f32 %v7518, %v8831
        %v8833 = vpop.f32.mrb[0].mxu0
        %v8834 = vadd.f32 %v7518, %v8833
        %8835 = vdwg.mxu0
        %8836 = vst [vmem:[%s217] sm:$0xff] %v7812
        %8837 = vst [vmem:[%s217 + $0x8] sm:$0xff] %v7814
        %8838 = vst [vmem:[%s217 + $0x10] sm:$0xff] %v8165
        %8839 = vst [vmem:[%s217 + $0x18] sm:$0xff] %v8167
        %8840 = vst [vmem:[%s217 + $0x20] sm:$0xff] %v8518
        %8841 = vst [vmem:[%s217 + $0x28] sm:$0xff] %v8520
        %8842 = vst [vmem:[%s217 + $0x30] sm:$0xff] %v7816
        %8843 = vst [vmem:[%s217 + $0x38] sm:$0xff] %v7818
        %8844 = vst [vmem:[%s217 + $0x40] sm:$0xff] %v8169
        %8845 = vst [vmem:[%s217 + $0x48] sm:$0xff] %v8171
        %8846 = vst [vmem:[%s217 + $0x50] sm:$0xff] %v8522
        %8847 = vst [vmem:[%s217 + $0x58] sm:$0xff] %v8524
        %8848 = vst [vmem:[%s217 + $0x60] sm:$0xff] %v7822
        %8849 = vst [vmem:[%s217 + $0x68] sm:$0xff] %v7824
        %8850 = vst [vmem:[%s217 + $0x70] sm:$0xff] %v8175
        %8851 = vst [vmem:[%s217 + $0x78] sm:$0xff] %v8177
        %8852 = vst [vmem:[%s217 + $0x80] sm:$0xff] %v8528
        %8853 = vst [vmem:[%s217 + $0x88] sm:$0xff] %v8530
        %8854 = vst [vmem:[%s217 + $0x90] sm:$0xff] %v7826
        %8855 = vst [vmem:[%s217 + $0x98] sm:$0xff] %v7828
        %8856 = vst [vmem:[%s217 + $0xa0] sm:$0xff] %v8179
        %8857 = vst [vmem:[%s217 + $0xa8] sm:$0xff] %v8181
        %8858 = vst [vmem:[%s217 + $0xb0] sm:$0xff] %v8532
        %8859 = vst [vmem:[%s217 + $0xb8] sm:$0xff] %v8534
        %8860 = vst [vmem:[%s217 + $0xc0] sm:$0xff] %v7832
        %8861 = vst [vmem:[%s217 + $0xc8] sm:$0xff] %v7834
        %8862 = vst [vmem:[%s217 + $0xd0] sm:$0xff] %v8185
        %8863 = vst [vmem:[%s217 + $0xd8] sm:$0xff] %v8187
        %8864 = vst [vmem:[%s217 + $0xe0] sm:$0xff] %v8538
        %8865 = vst [vmem:[%s217 + $0xe8] sm:$0xff] %v8540
        %8866 = vst [vmem:[%s217 + $0xf0] sm:$0xff] %v7836
        %8867 = vst [vmem:[%s217 + $0xf8] sm:$0xff] %v7838
        %8868 = vst [vmem:[%s217 + $0x100] sm:$0xff] %v8189
        %8869 = vst [vmem:[%s217 + $0x108] sm:$0xff] %v8191
        %8870 = vst [vmem:[%s217 + $0x110] sm:$0xff] %v8542
        %8871 = vst [vmem:[%s217 + $0x118] sm:$0xff] %v8544
        %8872 = vst [vmem:[%s217 + $0x120] sm:$0xff] %v7842
        %8873 = vst [vmem:[%s217 + $0x128] sm:$0xff] %v7844
        %8874 = vst [vmem:[%s217 + $0x130] sm:$0xff] %v8195
        %8875 = vst [vmem:[%s217 + $0x138] sm:$0xff] %v8197
        %8876 = vst [vmem:[%s217 + $0x140] sm:$0xff] %v8548
        %8877 = vst [vmem:[%s217 + $0x148] sm:$0xff] %v8550
        %8878 = vst [vmem:[%s217 + $0x150] sm:$0xff] %v7846
        %8879 = vst [vmem:[%s217 + $0x158] sm:$0xff] %v7848
        %8880 = vst [vmem:[%s217 + $0x160] sm:$0xff] %v8199
        %8881 = vst [vmem:[%s217 + $0x168] sm:$0xff] %v8201
        %8882 = vst [vmem:[%s217 + $0x170] sm:$0xff] %v8552
        %8883 = vst [vmem:[%s217 + $0x178] sm:$0xff] %v8554
        %8884 = vst [vmem:[%s217 + $0x180] sm:$0xff] %v7852
        %8885 = vst [vmem:[%s217 + $0x188] sm:$0xff] %v7854
        %8886 = vst [vmem:[%s217 + $0x190] sm:$0xff] %v8205
        %8887 = vst [vmem:[%s217 + $0x198] sm:$0xff] %v8207
        %8888 = vst [vmem:[%s217 + $0x1a0] sm:$0xff] %v8558
        %8889 = vst [vmem:[%s217 + $0x1a8] sm:$0xff] %v8560
        %8890 = vst [vmem:[%s217 + $0x1b0] sm:$0xff] %v7856
        %8891 = vst [vmem:[%s217 + $0x1b8] sm:$0xff] %v7858
        %8892 = vst [vmem:[%s217 + $0x1c0] sm:$0xff] %v8209
        %8893 = vst [vmem:[%s217 + $0x1c8] sm:$0xff] %v8211
        %8894 = vst [vmem:[%s217 + $0x1d0] sm:$0xff] %v8562
        %8895 = vst [vmem:[%s217 + $0x1d8] sm:$0xff] %v8564
        %8896 = vst [vmem:[%s217 + $0x1e0] sm:$0xff] %v7862
        %8897 = vst [vmem:[%s217 + $0x1e8] sm:$0xff] %v7864
        %8898 = vst [vmem:[%s217 + $0x1f0] sm:$0xff] %v8215
        %8899 = vst [vmem:[%s217 + $0x1f8] sm:$0xff] %v8217
        %8900 = vst [vmem:[%s217 + $0x200] sm:$0xff] %v8568
        %8901 = vst [vmem:[%s217 + $0x208] sm:$0xff] %v8570
        %8902 = vst [vmem:[%s217 + $0x210] sm:$0xff] %v7866
        %8903 = vst [vmem:[%s217 + $0x218] sm:$0xff] %v7868
        %8904 = vst [vmem:[%s217 + $0x220] sm:$0xff] %v8219
        %8905 = vst [vmem:[%s217 + $0x228] sm:$0xff] %v8221
        %8906 = vst [vmem:[%s217 + $0x230] sm:$0xff] %v8572
        %8907 = vst [vmem:[%s217 + $0x238] sm:$0xff] %v8574
        %8908 = vst [vmem:[%s217 + $0x240] sm:$0xff] %v7872
        %8909 = vst [vmem:[%s217 + $0x248] sm:$0xff] %v7874
        %8910 = vst [vmem:[%s217 + $0x250] sm:$0xff] %v8225
        %8911 = vst [vmem:[%s217 + $0x258] sm:$0xff] %v8227
        %8912 = vst [vmem:[%s217 + $0x260] sm:$0xff] %v8578
        %8913 = vst [vmem:[%s217 + $0x268] sm:$0xff] %v8580
        %8914 = vst [vmem:[%s217 + $0x270] sm:$0xff] %v7876
        %8915 = vst [vmem:[%s217 + $0x278] sm:$0xff] %v7878
        %8916 = vst [vmem:[%s217 + $0x280] sm:$0xff] %v8229
        %8917 = vst [vmem:[%s217 + $0x288] sm:$0xff] %v8231
        %8918 = vst [vmem:[%s217 + $0x290] sm:$0xff] %v8582
        %8919 = vst [vmem:[%s217 + $0x298] sm:$0xff] %v8584
        %8920 = vst [vmem:[%s217 + $0x2a0] sm:$0xff] %v7882
        %8921 = vst [vmem:[%s217 + $0x2a8] sm:$0xff] %v7884
        %8922 = vst [vmem:[%s217 + $0x2b0] sm:$0xff] %v8235
        %8923 = vst [vmem:[%s217 + $0x2b8] sm:$0xff] %v8237
        %8924 = vst [vmem:[%s217 + $0x2c0] sm:$0xff] %v8588
        %8925 = vst [vmem:[%s217 + $0x2c8] sm:$0xff] %v8590
        %8926 = vst [vmem:[%s217 + $0x2d0] sm:$0xff] %v7886
        %8927 = vst [vmem:[%s217 + $0x2d8] sm:$0xff] %v7888
        %8928 = vst [vmem:[%s217 + $0x2e0] sm:$0xff] %v8239
        %8929 = vst [vmem:[%s217 + $0x2e8] sm:$0xff] %v8241
        %8930 = vst [vmem:[%s217 + $0x2f0] sm:$0xff] %v8592
        %8931 = vst [vmem:[%s217 + $0x2f8] sm:$0xff] %v8594
        %8932 = vst [vmem:[%s217 + $0x300] sm:$0xff] %v7892
        %8933 = vst [vmem:[%s217 + $0x308] sm:$0xff] %v7894
        %8934 = vst [vmem:[%s217 + $0x310] sm:$0xff] %v8245
        %8935 = vst [vmem:[%s217 + $0x318] sm:$0xff] %v8247
        %8936 = vst [vmem:[%s217 + $0x320] sm:$0xff] %v8598
        %8937 = vst [vmem:[%s217 + $0x328] sm:$0xff] %v8600
        %8938 = vst [vmem:[%s217 + $0x330] sm:$0xff] %v7896
        %8939 = vst [vmem:[%s217 + $0x338] sm:$0xff] %v7898
        %8940 = vst [vmem:[%s217 + $0x340] sm:$0xff] %v8249
        %8941 = vst [vmem:[%s217 + $0x348] sm:$0xff] %v8251
        %8942 = vst [vmem:[%s217 + $0x350] sm:$0xff] %v8602
        %8943 = vst [vmem:[%s217 + $0x358] sm:$0xff] %v8604
        %8944 = vst [vmem:[%s217 + $0x360] sm:$0xff] %v7902
        %8945 = vst [vmem:[%s217 + $0x368] sm:$0xff] %v7904
        %8946 = vst [vmem:[%s217 + $0x370] sm:$0xff] %v8255
        %8947 = vst [vmem:[%s217 + $0x378] sm:$0xff] %v8257
        %8948 = vst [vmem:[%s217 + $0x380] sm:$0xff] %v8608
        %8949 = vst [vmem:[%s217 + $0x388] sm:$0xff] %v8610
        %8950 = vst [vmem:[%s217 + $0x390] sm:$0xff] %v7906
        %8951 = vst [vmem:[%s217 + $0x398] sm:$0xff] %v7908
        %8952 = vst [vmem:[%s217 + $0x3a0] sm:$0xff] %v8259
        %8953 = vst [vmem:[%s217 + $0x3a8] sm:$0xff] %v8261
        %8954 = vst [vmem:[%s217 + $0x3b0] sm:$0xff] %v8612
        %8955 = vst [vmem:[%s217 + $0x3b8] sm:$0xff] %v8614
        %8956 = vst [vmem:[%s217 + $0x3c0] sm:$0xff] %v7912
        %8957 = vst [vmem:[%s217 + $0x3c8] sm:$0xff] %v7914
        %8958 = vst [vmem:[%s217 + $0x3d0] sm:$0xff] %v8265
        %8959 = vst [vmem:[%s217 + $0x3d8] sm:$0xff] %v8267
        %8960 = vst [vmem:[%s217 + $0x3e0] sm:$0xff] %v8618
        %8961 = vst [vmem:[%s217 + $0x3e8] sm:$0xff] %v8620
        %8962 = vst [vmem:[%s217 + $0x3f0] sm:$0xff] %v7916
        %8963 = vst [vmem:[%s217 + $0x3f8] sm:$0xff] %v7918
        %8964 = vst [vmem:[%s217 + $0x400] sm:$0xff] %v8269
        %8965 = vst [vmem:[%s217 + $0x408] sm:$0xff] %v8271
        %8966 = vst [vmem:[%s217 + $0x410] sm:$0xff] %v8622
        %8967 = vst [vmem:[%s217 + $0x418] sm:$0xff] %v8624
        %8968 = vst [vmem:[%s217 + $0x420] sm:$0xff] %v7922
        %8969 = vst [vmem:[%s217 + $0x428] sm:$0xff] %v7924
        %8970 = vst [vmem:[%s217 + $0x430] sm:$0xff] %v8275
        %8971 = vst [vmem:[%s217 + $0x438] sm:$0xff] %v8277
        %8972 = vst [vmem:[%s217 + $0x440] sm:$0xff] %v8628
        %8973 = vst [vmem:[%s217 + $0x448] sm:$0xff] %v8630
        %8974 = vst [vmem:[%s217 + $0x450] sm:$0xff] %v7926
        %8975 = vst [vmem:[%s217 + $0x458] sm:$0xff] %v7928
        %8976 = vst [vmem:[%s217 + $0x460] sm:$0xff] %v8279
        %8977 = vst [vmem:[%s217 + $0x468] sm:$0xff] %v8281
        %8978 = vst [vmem:[%s217 + $0x470] sm:$0xff] %v8632
        %8979 = vst [vmem:[%s217 + $0x478] sm:$0xff] %v8634
        %8980 = vst [vmem:[%s217 + $0x480] sm:$0xff] %v7932
        %8981 = vst [vmem:[%s217 + $0x488] sm:$0xff] %v7934
        %8982 = vst [vmem:[%s217 + $0x490] sm:$0xff] %v8285
        %8983 = vst [vmem:[%s217 + $0x498] sm:$0xff] %v8287
        %8984 = vst [vmem:[%s217 + $0x4a0] sm:$0xff] %v8638
        %8985 = vst [vmem:[%s217 + $0x4a8] sm:$0xff] %v8640
        %8986 = vst [vmem:[%s217 + $0x4b0] sm:$0xff] %v7936
        %8987 = vst [vmem:[%s217 + $0x4b8] sm:$0xff] %v7938
        %8988 = vst [vmem:[%s217 + $0x4c0] sm:$0xff] %v8289
        %8989 = vst [vmem:[%s217 + $0x4c8] sm:$0xff] %v8291
        %8990 = vst [vmem:[%s217 + $0x4d0] sm:$0xff] %v8642
        %8991 = vst [vmem:[%s217 + $0x4d8] sm:$0xff] %v8644
        %8992 = vst [vmem:[%s217 + $0x4e0] sm:$0xff] %v7942
        %8993 = vst [vmem:[%s217 + $0x4e8] sm:$0xff] %v7944
        %8994 = vst [vmem:[%s217 + $0x4f0] sm:$0xff] %v8295
        %8995 = vst [vmem:[%s217 + $0x4f8] sm:$0xff] %v8297
        %8996 = vst [vmem:[%s217 + $0x500] sm:$0xff] %v8648
        %8997 = vst [vmem:[%s217 + $0x508] sm:$0xff] %v8650
        %8998 = vst [vmem:[%s217 + $0x510] sm:$0xff] %v7946
        %8999 = vst [vmem:[%s217 + $0x518] sm:$0xff] %v7948
        %9000 = vst [vmem:[%s217 + $0x520] sm:$0xff] %v8299
        %9001 = vst [vmem:[%s217 + $0x528] sm:$0xff] %v8301
        %9002 = vst [vmem:[%s217 + $0x530] sm:$0xff] %v8652
        %9003 = vst [vmem:[%s217 + $0x538] sm:$0xff] %v8654
        %9004 = vst [vmem:[%s217 + $0x540] sm:$0xff] %v7952
        %9005 = vst [vmem:[%s217 + $0x548] sm:$0xff] %v7954
        %9006 = vst [vmem:[%s217 + $0x550] sm:$0xff] %v8305
        %9007 = vst [vmem:[%s217 + $0x558] sm:$0xff] %v8307
        %9008 = vst [vmem:[%s217 + $0x560] sm:$0xff] %v8658
        %9009 = vst [vmem:[%s217 + $0x568] sm:$0xff] %v8660
        %9010 = vst [vmem:[%s217 + $0x570] sm:$0xff] %v7956
        %9011 = vst [vmem:[%s217 + $0x578] sm:$0xff] %v7958
        %9012 = vst [vmem:[%s217 + $0x580] sm:$0xff] %v8309
        %9013 = vst [vmem:[%s217 + $0x588] sm:$0xff] %v8311
        %9014 = vst [vmem:[%s217 + $0x590] sm:$0xff] %v8662
        %9015 = vst [vmem:[%s217 + $0x598] sm:$0xff] %v8664
        %9016 = vst [vmem:[%s217 + $0x5a0] sm:$0xff] %v7962
        %9017 = vst [vmem:[%s217 + $0x5a8] sm:$0xff] %v7964
        %9018 = vst [vmem:[%s217 + $0x5b0] sm:$0xff] %v8315
        %9019 = vst [vmem:[%s217 + $0x5b8] sm:$0xff] %v8317
        %9020 = vst [vmem:[%s217 + $0x5c0] sm:$0xff] %v8668
        %9021 = vst [vmem:[%s217 + $0x5c8] sm:$0xff] %v8670
        %9022 = vst [vmem:[%s217 + $0x5d0] sm:$0xff] %v7966
        %9023 = vst [vmem:[%s217 + $0x5d8] sm:$0xff] %v7968
        %9024 = vst [vmem:[%s217 + $0x5e0] sm:$0xff] %v8319
        %9025 = vst [vmem:[%s217 + $0x5e8] sm:$0xff] %v8321
        %9026 = vst [vmem:[%s217 + $0x5f0] sm:$0xff] %v8672
        %9027 = vst [vmem:[%s217 + $0x5f8] sm:$0xff] %v8674
        %9028 = vst [vmem:[%s217 + $0x600] sm:$0xff] %v7972
        %9029 = vst [vmem:[%s217 + $0x608] sm:$0xff] %v7974
        %9030 = vst [vmem:[%s217 + $0x610] sm:$0xff] %v8325
        %9031 = vst [vmem:[%s217 + $0x618] sm:$0xff] %v8327
        %9032 = vst [vmem:[%s217 + $0x620] sm:$0xff] %v8678
        %9033 = vst [vmem:[%s217 + $0x628] sm:$0xff] %v8680
        %9034 = vst [vmem:[%s217 + $0x630] sm:$0xff] %v7976
        %9035 = vst [vmem:[%s217 + $0x638] sm:$0xff] %v7978
        %9036 = vst [vmem:[%s217 + $0x640] sm:$0xff] %v8329
        %9037 = vst [vmem:[%s217 + $0x648] sm:$0xff] %v8331
        %9038 = vst [vmem:[%s217 + $0x650] sm:$0xff] %v8682
        %9039 = vst [vmem:[%s217 + $0x658] sm:$0xff] %v8684
        %9040 = vst [vmem:[%s217 + $0x660] sm:$0xff] %v7982
        %9041 = vst [vmem:[%s217 + $0x668] sm:$0xff] %v7984
        %9042 = vst [vmem:[%s217 + $0x670] sm:$0xff] %v8335
        %9043 = vst [vmem:[%s217 + $0x678] sm:$0xff] %v8337
        %9044 = vst [vmem:[%s217 + $0x680] sm:$0xff] %v8688
        %9045 = vst [vmem:[%s217 + $0x688] sm:$0xff] %v8690
        %9046 = vst [vmem:[%s217 + $0x690] sm:$0xff] %v7986
        %9047 = vst [vmem:[%s217 + $0x698] sm:$0xff] %v7988
        %9048 = vst [vmem:[%s217 + $0x6a0] sm:$0xff] %v8339
        %9049 = vst [vmem:[%s217 + $0x6a8] sm:$0xff] %v8341
        %9050 = vst [vmem:[%s217 + $0x6b0] sm:$0xff] %v8692
        %9051 = vst [vmem:[%s217 + $0x6b8] sm:$0xff] %v8694
        %9052 = vst [vmem:[%s217 + $0x6c0] sm:$0xff] %v7992
        %9053 = vst [vmem:[%s217 + $0x6c8] sm:$0xff] %v7994
        %9054 = vst [vmem:[%s217 + $0x6d0] sm:$0xff] %v8345
        %9055 = vst [vmem:[%s217 + $0x6d8] sm:$0xff] %v8347
        %9056 = vst [vmem:[%s217 + $0x6e0] sm:$0xff] %v8698
        %9057 = vst [vmem:[%s217 + $0x6e8] sm:$0xff] %v8700
        %9058 = vst [vmem:[%s217 + $0x6f0] sm:$0xff] %v7996
        %9059 = vst [vmem:[%s217 + $0x6f8] sm:$0xff] %v7998
        %9060 = vst [vmem:[%s217 + $0x700] sm:$0xff] %v8349
        %9061 = vst [vmem:[%s217 + $0x708] sm:$0xff] %v8351
        %9062 = vst [vmem:[%s217 + $0x710] sm:$0xff] %v8702
        %9063 = vst [vmem:[%s217 + $0x718] sm:$0xff] %v8704
        %9064 = vst [vmem:[%s217 + $0x720] sm:$0xff] %v8002
        %9065 = vst [vmem:[%s217 + $0x728] sm:$0xff] %v8004
        %9066 = vst [vmem:[%s217 + $0x730] sm:$0xff] %v8355
        %9067 = vst [vmem:[%s217 + $0x738] sm:$0xff] %v8357
        %9068 = vst [vmem:[%s217 + $0x740] sm:$0xff] %v8708
        %9069 = vst [vmem:[%s217 + $0x748] sm:$0xff] %v8710
        %9070 = vst [vmem:[%s217 + $0x750] sm:$0xff] %v8006
        %9071 = vst [vmem:[%s217 + $0x758] sm:$0xff] %v8008
        %9072 = vst [vmem:[%s217 + $0x760] sm:$0xff] %v8359
        %9073 = vst [vmem:[%s217 + $0x768] sm:$0xff] %v8361
        %9074 = vst [vmem:[%s217 + $0x770] sm:$0xff] %v8712
        %9075 = vst [vmem:[%s217 + $0x778] sm:$0xff] %v8714
        %9076 = vst [vmem:[%s217 + $0x780] sm:$0xff] %v8012
        %9077 = vst [vmem:[%s217 + $0x788] sm:$0xff] %v8014
        %9078 = vst [vmem:[%s217 + $0x790] sm:$0xff] %v8365
        %9079 = vst [vmem:[%s217 + $0x798] sm:$0xff] %v8367
        %9080 = vst [vmem:[%s217 + $0x7a0] sm:$0xff] %v8718
        %9081 = vst [vmem:[%s217 + $0x7a8] sm:$0xff] %v8720
        %9082 = vst [vmem:[%s217 + $0x7b0] sm:$0xff] %v8016
        %9083 = vst [vmem:[%s217 + $0x7b8] sm:$0xff] %v8018
        %9084 = vst [vmem:[%s217 + $0x7c0] sm:$0xff] %v8369
        %9085 = vst [vmem:[%s217 + $0x7c8] sm:$0xff] %v8371
        %9086 = vst [vmem:[%s217 + $0x7d0] sm:$0xff] %v8722
        %9087 = vst [vmem:[%s217 + $0x7d8] sm:$0xff] %v8724
        %9088 = vst [vmem:[%s217 + $0x7e0] sm:$0xff] %v8022
        %9089 = vst [vmem:[%s217 + $0x7e8] sm:$0xff] %v8024
        %9090 = vst [vmem:[%s217 + $0x7f0] sm:$0xff] %v8375
        %9091 = vst [vmem:[%s217 + $0x7f8] sm:$0xff] %v8377
        %9092 = vst [vmem:[%s217 + $0x800] sm:$0xff] %v8728
        %9093 = vst [vmem:[%s217 + $0x808] sm:$0xff] %v8730
        %9094 = vst [vmem:[%s217 + $0x810] sm:$0xff] %v8026
        %9095 = vst [vmem:[%s217 + $0x818] sm:$0xff] %v8028
        %9096 = vst [vmem:[%s217 + $0x820] sm:$0xff] %v8379
        %9097 = vst [vmem:[%s217 + $0x828] sm:$0xff] %v8381
        %9098 = vst [vmem:[%s217 + $0x830] sm:$0xff] %v8732
        %9099 = vst [vmem:[%s217 + $0x838] sm:$0xff] %v8734
        %9100 = vst [vmem:[%s217 + $0x840] sm:$0xff] %v8032
        %9101 = vst [vmem:[%s217 + $0x848] sm:$0xff] %v8034
        %9102 = vst [vmem:[%s217 + $0x850] sm:$0xff] %v8385
        %9103 = vst [vmem:[%s217 + $0x858] sm:$0xff] %v8387
        %9104 = vst [vmem:[%s217 + $0x860] sm:$0xff] %v8738
        %9105 = vst [vmem:[%s217 + $0x868] sm:$0xff] %v8740
        %9106 = vst [vmem:[%s217 + $0x870] sm:$0xff] %v8036
        %9107 = vst [vmem:[%s217 + $0x878] sm:$0xff] %v8038
        %9108 = vst [vmem:[%s217 + $0x880] sm:$0xff] %v8389
        %9109 = vst [vmem:[%s217 + $0x888] sm:$0xff] %v8391
        %9110 = vst [vmem:[%s217 + $0x890] sm:$0xff] %v8742
        %9111 = vst [vmem:[%s217 + $0x898] sm:$0xff] %v8744
        %9112 = vst [vmem:[%s217 + $0x8a0] sm:$0xff] %v8042
        %9113 = vst [vmem:[%s217 + $0x8a8] sm:$0xff] %v8044
        %9114 = vst [vmem:[%s217 + $0x8b0] sm:$0xff] %v8395
        %9115 = vst [vmem:[%s217 + $0x8b8] sm:$0xff] %v8397
        %9116 = vst [vmem:[%s217 + $0x8c0] sm:$0xff] %v8748
        %9117 = vst [vmem:[%s217 + $0x8c8] sm:$0xff] %v8750
        %9118 = vst [vmem:[%s217 + $0x8d0] sm:$0xff] %v8046
        %9119 = vst [vmem:[%s217 + $0x8d8] sm:$0xff] %v8048
        %9120 = vst [vmem:[%s217 + $0x8e0] sm:$0xff] %v8399
        %9121 = vst [vmem:[%s217 + $0x8e8] sm:$0xff] %v8401
        %9122 = vst [vmem:[%s217 + $0x8f0] sm:$0xff] %v8752
        %9123 = vst [vmem:[%s217 + $0x8f8] sm:$0xff] %v8754
        %9124 = vst [vmem:[%s217 + $0x900] sm:$0xff] %v8052
        %9125 = vst [vmem:[%s217 + $0x908] sm:$0xff] %v8054
        %9126 = vst [vmem:[%s217 + $0x910] sm:$0xff] %v8405
        %9127 = vst [vmem:[%s217 + $0x918] sm:$0xff] %v8407
        %9128 = vst [vmem:[%s217 + $0x920] sm:$0xff] %v8758
        %9129 = vst [vmem:[%s217 + $0x928] sm:$0xff] %v8760
        %9130 = vst [vmem:[%s217 + $0x930] sm:$0xff] %v8056
        %9131 = vst [vmem:[%s217 + $0x938] sm:$0xff] %v8058
        %9132 = vst [vmem:[%s217 + $0x940] sm:$0xff] %v8409
        %9133 = vst [vmem:[%s217 + $0x948] sm:$0xff] %v8411
        %9134 = vst [vmem:[%s217 + $0x950] sm:$0xff] %v8762
        %9135 = vst [vmem:[%s217 + $0x958] sm:$0xff] %v8764
        %9136 = vst [vmem:[%s217 + $0x960] sm:$0xff] %v8062
        %9137 = vst [vmem:[%s217 + $0x968] sm:$0xff] %v8064
        %9138 = vst [vmem:[%s217 + $0x970] sm:$0xff] %v8415
        %9139 = vst [vmem:[%s217 + $0x978] sm:$0xff] %v8417
        %9140 = vst [vmem:[%s217 + $0x980] sm:$0xff] %v8768
        %9141 = vst [vmem:[%s217 + $0x988] sm:$0xff] %v8770
        %9142 = vst [vmem:[%s217 + $0x990] sm:$0xff] %v8066
        %9143 = vst [vmem:[%s217 + $0x998] sm:$0xff] %v8068
        %9144 = vst [vmem:[%s217 + $0x9a0] sm:$0xff] %v8419
        %9145 = vst [vmem:[%s217 + $0x9a8] sm:$0xff] %v8421
        %9146 = vst [vmem:[%s217 + $0x9b0] sm:$0xff] %v8772
        %9147 = vst [vmem:[%s217 + $0x9b8] sm:$0xff] %v8774
        %9148 = vst [vmem:[%s217 + $0x9c0] sm:$0xff] %v8072
        %9149 = vst [vmem:[%s217 + $0x9c8] sm:$0xff] %v8074
        %9150 = vst [vmem:[%s217 + $0x9d0] sm:$0xff] %v8425
        %9151 = vst [vmem:[%s217 + $0x9d8] sm:$0xff] %v8427
        %9152 = vst [vmem:[%s217 + $0x9e0] sm:$0xff] %v8778
        %9153 = vst [vmem:[%s217 + $0x9e8] sm:$0xff] %v8780
        %9154 = vst [vmem:[%s217 + $0x9f0] sm:$0xff] %v8076
        %9155 = vst [vmem:[%s217 + $0x9f8] sm:$0xff] %v8078
        %9156 = vst [vmem:[%s217 + $0xa00] sm:$0xff] %v8429
        %9157 = vst [vmem:[%s217 + $0xa08] sm:$0xff] %v8431
        %9158 = vst [vmem:[%s217 + $0xa10] sm:$0xff] %v8782
        %9159 = vst [vmem:[%s217 + $0xa18] sm:$0xff] %v8784
        %9160 = vst [vmem:[%s217 + $0xa20] sm:$0xff] %v8082
        %9161 = vst [vmem:[%s217 + $0xa28] sm:$0xff] %v8084
        %9162 = vst [vmem:[%s217 + $0xa30] sm:$0xff] %v8435
        %9163 = vst [vmem:[%s217 + $0xa38] sm:$0xff] %v8437
        %9164 = vst [vmem:[%s217 + $0xa40] sm:$0xff] %v8788
        %9165 = vst [vmem:[%s217 + $0xa48] sm:$0xff] %v8790
        %9166 = vst [vmem:[%s217 + $0xa50] sm:$0xff] %v8086
        %9167 = vst [vmem:[%s217 + $0xa58] sm:$0xff] %v8088
        %9168 = vst [vmem:[%s217 + $0xa60] sm:$0xff] %v8439
        %9169 = vst [vmem:[%s217 + $0xa68] sm:$0xff] %v8441
        %9170 = vst [vmem:[%s217 + $0xa70] sm:$0xff] %v8792
        %9171 = vst [vmem:[%s217 + $0xa78] sm:$0xff] %v8794
        %9172 = vst [vmem:[%s217 + $0xa80] sm:$0xff] %v8092
        %9173 = vst [vmem:[%s217 + $0xa88] sm:$0xff] %v8094
        %9174 = vst [vmem:[%s217 + $0xa90] sm:$0xff] %v8445
        %9175 = vst [vmem:[%s217 + $0xa98] sm:$0xff] %v8447
        %9176 = vst [vmem:[%s217 + $0xaa0] sm:$0xff] %v8798
        %9177 = vst [vmem:[%s217 + $0xaa8] sm:$0xff] %v8800
        %9178 = vst [vmem:[%s217 + $0xab0] sm:$0xff] %v8096
        %9179 = vst [vmem:[%s217 + $0xab8] sm:$0xff] %v8098
        %9180 = vst [vmem:[%s217 + $0xac0] sm:$0xff] %v8449
        %9181 = vst [vmem:[%s217 + $0xac8] sm:$0xff] %v8451
        %9182 = vst [vmem:[%s217 + $0xad0] sm:$0xff] %v8802
        %9183 = vst [vmem:[%s217 + $0xad8] sm:$0xff] %v8804
        %9184 = vst [vmem:[%s217 + $0xae0] sm:$0xff] %v8102
        %9185 = vst [vmem:[%s217 + $0xae8] sm:$0xff] %v8104
        %9186 = vst [vmem:[%s217 + $0xaf0] sm:$0xff] %v8455
        %9187 = vst [vmem:[%s217 + $0xaf8] sm:$0xff] %v8457
        %9188 = vst [vmem:[%s217 + $0xb00] sm:$0xff] %v8808
        %9189 = vst [vmem:[%s217 + $0xb08] sm:$0xff] %v8810
        %9190 = vst [vmem:[%s217 + $0xb10] sm:$0xff] %v8106
        %9191 = vst [vmem:[%s217 + $0xb18] sm:$0xff] %v8108
        %9192 = vst [vmem:[%s217 + $0xb20] sm:$0xff] %v8459
        %9193 = vst [vmem:[%s217 + $0xb28] sm:$0xff] %v8461
        %9194 = vst [vmem:[%s217 + $0xb30] sm:$0xff] %v8812
        %9195 = vst [vmem:[%s217 + $0xb38] sm:$0xff] %v8814
        %9196 = vst [vmem:[%s217 + $0xb40] sm:$0xff] %v8112
        %9197 = vst [vmem:[%s217 + $0xb48] sm:$0xff] %v8114
        %9198 = vst [vmem:[%s217 + $0xb50] sm:$0xff] %v8465
        %9199 = vst [vmem:[%s217 + $0xb58] sm:$0xff] %v8467
        %9200 = vst [vmem:[%s217 + $0xb60] sm:$0xff] %v8818
        %9201 = vst [vmem:[%s217 + $0xb68] sm:$0xff] %v8820
        %9202 = vst [vmem:[%s217 + $0xb70] sm:$0xff] %v8116
        %9203 = vst [vmem:[%s217 + $0xb78] sm:$0xff] %v8118
        %9204 = vst [vmem:[%s217 + $0xb80] sm:$0xff] %v8469
        %9205 = vst [vmem:[%s217 + $0xb88] sm:$0xff] %v8471
        %9206 = vst [vmem:[%s217 + $0xb90] sm:$0xff] %v8822
        %9207 = vst [vmem:[%s217 + $0xb98] sm:$0xff] %v8824
        %9208 = vst [vmem:[%s217 + $0xba0] sm:$0xff] %v8122
        %9209 = vst [vmem:[%s217 + $0xba8] sm:$0xff] %v8124
        %9210 = vst [vmem:[%s217 + $0xbb0] sm:$0xff] %v8475
        %9211 = vst [vmem:[%s217 + $0xbb8] sm:$0xff] %v8477
        %9212 = vst [vmem:[%s217 + $0xbc0] sm:$0xff] %v8828
        %9213 = vst [vmem:[%s217 + $0xbc8] sm:$0xff] %v8830
        %9214 = vst [vmem:[%s217 + $0xbd0] sm:$0xff] %v8126
        %9215 = vst [vmem:[%s217 + $0xbd8] sm:$0xff] %v8128
        %9216 = vst [vmem:[%s217 + $0xbe0] sm:$0xff] %v8479
        %9217 = vst [vmem:[%s217 + $0xbe8] sm:$0xff] %v8481
        %9218 = vst [vmem:[%s217 + $0xbf0] sm:$0xff] %v8832
        %9219 = vst [vmem:[%s217 + $0xbf8] sm:$0xff] %v8834
        %s9220 = sand.u32 %s137, 1
        %s9221 = scalar_lea.sflag [#allocation3], %s9220
        %s9222 = sand.u32 %s137, 1
        %s9223 = smul.addr %s9222, 3072
        %s9224 = scalar_lea.vmem [#allocation2], %s9223
        // Predicated region
        $region41: #{resnet_feature_extractor_head.1} parent=39 // pred_check
          %p9225 = pneg %p147
        $region42: #{resnet_feature_extractor_head.1} parent=39 // pred_check_branch
          %9227 = sbr.rel (%p9225) target = $region44
        $region43: #{resnet_feature_extractor_head.1} parent=39 // pred_region
          %s9229 = ssub.s32 49152, 49152
          %9230 = vsyncadd %s9221, %s9229
          %s9231 = smul.addr %s19, 384
          %s9232 = smul.addr %s9231, 128
          %s9233 = scalar_lea.hbm %s5, %s9232
          %s9234 = sshll.u32 %s9224, 4
          %s9235 = int_to_ptr.vmem [resolvable:$true] %s9234
          %9240 = dma.vmem_to_hbm [thread:$0]  %s9235, 49152, %s9233, %s9221, 768, 768, 48
        $region44: #{resnet_feature_extractor_head.1} parent=39 // pred_fallthru
          _
      $region40: #{resnet_feature_extractor_head.1} parent=5 // pred_fallthru
        _
      %p9241 = scmp.le.s32.totalorder 2, %s14
      // Predicated region
      $region45: #{resnet_feature_extractor_head.1} parent=5 // pred_check
        %p9242 = pneg %p9241
      $region46: #{resnet_feature_extractor_head.1} parent=5 // pred_check_branch
        %9244 = sbr.rel (%p9242) target = $region48
      $region47: #{resnet_feature_extractor_head.1} parent=5 // pred_region
        %s9245 = ssub.s32 %s14, 2
        // Predicated region
        $region49: #{resnet_feature_extractor_head.1} parent=47 // pred_check
          %p9246 = pneg %p153
        $region50: #{resnet_feature_extractor_head.1} parent=47 // pred_check_branch
          %9248 = sbr.rel (%p9246) target = $region52
        $region51: #{resnet_feature_extractor_head.1} parent=47 // pred_region
          %s9249 = sand.u32 %s138, 1
          %s9250 = scalar_lea.sflag [#allocation3], %s9249
          %s9251 = sand.u32 %s138, 1
          %s9252 = smul.addr %s9251, 3072
          %s9253 = scalar_lea.vmem [#allocation2], %s9252
          %9254 = dma.done %s9250, 49152
        $region52: #{resnet_feature_extractor_head.1} parent=47 // pred_fallthru
          _
      $region48: #{resnet_feature_extractor_head.1} parent=5 // pred_fallthru
        _
    $region6: #{resnet_feature_extractor_head.1} parent=1 // loop_footer
      %s18 = sadd.s32 1, %s14
    $region7: #{resnet_feature_extractor_head.1} parent=1 // loop_footer_branch
      %13 = sbr.rel target = $region3
    $region8: #{resnet_feature_extractor_head.1} parent=1 // loop_exit
      _
    %9255 = vsyncpa [#allocation3], 1
    %s9256 = scalar_lea.sflag [#allocation3], 1
    %9257 = vsyncpa %s9256, 1

</llo_original>
